<compile_context>
chip_gen: v7x
topology: tpu7x:2x2x1
jax: 0.10.0
libtpu: 0.0.40
codegen_flags: <defaults>
</compile_context>

<pallas_src>
import functools

import jax
import jax.numpy as jnp
from jax.experimental import pallas as pl
from jax.experimental.pallas import tpu as pltpu


def _round_up(x, m):
    return (x + m - 1) // m * m


def _basic_block_kernel(x_ref, w1_ref, w2_ref, b1_ref, b2_ref, mask_ref,
                        o_ref, h_ref, *, hp, wp, pad_lo):
    """Fused conv1+BN1+ReLU -> conv2+BN2+residual+ReLU for one batch sample.

    x_ref   : (1, C, PF) bf16  zero-padded input, spatial axis flattened
                                (flat index q = d*Hp*Wp + h*Wp + w, padded to PF)
    w1_ref  : (27, C, C) bf16  conv1 weights per tap (BN1 scale folded in)
    w2_ref  : (27, C, C) bf16  conv2 weights per tap (BN2 scale folded in)
    b1_ref  : (C, 1)     f32   BN1 bias
    b2_ref  : (C, 1)     f32   BN2 bias
    mask_ref: (1, L)     f32   1.0 on interior voxels of the computed flat range
    o_ref   : (1, C, L)  f32   L = D*Hp*Wp; wrapper reshapes/slices to (D,H,W)
    h_ref   : (C, HF)    bf16  VMEM scratch: zero-padded conv1 activation
    """
    cout = o_ref.shape[1]
    L = o_ref.shape[2]
    off_c = hp * wp + wp + 1          # flat offset of the (1,1,1) center tap

    def conv_taps(w_ref, tap_slice, base):
        # 27 shifted-slice matmuls, fp32 accumulation on the MXU.
        acc = jnp.zeros((cout, L), jnp.float32)
        for kd in range(3):
            for kh in range(3):
                for kw in range(3):
                    t = (kd * 3 + kh) * 3 + kw
                    off = (kd - 1) * hp * wp + (kh - 1) * wp + (kw - 1)
                    acc = acc + jnp.dot(w_ref[t], tap_slice(base + off),
                                        preferred_element_type=jnp.float32)
        return acc

    # ---- conv1 (BN1 scale pre-folded) + BN1 bias + ReLU -------------------
    y1 = conv_taps(w1_ref, lambda s: x_ref[0, :, s:s + L], off_c)
    # Zero the halo / garbage columns so conv2 sees a correctly zero-padded input.
    h = jnp.maximum(y1 + b1_ref[...], 0.0) * mask_ref[...]

    # Stage the padded conv1 activation in VMEM only (never touches HBM).
    h_ref[...] = jnp.zeros_like(h_ref)
    h_ref[:, pad_lo:pad_lo + L] = h.astype(h_ref.dtype)

    # ---- conv2 (BN2 scale pre-folded) + BN2 bias + residual + ReLU --------
    y2 = conv_taps(w2_ref, lambda s: h_ref[:, s:s + L], pad_lo)
    res = x_ref[0, :, off_c:off_c + L].astype(jnp.float32)   # identity residual
    o_ref[0] = jnp.maximum(y2 + b2_ref[...] + res, 0.0).astype(o_ref.dtype)


def basic_block_forward(x_ncdhw, params, eps=1e-5):
    """BasicBlock.forward with stride=1, downsample=None (identity residual)."""
    n, cin, d, h, w = x_ncdhw.shape
    cout = params["w1"].shape[0]
    assert cin == cout, "identity residual requires inplanes == planes"

    dp, hp, wp = d + 2, h + 2, w + 2
    off_c = hp * wp + wp + 1                     # center-tap flat offset
    L = d * hp * wp                              # computed flat output range
    pf = _round_up(2 * off_c + L, 128)           # lane-aligned padded input length
    pad_lo = _round_up(off_c, 128)               # aligned store offset for conv1 act
    hf = _round_up(pad_lo + off_c + L, 128)      # conv1-activation scratch length

    # Zero-pad spatially, flatten the spatial axis, pad to PF lanes, cast bf16.
    xp = jnp.pad(x_ncdhw, ((0, 0), (0, 0), (1, 1), (1, 1), (1, 1)))
    x_flat = xp.reshape(n, cin, dp * hp * wp)
    x_flat = jnp.pad(x_flat, ((0, 0), (0, 0), (0, pf - dp * hp * wp)))
    x_flat = x_flat.astype(jnp.bfloat16)

    # BN inference affine with fresh running stats (mean=0, var=1); fold the
    # scale into the conv weights (exact) and stream only the bias.
    rm = jnp.zeros((cout,), jnp.float32)
    rv = jnp.ones((cout,), jnp.float32)

    def fold(w_oidhw, gamma, beta):
        scale = gamma / jnp.sqrt(rv + eps)
        bias = beta - rm * scale
        w_s = w_oidhw.astype(jnp.float32) * scale[:, None, None, None, None]
        # (Cout, Cin, 3,3,3) -> (27, Cout, Cin), tap order t = (kd*3 + kh)*3 + kw
        w_taps = jnp.transpose(w_s, (2, 3, 4, 0, 1)).reshape(27, cout, cin)
        return w_taps.astype(jnp.bfloat16), bias.reshape(cout, 1).astype(jnp.float32)

    w1_taps, b1 = fold(params["w1"], params["gamma1"], params["beta1"])
    w2_taps, b2 = fold(params["w2"], params["gamma2"], params["beta2"])

    # Interior-voxel mask over the computed flat range [off_c, off_c + L).
    m3 = jnp.zeros((dp, hp, wp), jnp.float32)
    m3 = m3.at[1:1 + d, 1:1 + h, 1:1 + w].set(1.0)
    mask = m3.reshape(-1)[off_c:off_c + L].reshape(1, L)

    kernel = functools.partial(_basic_block_kernel, hp=hp, wp=wp, pad_lo=pad_lo)
    out_flat = pl.pallas_call(
        kernel,
        out_shape=jax.ShapeDtypeStruct((n, cout, L), jnp.float32),
        grid_spec=pltpu.PrefetchScalarGridSpec(
            num_scalar_prefetch=0,
            grid=(n,),
            in_specs=[
                pl.BlockSpec((1, cin, pf), lambda i: (i, 0, 0)),      # padded input
                pl.BlockSpec((27, cout, cin), lambda i: (0, 0, 0)),   # w1 (grid-invariant)
                pl.BlockSpec((27, cout, cin), lambda i: (0, 0, 0)),   # w2 (grid-invariant)
                pl.BlockSpec((cout, 1), lambda i: (0, 0)),            # BN1 bias
                pl.BlockSpec((cout, 1), lambda i: (0, 0)),            # BN2 bias
                pl.BlockSpec((1, L), lambda i: (0, 0)),               # interior mask
            ],
            out_specs=pl.BlockSpec((1, cout, L), lambda i: (i, 0, 0)),
            scratch_shapes=[pltpu.VMEM((cout, hf), jnp.bfloat16)],    # conv1 act (VMEM only)
        ),
        compiler_params=pltpu.CompilerParams(
            dimension_semantics=("parallel",)),
    )(x_flat, w1_taps, w2_taps, b1, b2, mask)

    # (N, C, D*Hp*Wp) -> (N, C, D, Hp, Wp) -> drop the halo rows/cols.
    return out_flat.reshape(n, cout, d, hp, wp)[:, :, :, :h, :w]


def _reference_block(x, p, eps=1e-5):
    """Plain-JAX fp32 reference (independent path through lax.conv)."""
    def conv(inp, w):
        return jax.lax.conv_general_dilated(
            inp, w, window_strides=(1, 1, 1),
            padding=((1, 1), (1, 1), (1, 1)),
            dimension_numbers=("NCDHW", "OIDHW", "NCDHW"))

    def bn(o, gamma, beta):
        scale = gamma / jnp.sqrt(1.0 + eps)
        return o * scale[None, :, None, None, None] + beta[None, :, None, None, None]

    out = jax.nn.relu(bn(conv(x, p["w1"]), p["gamma1"], p["beta1"]))
    out = bn(conv(out, p["w2"]), p["gamma2"], p["beta2"]) + x
    return jax.nn.relu(out)


if __name__ == "__main__":
    key = jax.random.PRNGKey(0)
    k_x, k_w1, k_w2, k_g1, k_b1, k_g2, k_b2 = jax.random.split(key, 7)

    # Small shapes: batch=2, inplanes=planes=8, spatial D=4, H=W=8.
    N, C, D, H, W = 2, 8, 4, 8, 8
    planes = C  # identity residual requires inplanes == planes
    fan_in = C * 27

    x = jax.random.normal(k_x, (N, C, D, H, W), jnp.float32)
    params = {
        "w1": jax.random.normal(k_w1, (planes, C, 3, 3, 3), jnp.float32)
              / jnp.sqrt(fan_in),
        "w2": jax.random.normal(k_w2, (planes, planes, 3, 3, 3), jnp.float32)
              / jnp.sqrt(planes * 27),
        "gamma1": 1.0 + 0.1 * jax.random.normal(k_g1, (planes,), jnp.float32),
        "beta1": 0.1 * jax.random.normal(k_b1, (planes,), jnp.float32),
        "gamma2": 1.0 + 0.1 * jax.random.normal(k_g2, (planes,), jnp.float32),
        "beta2": 0.1 * jax.random.normal(k_b2, (planes,), jnp.float32),
    }

    out = jax.block_until_ready(jax.jit(basic_block_forward)(x, params))
    assert out.shape == (N, planes, D, H, W), out.shape

    ref = jax.block_until_ready(_reference_block(x, params))
    max_err = float(jnp.max(jnp.abs(out - ref)))
    # bf16 MXU operands with fp32 accumulation vs. fp32 reference.
    assert max_err < 1e-1, f"max abs error {max_err}"

    print("KERNEL_OK")
</pallas_src>

<mosaic_0001>
module attributes {stable_mosaic.version = 11 : i64} {
  func.func @_basic_block_kernel(%arg0: i32, %arg1: memref<1x8x640xbf16, #tpu.memory_space<vmem>>, %arg2: memref<27x8x8xbf16, #tpu.memory_space<vmem>>, %arg3: memref<27x8x8xbf16, #tpu.memory_space<vmem>>, %arg4: memref<8x1xf32, #tpu.memory_space<vmem>>, %arg5: memref<8x1xf32, #tpu.memory_space<vmem>>, %arg6: memref<1x400xf32, #tpu.memory_space<vmem>>, %arg7: memref<1x8x400xf32, #tpu.memory_space<vmem>>, %arg8: memref<8x640xbf16, #tpu.memory_space<vmem>>) attributes {dimension_semantics = [#tpu.dimension_semantics<parallel>], iteration_bounds = array<i64: 2>, scalar_prefetch = 0 : i64, scratch_operands = 1 : i64, tpu.core_type = #tpu.core_type<tc>, window_params = [{transform_indices = @transform_0, window_bounds = array<i64: 1, 8, 640>}, {pipeline_mode = #tpu.pipeline_mode<synchronous>, transform_indices = @transform_1, window_bounds = array<i64: 27, 8, 8>}, {pipeline_mode = #tpu.pipeline_mode<synchronous>, transform_indices = @transform_2, window_bounds = array<i64: 27, 8, 8>}, {pipeline_mode = #tpu.pipeline_mode<synchronous>, transform_indices = @transform_3, window_bounds = array<i64: 8, 1>}, {pipeline_mode = #tpu.pipeline_mode<synchronous>, transform_indices = @transform_4, window_bounds = array<i64: 8, 1>}, {pipeline_mode = #tpu.pipeline_mode<synchronous>, transform_indices = @transform_5, window_bounds = array<i64: 1, 400>}, {transform_indices = @transform_6, window_bounds = array<i64: 1, 8, 400>}]} {
    %cst = arith.constant 0.000000e+00 : f32
    %0 = vector.broadcast %cst : f32 to vector<8x400xf32>
    %c0 = arith.constant 0 : index
    %c0_0 = arith.constant 0 : index
    %c0_1 = arith.constant 0 : index
    %1 = vector.load %arg2[%c0, %c0_0, %c0_1] : memref<27x8x8xbf16, #tpu.memory_space<vmem>>, vector<1x8x8xbf16>
    %2 = vector.shape_cast %1 : vector<1x8x8xbf16> to vector<8x8xbf16>
    %c0_2 = arith.constant 0 : index
    %c0_3 = arith.constant 0 : index
    %c0_4 = arith.constant 0 : index
    %3 = vector.load %arg1[%c0_2, %c0_3, %c0_4] : memref<1x8x640xbf16, #tpu.memory_space<vmem>>, vector<1x8x400xbf16>
    %4 = vector.shape_cast %3 : vector<1x8x400xbf16> to vector<8x400xbf16>
    %cst_5 = arith.constant dense<0.000000e+00> : vector<8x400xf32>
    %5 = tpu.matmul %2, %4, %cst_5 {dimension_numbers = #tpu.dot_dimension_numbers<[1], [0], [0], [1], [0, 0, 1, 1], [], []>} : vector<8x8xbf16>, vector<8x400xbf16>, vector<8x400xf32> -> vector<8x400xf32>
    %6 = arith.addf %0, %5 : vector<8x400xf32>
    %c1 = arith.constant 1 : index
    %c0_6 = arith.constant 0 : index
    %c0_7 = arith.constant 0 : index
    %7 = vector.load %arg2[%c1, %c0_6, %c0_7] : memref<27x8x8xbf16, #tpu.memory_space<vmem>>, vector<1x8x8xbf16>
    %8 = vector.shape_cast %7 : vector<1x8x8xbf16> to vector<8x8xbf16>
    %c0_8 = arith.constant 0 : index
    %c0_9 = arith.constant 0 : index
    %c1_10 = arith.constant 1 : index
    %9 = vector.load %arg1[%c0_8, %c0_9, %c1_10] : memref<1x8x640xbf16, #tpu.memory_space<vmem>>, vector<1x8x400xbf16>
    %10 = vector.shape_cast %9 : vector<1x8x400xbf16> to vector<8x400xbf16>
    %cst_11 = arith.constant dense<0.000000e+00> : vector<8x400xf32>
    %11 = tpu.matmul %8, %10, %cst_11 {dimension_numbers = #tpu.dot_dimension_numbers<[1], [0], [0], [1], [0, 0, 1, 1], [], []>} : vector<8x8xbf16>, vector<8x400xbf16>, vector<8x400xf32> -> vector<8x400xf32>
    %12 = arith.addf %6, %11 : vector<8x400xf32>
    %c2 = arith.constant 2 : index
    %c0_12 = arith.constant 0 : index
    %c0_13 = arith.constant 0 : index
    %13 = vector.load %arg2[%c2, %c0_12, %c0_13] : memref<27x8x8xbf16, #tpu.memory_space<vmem>>, vector<1x8x8xbf16>
    %14 = vector.shape_cast %13 : vector<1x8x8xbf16> to vector<8x8xbf16>
    %c0_14 = arith.constant 0 : index
    %c0_15 = arith.constant 0 : index
    %c2_16 = arith.constant 2 : index
    %15 = vector.load %arg1[%c0_14, %c0_15, %c2_16] : memref<1x8x640xbf16, #tpu.memory_space<vmem>>, vector<1x8x400xbf16>
    %16 = vector.shape_cast %15 : vector<1x8x400xbf16> to vector<8x400xbf16>
    %cst_17 = arith.constant dense<0.000000e+00> : vector<8x400xf32>
    %17 = tpu.matmul %14, %16, %cst_17 {dimension_numbers = #tpu.dot_dimension_numbers<[1], [0], [0], [1], [0, 0, 1, 1], [], []>} : vector<8x8xbf16>, vector<8x400xbf16>, vector<8x400xf32> -> vector<8x400xf32>
    %18 = arith.addf %12, %17 : vector<8x400xf32>
    %c3 = arith.constant 3 : index
    %c0_18 = arith.constant 0 : index
    %c0_19 = arith.constant 0 : index
    %19 = vector.load %arg2[%c3, %c0_18, %c0_19] : memref<27x8x8xbf16, #tpu.memory_space<vmem>>, vector<1x8x8xbf16>
    %20 = vector.shape_cast %19 : vector<1x8x8xbf16> to vector<8x8xbf16>
    %c0_20 = arith.constant 0 : index
    %c0_21 = arith.constant 0 : index
    %c10 = arith.constant 10 : index
    %21 = vector.load %arg1[%c0_20, %c0_21, %c10] : memref<1x8x640xbf16, #tpu.memory_space<vmem>>, vector<1x8x400xbf16>
    %22 = vector.shape_cast %21 : vector<1x8x400xbf16> to vector<8x400xbf16>
    %cst_22 = arith.constant dense<0.000000e+00> : vector<8x400xf32>
    %23 = tpu.matmul %20, %22, %cst_22 {dimension_numbers = #tpu.dot_dimension_numbers<[1], [0], [0], [1], [0, 0, 1, 1], [], []>} : vector<8x8xbf16>, vector<8x400xbf16>, vector<8x400xf32> -> vector<8x400xf32>
    %24 = arith.addf %18, %23 : vector<8x400xf32>
    %c4 = arith.constant 4 : index
    %c0_23 = arith.constant 0 : index
    %c0_24 = arith.constant 0 : index
    %25 = vector.load %arg2[%c4, %c0_23, %c0_24] : memref<27x8x8xbf16, #tpu.memory_space<vmem>>, vector<1x8x8xbf16>
    %26 = vector.shape_cast %25 : vector<1x8x8xbf16> to vector<8x8xbf16>
    %c0_25 = arith.constant 0 : index
    %c0_26 = arith.constant 0 : index
    %c11 = arith.constant 11 : index
    %27 = vector.load %arg1[%c0_25, %c0_26, %c11] : memref<1x8x640xbf16, #tpu.memory_space<vmem>>, vector<1x8x400xbf16>
    %28 = vector.shape_cast %27 : vector<1x8x400xbf16> to vector<8x400xbf16>
    %cst_27 = arith.constant dense<0.000000e+00> : vector<8x400xf32>
    %29 = tpu.matmul %26, %28, %cst_27 {dimension_numbers = #tpu.dot_dimension_numbers<[1], [0], [0], [1], [0, 0, 1, 1], [], []>} : vector<8x8xbf16>, vector<8x400xbf16>, vector<8x400xf32> -> vector<8x400xf32>
    %30 = arith.addf %24, %29 : vector<8x400xf32>
    %c5 = arith.constant 5 : index
    %c0_28 = arith.constant 0 : index
    %c0_29 = arith.constant 0 : index
    %31 = vector.load %arg2[%c5, %c0_28, %c0_29] : memref<27x8x8xbf16, #tpu.memory_space<vmem>>, vector<1x8x8xbf16>
    %32 = vector.shape_cast %31 : vector<1x8x8xbf16> to vector<8x8xbf16>
    %c0_30 = arith.constant 0 : index
    %c0_31 = arith.constant 0 : index
    %c12 = arith.constant 12 : index
    %33 = vector.load %arg1[%c0_30, %c0_31, %c12] : memref<1x8x640xbf16, #tpu.memory_space<vmem>>, vector<1x8x400xbf16>
    %34 = vector.shape_cast %33 : vector<1x8x400xbf16> to vector<8x400xbf16>
    %cst_32 = arith.constant dense<0.000000e+00> : vector<8x400xf32>
    %35 = tpu.matmul %32, %34, %cst_32 {dimension_numbers = #tpu.dot_dimension_numbers<[1], [0], [0], [1], [0, 0, 1, 1], [], []>} : vector<8x8xbf16>, vector<8x400xbf16>, vector<8x400xf32> -> vector<8x400xf32>
    %36 = arith.addf %30, %35 : vector<8x400xf32>
    %c6 = arith.constant 6 : index
    %c0_33 = arith.constant 0 : index
    %c0_34 = arith.constant 0 : index
    %37 = vector.load %arg2[%c6, %c0_33, %c0_34] : memref<27x8x8xbf16, #tpu.memory_space<vmem>>, vector<1x8x8xbf16>
    %38 = vector.shape_cast %37 : vector<1x8x8xbf16> to vector<8x8xbf16>
    %c0_35 = arith.constant 0 : index
    %c0_36 = arith.constant 0 : index
    %c20 = arith.constant 20 : index
    %39 = vector.load %arg1[%c0_35, %c0_36, %c20] : memref<1x8x640xbf16, #tpu.memory_space<vmem>>, vector<1x8x400xbf16>
    %40 = vector.shape_cast %39 : vector<1x8x400xbf16> to vector<8x400xbf16>
    %cst_37 = arith.constant dense<0.000000e+00> : vector<8x400xf32>
    %41 = tpu.matmul %38, %40, %cst_37 {dimension_numbers = #tpu.dot_dimension_numbers<[1], [0], [0], [1], [0, 0, 1, 1], [], []>} : vector<8x8xbf16>, vector<8x400xbf16>, vector<8x400xf32> -> vector<8x400xf32>
    %42 = arith.addf %36, %41 : vector<8x400xf32>
    %c7 = arith.constant 7 : index
    %c0_38 = arith.constant 0 : index
    %c0_39 = arith.constant 0 : index
    %43 = vector.load %arg2[%c7, %c0_38, %c0_39] : memref<27x8x8xbf16, #tpu.memory_space<vmem>>, vector<1x8x8xbf16>
    %44 = vector.shape_cast %43 : vector<1x8x8xbf16> to vector<8x8xbf16>
    %c0_40 = arith.constant 0 : index
    %c0_41 = arith.constant 0 : index
    %c21 = arith.constant 21 : index
    %45 = vector.load %arg1[%c0_40, %c0_41, %c21] : memref<1x8x640xbf16, #tpu.memory_space<vmem>>, vector<1x8x400xbf16>
    %46 = vector.shape_cast %45 : vector<1x8x400xbf16> to vector<8x400xbf16>
    %cst_42 = arith.constant dense<0.000000e+00> : vector<8x400xf32>
    %47 = tpu.matmul %44, %46, %cst_42 {dimension_numbers = #tpu.dot_dimension_numbers<[1], [0], [0], [1], [0, 0, 1, 1], [], []>} : vector<8x8xbf16>, vector<8x400xbf16>, vector<8x400xf32> -> vector<8x400xf32>
    %48 = arith.addf %42, %47 : vector<8x400xf32>
    %c8 = arith.constant 8 : index
    %c0_43 = arith.constant 0 : index
    %c0_44 = arith.constant 0 : index
    %49 = vector.load %arg2[%c8, %c0_43, %c0_44] : memref<27x8x8xbf16, #tpu.memory_space<vmem>>, vector<1x8x8xbf16>
    %50 = vector.shape_cast %49 : vector<1x8x8xbf16> to vector<8x8xbf16>
    %c0_45 = arith.constant 0 : index
    %c0_46 = arith.constant 0 : index
    %c22 = arith.constant 22 : index
    %51 = vector.load %arg1[%c0_45, %c0_46, %c22] : memref<1x8x640xbf16, #tpu.memory_space<vmem>>, vector<1x8x400xbf16>
    %52 = vector.shape_cast %51 : vector<1x8x400xbf16> to vector<8x400xbf16>
    %cst_47 = arith.constant dense<0.000000e+00> : vector<8x400xf32>
    %53 = tpu.matmul %50, %52, %cst_47 {dimension_numbers = #tpu.dot_dimension_numbers<[1], [0], [0], [1], [0, 0, 1, 1], [], []>} : vector<8x8xbf16>, vector<8x400xbf16>, vector<8x400xf32> -> vector<8x400xf32>
    %54 = arith.addf %48, %53 : vector<8x400xf32>
    %c9 = arith.constant 9 : index
    %c0_48 = arith.constant 0 : index
    %c0_49 = arith.constant 0 : index
    %55 = vector.load %arg2[%c9, %c0_48, %c0_49] : memref<27x8x8xbf16, #tpu.memory_space<vmem>>, vector<1x8x8xbf16>
    %56 = vector.shape_cast %55 : vector<1x8x8xbf16> to vector<8x8xbf16>
    %c0_50 = arith.constant 0 : index
    %c0_51 = arith.constant 0 : index
    %c100 = arith.constant 100 : index
    %57 = vector.load %arg1[%c0_50, %c0_51, %c100] : memref<1x8x640xbf16, #tpu.memory_space<vmem>>, vector<1x8x400xbf16>
    %58 = vector.shape_cast %57 : vector<1x8x400xbf16> to vector<8x400xbf16>
    %cst_52 = arith.constant dense<0.000000e+00> : vector<8x400xf32>
    %59 = tpu.matmul %56, %58, %cst_52 {dimension_numbers = #tpu.dot_dimension_numbers<[1], [0], [0], [1], [0, 0, 1, 1], [], []>} : vector<8x8xbf16>, vector<8x400xbf16>, vector<8x400xf32> -> vector<8x400xf32>
    %60 = arith.addf %54, %59 : vector<8x400xf32>
    %c10_53 = arith.constant 10 : index
    %c0_54 = arith.constant 0 : index
    %c0_55 = arith.constant 0 : index
    %61 = vector.load %arg2[%c10_53, %c0_54, %c0_55] : memref<27x8x8xbf16, #tpu.memory_space<vmem>>, vector<1x8x8xbf16>
    %62 = vector.shape_cast %61 : vector<1x8x8xbf16> to vector<8x8xbf16>
    %c0_56 = arith.constant 0 : index
    %c0_57 = arith.constant 0 : index
    %c101 = arith.constant 101 : index
    %63 = vector.load %arg1[%c0_56, %c0_57, %c101] : memref<1x8x640xbf16, #tpu.memory_space<vmem>>, vector<1x8x400xbf16>
    %64 = vector.shape_cast %63 : vector<1x8x400xbf16> to vector<8x400xbf16>
    %cst_58 = arith.constant dense<0.000000e+00> : vector<8x400xf32>
    %65 = tpu.matmul %62, %64, %cst_58 {dimension_numbers = #tpu.dot_dimension_numbers<[1], [0], [0], [1], [0, 0, 1, 1], [], []>} : vector<8x8xbf16>, vector<8x400xbf16>, vector<8x400xf32> -> vector<8x400xf32>
    %66 = arith.addf %60, %65 : vector<8x400xf32>
    %c11_59 = arith.constant 11 : index
    %c0_60 = arith.constant 0 : index
    %c0_61 = arith.constant 0 : index
    %67 = vector.load %arg2[%c11_59, %c0_60, %c0_61] : memref<27x8x8xbf16, #tpu.memory_space<vmem>>, vector<1x8x8xbf16>
    %68 = vector.shape_cast %67 : vector<1x8x8xbf16> to vector<8x8xbf16>
    %c0_62 = arith.constant 0 : index
    %c0_63 = arith.constant 0 : index
    %c102 = arith.constant 102 : index
    %69 = vector.load %arg1[%c0_62, %c0_63, %c102] : memref<1x8x640xbf16, #tpu.memory_space<vmem>>, vector<1x8x400xbf16>
    %70 = vector.shape_cast %69 : vector<1x8x400xbf16> to vector<8x400xbf16>
    %cst_64 = arith.constant dense<0.000000e+00> : vector<8x400xf32>
    %71 = tpu.matmul %68, %70, %cst_64 {dimension_numbers = #tpu.dot_dimension_numbers<[1], [0], [0], [1], [0, 0, 1, 1], [], []>} : vector<8x8xbf16>, vector<8x400xbf16>, vector<8x400xf32> -> vector<8x400xf32>
    %72 = arith.addf %66, %71 : vector<8x400xf32>
    %c12_65 = arith.constant 12 : index
    %c0_66 = arith.constant 0 : index
    %c0_67 = arith.constant 0 : index
    %73 = vector.load %arg2[%c12_65, %c0_66, %c0_67] : memref<27x8x8xbf16, #tpu.memory_space<vmem>>, vector<1x8x8xbf16>
    %74 = vector.shape_cast %73 : vector<1x8x8xbf16> to vector<8x8xbf16>
    %c0_68 = arith.constant 0 : index
    %c0_69 = arith.constant 0 : index
    %c110 = arith.constant 110 : index
    %75 = vector.load %arg1[%c0_68, %c0_69, %c110] : memref<1x8x640xbf16, #tpu.memory_space<vmem>>, vector<1x8x400xbf16>
    %76 = vector.shape_cast %75 : vector<1x8x400xbf16> to vector<8x400xbf16>
    %cst_70 = arith.constant dense<0.000000e+00> : vector<8x400xf32>
    %77 = tpu.matmul %74, %76, %cst_70 {dimension_numbers = #tpu.dot_dimension_numbers<[1], [0], [0], [1], [0, 0, 1, 1], [], []>} : vector<8x8xbf16>, vector<8x400xbf16>, vector<8x400xf32> -> vector<8x400xf32>
    %78 = arith.addf %72, %77 : vector<8x400xf32>
    %c13 = arith.constant 13 : index
    %c0_71 = arith.constant 0 : index
    %c0_72 = arith.constant 0 : index
    %79 = vector.load %arg2[%c13, %c0_71, %c0_72] : memref<27x8x8xbf16, #tpu.memory_space<vmem>>, vector<1x8x8xbf16>
    %80 = vector.shape_cast %79 : vector<1x8x8xbf16> to vector<8x8xbf16>
    %c0_73 = arith.constant 0 : index
    %c0_74 = arith.constant 0 : index
    %c111 = arith.constant 111 : index
    %81 = vector.load %arg1[%c0_73, %c0_74, %c111] : memref<1x8x640xbf16, #tpu.memory_space<vmem>>, vector<1x8x400xbf16>
    %82 = vector.shape_cast %81 : vector<1x8x400xbf16> to vector<8x400xbf16>
    %cst_75 = arith.constant dense<0.000000e+00> : vector<8x400xf32>
    %83 = tpu.matmul %80, %82, %cst_75 {dimension_numbers = #tpu.dot_dimension_numbers<[1], [0], [0], [1], [0, 0, 1, 1], [], []>} : vector<8x8xbf16>, vector<8x400xbf16>, vector<8x400xf32> -> vector<8x400xf32>
    %84 = arith.addf %78, %83 : vector<8x400xf32>
    %c14 = arith.constant 14 : index
    %c0_76 = arith.constant 0 : index
    %c0_77 = arith.constant 0 : index
    %85 = vector.load %arg2[%c14, %c0_76, %c0_77] : memref<27x8x8xbf16, #tpu.memory_space<vmem>>, vector<1x8x8xbf16>
    %86 = vector.shape_cast %85 : vector<1x8x8xbf16> to vector<8x8xbf16>
    %c0_78 = arith.constant 0 : index
    %c0_79 = arith.constant 0 : index
    %c112 = arith.constant 112 : index
    %87 = vector.load %arg1[%c0_78, %c0_79, %c112] : memref<1x8x640xbf16, #tpu.memory_space<vmem>>, vector<1x8x400xbf16>
    %88 = vector.shape_cast %87 : vector<1x8x400xbf16> to vector<8x400xbf16>
    %cst_80 = arith.constant dense<0.000000e+00> : vector<8x400xf32>
    %89 = tpu.matmul %86, %88, %cst_80 {dimension_numbers = #tpu.dot_dimension_numbers<[1], [0], [0], [1], [0, 0, 1, 1], [], []>} : vector<8x8xbf16>, vector<8x400xbf16>, vector<8x400xf32> -> vector<8x400xf32>
    %90 = arith.addf %84, %89 : vector<8x400xf32>
    %c15 = arith.constant 15 : index
    %c0_81 = arith.constant 0 : index
    %c0_82 = arith.constant 0 : index
    %91 = vector.load %arg2[%c15, %c0_81, %c0_82] : memref<27x8x8xbf16, #tpu.memory_space<vmem>>, vector<1x8x8xbf16>
    %92 = vector.shape_cast %91 : vector<1x8x8xbf16> to vector<8x8xbf16>
    %c0_83 = arith.constant 0 : index
    %c0_84 = arith.constant 0 : index
    %c120 = arith.constant 120 : index
    %93 = vector.load %arg1[%c0_83, %c0_84, %c120] : memref<1x8x640xbf16, #tpu.memory_space<vmem>>, vector<1x8x400xbf16>
    %94 = vector.shape_cast %93 : vector<1x8x400xbf16> to vector<8x400xbf16>
    %cst_85 = arith.constant dense<0.000000e+00> : vector<8x400xf32>
    %95 = tpu.matmul %92, %94, %cst_85 {dimension_numbers = #tpu.dot_dimension_numbers<[1], [0], [0], [1], [0, 0, 1, 1], [], []>} : vector<8x8xbf16>, vector<8x400xbf16>, vector<8x400xf32> -> vector<8x400xf32>
    %96 = arith.addf %90, %95 : vector<8x400xf32>
    %c16 = arith.constant 16 : index
    %c0_86 = arith.constant 0 : index
    %c0_87 = arith.constant 0 : index
    %97 = vector.load %arg2[%c16, %c0_86, %c0_87] : memref<27x8x8xbf16, #tpu.memory_space<vmem>>, vector<1x8x8xbf16>
    %98 = vector.shape_cast %97 : vector<1x8x8xbf16> to vector<8x8xbf16>
    %c0_88 = arith.constant 0 : index
    %c0_89 = arith.constant 0 : index
    %c121 = arith.constant 121 : index
    %99 = vector.load %arg1[%c0_88, %c0_89, %c121] : memref<1x8x640xbf16, #tpu.memory_space<vmem>>, vector<1x8x400xbf16>
    %100 = vector.shape_cast %99 : vector<1x8x400xbf16> to vector<8x400xbf16>
    %cst_90 = arith.constant dense<0.000000e+00> : vector<8x400xf32>
    %101 = tpu.matmul %98, %100, %cst_90 {dimension_numbers = #tpu.dot_dimension_numbers<[1], [0], [0], [1], [0, 0, 1, 1], [], []>} : vector<8x8xbf16>, vector<8x400xbf16>, vector<8x400xf32> -> vector<8x400xf32>
    %102 = arith.addf %96, %101 : vector<8x400xf32>
    %c17 = arith.constant 17 : index
    %c0_91 = arith.constant 0 : index
    %c0_92 = arith.constant 0 : index
    %103 = vector.load %arg2[%c17, %c0_91, %c0_92] : memref<27x8x8xbf16, #tpu.memory_space<vmem>>, vector<1x8x8xbf16>
    %104 = vector.shape_cast %103 : vector<1x8x8xbf16> to vector<8x8xbf16>
    %c0_93 = arith.constant 0 : index
    %c0_94 = arith.constant 0 : index
    %c122 = arith.constant 122 : index
    %105 = vector.load %arg1[%c0_93, %c0_94, %c122] : memref<1x8x640xbf16, #tpu.memory_space<vmem>>, vector<1x8x400xbf16>
    %106 = vector.shape_cast %105 : vector<1x8x400xbf16> to vector<8x400xbf16>
    %cst_95 = arith.constant dense<0.000000e+00> : vector<8x400xf32>
    %107 = tpu.matmul %104, %106, %cst_95 {dimension_numbers = #tpu.dot_dimension_numbers<[1], [0], [0], [1], [0, 0, 1, 1], [], []>} : vector<8x8xbf16>, vector<8x400xbf16>, vector<8x400xf32> -> vector<8x400xf32>
    %108 = arith.addf %102, %107 : vector<8x400xf32>
    %c18 = arith.constant 18 : index
    %c0_96 = arith.constant 0 : index
    %c0_97 = arith.constant 0 : index
    %109 = vector.load %arg2[%c18, %c0_96, %c0_97] : memref<27x8x8xbf16, #tpu.memory_space<vmem>>, vector<1x8x8xbf16>
    %110 = vector.shape_cast %109 : vector<1x8x8xbf16> to vector<8x8xbf16>
    %c0_98 = arith.constant 0 : index
    %c0_99 = arith.constant 0 : index
    %c200 = arith.constant 200 : index
    %111 = vector.load %arg1[%c0_98, %c0_99, %c200] : memref<1x8x640xbf16, #tpu.memory_space<vmem>>, vector<1x8x400xbf16>
    %112 = vector.shape_cast %111 : vector<1x8x400xbf16> to vector<8x400xbf16>
    %cst_100 = arith.constant dense<0.000000e+00> : vector<8x400xf32>
    %113 = tpu.matmul %110, %112, %cst_100 {dimension_numbers = #tpu.dot_dimension_numbers<[1], [0], [0], [1], [0, 0, 1, 1], [], []>} : vector<8x8xbf16>, vector<8x400xbf16>, vector<8x400xf32> -> vector<8x400xf32>
    %114 = arith.addf %108, %113 : vector<8x400xf32>
    %c19 = arith.constant 19 : index
    %c0_101 = arith.constant 0 : index
    %c0_102 = arith.constant 0 : index
    %115 = vector.load %arg2[%c19, %c0_101, %c0_102] : memref<27x8x8xbf16, #tpu.memory_space<vmem>>, vector<1x8x8xbf16>
    %116 = vector.shape_cast %115 : vector<1x8x8xbf16> to vector<8x8xbf16>
    %c0_103 = arith.constant 0 : index
    %c0_104 = arith.constant 0 : index
    %c201 = arith.constant 201 : index
    %117 = vector.load %arg1[%c0_103, %c0_104, %c201] : memref<1x8x640xbf16, #tpu.memory_space<vmem>>, vector<1x8x400xbf16>
    %118 = vector.shape_cast %117 : vector<1x8x400xbf16> to vector<8x400xbf16>
    %cst_105 = arith.constant dense<0.000000e+00> : vector<8x400xf32>
    %119 = tpu.matmul %116, %118, %cst_105 {dimension_numbers = #tpu.dot_dimension_numbers<[1], [0], [0], [1], [0, 0, 1, 1], [], []>} : vector<8x8xbf16>, vector<8x400xbf16>, vector<8x400xf32> -> vector<8x400xf32>
    %120 = arith.addf %114, %119 : vector<8x400xf32>
    %c20_106 = arith.constant 20 : index
    %c0_107 = arith.constant 0 : index
    %c0_108 = arith.constant 0 : index
    %121 = vector.load %arg2[%c20_106, %c0_107, %c0_108] : memref<27x8x8xbf16, #tpu.memory_space<vmem>>, vector<1x8x8xbf16>
    %122 = vector.shape_cast %121 : vector<1x8x8xbf16> to vector<8x8xbf16>
    %c0_109 = arith.constant 0 : index
    %c0_110 = arith.constant 0 : index
    %c202 = arith.constant 202 : index
    %123 = vector.load %arg1[%c0_109, %c0_110, %c202] : memref<1x8x640xbf16, #tpu.memory_space<vmem>>, vector<1x8x400xbf16>
    %124 = vector.shape_cast %123 : vector<1x8x400xbf16> to vector<8x400xbf16>
    %cst_111 = arith.constant dense<0.000000e+00> : vector<8x400xf32>
    %125 = tpu.matmul %122, %124, %cst_111 {dimension_numbers = #tpu.dot_dimension_numbers<[1], [0], [0], [1], [0, 0, 1, 1], [], []>} : vector<8x8xbf16>, vector<8x400xbf16>, vector<8x400xf32> -> vector<8x400xf32>
    %126 = arith.addf %120, %125 : vector<8x400xf32>
    %c21_112 = arith.constant 21 : index
    %c0_113 = arith.constant 0 : index
    %c0_114 = arith.constant 0 : index
    %127 = vector.load %arg2[%c21_112, %c0_113, %c0_114] : memref<27x8x8xbf16, #tpu.memory_space<vmem>>, vector<1x8x8xbf16>
    %128 = vector.shape_cast %127 : vector<1x8x8xbf16> to vector<8x8xbf16>
    %c0_115 = arith.constant 0 : index
    %c0_116 = arith.constant 0 : index
    %c210 = arith.constant 210 : index
    %129 = vector.load %arg1[%c0_115, %c0_116, %c210] : memref<1x8x640xbf16, #tpu.memory_space<vmem>>, vector<1x8x400xbf16>
    %130 = vector.shape_cast %129 : vector<1x8x400xbf16> to vector<8x400xbf16>
    %cst_117 = arith.constant dense<0.000000e+00> : vector<8x400xf32>
    %131 = tpu.matmul %128, %130, %cst_117 {dimension_numbers = #tpu.dot_dimension_numbers<[1], [0], [0], [1], [0, 0, 1, 1], [], []>} : vector<8x8xbf16>, vector<8x400xbf16>, vector<8x400xf32> -> vector<8x400xf32>
    %132 = arith.addf %126, %131 : vector<8x400xf32>
    %c22_118 = arith.constant 22 : index
    %c0_119 = arith.constant 0 : index
    %c0_120 = arith.constant 0 : index
    %133 = vector.load %arg2[%c22_118, %c0_119, %c0_120] : memref<27x8x8xbf16, #tpu.memory_space<vmem>>, vector<1x8x8xbf16>
    %134 = vector.shape_cast %133 : vector<1x8x8xbf16> to vector<8x8xbf16>
    %c0_121 = arith.constant 0 : index
    %c0_122 = arith.constant 0 : index
    %c211 = arith.constant 211 : index
    %135 = vector.load %arg1[%c0_121, %c0_122, %c211] : memref<1x8x640xbf16, #tpu.memory_space<vmem>>, vector<1x8x400xbf16>
    %136 = vector.shape_cast %135 : vector<1x8x400xbf16> to vector<8x400xbf16>
    %cst_123 = arith.constant dense<0.000000e+00> : vector<8x400xf32>
    %137 = tpu.matmul %134, %136, %cst_123 {dimension_numbers = #tpu.dot_dimension_numbers<[1], [0], [0], [1], [0, 0, 1, 1], [], []>} : vector<8x8xbf16>, vector<8x400xbf16>, vector<8x400xf32> -> vector<8x400xf32>
    %138 = arith.addf %132, %137 : vector<8x400xf32>
    %c23 = arith.constant 23 : index
    %c0_124 = arith.constant 0 : index
    %c0_125 = arith.constant 0 : index
    %139 = vector.load %arg2[%c23, %c0_124, %c0_125] : memref<27x8x8xbf16, #tpu.memory_space<vmem>>, vector<1x8x8xbf16>
    %140 = vector.shape_cast %139 : vector<1x8x8xbf16> to vector<8x8xbf16>
    %c0_126 = arith.constant 0 : index
    %c0_127 = arith.constant 0 : index
    %c212 = arith.constant 212 : index
    %141 = vector.load %arg1[%c0_126, %c0_127, %c212] : memref<1x8x640xbf16, #tpu.memory_space<vmem>>, vector<1x8x400xbf16>
    %142 = vector.shape_cast %141 : vector<1x8x400xbf16> to vector<8x400xbf16>
    %cst_128 = arith.constant dense<0.000000e+00> : vector<8x400xf32>
    %143 = tpu.matmul %140, %142, %cst_128 {dimension_numbers = #tpu.dot_dimension_numbers<[1], [0], [0], [1], [0, 0, 1, 1], [], []>} : vector<8x8xbf16>, vector<8x400xbf16>, vector<8x400xf32> -> vector<8x400xf32>
    %144 = arith.addf %138, %143 : vector<8x400xf32>
    %c24 = arith.constant 24 : index
    %c0_129 = arith.constant 0 : index
    %c0_130 = arith.constant 0 : index
    %145 = vector.load %arg2[%c24, %c0_129, %c0_130] : memref<27x8x8xbf16, #tpu.memory_space<vmem>>, vector<1x8x8xbf16>
    %146 = vector.shape_cast %145 : vector<1x8x8xbf16> to vector<8x8xbf16>
    %c0_131 = arith.constant 0 : index
    %c0_132 = arith.constant 0 : index
    %c220 = arith.constant 220 : index
    %147 = vector.load %arg1[%c0_131, %c0_132, %c220] : memref<1x8x640xbf16, #tpu.memory_space<vmem>>, vector<1x8x400xbf16>
    %148 = vector.shape_cast %147 : vector<1x8x400xbf16> to vector<8x400xbf16>
    %cst_133 = arith.constant dense<0.000000e+00> : vector<8x400xf32>
    %149 = tpu.matmul %146, %148, %cst_133 {dimension_numbers = #tpu.dot_dimension_numbers<[1], [0], [0], [1], [0, 0, 1, 1], [], []>} : vector<8x8xbf16>, vector<8x400xbf16>, vector<8x400xf32> -> vector<8x400xf32>
    %150 = arith.addf %144, %149 : vector<8x400xf32>
    %c25 = arith.constant 25 : index
    %c0_134 = arith.constant 0 : index
    %c0_135 = arith.constant 0 : index
    %151 = vector.load %arg2[%c25, %c0_134, %c0_135] : memref<27x8x8xbf16, #tpu.memory_space<vmem>>, vector<1x8x8xbf16>
    %152 = vector.shape_cast %151 : vector<1x8x8xbf16> to vector<8x8xbf16>
    %c0_136 = arith.constant 0 : index
    %c0_137 = arith.constant 0 : index
    %c221 = arith.constant 221 : index
    %153 = vector.load %arg1[%c0_136, %c0_137, %c221] : memref<1x8x640xbf16, #tpu.memory_space<vmem>>, vector<1x8x400xbf16>
    %154 = vector.shape_cast %153 : vector<1x8x400xbf16> to vector<8x400xbf16>
    %cst_138 = arith.constant dense<0.000000e+00> : vector<8x400xf32>
    %155 = tpu.matmul %152, %154, %cst_138 {dimension_numbers = #tpu.dot_dimension_numbers<[1], [0], [0], [1], [0, 0, 1, 1], [], []>} : vector<8x8xbf16>, vector<8x400xbf16>, vector<8x400xf32> -> vector<8x400xf32>
    %156 = arith.addf %150, %155 : vector<8x400xf32>
    %c26 = arith.constant 26 : index
    %c0_139 = arith.constant 0 : index
    %c0_140 = arith.constant 0 : index
    %157 = vector.load %arg2[%c26, %c0_139, %c0_140] : memref<27x8x8xbf16, #tpu.memory_space<vmem>>, vector<1x8x8xbf16>
    %158 = vector.shape_cast %157 : vector<1x8x8xbf16> to vector<8x8xbf16>
    %c0_141 = arith.constant 0 : index
    %c0_142 = arith.constant 0 : index
    %c222 = arith.constant 222 : index
    %159 = vector.load %arg1[%c0_141, %c0_142, %c222] : memref<1x8x640xbf16, #tpu.memory_space<vmem>>, vector<1x8x400xbf16>
    %160 = vector.shape_cast %159 : vector<1x8x400xbf16> to vector<8x400xbf16>
    %cst_143 = arith.constant dense<0.000000e+00> : vector<8x400xf32>
    %161 = tpu.matmul %158, %160, %cst_143 {dimension_numbers = #tpu.dot_dimension_numbers<[1], [0], [0], [1], [0, 0, 1, 1], [], []>} : vector<8x8xbf16>, vector<8x400xbf16>, vector<8x400xf32> -> vector<8x400xf32>
    %162 = arith.addf %156, %161 : vector<8x400xf32>
    %c0_144 = arith.constant 0 : index
    %c0_145 = arith.constant 0 : index
    %163 = vector.load %arg4[%c0_144, %c0_145] : memref<8x1xf32, #tpu.memory_space<vmem>>, vector<8x1xf32>
    %164 = vector.broadcast %163 : vector<8x1xf32> to vector<8x400xf32>
    %165 = arith.addf %162, %164 : vector<8x400xf32>
    %cst_146 = arith.constant 0.000000e+00 : f32
    %166 = vector.broadcast %cst_146 : f32 to vector<8x400xf32>
    %167 = arith.maximumf %165, %166 : vector<8x400xf32>
    %c0_147 = arith.constant 0 : index
    %c0_148 = arith.constant 0 : index
    %168 = vector.load %arg6[%c0_147, %c0_148] : memref<1x400xf32, #tpu.memory_space<vmem>>, vector<1x400xf32>
    %169 = vector.broadcast %168 : vector<1x400xf32> to vector<8x400xf32>
    %170 = arith.mulf %167, %169 : vector<8x400xf32>
    %cst_149 = arith.constant 0.000000e+00 : bf16
    %171 = vector.broadcast %cst_149 : bf16 to vector<8x640xbf16>
    %c0_150 = arith.constant 0 : index
    %c0_151 = arith.constant 0 : index
    %172 = vector.load %arg8[%c0_150, %c0_151] : memref<8x640xbf16, #tpu.memory_space<vmem>>, vector<8x640xbf16>
    tpu.vector_store %arg8[%c0_150, %c0_151], %171 {strides = array<i32>} : memref<8x640xbf16, #tpu.memory_space<vmem>>, vector<8x640xbf16>,
    %173 = arith.truncf %170 : vector<8x400xf32> to vector<8x400xbf16>
    %c0_152 = arith.constant 0 : index
    %c128 = arith.constant 128 : index
    %174 = vector.load %arg8[%c0_152, %c128] : memref<8x640xbf16, #tpu.memory_space<vmem>>, vector<8x400xbf16>
    tpu.vector_store %arg8[%c0_152, %c128], %173 {strides = array<i32>} : memref<8x640xbf16, #tpu.memory_space<vmem>>, vector<8x400xbf16>,
    %cst_153 = arith.constant 0.000000e+00 : f32
    %175 = vector.broadcast %cst_153 : f32 to vector<8x400xf32>
    %c0_154 = arith.constant 0 : index
    %c0_155 = arith.constant 0 : index
    %c0_156 = arith.constant 0 : index
    %176 = vector.load %arg3[%c0_154, %c0_155, %c0_156] : memref<27x8x8xbf16, #tpu.memory_space<vmem>>, vector<1x8x8xbf16>
    %177 = vector.shape_cast %176 : vector<1x8x8xbf16> to vector<8x8xbf16>
    %c0_157 = arith.constant 0 : index
    %c17_158 = arith.constant 17 : index
    %178 = vector.load %arg8[%c0_157, %c17_158] : memref<8x640xbf16, #tpu.memory_space<vmem>>, vector<8x400xbf16>
    %cst_159 = arith.constant dense<0.000000e+00> : vector<8x400xf32>
    %179 = tpu.matmul %177, %178, %cst_159 {dimension_numbers = #tpu.dot_dimension_numbers<[1], [0], [0], [1], [0, 0, 1, 1], [], []>} : vector<8x8xbf16>, vector<8x400xbf16>, vector<8x400xf32> -> vector<8x400xf32>
    %180 = arith.addf %175, %179 : vector<8x400xf32>
    %c1_160 = arith.constant 1 : index
    %c0_161 = arith.constant 0 : index
    %c0_162 = arith.constant 0 : index
    %181 = vector.load %arg3[%c1_160, %c0_161, %c0_162] : memref<27x8x8xbf16, #tpu.memory_space<vmem>>, vector<1x8x8xbf16>
    %182 = vector.shape_cast %181 : vector<1x8x8xbf16> to vector<8x8xbf16>
    %c0_163 = arith.constant 0 : index
    %c18_164 = arith.constant 18 : index
    %183 = vector.load %arg8[%c0_163, %c18_164] : memref<8x640xbf16, #tpu.memory_space<vmem>>, vector<8x400xbf16>
    %cst_165 = arith.constant dense<0.000000e+00> : vector<8x400xf32>
    %184 = tpu.matmul %182, %183, %cst_165 {dimension_numbers = #tpu.dot_dimension_numbers<[1], [0], [0], [1], [0, 0, 1, 1], [], []>} : vector<8x8xbf16>, vector<8x400xbf16>, vector<8x400xf32> -> vector<8x400xf32>
    %185 = arith.addf %180, %184 : vector<8x400xf32>
    %c2_166 = arith.constant 2 : index
    %c0_167 = arith.constant 0 : index
    %c0_168 = arith.constant 0 : index
    %186 = vector.load %arg3[%c2_166, %c0_167, %c0_168] : memref<27x8x8xbf16, #tpu.memory_space<vmem>>, vector<1x8x8xbf16>
    %187 = vector.shape_cast %186 : vector<1x8x8xbf16> to vector<8x8xbf16>
    %c0_169 = arith.constant 0 : index
    %c19_170 = arith.constant 19 : index
    %188 = vector.load %arg8[%c0_169, %c19_170] : memref<8x640xbf16, #tpu.memory_space<vmem>>, vector<8x400xbf16>
    %cst_171 = arith.constant dense<0.000000e+00> : vector<8x400xf32>
    %189 = tpu.matmul %187, %188, %cst_171 {dimension_numbers = #tpu.dot_dimension_numbers<[1], [0], [0], [1], [0, 0, 1, 1], [], []>} : vector<8x8xbf16>, vector<8x400xbf16>, vector<8x400xf32> -> vector<8x400xf32>
    %190 = arith.addf %185, %189 : vector<8x400xf32>
    %c3_172 = arith.constant 3 : index
    %c0_173 = arith.constant 0 : index
    %c0_174 = arith.constant 0 : index
    %191 = vector.load %arg3[%c3_172, %c0_173, %c0_174] : memref<27x8x8xbf16, #tpu.memory_space<vmem>>, vector<1x8x8xbf16>
    %192 = vector.shape_cast %191 : vector<1x8x8xbf16> to vector<8x8xbf16>
    %c0_175 = arith.constant 0 : index
    %c27 = arith.constant 27 : index
    %193 = vector.load %arg8[%c0_175, %c27] : memref<8x640xbf16, #tpu.memory_space<vmem>>, vector<8x400xbf16>
    %cst_176 = arith.constant dense<0.000000e+00> : vector<8x400xf32>
    %194 = tpu.matmul %192, %193, %cst_176 {dimension_numbers = #tpu.dot_dimension_numbers<[1], [0], [0], [1], [0, 0, 1, 1], [], []>} : vector<8x8xbf16>, vector<8x400xbf16>, vector<8x400xf32> -> vector<8x400xf32>
    %195 = arith.addf %190, %194 : vector<8x400xf32>
    %c4_177 = arith.constant 4 : index
    %c0_178 = arith.constant 0 : index
    %c0_179 = arith.constant 0 : index
    %196 = vector.load %arg3[%c4_177, %c0_178, %c0_179] : memref<27x8x8xbf16, #tpu.memory_space<vmem>>, vector<1x8x8xbf16>
    %197 = vector.shape_cast %196 : vector<1x8x8xbf16> to vector<8x8xbf16>
    %c0_180 = arith.constant 0 : index
    %c28 = arith.constant 28 : index
    %198 = vector.load %arg8[%c0_180, %c28] : memref<8x640xbf16, #tpu.memory_space<vmem>>, vector<8x400xbf16>
    %cst_181 = arith.constant dense<0.000000e+00> : vector<8x400xf32>
    %199 = tpu.matmul %197, %198, %cst_181 {dimension_numbers = #tpu.dot_dimension_numbers<[1], [0], [0], [1], [0, 0, 1, 1], [], []>} : vector<8x8xbf16>, vector<8x400xbf16>, vector<8x400xf32> -> vector<8x400xf32>
    %200 = arith.addf %195, %199 : vector<8x400xf32>
    %c5_182 = arith.constant 5 : index
    %c0_183 = arith.constant 0 : index
    %c0_184 = arith.constant 0 : index
    %201 = vector.load %arg3[%c5_182, %c0_183, %c0_184] : memref<27x8x8xbf16, #tpu.memory_space<vmem>>, vector<1x8x8xbf16>
    %202 = vector.shape_cast %201 : vector<1x8x8xbf16> to vector<8x8xbf16>
    %c0_185 = arith.constant 0 : index
    %c29 = arith.constant 29 : index
    %203 = vector.load %arg8[%c0_185, %c29] : memref<8x640xbf16, #tpu.memory_space<vmem>>, vector<8x400xbf16>
    %cst_186 = arith.constant dense<0.000000e+00> : vector<8x400xf32>
    %204 = tpu.matmul %202, %203, %cst_186 {dimension_numbers = #tpu.dot_dimension_numbers<[1], [0], [0], [1], [0, 0, 1, 1], [], []>} : vector<8x8xbf16>, vector<8x400xbf16>, vector<8x400xf32> -> vector<8x400xf32>
    %205 = arith.addf %200, %204 : vector<8x400xf32>
    %c6_187 = arith.constant 6 : index
    %c0_188 = arith.constant 0 : index
    %c0_189 = arith.constant 0 : index
    %206 = vector.load %arg3[%c6_187, %c0_188, %c0_189] : memref<27x8x8xbf16, #tpu.memory_space<vmem>>, vector<1x8x8xbf16>
    %207 = vector.shape_cast %206 : vector<1x8x8xbf16> to vector<8x8xbf16>
    %c0_190 = arith.constant 0 : index
    %c37 = arith.constant 37 : index
    %208 = vector.load %arg8[%c0_190, %c37] : memref<8x640xbf16, #tpu.memory_space<vmem>>, vector<8x400xbf16>
    %cst_191 = arith.constant dense<0.000000e+00> : vector<8x400xf32>
    %209 = tpu.matmul %207, %208, %cst_191 {dimension_numbers = #tpu.dot_dimension_numbers<[1], [0], [0], [1], [0, 0, 1, 1], [], []>} : vector<8x8xbf16>, vector<8x400xbf16>, vector<8x400xf32> -> vector<8x400xf32>
    %210 = arith.addf %205, %209 : vector<8x400xf32>
    %c7_192 = arith.constant 7 : index
    %c0_193 = arith.constant 0 : index
    %c0_194 = arith.constant 0 : index
    %211 = vector.load %arg3[%c7_192, %c0_193, %c0_194] : memref<27x8x8xbf16, #tpu.memory_space<vmem>>, vector<1x8x8xbf16>
    %212 = vector.shape_cast %211 : vector<1x8x8xbf16> to vector<8x8xbf16>
    %c0_195 = arith.constant 0 : index
    %c38 = arith.constant 38 : index
    %213 = vector.load %arg8[%c0_195, %c38] : memref<8x640xbf16, #tpu.memory_space<vmem>>, vector<8x400xbf16>
    %cst_196 = arith.constant dense<0.000000e+00> : vector<8x400xf32>
    %214 = tpu.matmul %212, %213, %cst_196 {dimension_numbers = #tpu.dot_dimension_numbers<[1], [0], [0], [1], [0, 0, 1, 1], [], []>} : vector<8x8xbf16>, vector<8x400xbf16>, vector<8x400xf32> -> vector<8x400xf32>
    %215 = arith.addf %210, %214 : vector<8x400xf32>
    %c8_197 = arith.constant 8 : index
    %c0_198 = arith.constant 0 : index
    %c0_199 = arith.constant 0 : index
    %216 = vector.load %arg3[%c8_197, %c0_198, %c0_199] : memref<27x8x8xbf16, #tpu.memory_space<vmem>>, vector<1x8x8xbf16>
    %217 = vector.shape_cast %216 : vector<1x8x8xbf16> to vector<8x8xbf16>
    %c0_200 = arith.constant 0 : index
    %c39 = arith.constant 39 : index
    %218 = vector.load %arg8[%c0_200, %c39] : memref<8x640xbf16, #tpu.memory_space<vmem>>, vector<8x400xbf16>
    %cst_201 = arith.constant dense<0.000000e+00> : vector<8x400xf32>
    %219 = tpu.matmul %217, %218, %cst_201 {dimension_numbers = #tpu.dot_dimension_numbers<[1], [0], [0], [1], [0, 0, 1, 1], [], []>} : vector<8x8xbf16>, vector<8x400xbf16>, vector<8x400xf32> -> vector<8x400xf32>
    %220 = arith.addf %215, %219 : vector<8x400xf32>
    %c9_202 = arith.constant 9 : index
    %c0_203 = arith.constant 0 : index
    %c0_204 = arith.constant 0 : index
    %221 = vector.load %arg3[%c9_202, %c0_203, %c0_204] : memref<27x8x8xbf16, #tpu.memory_space<vmem>>, vector<1x8x8xbf16>
    %222 = vector.shape_cast %221 : vector<1x8x8xbf16> to vector<8x8xbf16>
    %c0_205 = arith.constant 0 : index
    %c117 = arith.constant 117 : index
    %223 = vector.load %arg8[%c0_205, %c117] : memref<8x640xbf16, #tpu.memory_space<vmem>>, vector<8x400xbf16>
    %cst_206 = arith.constant dense<0.000000e+00> : vector<8x400xf32>
    %224 = tpu.matmul %222, %223, %cst_206 {dimension_numbers = #tpu.dot_dimension_numbers<[1], [0], [0], [1], [0, 0, 1, 1], [], []>} : vector<8x8xbf16>, vector<8x400xbf16>, vector<8x400xf32> -> vector<8x400xf32>
    %225 = arith.addf %220, %224 : vector<8x400xf32>
    %c10_207 = arith.constant 10 : index
    %c0_208 = arith.constant 0 : index
    %c0_209 = arith.constant 0 : index
    %226 = vector.load %arg3[%c10_207, %c0_208, %c0_209] : memref<27x8x8xbf16, #tpu.memory_space<vmem>>, vector<1x8x8xbf16>
    %227 = vector.shape_cast %226 : vector<1x8x8xbf16> to vector<8x8xbf16>
    %c0_210 = arith.constant 0 : index
    %c118 = arith.constant 118 : index
    %228 = vector.load %arg8[%c0_210, %c118] : memref<8x640xbf16, #tpu.memory_space<vmem>>, vector<8x400xbf16>
    %cst_211 = arith.constant dense<0.000000e+00> : vector<8x400xf32>
    %229 = tpu.matmul %227, %228, %cst_211 {dimension_numbers = #tpu.dot_dimension_numbers<[1], [0], [0], [1], [0, 0, 1, 1], [], []>} : vector<8x8xbf16>, vector<8x400xbf16>, vector<8x400xf32> -> vector<8x400xf32>
    %230 = arith.addf %225, %229 : vector<8x400xf32>
    %c11_212 = arith.constant 11 : index
    %c0_213 = arith.constant 0 : index
    %c0_214 = arith.constant 0 : index
    %231 = vector.load %arg3[%c11_212, %c0_213, %c0_214] : memref<27x8x8xbf16, #tpu.memory_space<vmem>>, vector<1x8x8xbf16>
    %232 = vector.shape_cast %231 : vector<1x8x8xbf16> to vector<8x8xbf16>
    %c0_215 = arith.constant 0 : index
    %c119 = arith.constant 119 : index
    %233 = vector.load %arg8[%c0_215, %c119] : memref<8x640xbf16, #tpu.memory_space<vmem>>, vector<8x400xbf16>
    %cst_216 = arith.constant dense<0.000000e+00> : vector<8x400xf32>
    %234 = tpu.matmul %232, %233, %cst_216 {dimension_numbers = #tpu.dot_dimension_numbers<[1], [0], [0], [1], [0, 0, 1, 1], [], []>} : vector<8x8xbf16>, vector<8x400xbf16>, vector<8x400xf32> -> vector<8x400xf32>
    %235 = arith.addf %230, %234 : vector<8x400xf32>
    %c12_217 = arith.constant 12 : index
    %c0_218 = arith.constant 0 : index
    %c0_219 = arith.constant 0 : index
    %236 = vector.load %arg3[%c12_217, %c0_218, %c0_219] : memref<27x8x8xbf16, #tpu.memory_space<vmem>>, vector<1x8x8xbf16>
    %237 = vector.shape_cast %236 : vector<1x8x8xbf16> to vector<8x8xbf16>
    %c0_220 = arith.constant 0 : index
    %c127 = arith.constant 127 : index
    %238 = vector.load %arg8[%c0_220, %c127] : memref<8x640xbf16, #tpu.memory_space<vmem>>, vector<8x400xbf16>
    %cst_221 = arith.constant dense<0.000000e+00> : vector<8x400xf32>
    %239 = tpu.matmul %237, %238, %cst_221 {dimension_numbers = #tpu.dot_dimension_numbers<[1], [0], [0], [1], [0, 0, 1, 1], [], []>} : vector<8x8xbf16>, vector<8x400xbf16>, vector<8x400xf32> -> vector<8x400xf32>
    %240 = arith.addf %235, %239 : vector<8x400xf32>
    %c13_222 = arith.constant 13 : index
    %c0_223 = arith.constant 0 : index
    %c0_224 = arith.constant 0 : index
    %241 = vector.load %arg3[%c13_222, %c0_223, %c0_224] : memref<27x8x8xbf16, #tpu.memory_space<vmem>>, vector<1x8x8xbf16>
    %242 = vector.shape_cast %241 : vector<1x8x8xbf16> to vector<8x8xbf16>
    %c0_225 = arith.constant 0 : index
    %c128_226 = arith.constant 128 : index
    %243 = vector.load %arg8[%c0_225, %c128_226] : memref<8x640xbf16, #tpu.memory_space<vmem>>, vector<8x400xbf16>
    %cst_227 = arith.constant dense<0.000000e+00> : vector<8x400xf32>
    %244 = tpu.matmul %242, %243, %cst_227 {dimension_numbers = #tpu.dot_dimension_numbers<[1], [0], [0], [1], [0, 0, 1, 1], [], []>} : vector<8x8xbf16>, vector<8x400xbf16>, vector<8x400xf32> -> vector<8x400xf32>
    %245 = arith.addf %240, %244 : vector<8x400xf32>
    %c14_228 = arith.constant 14 : index
    %c0_229 = arith.constant 0 : index
    %c0_230 = arith.constant 0 : index
    %246 = vector.load %arg3[%c14_228, %c0_229, %c0_230] : memref<27x8x8xbf16, #tpu.memory_space<vmem>>, vector<1x8x8xbf16>
    %247 = vector.shape_cast %246 : vector<1x8x8xbf16> to vector<8x8xbf16>
    %c0_231 = arith.constant 0 : index
    %c129 = arith.constant 129 : index
    %248 = vector.load %arg8[%c0_231, %c129] : memref<8x640xbf16, #tpu.memory_space<vmem>>, vector<8x400xbf16>
    %cst_232 = arith.constant dense<0.000000e+00> : vector<8x400xf32>
    %249 = tpu.matmul %247, %248, %cst_232 {dimension_numbers = #tpu.dot_dimension_numbers<[1], [0], [0], [1], [0, 0, 1, 1], [], []>} : vector<8x8xbf16>, vector<8x400xbf16>, vector<8x400xf32> -> vector<8x400xf32>
    %250 = arith.addf %245, %249 : vector<8x400xf32>
    %c15_233 = arith.constant 15 : index
    %c0_234 = arith.constant 0 : index
    %c0_235 = arith.constant 0 : index
    %251 = vector.load %arg3[%c15_233, %c0_234, %c0_235] : memref<27x8x8xbf16, #tpu.memory_space<vmem>>, vector<1x8x8xbf16>
    %252 = vector.shape_cast %251 : vector<1x8x8xbf16> to vector<8x8xbf16>
    %c0_236 = arith.constant 0 : index
    %c137 = arith.constant 137 : index
    %253 = vector.load %arg8[%c0_236, %c137] : memref<8x640xbf16, #tpu.memory_space<vmem>>, vector<8x400xbf16>
    %cst_237 = arith.constant dense<0.000000e+00> : vector<8x400xf32>
    %254 = tpu.matmul %252, %253, %cst_237 {dimension_numbers = #tpu.dot_dimension_numbers<[1], [0], [0], [1], [0, 0, 1, 1], [], []>} : vector<8x8xbf16>, vector<8x400xbf16>, vector<8x400xf32> -> vector<8x400xf32>
    %255 = arith.addf %250, %254 : vector<8x400xf32>
    %c16_238 = arith.constant 16 : index
    %c0_239 = arith.constant 0 : index
    %c0_240 = arith.constant 0 : index
    %256 = vector.load %arg3[%c16_238, %c0_239, %c0_240] : memref<27x8x8xbf16, #tpu.memory_space<vmem>>, vector<1x8x8xbf16>
    %257 = vector.shape_cast %256 : vector<1x8x8xbf16> to vector<8x8xbf16>
    %c0_241 = arith.constant 0 : index
    %c138 = arith.constant 138 : index
    %258 = vector.load %arg8[%c0_241, %c138] : memref<8x640xbf16, #tpu.memory_space<vmem>>, vector<8x400xbf16>
    %cst_242 = arith.constant dense<0.000000e+00> : vector<8x400xf32>
    %259 = tpu.matmul %257, %258, %cst_242 {dimension_numbers = #tpu.dot_dimension_numbers<[1], [0], [0], [1], [0, 0, 1, 1], [], []>} : vector<8x8xbf16>, vector<8x400xbf16>, vector<8x400xf32> -> vector<8x400xf32>
    %260 = arith.addf %255, %259 : vector<8x400xf32>
    %c17_243 = arith.constant 17 : index
    %c0_244 = arith.constant 0 : index
    %c0_245 = arith.constant 0 : index
    %261 = vector.load %arg3[%c17_243, %c0_244, %c0_245] : memref<27x8x8xbf16, #tpu.memory_space<vmem>>, vector<1x8x8xbf16>
    %262 = vector.shape_cast %261 : vector<1x8x8xbf16> to vector<8x8xbf16>
    %c0_246 = arith.constant 0 : index
    %c139 = arith.constant 139 : index
    %263 = vector.load %arg8[%c0_246, %c139] : memref<8x640xbf16, #tpu.memory_space<vmem>>, vector<8x400xbf16>
    %cst_247 = arith.constant dense<0.000000e+00> : vector<8x400xf32>
    %264 = tpu.matmul %262, %263, %cst_247 {dimension_numbers = #tpu.dot_dimension_numbers<[1], [0], [0], [1], [0, 0, 1, 1], [], []>} : vector<8x8xbf16>, vector<8x400xbf16>, vector<8x400xf32> -> vector<8x400xf32>
    %265 = arith.addf %260, %264 : vector<8x400xf32>
    %c18_248 = arith.constant 18 : index
    %c0_249 = arith.constant 0 : index
    %c0_250 = arith.constant 0 : index
    %266 = vector.load %arg3[%c18_248, %c0_249, %c0_250] : memref<27x8x8xbf16, #tpu.memory_space<vmem>>, vector<1x8x8xbf16>
    %267 = vector.shape_cast %266 : vector<1x8x8xbf16> to vector<8x8xbf16>
    %c0_251 = arith.constant 0 : index
    %c217 = arith.constant 217 : index
    %268 = vector.load %arg8[%c0_251, %c217] : memref<8x640xbf16, #tpu.memory_space<vmem>>, vector<8x400xbf16>
    %cst_252 = arith.constant dense<0.000000e+00> : vector<8x400xf32>
    %269 = tpu.matmul %267, %268, %cst_252 {dimension_numbers = #tpu.dot_dimension_numbers<[1], [0], [0], [1], [0, 0, 1, 1], [], []>} : vector<8x8xbf16>, vector<8x400xbf16>, vector<8x400xf32> -> vector<8x400xf32>
    %270 = arith.addf %265, %269 : vector<8x400xf32>
    %c19_253 = arith.constant 19 : index
    %c0_254 = arith.constant 0 : index
    %c0_255 = arith.constant 0 : index
    %271 = vector.load %arg3[%c19_253, %c0_254, %c0_255] : memref<27x8x8xbf16, #tpu.memory_space<vmem>>, vector<1x8x8xbf16>
    %272 = vector.shape_cast %271 : vector<1x8x8xbf16> to vector<8x8xbf16>
    %c0_256 = arith.constant 0 : index
    %c218 = arith.constant 218 : index
    %273 = vector.load %arg8[%c0_256, %c218] : memref<8x640xbf16, #tpu.memory_space<vmem>>, vector<8x400xbf16>
    %cst_257 = arith.constant dense<0.000000e+00> : vector<8x400xf32>
    %274 = tpu.matmul %272, %273, %cst_257 {dimension_numbers = #tpu.dot_dimension_numbers<[1], [0], [0], [1], [0, 0, 1, 1], [], []>} : vector<8x8xbf16>, vector<8x400xbf16>, vector<8x400xf32> -> vector<8x400xf32>
    %275 = arith.addf %270, %274 : vector<8x400xf32>
    %c20_258 = arith.constant 20 : index
    %c0_259 = arith.constant 0 : index
    %c0_260 = arith.constant 0 : index
    %276 = vector.load %arg3[%c20_258, %c0_259, %c0_260] : memref<27x8x8xbf16, #tpu.memory_space<vmem>>, vector<1x8x8xbf16>
    %277 = vector.shape_cast %276 : vector<1x8x8xbf16> to vector<8x8xbf16>
    %c0_261 = arith.constant 0 : index
    %c219 = arith.constant 219 : index
    %278 = vector.load %arg8[%c0_261, %c219] : memref<8x640xbf16, #tpu.memory_space<vmem>>, vector<8x400xbf16>
    %cst_262 = arith.constant dense<0.000000e+00> : vector<8x400xf32>
    %279 = tpu.matmul %277, %278, %cst_262 {dimension_numbers = #tpu.dot_dimension_numbers<[1], [0], [0], [1], [0, 0, 1, 1], [], []>} : vector<8x8xbf16>, vector<8x400xbf16>, vector<8x400xf32> -> vector<8x400xf32>
    %280 = arith.addf %275, %279 : vector<8x400xf32>
    %c21_263 = arith.constant 21 : index
    %c0_264 = arith.constant 0 : index
    %c0_265 = arith.constant 0 : index
    %281 = vector.load %arg3[%c21_263, %c0_264, %c0_265] : memref<27x8x8xbf16, #tpu.memory_space<vmem>>, vector<1x8x8xbf16>
    %282 = vector.shape_cast %281 : vector<1x8x8xbf16> to vector<8x8xbf16>
    %c0_266 = arith.constant 0 : index
    %c227 = arith.constant 227 : index
    %283 = vector.load %arg8[%c0_266, %c227] : memref<8x640xbf16, #tpu.memory_space<vmem>>, vector<8x400xbf16>
    %cst_267 = arith.constant dense<0.000000e+00> : vector<8x400xf32>
    %284 = tpu.matmul %282, %283, %cst_267 {dimension_numbers = #tpu.dot_dimension_numbers<[1], [0], [0], [1], [0, 0, 1, 1], [], []>} : vector<8x8xbf16>, vector<8x400xbf16>, vector<8x400xf32> -> vector<8x400xf32>
    %285 = arith.addf %280, %284 : vector<8x400xf32>
    %c22_268 = arith.constant 22 : index
    %c0_269 = arith.constant 0 : index
    %c0_270 = arith.constant 0 : index
    %286 = vector.load %arg3[%c22_268, %c0_269, %c0_270] : memref<27x8x8xbf16, #tpu.memory_space<vmem>>, vector<1x8x8xbf16>
    %287 = vector.shape_cast %286 : vector<1x8x8xbf16> to vector<8x8xbf16>
    %c0_271 = arith.constant 0 : index
    %c228 = arith.constant 228 : index
    %288 = vector.load %arg8[%c0_271, %c228] : memref<8x640xbf16, #tpu.memory_space<vmem>>, vector<8x400xbf16>
    %cst_272 = arith.constant dense<0.000000e+00> : vector<8x400xf32>
    %289 = tpu.matmul %287, %288, %cst_272 {dimension_numbers = #tpu.dot_dimension_numbers<[1], [0], [0], [1], [0, 0, 1, 1], [], []>} : vector<8x8xbf16>, vector<8x400xbf16>, vector<8x400xf32> -> vector<8x400xf32>
    %290 = arith.addf %285, %289 : vector<8x400xf32>
    %c23_273 = arith.constant 23 : index
    %c0_274 = arith.constant 0 : index
    %c0_275 = arith.constant 0 : index
    %291 = vector.load %arg3[%c23_273, %c0_274, %c0_275] : memref<27x8x8xbf16, #tpu.memory_space<vmem>>, vector<1x8x8xbf16>
    %292 = vector.shape_cast %291 : vector<1x8x8xbf16> to vector<8x8xbf16>
    %c0_276 = arith.constant 0 : index
    %c229 = arith.constant 229 : index
    %293 = vector.load %arg8[%c0_276, %c229] : memref<8x640xbf16, #tpu.memory_space<vmem>>, vector<8x400xbf16>
    %cst_277 = arith.constant dense<0.000000e+00> : vector<8x400xf32>
    %294 = tpu.matmul %292, %293, %cst_277 {dimension_numbers = #tpu.dot_dimension_numbers<[1], [0], [0], [1], [0, 0, 1, 1], [], []>} : vector<8x8xbf16>, vector<8x400xbf16>, vector<8x400xf32> -> vector<8x400xf32>
    %295 = arith.addf %290, %294 : vector<8x400xf32>
    %c24_278 = arith.constant 24 : index
    %c0_279 = arith.constant 0 : index
    %c0_280 = arith.constant 0 : index
    %296 = vector.load %arg3[%c24_278, %c0_279, %c0_280] : memref<27x8x8xbf16, #tpu.memory_space<vmem>>, vector<1x8x8xbf16>
    %297 = vector.shape_cast %296 : vector<1x8x8xbf16> to vector<8x8xbf16>
    %c0_281 = arith.constant 0 : index
    %c237 = arith.constant 237 : index
    %298 = vector.load %arg8[%c0_281, %c237] : memref<8x640xbf16, #tpu.memory_space<vmem>>, vector<8x400xbf16>
    %cst_282 = arith.constant dense<0.000000e+00> : vector<8x400xf32>
    %299 = tpu.matmul %297, %298, %cst_282 {dimension_numbers = #tpu.dot_dimension_numbers<[1], [0], [0], [1], [0, 0, 1, 1], [], []>} : vector<8x8xbf16>, vector<8x400xbf16>, vector<8x400xf32> -> vector<8x400xf32>
    %300 = arith.addf %295, %299 : vector<8x400xf32>
    %c25_283 = arith.constant 25 : index
    %c0_284 = arith.constant 0 : index
    %c0_285 = arith.constant 0 : index
    %301 = vector.load %arg3[%c25_283, %c0_284, %c0_285] : memref<27x8x8xbf16, #tpu.memory_space<vmem>>, vector<1x8x8xbf16>
    %302 = vector.shape_cast %301 : vector<1x8x8xbf16> to vector<8x8xbf16>
    %c0_286 = arith.constant 0 : index
    %c238 = arith.constant 238 : index
    %303 = vector.load %arg8[%c0_286, %c238] : memref<8x640xbf16, #tpu.memory_space<vmem>>, vector<8x400xbf16>
    %cst_287 = arith.constant dense<0.000000e+00> : vector<8x400xf32>
    %304 = tpu.matmul %302, %303, %cst_287 {dimension_numbers = #tpu.dot_dimension_numbers<[1], [0], [0], [1], [0, 0, 1, 1], [], []>} : vector<8x8xbf16>, vector<8x400xbf16>, vector<8x400xf32> -> vector<8x400xf32>
    %305 = arith.addf %300, %304 : vector<8x400xf32>
    %c26_288 = arith.constant 26 : index
    %c0_289 = arith.constant 0 : index
    %c0_290 = arith.constant 0 : index
    %306 = vector.load %arg3[%c26_288, %c0_289, %c0_290] : memref<27x8x8xbf16, #tpu.memory_space<vmem>>, vector<1x8x8xbf16>
    %307 = vector.shape_cast %306 : vector<1x8x8xbf16> to vector<8x8xbf16>
    %c0_291 = arith.constant 0 : index
    %c239 = arith.constant 239 : index
    %308 = vector.load %arg8[%c0_291, %c239] : memref<8x640xbf16, #tpu.memory_space<vmem>>, vector<8x400xbf16>
    %cst_292 = arith.constant dense<0.000000e+00> : vector<8x400xf32>
    %309 = tpu.matmul %307, %308, %cst_292 {dimension_numbers = #tpu.dot_dimension_numbers<[1], [0], [0], [1], [0, 0, 1, 1], [], []>} : vector<8x8xbf16>, vector<8x400xbf16>, vector<8x400xf32> -> vector<8x400xf32>
    %310 = arith.addf %305, %309 : vector<8x400xf32>
    %c0_293 = arith.constant 0 : index
    %c0_294 = arith.constant 0 : index
    %c111_295 = arith.constant 111 : index
    %311 = vector.load %arg1[%c0_293, %c0_294, %c111_295] : memref<1x8x640xbf16, #tpu.memory_space<vmem>>, vector<1x8x400xbf16>
    %312 = vector.shape_cast %311 : vector<1x8x400xbf16> to vector<8x400xbf16>
    %313 = arith.extf %312 : vector<8x400xbf16> to vector<8x400xf32>
    %c0_296 = arith.constant 0 : index
    %c0_297 = arith.constant 0 : index
    %314 = vector.load %arg5[%c0_296, %c0_297] : memref<8x1xf32, #tpu.memory_space<vmem>>, vector<8x1xf32>
    %315 = vector.broadcast %314 : vector<8x1xf32> to vector<8x400xf32>
    %316 = arith.addf %310, %315 : vector<8x400xf32>
    %317 = arith.addf %316, %313 : vector<8x400xf32>
    %cst_298 = arith.constant 0.000000e+00 : f32
    %318 = vector.broadcast %cst_298 : f32 to vector<8x400xf32>
    %319 = arith.maximumf %317, %318 : vector<8x400xf32>
    %c0_299 = arith.constant 0 : index
    %c0_300 = arith.constant 0 : index
    %c0_301 = arith.constant 0 : index
    %320 = vector.load %arg7[%c0_299, %c0_300, %c0_301] : memref<1x8x400xf32, #tpu.memory_space<vmem>>, vector<1x8x400xf32>
    %321 = vector.shape_cast %320 : vector<1x8x400xf32> to vector<8x400xf32>
    %322 = vector.shape_cast %319 : vector<8x400xf32> to vector<1x8x400xf32>
    tpu.vector_store %arg7[%c0_299, %c0_300, %c0_301], %322 {strides = array<i32>} : memref<1x8x400xf32, #tpu.memory_space<vmem>>, vector<1x8x400xf32>,
    return
  }
  func.func @transform_0(%arg0: i32) -> (i32, i32, i32) {
    %c0_i32 = arith.constant 0 : i32
    %c0_i32_0 = arith.constant 0 : i32
    %c0_i32_1 = arith.constant 0 : i32
    return %arg0, %c0_i32, %c0_i32_0 : i32, i32, i32
  }
  func.func @transform_1(%arg0: i32) -> (i32, i32, i32) {
    %c0_i32 = arith.constant 0 : i32
    %c0_i32_0 = arith.constant 0 : i32
    %c0_i32_1 = arith.constant 0 : i32
    %c0_i32_2 = arith.constant 0 : i32
    return %c0_i32, %c0_i32_0, %c0_i32_1 : i32, i32, i32
  }
  func.func @transform_2(%arg0: i32) -> (i32, i32, i32) {
    %c0_i32 = arith.constant 0 : i32
    %c0_i32_0 = arith.constant 0 : i32
    %c0_i32_1 = arith.constant 0 : i32
    %c0_i32_2 = arith.constant 0 : i32
    return %c0_i32, %c0_i32_0, %c0_i32_1 : i32, i32, i32
  }
  func.func @transform_3(%arg0: i32) -> (i32, i32) {
    %c0_i32 = arith.constant 0 : i32
    %c0_i32_0 = arith.constant 0 : i32
    %c0_i32_1 = arith.constant 0 : i32
    return %c0_i32, %c0_i32_0 : i32, i32
  }
  func.func @transform_4(%arg0: i32) -> (i32, i32) {
    %c0_i32 = arith.constant 0 : i32
    %c0_i32_0 = arith.constant 0 : i32
    %c0_i32_1 = arith.constant 0 : i32
    return %c0_i32, %c0_i32_0 : i32, i32
  }
  func.func @transform_5(%arg0: i32) -> (i32, i32) {
    %c0_i32 = arith.constant 0 : i32
    %c0_i32_0 = arith.constant 0 : i32
    %c0_i32_1 = arith.constant 0 : i32
    return %c0_i32, %c0_i32_0 : i32, i32
  }
  func.func @transform_6(%arg0: i32) -> (i32, i32, i32) {
    %c0_i32 = arith.constant 0 : i32
    %c0_i32_0 = arith.constant 0 : i32
    %c0_i32_1 = arith.constant 0 : i32
    return %arg0, %c0_i32, %c0_i32_0 : i32, i32, i32
  }
}

</mosaic_0001>

<llo_original>
// kernel: basic_block_forward.1
$region0: #{basic_block_forward.1}
  #allocation0 [shape = 'u32[]', space=smem, size = 0x4, offset = 0x4, fixed_abs, tag = 'smem constant byte address 0x4 - core index']
  #allocation1 [shape = 'u32[144,128]{1,0:T(1,128)}', space=vmem, size = 0x12000, scoped, tag = 'internal scratch']
  #allocation2 [shape = 'bf16[8,640]{1,0:T(8,128)(2,1)}', space=vmem, size = 0x2800, scoped, tag = 'scratch operand']
  %s0 = inlined_call_operand.vmem [shape: bf16[2,8,640], index: 0, kind: input, shape index: {}]
  %s1 = inlined_call_operand.vmem [shape: bf16[27,8,8], index: 1, kind: input, shape index: {}]
  %s2 = inlined_call_operand.vmem [shape: bf16[27,8,8], index: 2, kind: input, shape index: {}]
  %s3 = inlined_call_operand.vmem [shape: f32[8,1], index: 3, kind: input, shape index: {}]
  %s4 = inlined_call_operand.vmem [shape: f32[8,1], index: 4, kind: input, shape index: {}]
  %s5 = inlined_call_operand.vmem [shape: f32[1,400], index: 5, kind: input, shape index: {}]
  %s6 = inlined_call_operand.vmem [shape: f32[2,8,400], index: 6, kind: output, shape index: {}]
  %s7 = sld [smem:[#allocation0]]
  $region57: #{basic_block_forward.1} parent=0
    _
  %s9 = ssub.s32 1, %s7
  %s10 = scalar_select 0, %s9, %s7
  loop: start=0, step=1, limit=4
  $region2: #{basic_block_forward.1} parent=0 // loop_pre_header
    _
  $region3: #{basic_block_forward.1} parent=0 // loop_header
    %s12 = sphi 0, %s16
    %p13 = scmp.ge.s32.totalorder %s12, 4
    %s22 = sphi 0, %s24
    %s25 = sphi 0, %s22
    %s26 = sphi 0, %s25
    %s42 = sphi 0, %s26
    %s46 = sphi 0, %s46
    %s48 = sphi 0, %s46
    %s49 = sphi 0, %s48
    %s63 = sphi 0, %s49
    %s67 = sphi 0, %s67
    %s69 = sphi 0, %s67
    %s70 = sphi 0, %s69
    %s84 = sphi 0, %s70
    %s88 = sphi 0, %s88
    %s90 = sphi 0, %s88
    %s91 = sphi 0, %s90
    %s105 = sphi 0, %s91
    %s109 = sphi 0, %s109
    %s111 = sphi 0, %s109
    %s112 = sphi 0, %s111
    %s126 = sphi 0, %s112
    %s130 = sphi 0, %s130
    %s132 = sphi 0, %s130
    %s133 = sphi 0, %s132
    %s147 = sphi 0, %s133
    %s153 = sphi 0, %s155
    %s156 = sphi 0, %s153
    %s157 = sphi 0, %s156
    %s173 = sphi 0, %s157
  $region4: #{basic_block_forward.1} parent=0 // loop_header_branch
    %15 = sbr.rel (%p13) target = $region8
  $region5: #{basic_block_forward.1} parent=0 // loop_body
    %s17 = ssub.s32 %s12, 1
    %s18 = ssub.s32 %s12, 2
    %s19 = sadd.s32 %s12, 1
    %s20 = ssub.s32 %s12, %s19
    %p21 = scmp.eq.s32.totalorder %s20, 0
    %s23 = sadd.s32 %s22, 1
    %s24 = scalar_select %p21, %s22, %s23
    %p27 = pneg %p21
    %p28 = scmp.eq.s32.totalorder %s12, 1
    %p29 = por %p27, %p28
    %p30 = scmp.ne.s32.totalorder %s22, %s25
    %p31 = scmp.eq.s32.totalorder %s12, 0
    %p32 = por %p30, %p31
    %p33 = scmp.ne.s32.totalorder %s22, %s25
    %p34 = scmp.eq.s32.totalorder %s17, 1
    %p35 = por %p33, %p34
    %p36 = scmp.ne.s32.totalorder %s25, %s26
    %p37 = scmp.eq.s32.totalorder %s17, 0
    %p38 = por %p36, %p37
    %p39 = scmp.ne.s32.totalorder %s25, %s26
    %p40 = scmp.eq.s32.totalorder %s18, 1
    %p41 = por %p39, %p40
    %p43 = scmp.ne.s32.totalorder %s26, %s42
    %p44 = scmp.eq.s32.totalorder %s18, 0
    %p45 = por %p43, %p44
    %s47 = sadd.s32 %s46, 1
    %p50 = scmp.eq.s32.totalorder %s12, 1
    %p51 = scmp.ne.s32.totalorder %s46, %s48
    %p52 = scmp.eq.s32.totalorder %s12, 0
    %p53 = por %p51, %p52
    %p54 = scmp.ne.s32.totalorder %s46, %s48
    %p55 = scmp.eq.s32.totalorder %s17, 1
    %p56 = por %p54, %p55
    %p57 = scmp.ne.s32.totalorder %s48, %s49
    %p58 = scmp.eq.s32.totalorder %s17, 0
    %p59 = por %p57, %p58
    %p60 = scmp.ne.s32.totalorder %s48, %s49
    %p61 = scmp.eq.s32.totalorder %s18, 1
    %p62 = por %p60, %p61
    %p64 = scmp.ne.s32.totalorder %s49, %s63
    %p65 = scmp.eq.s32.totalorder %s18, 0
    %p66 = por %p64, %p65
    %s68 = sadd.s32 %s67, 1
    %p71 = scmp.eq.s32.totalorder %s12, 1
    %p72 = scmp.ne.s32.totalorder %s67, %s69
    %p73 = scmp.eq.s32.totalorder %s12, 0
    %p74 = por %p72, %p73
    %p75 = scmp.ne.s32.totalorder %s67, %s69
    %p76 = scmp.eq.s32.totalorder %s17, 1
    %p77 = por %p75, %p76
    %p78 = scmp.ne.s32.totalorder %s69, %s70
    %p79 = scmp.eq.s32.totalorder %s17, 0
    %p80 = por %p78, %p79
    %p81 = scmp.ne.s32.totalorder %s69, %s70
    %p82 = scmp.eq.s32.totalorder %s18, 1
    %p83 = por %p81, %p82
    %p85 = scmp.ne.s32.totalorder %s70, %s84
    %p86 = scmp.eq.s32.totalorder %s18, 0
    %p87 = por %p85, %p86
    %s89 = sadd.s32 %s88, 1
    %p92 = scmp.eq.s32.totalorder %s12, 1
    %p93 = scmp.ne.s32.totalorder %s88, %s90
    %p94 = scmp.eq.s32.totalorder %s12, 0
    %p95 = por %p93, %p94
    %p96 = scmp.ne.s32.totalorder %s88, %s90
    %p97 = scmp.eq.s32.totalorder %s17, 1
    %p98 = por %p96, %p97
    %p99 = scmp.ne.s32.totalorder %s90, %s91
    %p100 = scmp.eq.s32.totalorder %s17, 0
    %p101 = por %p99, %p100
    %p102 = scmp.ne.s32.totalorder %s90, %s91
    %p103 = scmp.eq.s32.totalorder %s18, 1
    %p104 = por %p102, %p103
    %p106 = scmp.ne.s32.totalorder %s91, %s105
    %p107 = scmp.eq.s32.totalorder %s18, 0
    %p108 = por %p106, %p107
    %s110 = sadd.s32 %s109, 1
    %p113 = scmp.eq.s32.totalorder %s12, 1
    %p114 = scmp.ne.s32.totalorder %s109, %s111
    %p115 = scmp.eq.s32.totalorder %s12, 0
    %p116 = por %p114, %p115
    %p117 = scmp.ne.s32.totalorder %s109, %s111
    %p118 = scmp.eq.s32.totalorder %s17, 1
    %p119 = por %p117, %p118
    %p120 = scmp.ne.s32.totalorder %s111, %s112
    %p121 = scmp.eq.s32.totalorder %s17, 0
    %p122 = por %p120, %p121
    %p123 = scmp.ne.s32.totalorder %s111, %s112
    %p124 = scmp.eq.s32.totalorder %s18, 1
    %p125 = por %p123, %p124
    %p127 = scmp.ne.s32.totalorder %s112, %s126
    %p128 = scmp.eq.s32.totalorder %s18, 0
    %p129 = por %p127, %p128
    %s131 = sadd.s32 %s130, 1
    %p134 = scmp.eq.s32.totalorder %s12, 1
    %p135 = scmp.ne.s32.totalorder %s130, %s132
    %p136 = scmp.eq.s32.totalorder %s12, 0
    %p137 = por %p135, %p136
    %p138 = scmp.ne.s32.totalorder %s130, %s132
    %p139 = scmp.eq.s32.totalorder %s17, 1
    %p140 = por %p138, %p139
    %p141 = scmp.ne.s32.totalorder %s132, %s133
    %p142 = scmp.eq.s32.totalorder %s17, 0
    %p143 = por %p141, %p142
    %p144 = scmp.ne.s32.totalorder %s132, %s133
    %p145 = scmp.eq.s32.totalorder %s18, 1
    %p146 = por %p144, %p145
    %p148 = scmp.ne.s32.totalorder %s133, %s147
    %p149 = scmp.eq.s32.totalorder %s18, 0
    %p150 = por %p148, %p149
    %s151 = ssub.s32 %s12, %s19
    %p152 = scmp.eq.s32.totalorder %s151, 0
    %s154 = sadd.s32 %s153, 1
    %s155 = scalar_select %p152, %s153, %s154
    %p158 = pneg %p152
    %p159 = scmp.eq.s32.totalorder %s12, 1
    %p160 = por %p158, %p159
    %p161 = scmp.ne.s32.totalorder %s153, %s156
    %p162 = scmp.eq.s32.totalorder %s12, 0
    %p163 = por %p161, %p162
    %p164 = scmp.ne.s32.totalorder %s153, %s156
    %p165 = scmp.eq.s32.totalorder %s17, 1
    %p166 = por %p164, %p165
    %p167 = scmp.ne.s32.totalorder %s156, %s157
    %p168 = scmp.eq.s32.totalorder %s17, 0
    %p169 = por %p167, %p168
    %p170 = scmp.ne.s32.totalorder %s156, %s157
    %p171 = scmp.eq.s32.totalorder %s18, 1
    %p172 = por %p170, %p171
    %p174 = scmp.ne.s32.totalorder %s157, %s173
    %p175 = scmp.eq.s32.totalorder %s18, 0
    %p176 = por %p174, %p175
    %p177 = scmp.le.s32.totalorder 1, %s12
    %p178 = scmp.lt.s32.totalorder %s12, 3
    %p179 = pnand %p177, %p178
    %p180 = pneg %p179
    // Predicated region
    $region9: #{basic_block_forward.1} parent=5 // pred_check
      _
    $region10: #{basic_block_forward.1} parent=5 // pred_check_branch
      %182 = sbr.rel (%p179) target = $region12
    $region11: #{basic_block_forward.1} parent=5 // pred_region
      %s183 = ssub.s32 %s12, 1
      // Predicated region
      $region13: #{basic_block_forward.1} parent=11 // pred_check
        %p184 = pneg %p59
      $region14: #{basic_block_forward.1} parent=11 // pred_check_branch
        %186 = sbr.rel (%p184) target = $region16
      $region15: #{basic_block_forward.1} parent=11 // pred_region
        _
      $region16: #{basic_block_forward.1} parent=11 // pred_fallthru
        _
      // Predicated region
      $region17: #{basic_block_forward.1} parent=11 // pred_check
        %p187 = pneg %p80
      $region18: #{basic_block_forward.1} parent=11 // pred_check_branch
        %189 = sbr.rel (%p187) target = $region20
      $region19: #{basic_block_forward.1} parent=11 // pred_region
        _
      $region20: #{basic_block_forward.1} parent=11 // pred_fallthru
        _
      // Predicated region
      $region21: #{basic_block_forward.1} parent=11 // pred_check
        %p190 = pneg %p101
      $region22: #{basic_block_forward.1} parent=11 // pred_check_branch
        %192 = sbr.rel (%p190) target = $region24
      $region23: #{basic_block_forward.1} parent=11 // pred_region
        _
      $region24: #{basic_block_forward.1} parent=11 // pred_fallthru
        _
      // Predicated region
      $region25: #{basic_block_forward.1} parent=11 // pred_check
        %p193 = pneg %p122
      $region26: #{basic_block_forward.1} parent=11 // pred_check_branch
        %195 = sbr.rel (%p193) target = $region28
      $region27: #{basic_block_forward.1} parent=11 // pred_region
        _
      $region28: #{basic_block_forward.1} parent=11 // pred_fallthru
        _
      // Predicated region
      $region29: #{basic_block_forward.1} parent=11 // pred_check
        %p196 = pneg %p143
      $region30: #{basic_block_forward.1} parent=11 // pred_check_branch
        %198 = sbr.rel (%p196) target = $region32
      $region31: #{basic_block_forward.1} parent=11 // pred_region
        _
      $region32: #{basic_block_forward.1} parent=11 // pred_fallthru
        _
    $region12: #{basic_block_forward.1} parent=5 // pred_fallthru
      _
    %p199 = scmp.lt.s32.totalorder %s12, 2
    // Predicated region
    $region33: #{basic_block_forward.1} parent=5 // pred_check
      %p200 = pneg %p199
    $region34: #{basic_block_forward.1} parent=5 // pred_check_branch
      %202 = sbr.rel (%p200) target = $region36
    $region35: #{basic_block_forward.1} parent=5 // pred_region
      // Predicated region
      $region37: #{basic_block_forward.1} parent=35 // pred_check
        %p203 = pneg %p32
      $region38: #{basic_block_forward.1} parent=35 // pred_check_branch
        %205 = sbr.rel (%p203) target = $region40
      $region39: #{basic_block_forward.1} parent=35 // pred_region
        %p206 = scmp.lt.s32.totalorder %s12, 1
        %s207 = scalar_select %p206, %s12, 1
        %s208 = smul.addr %s207, 5
        %s209 = smul.addr %s208, 4
        %s210 = scalar_lea.vmem %s0, %s209
      $region40: #{basic_block_forward.1} parent=35 // pred_fallthru
        _
    $region36: #{basic_block_forward.1} parent=5 // pred_fallthru
      _
    %p211 = scmp.le.s32.totalorder 1, %s12
    %p212 = scmp.lt.s32.totalorder %s12, 3
    %p213 = pnand %p211, %p212
    %p214 = pneg %p213
    // Predicated region
    $region41: #{basic_block_forward.1} parent=5 // pred_check
      _
    $region42: #{basic_block_forward.1} parent=5 // pred_check_branch
      %216 = sbr.rel (%p213) target = $region44
    $region43: #{basic_block_forward.1} parent=5 // pred_region
      %s217 = ssub.s32 %s12, 1
      %p218 = scmp.lt.s32.totalorder %s17, 1
      %s219 = scalar_select %p218, %s17, 1
      %s220 = smul.addr %s219, 5
      %s221 = smul.addr %s220, 4
      %s222 = scalar_lea.vmem %s0, %s221
      %p223 = pneg %p38
      %p224 = pneg %p35
      %p225 = pneg %p59
      %p226 = pneg %p56
      %p227 = pneg %p80
      %p228 = pneg %p77
      %p229 = pneg %p101
      %p230 = pneg %p98
      %p231 = pneg %p122
      %p232 = pneg %p119
      %p233 = pneg %p143
      %p234 = pneg %p140
      %p235 = pneg %p169
      %p236 = pneg %p166
      %p237 = scmp.lt.s32.totalorder %s17, 1
      %s238 = scalar_select %p237, %s17, 1
      %s239 = smul.addr %s238, 4
      %s240 = smul.addr %s239, 8
      %s241 = scalar_lea.vmem %s6, %s240
      %p242 = scmp.lt.s32.totalorder %s17, 1
      %s243 = scalar_select %p242, %s17, 1
      %s244 = smul.addr %s243, 5
      %s245 = smul.addr %s244, 4
      %s246 = scalar_lea.vmem %s0, %s245
      %p247 = scmp.lt.s32.totalorder %s17, 1
      %s248 = scalar_select %p247, %s17, 1
      %s249 = smul.addr %s248, 4
      %s250 = smul.addr %s249, 8
      %s251 = scalar_lea.vmem %s6, %s250
      %v253 = vld [vmem:[%s1] sm:$0xf]
      %v254 = vld [vmem:[%s246] sm:$0xff]
      %v255 = vld [vmem:[%s246 + $0x8] sm:$0xff]
      %s256 = scalar_lea.vmem %s1, 4
      %v257 = vld [vmem:[%s256] sm:$0xf]
      %v260 = vunpack.c.l.b16 %v254
      %v261 = vunpack.c.h.b16 %v254
      %v262 = vunpack.c.l.b16 %v255
      %v263 = vunpack.c.h.b16 %v255
      %v264 = vpack.c.b16 %v260, %v260
      %v265 = vpack.c.b16 %v261, %v261
      %v266 = vpack.c.b16 %v262, %v262
      %v267 = vpack.c.b16 %v263, %v263
      %268 = vrot.lane.b32.xlu0 %v264, 127
      %v269 = vpop.permute.xlu0 %268
      %270 = vrot.lane.b32.xlu0 %v265, 127
      %v271 = vpop.permute.xlu0 %270
      %272 = vrot.lane.b32.xlu0 %v266, 127
      %v273 = vpop.permute.xlu0 %272
      %274 = vrot.lane.b32.xlu0 %v267, 127
      %v275 = vpop.permute.xlu0 %274
      %vm276 = vcmask 1039360
      %v277 = vsel %vm276, %v269, %v271
      %v278 = vsel %vm276, %v271, %v273
      %v279 = vsel %vm276, %v273, %v275
      %vm280 = vcmask 64512
      %v282 = vsel %vm280, %v257, 0
      %vm284 = vcmask 1043456
      %v286 = vsel %vm284, %v277, 0
      %v289 = vsel %vm284, %v278, 0
      %v292 = vsel %vm284, %v279, 0
      %v295 = vsel %vm284, %v275, 0
      %297 = vmatprep.subr.bf16.mxu0 %v289
      %298 = vmatpush1.bf16.msra.mxu0 %v286
      %299 = vmatprep.subr.bf16.mxu0 0
      %300 = vmatpush1.bf16.msra.mxu0 0
      %301 = vmatprep.subr.bf16.mxu0 0
      %302 = vmatpush1.bf16.msra.mxu0 0
      %303 = vmatprep.subr.bf16.mxu0 0
      %304 = vmatpush1.bf16.msra.mxu0 0
      %305 = vmatprep.subr.bf16.mxu0 0
      %306 = vmatpush1.bf16.msra.mxu0 0
      %307 = vmatprep.subr.bf16.mxu0 0
      %308 = vmatpush1.bf16.msra.mxu0 0
      %309 = vmatprep.subr.bf16.mxu0 0
      %310 = vmatpush1.bf16.msra.mxu0 0
      %311 = vmatprep.subr.bf16.mxu0 0
      %312 = vmatpush1.bf16.msra.mxu0 0
      %313 = vmatprep.subr.bf16.mxu0 0
      %314 = vmatpush1.bf16.msra.mxu0 0
      %315 = vmatprep.subr.bf16.mxu0 0
      %316 = vmatpush1.bf16.msra.mxu0 0
      %317 = vmatprep.subr.bf16.mxu0 0
      %318 = vmatpush1.bf16.msra.mxu0 0
      %319 = vmatprep.subr.bf16.mxu0 0
      %320 = vmatpush1.bf16.msra.mxu0 0
      %321 = vmatprep.subr.bf16.mxu0 0
      %322 = vmatpush1.bf16.msra.mxu0 0
      %323 = vmatprep.subr.bf16.mxu0 0
      %324 = vmatpush1.bf16.msra.mxu0 0
      %325 = vmatprep.subr.bf16.mxu0 0
      %326 = vmatpush1.bf16.msra.mxu0 0
      %327 = vmatprep.subr.bf16.mxu0 0
      %328 = vmatpush1.bf16.msra.mxu0 0
      %329 = vmatprep.mubr.bf16.mxu0 0
      %330 = vmatmul.mubr.bf16.gmra.mrb[0].mxu0 %v282
      %v331 = vpop.f32.mrb[0].mxu0
      %v332 = vadd.f32 0.0, %v331
      %v333 = vpop.f32.mrb[0].mxu0
      %v334 = vadd.f32 0.0, %v333
      %v335 = vpop.f32.mrb[0].mxu0
      %v336 = vpop.f32.mrb[0].mxu0
      %337 = vdwg.mxu0
      %338 = vmatprep.subr.bf16.mxu0 %v295
      %339 = vmatpush1.bf16.msra.mxu0 %v292
      %340 = vmatprep.subr.bf16.mxu0 0
      %341 = vmatpush1.bf16.msra.mxu0 0
      %342 = vmatprep.subr.bf16.mxu0 0
      %343 = vmatpush1.bf16.msra.mxu0 0
      %344 = vmatprep.subr.bf16.mxu0 0
      %345 = vmatpush1.bf16.msra.mxu0 0
      %346 = vmatprep.subr.bf16.mxu0 0
      %347 = vmatpush1.bf16.msra.mxu0 0
      %348 = vmatprep.subr.bf16.mxu0 0
      %349 = vmatpush1.bf16.msra.mxu0 0
      %350 = vmatprep.subr.bf16.mxu0 0
      %351 = vmatpush1.bf16.msra.mxu0 0
      %352 = vmatprep.subr.bf16.mxu0 0
      %353 = vmatpush1.bf16.msra.mxu0 0
      %354 = vmatprep.subr.bf16.mxu0 0
      %355 = vmatpush1.bf16.msra.mxu0 0
      %356 = vmatprep.subr.bf16.mxu0 0
      %357 = vmatpush1.bf16.msra.mxu0 0
      %358 = vmatprep.subr.bf16.mxu0 0
      %359 = vmatpush1.bf16.msra.mxu0 0
      %360 = vmatprep.subr.bf16.mxu0 0
      %361 = vmatpush1.bf16.msra.mxu0 0
      %362 = vmatprep.subr.bf16.mxu0 0
      %363 = vmatpush1.bf16.msra.mxu0 0
      %364 = vmatprep.subr.bf16.mxu0 0
      %365 = vmatpush1.bf16.msra.mxu0 0
      %366 = vmatprep.subr.bf16.mxu0 0
      %367 = vmatpush1.bf16.msra.mxu0 0
      %368 = vmatprep.subr.bf16.mxu0 0
      %369 = vmatpush1.bf16.msra.mxu0 0
      %370 = vmatprep.mubr.bf16.mxu0 0
      %371 = vmatmul.mubr.bf16.gmra.mrb[0].mxu0 %v282
      %v372 = vpop.f32.mrb[0].mxu0
      %v373 = vadd.f32 0.0, %v372
      %v374 = vpop.f32.mrb[0].mxu0
      %v375 = vadd.f32 0.0, %v374
      %v376 = vpop.f32.mrb[0].mxu0
      %v377 = vpop.f32.mrb[0].mxu0
      %378 = vdwg.mxu0
      %v380 = vsel %vm280, %v253, 0
      %v383 = vsel %vm284, %v264, 0
      %v386 = vsel %vm284, %v265, 0
      %v389 = vsel %vm284, %v266, 0
      %v392 = vsel %vm284, %v267, 0
      %394 = vmatprep.subr.bf16.mxu0 %v386
      %395 = vmatpush1.bf16.msra.mxu0 %v383
      %396 = vmatprep.subr.bf16.mxu0 0
      %397 = vmatpush1.bf16.msra.mxu0 0
      %398 = vmatprep.subr.bf16.mxu0 0
      %399 = vmatpush1.bf16.msra.mxu0 0
      %400 = vmatprep.subr.bf16.mxu0 0
      %401 = vmatpush1.bf16.msra.mxu0 0
      %402 = vmatprep.subr.bf16.mxu0 0
      %403 = vmatpush1.bf16.msra.mxu0 0
      %404 = vmatprep.subr.bf16.mxu0 0
      %405 = vmatpush1.bf16.msra.mxu0 0
      %406 = vmatprep.subr.bf16.mxu0 0
      %407 = vmatpush1.bf16.msra.mxu0 0
      %408 = vmatprep.subr.bf16.mxu0 0
      %409 = vmatpush1.bf16.msra.mxu0 0
      %410 = vmatprep.subr.bf16.mxu0 0
      %411 = vmatpush1.bf16.msra.mxu0 0
      %412 = vmatprep.subr.bf16.mxu0 0
      %413 = vmatpush1.bf16.msra.mxu0 0
      %414 = vmatprep.subr.bf16.mxu0 0
      %415 = vmatpush1.bf16.msra.mxu0 0
      %416 = vmatprep.subr.bf16.mxu0 0
      %417 = vmatpush1.bf16.msra.mxu0 0
      %418 = vmatprep.subr.bf16.mxu0 0
      %419 = vmatpush1.bf16.msra.mxu0 0
      %420 = vmatprep.subr.bf16.mxu0 0
      %421 = vmatpush1.bf16.msra.mxu0 0
      %422 = vmatprep.subr.bf16.mxu0 0
      %423 = vmatpush1.bf16.msra.mxu0 0
      %424 = vmatprep.subr.bf16.mxu0 0
      %425 = vmatpush1.bf16.msra.mxu0 0
      %426 = vmatprep.mubr.bf16.mxu0 0
      %427 = vmatmul.mubr.bf16.gmra.mrb[0].mxu0 %v380
      %v428 = vpop.f32.mrb[0].mxu0
      %v429 = vadd.f32 %v332, %v428
      %v430 = vpop.f32.mrb[0].mxu0
      %v431 = vadd.f32 %v334, %v430
      %v432 = vpop.f32.mrb[0].mxu0
      %v433 = vpop.f32.mrb[0].mxu0
      %434 = vdwg.mxu0
      %435 = vmatprep.subr.bf16.mxu0 %v392
      %436 = vmatpush1.bf16.msra.mxu0 %v389
      %437 = vmatprep.subr.bf16.mxu0 0
      %438 = vmatpush1.bf16.msra.mxu0 0
      %439 = vmatprep.subr.bf16.mxu0 0
      %440 = vmatpush1.bf16.msra.mxu0 0
      %441 = vmatprep.subr.bf16.mxu0 0
      %442 = vmatpush1.bf16.msra.mxu0 0
      %443 = vmatprep.subr.bf16.mxu0 0
      %444 = vmatpush1.bf16.msra.mxu0 0
      %445 = vmatprep.subr.bf16.mxu0 0
      %446 = vmatpush1.bf16.msra.mxu0 0
      %447 = vmatprep.subr.bf16.mxu0 0
      %448 = vmatpush1.bf16.msra.mxu0 0
      %449 = vmatprep.subr.bf16.mxu0 0
      %450 = vmatpush1.bf16.msra.mxu0 0
      %451 = vmatprep.subr.bf16.mxu0 0
      %452 = vmatpush1.bf16.msra.mxu0 0
      %453 = vmatprep.subr.bf16.mxu0 0
      %454 = vmatpush1.bf16.msra.mxu0 0
      %455 = vmatprep.subr.bf16.mxu0 0
      %456 = vmatpush1.bf16.msra.mxu0 0
      %457 = vmatprep.subr.bf16.mxu0 0
      %458 = vmatpush1.bf16.msra.mxu0 0
      %459 = vmatprep.subr.bf16.mxu0 0
      %460 = vmatpush1.bf16.msra.mxu0 0
      %461 = vmatprep.subr.bf16.mxu0 0
      %462 = vmatpush1.bf16.msra.mxu0 0
      %463 = vmatprep.subr.bf16.mxu0 0
      %464 = vmatpush1.bf16.msra.mxu0 0
      %465 = vmatprep.subr.bf16.mxu0 0
      %466 = vmatpush1.bf16.msra.mxu0 0
      %467 = vmatprep.mubr.bf16.mxu0 0
      %468 = vmatmul.mubr.bf16.gmra.mrb[0].mxu0 %v380
      %v469 = vpop.f32.mrb[0].mxu0
      %v470 = vadd.f32 %v373, %v469
      %v471 = vpop.f32.mrb[0].mxu0
      %v472 = vadd.f32 %v375, %v471
      %v473 = vpop.f32.mrb[0].mxu0
      %v474 = vpop.f32.mrb[0].mxu0
      %475 = vdwg.mxu0
      %s476 = scalar_lea.vmem %s1, 8
      %v477 = vld [vmem:[%s476] sm:$0xf]
      %478 = vrot.lane.b32.xlu0 %v264, 126
      %v479 = vpop.permute.xlu0 %478
      %480 = vrot.lane.b32.xlu0 %v265, 126
      %v481 = vpop.permute.xlu0 %480
      %482 = vrot.lane.b32.xlu0 %v266, 126
      %v483 = vpop.permute.xlu0 %482
      %484 = vrot.lane.b32.xlu0 %v267, 126
      %v485 = vpop.permute.xlu0 %484
      %vm486 = vcmask 1031168
      %v487 = vsel %vm486, %v479, %v481
      %v488 = vsel %vm486, %v481, %v483
      %v489 = vsel %vm486, %v483, %v485
      %v491 = vsel %vm280, %v477, 0
      %v494 = vsel %vm284, %v487, 0
      %v497 = vsel %vm284, %v488, 0
      %v500 = vsel %vm284, %v489, 0
      %v503 = vsel %vm284, %v485, 0
      %505 = vmatprep.subr.bf16.mxu0 %v497
      %506 = vmatpush1.bf16.msra.mxu0 %v494
      %507 = vmatprep.subr.bf16.mxu0 0
      %508 = vmatpush1.bf16.msra.mxu0 0
      %509 = vmatprep.subr.bf16.mxu0 0
      %510 = vmatpush1.bf16.msra.mxu0 0
      %511 = vmatprep.subr.bf16.mxu0 0
      %512 = vmatpush1.bf16.msra.mxu0 0
      %513 = vmatprep.subr.bf16.mxu0 0
      %514 = vmatpush1.bf16.msra.mxu0 0
      %515 = vmatprep.subr.bf16.mxu0 0
      %516 = vmatpush1.bf16.msra.mxu0 0
      %517 = vmatprep.subr.bf16.mxu0 0
      %518 = vmatpush1.bf16.msra.mxu0 0
      %519 = vmatprep.subr.bf16.mxu0 0
      %520 = vmatpush1.bf16.msra.mxu0 0
      %521 = vmatprep.subr.bf16.mxu0 0
      %522 = vmatpush1.bf16.msra.mxu0 0
      %523 = vmatprep.subr.bf16.mxu0 0
      %524 = vmatpush1.bf16.msra.mxu0 0
      %525 = vmatprep.subr.bf16.mxu0 0
      %526 = vmatpush1.bf16.msra.mxu0 0
      %527 = vmatprep.subr.bf16.mxu0 0
      %528 = vmatpush1.bf16.msra.mxu0 0
      %529 = vmatprep.subr.bf16.mxu0 0
      %530 = vmatpush1.bf16.msra.mxu0 0
      %531 = vmatprep.subr.bf16.mxu0 0
      %532 = vmatpush1.bf16.msra.mxu0 0
      %533 = vmatprep.subr.bf16.mxu0 0
      %534 = vmatpush1.bf16.msra.mxu0 0
      %535 = vmatprep.subr.bf16.mxu0 0
      %536 = vmatpush1.bf16.msra.mxu0 0
      %537 = vmatprep.mubr.bf16.mxu0 0
      %538 = vmatmul.mubr.bf16.gmra.mrb[0].mxu0 %v491
      %v539 = vpop.f32.mrb[0].mxu0
      %v540 = vadd.f32 0.0, %v539
      %v541 = vpop.f32.mrb[0].mxu0
      %v542 = vadd.f32 0.0, %v541
      %v543 = vpop.f32.mrb[0].mxu0
      %v544 = vpop.f32.mrb[0].mxu0
      %545 = vdwg.mxu0
      %546 = vmatprep.subr.bf16.mxu0 %v503
      %547 = vmatpush1.bf16.msra.mxu0 %v500
      %548 = vmatprep.subr.bf16.mxu0 0
      %549 = vmatpush1.bf16.msra.mxu0 0
      %550 = vmatprep.subr.bf16.mxu0 0
      %551 = vmatpush1.bf16.msra.mxu0 0
      %552 = vmatprep.subr.bf16.mxu0 0
      %553 = vmatpush1.bf16.msra.mxu0 0
      %554 = vmatprep.subr.bf16.mxu0 0
      %555 = vmatpush1.bf16.msra.mxu0 0
      %556 = vmatprep.subr.bf16.mxu0 0
      %557 = vmatpush1.bf16.msra.mxu0 0
      %558 = vmatprep.subr.bf16.mxu0 0
      %559 = vmatpush1.bf16.msra.mxu0 0
      %560 = vmatprep.subr.bf16.mxu0 0
      %561 = vmatpush1.bf16.msra.mxu0 0
      %562 = vmatprep.subr.bf16.mxu0 0
      %563 = vmatpush1.bf16.msra.mxu0 0
      %564 = vmatprep.subr.bf16.mxu0 0
      %565 = vmatpush1.bf16.msra.mxu0 0
      %566 = vmatprep.subr.bf16.mxu0 0
      %567 = vmatpush1.bf16.msra.mxu0 0
      %568 = vmatprep.subr.bf16.mxu0 0
      %569 = vmatpush1.bf16.msra.mxu0 0
      %570 = vmatprep.subr.bf16.mxu0 0
      %571 = vmatpush1.bf16.msra.mxu0 0
      %572 = vmatprep.subr.bf16.mxu0 0
      %573 = vmatpush1.bf16.msra.mxu0 0
      %574 = vmatprep.subr.bf16.mxu0 0
      %575 = vmatpush1.bf16.msra.mxu0 0
      %576 = vmatprep.subr.bf16.mxu0 0
      %577 = vmatpush1.bf16.msra.mxu0 0
      %578 = vmatprep.mubr.bf16.mxu0 0
      %579 = vmatmul.mubr.bf16.gmra.mrb[0].mxu0 %v491
      %v580 = vpop.f32.mrb[0].mxu0
      %v581 = vadd.f32 0.0, %v580
      %v582 = vpop.f32.mrb[0].mxu0
      %v583 = vadd.f32 0.0, %v582
      %v584 = vpop.f32.mrb[0].mxu0
      %v585 = vpop.f32.mrb[0].mxu0
      %586 = vdwg.mxu0
      %v587 = vadd.f32 %v429, %v540
      %v588 = vadd.f32 %v431, %v542
      %v589 = vadd.f32 %v470, %v581
      %v590 = vadd.f32 %v472, %v583
      %s591 = scalar_lea.vmem %s1, 12
      %v592 = vld [vmem:[%s591] sm:$0xf]
      %593 = vrot.lane.b32.xlu0 %v264, 118
      %v594 = vpop.permute.xlu0 %593
      %595 = vrot.lane.b32.xlu0 %v265, 118
      %v596 = vpop.permute.xlu0 %595
      %597 = vrot.lane.b32.xlu0 %v266, 118
      %v598 = vpop.permute.xlu0 %597
      %599 = vrot.lane.b32.xlu0 %v267, 118
      %v600 = vpop.permute.xlu0 %599
      %vm601 = vcmask 965632
      %v602 = vsel %vm601, %v594, %v596
      %v603 = vsel %vm601, %v596, %v598
      %v604 = vsel %vm601, %v598, %v600
      %v606 = vsel %vm280, %v592, 0
      %v609 = vsel %vm284, %v602, 0
      %v612 = vsel %vm284, %v603, 0
      %v615 = vsel %vm284, %v604, 0
      %v618 = vsel %vm284, %v600, 0
      %620 = vmatprep.subr.bf16.mxu0 %v612
      %621 = vmatpush1.bf16.msra.mxu0 %v609
      %622 = vmatprep.subr.bf16.mxu0 0
      %623 = vmatpush1.bf16.msra.mxu0 0
      %624 = vmatprep.subr.bf16.mxu0 0
      %625 = vmatpush1.bf16.msra.mxu0 0
      %626 = vmatprep.subr.bf16.mxu0 0
      %627 = vmatpush1.bf16.msra.mxu0 0
      %628 = vmatprep.subr.bf16.mxu0 0
      %629 = vmatpush1.bf16.msra.mxu0 0
      %630 = vmatprep.subr.bf16.mxu0 0
      %631 = vmatpush1.bf16.msra.mxu0 0
      %632 = vmatprep.subr.bf16.mxu0 0
      %633 = vmatpush1.bf16.msra.mxu0 0
      %634 = vmatprep.subr.bf16.mxu0 0
      %635 = vmatpush1.bf16.msra.mxu0 0
      %636 = vmatprep.subr.bf16.mxu0 0
      %637 = vmatpush1.bf16.msra.mxu0 0
      %638 = vmatprep.subr.bf16.mxu0 0
      %639 = vmatpush1.bf16.msra.mxu0 0
      %640 = vmatprep.subr.bf16.mxu0 0
      %641 = vmatpush1.bf16.msra.mxu0 0
      %642 = vmatprep.subr.bf16.mxu0 0
      %643 = vmatpush1.bf16.msra.mxu0 0
      %644 = vmatprep.subr.bf16.mxu0 0
      %645 = vmatpush1.bf16.msra.mxu0 0
      %646 = vmatprep.subr.bf16.mxu0 0
      %647 = vmatpush1.bf16.msra.mxu0 0
      %648 = vmatprep.subr.bf16.mxu0 0
      %649 = vmatpush1.bf16.msra.mxu0 0
      %650 = vmatprep.subr.bf16.mxu0 0
      %651 = vmatpush1.bf16.msra.mxu0 0
      %652 = vmatprep.mubr.bf16.mxu0 0
      %653 = vmatmul.mubr.bf16.gmra.mrb[0].mxu0 %v606
      %v654 = vpop.f32.mrb[0].mxu0
      %v655 = vadd.f32 0.0, %v654
      %v656 = vpop.f32.mrb[0].mxu0
      %v657 = vadd.f32 0.0, %v656
      %v658 = vpop.f32.mrb[0].mxu0
      %v659 = vpop.f32.mrb[0].mxu0
      %660 = vdwg.mxu0
      %661 = vmatprep.subr.bf16.mxu0 %v618
      %662 = vmatpush1.bf16.msra.mxu0 %v615
      %663 = vmatprep.subr.bf16.mxu0 0
      %664 = vmatpush1.bf16.msra.mxu0 0
      %665 = vmatprep.subr.bf16.mxu0 0
      %666 = vmatpush1.bf16.msra.mxu0 0
      %667 = vmatprep.subr.bf16.mxu0 0
      %668 = vmatpush1.bf16.msra.mxu0 0
      %669 = vmatprep.subr.bf16.mxu0 0
      %670 = vmatpush1.bf16.msra.mxu0 0
      %671 = vmatprep.subr.bf16.mxu0 0
      %672 = vmatpush1.bf16.msra.mxu0 0
      %673 = vmatprep.subr.bf16.mxu0 0
      %674 = vmatpush1.bf16.msra.mxu0 0
      %675 = vmatprep.subr.bf16.mxu0 0
      %676 = vmatpush1.bf16.msra.mxu0 0
      %677 = vmatprep.subr.bf16.mxu0 0
      %678 = vmatpush1.bf16.msra.mxu0 0
      %679 = vmatprep.subr.bf16.mxu0 0
      %680 = vmatpush1.bf16.msra.mxu0 0
      %681 = vmatprep.subr.bf16.mxu0 0
      %682 = vmatpush1.bf16.msra.mxu0 0
      %683 = vmatprep.subr.bf16.mxu0 0
      %684 = vmatpush1.bf16.msra.mxu0 0
      %685 = vmatprep.subr.bf16.mxu0 0
      %686 = vmatpush1.bf16.msra.mxu0 0
      %687 = vmatprep.subr.bf16.mxu0 0
      %688 = vmatpush1.bf16.msra.mxu0 0
      %689 = vmatprep.subr.bf16.mxu0 0
      %690 = vmatpush1.bf16.msra.mxu0 0
      %691 = vmatprep.subr.bf16.mxu0 0
      %692 = vmatpush1.bf16.msra.mxu0 0
      %693 = vmatprep.mubr.bf16.mxu0 0
      %694 = vmatmul.mubr.bf16.gmra.mrb[0].mxu0 %v606
      %v695 = vpop.f32.mrb[0].mxu0
      %v696 = vadd.f32 0.0, %v695
      %v697 = vpop.f32.mrb[0].mxu0
      %v698 = vadd.f32 0.0, %v697
      %v699 = vpop.f32.mrb[0].mxu0
      %v700 = vpop.f32.mrb[0].mxu0
      %701 = vdwg.mxu0
      %v702 = vadd.f32 %v587, %v655
      %v703 = vadd.f32 %v588, %v657
      %v704 = vadd.f32 %v589, %v696
      %v705 = vadd.f32 %v590, %v698
      %s706 = scalar_lea.vmem %s1, 16
      %v707 = vld [vmem:[%s706] sm:$0xf]
      %708 = vrot.lane.b32.xlu0 %v264, 117
      %v709 = vpop.permute.xlu0 %708
      %710 = vrot.lane.b32.xlu0 %v265, 117
      %v711 = vpop.permute.xlu0 %710
      %712 = vrot.lane.b32.xlu0 %v266, 117
      %v713 = vpop.permute.xlu0 %712
      %714 = vrot.lane.b32.xlu0 %v267, 117
      %v715 = vpop.permute.xlu0 %714
      %vm716 = vcmask 957440
      %v717 = vsel %vm716, %v709, %v711
      %v718 = vsel %vm716, %v711, %v713
      %v719 = vsel %vm716, %v713, %v715
      %v721 = vsel %vm280, %v707, 0
      %v724 = vsel %vm284, %v717, 0
      %v727 = vsel %vm284, %v718, 0
      %v730 = vsel %vm284, %v719, 0
      %v733 = vsel %vm284, %v715, 0
      %735 = vmatprep.subr.bf16.mxu0 %v727
      %736 = vmatpush1.bf16.msra.mxu0 %v724
      %737 = vmatprep.subr.bf16.mxu0 0
      %738 = vmatpush1.bf16.msra.mxu0 0
      %739 = vmatprep.subr.bf16.mxu0 0
      %740 = vmatpush1.bf16.msra.mxu0 0
      %741 = vmatprep.subr.bf16.mxu0 0
      %742 = vmatpush1.bf16.msra.mxu0 0
      %743 = vmatprep.subr.bf16.mxu0 0
      %744 = vmatpush1.bf16.msra.mxu0 0
      %745 = vmatprep.subr.bf16.mxu0 0
      %746 = vmatpush1.bf16.msra.mxu0 0
      %747 = vmatprep.subr.bf16.mxu0 0
      %748 = vmatpush1.bf16.msra.mxu0 0
      %749 = vmatprep.subr.bf16.mxu0 0
      %750 = vmatpush1.bf16.msra.mxu0 0
      %751 = vmatprep.subr.bf16.mxu0 0
      %752 = vmatpush1.bf16.msra.mxu0 0
      %753 = vmatprep.subr.bf16.mxu0 0
      %754 = vmatpush1.bf16.msra.mxu0 0
      %755 = vmatprep.subr.bf16.mxu0 0
      %756 = vmatpush1.bf16.msra.mxu0 0
      %757 = vmatprep.subr.bf16.mxu0 0
      %758 = vmatpush1.bf16.msra.mxu0 0
      %759 = vmatprep.subr.bf16.mxu0 0
      %760 = vmatpush1.bf16.msra.mxu0 0
      %761 = vmatprep.subr.bf16.mxu0 0
      %762 = vmatpush1.bf16.msra.mxu0 0
      %763 = vmatprep.subr.bf16.mxu0 0
      %764 = vmatpush1.bf16.msra.mxu0 0
      %765 = vmatprep.subr.bf16.mxu0 0
      %766 = vmatpush1.bf16.msra.mxu0 0
      %767 = vmatprep.mubr.bf16.mxu0 0
      %768 = vmatmul.mubr.bf16.gmra.mrb[0].mxu0 %v721
      %v769 = vpop.f32.mrb[0].mxu0
      %v770 = vadd.f32 0.0, %v769
      %v771 = vpop.f32.mrb[0].mxu0
      %v772 = vadd.f32 0.0, %v771
      %v773 = vpop.f32.mrb[0].mxu0
      %v774 = vpop.f32.mrb[0].mxu0
      %775 = vdwg.mxu0
      %776 = vmatprep.subr.bf16.mxu0 %v733
      %777 = vmatpush1.bf16.msra.mxu0 %v730
      %778 = vmatprep.subr.bf16.mxu0 0
      %779 = vmatpush1.bf16.msra.mxu0 0
      %780 = vmatprep.subr.bf16.mxu0 0
      %781 = vmatpush1.bf16.msra.mxu0 0
      %782 = vmatprep.subr.bf16.mxu0 0
      %783 = vmatpush1.bf16.msra.mxu0 0
      %784 = vmatprep.subr.bf16.mxu0 0
      %785 = vmatpush1.bf16.msra.mxu0 0
      %786 = vmatprep.subr.bf16.mxu0 0
      %787 = vmatpush1.bf16.msra.mxu0 0
      %788 = vmatprep.subr.bf16.mxu0 0
      %789 = vmatpush1.bf16.msra.mxu0 0
      %790 = vmatprep.subr.bf16.mxu0 0
      %791 = vmatpush1.bf16.msra.mxu0 0
      %792 = vmatprep.subr.bf16.mxu0 0
      %793 = vmatpush1.bf16.msra.mxu0 0
      %794 = vmatprep.subr.bf16.mxu0 0
      %795 = vmatpush1.bf16.msra.mxu0 0
      %796 = vmatprep.subr.bf16.mxu0 0
      %797 = vmatpush1.bf16.msra.mxu0 0
      %798 = vmatprep.subr.bf16.mxu0 0
      %799 = vmatpush1.bf16.msra.mxu0 0
      %800 = vmatprep.subr.bf16.mxu0 0
      %801 = vmatpush1.bf16.msra.mxu0 0
      %802 = vmatprep.subr.bf16.mxu0 0
      %803 = vmatpush1.bf16.msra.mxu0 0
      %804 = vmatprep.subr.bf16.mxu0 0
      %805 = vmatpush1.bf16.msra.mxu0 0
      %806 = vmatprep.subr.bf16.mxu0 0
      %807 = vmatpush1.bf16.msra.mxu0 0
      %808 = vmatprep.mubr.bf16.mxu0 0
      %809 = vmatmul.mubr.bf16.gmra.mrb[0].mxu0 %v721
      %v810 = vpop.f32.mrb[0].mxu0
      %v811 = vadd.f32 0.0, %v810
      %v812 = vpop.f32.mrb[0].mxu0
      %v813 = vadd.f32 0.0, %v812
      %v814 = vpop.f32.mrb[0].mxu0
      %v815 = vpop.f32.mrb[0].mxu0
      %816 = vdwg.mxu0
      %v817 = vadd.f32 %v702, %v770
      %v818 = vadd.f32 %v703, %v772
      %v819 = vadd.f32 %v704, %v811
      %v820 = vadd.f32 %v705, %v813
      %s821 = scalar_lea.vmem %s1, 20
      %v822 = vld [vmem:[%s821] sm:$0xf]
      %823 = vrot.lane.b32.xlu0 %v264, 116
      %v824 = vpop.permute.xlu0 %823
      %825 = vrot.lane.b32.xlu0 %v265, 116
      %v826 = vpop.permute.xlu0 %825
      %827 = vrot.lane.b32.xlu0 %v266, 116
      %v828 = vpop.permute.xlu0 %827
      %829 = vrot.lane.b32.xlu0 %v267, 116
      %v830 = vpop.permute.xlu0 %829
      %vm831 = vcmask 949248
      %v832 = vsel %vm831, %v824, %v826
      %v833 = vsel %vm831, %v826, %v828
      %v834 = vsel %vm831, %v828, %v830
      %v836 = vsel %vm280, %v822, 0
      %v839 = vsel %vm284, %v832, 0
      %v842 = vsel %vm284, %v833, 0
      %v845 = vsel %vm284, %v834, 0
      %v848 = vsel %vm284, %v830, 0
      %850 = vmatprep.subr.bf16.mxu0 %v842
      %851 = vmatpush1.bf16.msra.mxu0 %v839
      %852 = vmatprep.subr.bf16.mxu0 0
      %853 = vmatpush1.bf16.msra.mxu0 0
      %854 = vmatprep.subr.bf16.mxu0 0
      %855 = vmatpush1.bf16.msra.mxu0 0
      %856 = vmatprep.subr.bf16.mxu0 0
      %857 = vmatpush1.bf16.msra.mxu0 0
      %858 = vmatprep.subr.bf16.mxu0 0
      %859 = vmatpush1.bf16.msra.mxu0 0
      %860 = vmatprep.subr.bf16.mxu0 0
      %861 = vmatpush1.bf16.msra.mxu0 0
      %862 = vmatprep.subr.bf16.mxu0 0
      %863 = vmatpush1.bf16.msra.mxu0 0
      %864 = vmatprep.subr.bf16.mxu0 0
      %865 = vmatpush1.bf16.msra.mxu0 0
      %866 = vmatprep.subr.bf16.mxu0 0
      %867 = vmatpush1.bf16.msra.mxu0 0
      %868 = vmatprep.subr.bf16.mxu0 0
      %869 = vmatpush1.bf16.msra.mxu0 0
      %870 = vmatprep.subr.bf16.mxu0 0
      %871 = vmatpush1.bf16.msra.mxu0 0
      %872 = vmatprep.subr.bf16.mxu0 0
      %873 = vmatpush1.bf16.msra.mxu0 0
      %874 = vmatprep.subr.bf16.mxu0 0
      %875 = vmatpush1.bf16.msra.mxu0 0
      %876 = vmatprep.subr.bf16.mxu0 0
      %877 = vmatpush1.bf16.msra.mxu0 0
      %878 = vmatprep.subr.bf16.mxu0 0
      %879 = vmatpush1.bf16.msra.mxu0 0
      %880 = vmatprep.subr.bf16.mxu0 0
      %881 = vmatpush1.bf16.msra.mxu0 0
      %882 = vmatprep.mubr.bf16.mxu0 0
      %883 = vmatmul.mubr.bf16.gmra.mrb[0].mxu0 %v836
      %v884 = vpop.f32.mrb[0].mxu0
      %v885 = vadd.f32 0.0, %v884
      %v886 = vpop.f32.mrb[0].mxu0
      %v887 = vadd.f32 0.0, %v886
      %v888 = vpop.f32.mrb[0].mxu0
      %v889 = vpop.f32.mrb[0].mxu0
      %890 = vdwg.mxu0
      %891 = vmatprep.subr.bf16.mxu0 %v848
      %892 = vmatpush1.bf16.msra.mxu0 %v845
      %893 = vmatprep.subr.bf16.mxu0 0
      %894 = vmatpush1.bf16.msra.mxu0 0
      %895 = vmatprep.subr.bf16.mxu0 0
      %896 = vmatpush1.bf16.msra.mxu0 0
      %897 = vmatprep.subr.bf16.mxu0 0
      %898 = vmatpush1.bf16.msra.mxu0 0
      %899 = vmatprep.subr.bf16.mxu0 0
      %900 = vmatpush1.bf16.msra.mxu0 0
      %901 = vmatprep.subr.bf16.mxu0 0
      %902 = vmatpush1.bf16.msra.mxu0 0
      %903 = vmatprep.subr.bf16.mxu0 0
      %904 = vmatpush1.bf16.msra.mxu0 0
      %905 = vmatprep.subr.bf16.mxu0 0
      %906 = vmatpush1.bf16.msra.mxu0 0
      %907 = vmatprep.subr.bf16.mxu0 0
      %908 = vmatpush1.bf16.msra.mxu0 0
      %909 = vmatprep.subr.bf16.mxu0 0
      %910 = vmatpush1.bf16.msra.mxu0 0
      %911 = vmatprep.subr.bf16.mxu0 0
      %912 = vmatpush1.bf16.msra.mxu0 0
      %913 = vmatprep.subr.bf16.mxu0 0
      %914 = vmatpush1.bf16.msra.mxu0 0
      %915 = vmatprep.subr.bf16.mxu0 0
      %916 = vmatpush1.bf16.msra.mxu0 0
      %917 = vmatprep.subr.bf16.mxu0 0
      %918 = vmatpush1.bf16.msra.mxu0 0
      %919 = vmatprep.subr.bf16.mxu0 0
      %920 = vmatpush1.bf16.msra.mxu0 0
      %921 = vmatprep.subr.bf16.mxu0 0
      %922 = vmatpush1.bf16.msra.mxu0 0
      %923 = vmatprep.mubr.bf16.mxu0 0
      %924 = vmatmul.mubr.bf16.gmra.mrb[0].mxu0 %v836
      %v925 = vpop.f32.mrb[0].mxu0
      %v926 = vadd.f32 0.0, %v925
      %v927 = vpop.f32.mrb[0].mxu0
      %v928 = vadd.f32 0.0, %v927
      %v929 = vpop.f32.mrb[0].mxu0
      %v930 = vpop.f32.mrb[0].mxu0
      %931 = vdwg.mxu0
      %v932 = vadd.f32 %v817, %v885
      %v933 = vadd.f32 %v818, %v887
      %v934 = vadd.f32 %v819, %v926
      %v935 = vadd.f32 %v820, %v928
      %s936 = scalar_lea.vmem %s1, 24
      %v937 = vld [vmem:[%s936] sm:$0xf]
      %938 = vrot.lane.b32.xlu0 %v264, 108
      %v939 = vpop.permute.xlu0 %938
      %940 = vrot.lane.b32.xlu0 %v265, 108
      %v941 = vpop.permute.xlu0 %940
      %942 = vrot.lane.b32.xlu0 %v266, 108
      %v943 = vpop.permute.xlu0 %942
      %944 = vrot.lane.b32.xlu0 %v267, 108
      %v945 = vpop.permute.xlu0 %944
      %vm946 = vcmask 883712
      %v947 = vsel %vm946, %v939, %v941
      %v948 = vsel %vm946, %v941, %v943
      %v949 = vsel %vm946, %v943, %v945
      %v951 = vsel %vm280, %v937, 0
      %v954 = vsel %vm284, %v947, 0
      %v957 = vsel %vm284, %v948, 0
      %v960 = vsel %vm284, %v949, 0
      %v963 = vsel %vm284, %v945, 0
      %965 = vmatprep.subr.bf16.mxu0 %v957
      %966 = vmatpush1.bf16.msra.mxu0 %v954
      %967 = vmatprep.subr.bf16.mxu0 0
      %968 = vmatpush1.bf16.msra.mxu0 0
      %969 = vmatprep.subr.bf16.mxu0 0
      %970 = vmatpush1.bf16.msra.mxu0 0
      %971 = vmatprep.subr.bf16.mxu0 0
      %972 = vmatpush1.bf16.msra.mxu0 0
      %973 = vmatprep.subr.bf16.mxu0 0
      %974 = vmatpush1.bf16.msra.mxu0 0
      %975 = vmatprep.subr.bf16.mxu0 0
      %976 = vmatpush1.bf16.msra.mxu0 0
      %977 = vmatprep.subr.bf16.mxu0 0
      %978 = vmatpush1.bf16.msra.mxu0 0
      %979 = vmatprep.subr.bf16.mxu0 0
      %980 = vmatpush1.bf16.msra.mxu0 0
      %981 = vmatprep.subr.bf16.mxu0 0
      %982 = vmatpush1.bf16.msra.mxu0 0
      %983 = vmatprep.subr.bf16.mxu0 0
      %984 = vmatpush1.bf16.msra.mxu0 0
      %985 = vmatprep.subr.bf16.mxu0 0
      %986 = vmatpush1.bf16.msra.mxu0 0
      %987 = vmatprep.subr.bf16.mxu0 0
      %988 = vmatpush1.bf16.msra.mxu0 0
      %989 = vmatprep.subr.bf16.mxu0 0
      %990 = vmatpush1.bf16.msra.mxu0 0
      %991 = vmatprep.subr.bf16.mxu0 0
      %992 = vmatpush1.bf16.msra.mxu0 0
      %993 = vmatprep.subr.bf16.mxu0 0
      %994 = vmatpush1.bf16.msra.mxu0 0
      %995 = vmatprep.subr.bf16.mxu0 0
      %996 = vmatpush1.bf16.msra.mxu0 0
      %997 = vmatprep.mubr.bf16.mxu0 0
      %998 = vmatmul.mubr.bf16.gmra.mrb[0].mxu0 %v951
      %v999 = vpop.f32.mrb[0].mxu0
      %v1000 = vadd.f32 0.0, %v999
      %v1001 = vpop.f32.mrb[0].mxu0
      %v1002 = vadd.f32 0.0, %v1001
      %v1003 = vpop.f32.mrb[0].mxu0
      %v1004 = vpop.f32.mrb[0].mxu0
      %1005 = vdwg.mxu0
      %1006 = vmatprep.subr.bf16.mxu0 %v963
      %1007 = vmatpush1.bf16.msra.mxu0 %v960
      %1008 = vmatprep.subr.bf16.mxu0 0
      %1009 = vmatpush1.bf16.msra.mxu0 0
      %1010 = vmatprep.subr.bf16.mxu0 0
      %1011 = vmatpush1.bf16.msra.mxu0 0
      %1012 = vmatprep.subr.bf16.mxu0 0
      %1013 = vmatpush1.bf16.msra.mxu0 0
      %1014 = vmatprep.subr.bf16.mxu0 0
      %1015 = vmatpush1.bf16.msra.mxu0 0
      %1016 = vmatprep.subr.bf16.mxu0 0
      %1017 = vmatpush1.bf16.msra.mxu0 0
      %1018 = vmatprep.subr.bf16.mxu0 0
      %1019 = vmatpush1.bf16.msra.mxu0 0
      %1020 = vmatprep.subr.bf16.mxu0 0
      %1021 = vmatpush1.bf16.msra.mxu0 0
      %1022 = vmatprep.subr.bf16.mxu0 0
      %1023 = vmatpush1.bf16.msra.mxu0 0
      %1024 = vmatprep.subr.bf16.mxu0 0
      %1025 = vmatpush1.bf16.msra.mxu0 0
      %1026 = vmatprep.subr.bf16.mxu0 0
      %1027 = vmatpush1.bf16.msra.mxu0 0
      %1028 = vmatprep.subr.bf16.mxu0 0
      %1029 = vmatpush1.bf16.msra.mxu0 0
      %1030 = vmatprep.subr.bf16.mxu0 0
      %1031 = vmatpush1.bf16.msra.mxu0 0
      %1032 = vmatprep.subr.bf16.mxu0 0
      %1033 = vmatpush1.bf16.msra.mxu0 0
      %1034 = vmatprep.subr.bf16.mxu0 0
      %1035 = vmatpush1.bf16.msra.mxu0 0
      %1036 = vmatprep.subr.bf16.mxu0 0
      %1037 = vmatpush1.bf16.msra.mxu0 0
      %1038 = vmatprep.mubr.bf16.mxu0 0
      %1039 = vmatmul.mubr.bf16.gmra.mrb[0].mxu0 %v951
      %v1040 = vpop.f32.mrb[0].mxu0
      %v1041 = vadd.f32 0.0, %v1040
      %v1042 = vpop.f32.mrb[0].mxu0
      %v1043 = vadd.f32 0.0, %v1042
      %v1044 = vpop.f32.mrb[0].mxu0
      %v1045 = vpop.f32.mrb[0].mxu0
      %1046 = vdwg.mxu0
      %v1047 = vadd.f32 %v932, %v1000
      %v1048 = vadd.f32 %v933, %v1002
      %v1049 = vadd.f32 %v934, %v1041
      %v1050 = vadd.f32 %v935, %v1043
      %s1051 = scalar_lea.vmem %s1, 28
      %v1052 = vld [vmem:[%s1051] sm:$0xf]
      %1053 = vrot.lane.b32.xlu0 %v264, 107
      %v1054 = vpop.permute.xlu0 %1053
      %1055 = vrot.lane.b32.xlu0 %v265, 107
      %v1056 = vpop.permute.xlu0 %1055
      %1057 = vrot.lane.b32.xlu0 %v266, 107
      %v1058 = vpop.permute.xlu0 %1057
      %1059 = vrot.lane.b32.xlu0 %v267, 107
      %v1060 = vpop.permute.xlu0 %1059
      %vm1061 = vcmask 875520
      %v1062 = vsel %vm1061, %v1054, %v1056
      %v1063 = vsel %vm1061, %v1056, %v1058
      %v1064 = vsel %vm1061, %v1058, %v1060
      %v1066 = vsel %vm280, %v1052, 0
      %v1069 = vsel %vm284, %v1062, 0
      %v1072 = vsel %vm284, %v1063, 0
      %v1075 = vsel %vm284, %v1064, 0
      %v1078 = vsel %vm284, %v1060, 0
      %1080 = vmatprep.subr.bf16.mxu0 %v1072
      %1081 = vmatpush1.bf16.msra.mxu0 %v1069
      %1082 = vmatprep.subr.bf16.mxu0 0
      %1083 = vmatpush1.bf16.msra.mxu0 0
      %1084 = vmatprep.subr.bf16.mxu0 0
      %1085 = vmatpush1.bf16.msra.mxu0 0
      %1086 = vmatprep.subr.bf16.mxu0 0
      %1087 = vmatpush1.bf16.msra.mxu0 0
      %1088 = vmatprep.subr.bf16.mxu0 0
      %1089 = vmatpush1.bf16.msra.mxu0 0
      %1090 = vmatprep.subr.bf16.mxu0 0
      %1091 = vmatpush1.bf16.msra.mxu0 0
      %1092 = vmatprep.subr.bf16.mxu0 0
      %1093 = vmatpush1.bf16.msra.mxu0 0
      %1094 = vmatprep.subr.bf16.mxu0 0
      %1095 = vmatpush1.bf16.msra.mxu0 0
      %1096 = vmatprep.subr.bf16.mxu0 0
      %1097 = vmatpush1.bf16.msra.mxu0 0
      %1098 = vmatprep.subr.bf16.mxu0 0
      %1099 = vmatpush1.bf16.msra.mxu0 0
      %1100 = vmatprep.subr.bf16.mxu0 0
      %1101 = vmatpush1.bf16.msra.mxu0 0
      %1102 = vmatprep.subr.bf16.mxu0 0
      %1103 = vmatpush1.bf16.msra.mxu0 0
      %1104 = vmatprep.subr.bf16.mxu0 0
      %1105 = vmatpush1.bf16.msra.mxu0 0
      %1106 = vmatprep.subr.bf16.mxu0 0
      %1107 = vmatpush1.bf16.msra.mxu0 0
      %1108 = vmatprep.subr.bf16.mxu0 0
      %1109 = vmatpush1.bf16.msra.mxu0 0
      %1110 = vmatprep.subr.bf16.mxu0 0
      %1111 = vmatpush1.bf16.msra.mxu0 0
      %1112 = vmatprep.mubr.bf16.mxu0 0
      %1113 = vmatmul.mubr.bf16.gmra.mrb[0].mxu0 %v1066
      %v1114 = vpop.f32.mrb[0].mxu0
      %v1115 = vadd.f32 0.0, %v1114
      %v1116 = vpop.f32.mrb[0].mxu0
      %v1117 = vadd.f32 0.0, %v1116
      %v1118 = vpop.f32.mrb[0].mxu0
      %v1119 = vpop.f32.mrb[0].mxu0
      %1120 = vdwg.mxu0
      %1121 = vmatprep.subr.bf16.mxu0 %v1078
      %1122 = vmatpush1.bf16.msra.mxu0 %v1075
      %1123 = vmatprep.subr.bf16.mxu0 0
      %1124 = vmatpush1.bf16.msra.mxu0 0
      %1125 = vmatprep.subr.bf16.mxu0 0
      %1126 = vmatpush1.bf16.msra.mxu0 0
      %1127 = vmatprep.subr.bf16.mxu0 0
      %1128 = vmatpush1.bf16.msra.mxu0 0
      %1129 = vmatprep.subr.bf16.mxu0 0
      %1130 = vmatpush1.bf16.msra.mxu0 0
      %1131 = vmatprep.subr.bf16.mxu0 0
      %1132 = vmatpush1.bf16.msra.mxu0 0
      %1133 = vmatprep.subr.bf16.mxu0 0
      %1134 = vmatpush1.bf16.msra.mxu0 0
      %1135 = vmatprep.subr.bf16.mxu0 0
      %1136 = vmatpush1.bf16.msra.mxu0 0
      %1137 = vmatprep.subr.bf16.mxu0 0
      %1138 = vmatpush1.bf16.msra.mxu0 0
      %1139 = vmatprep.subr.bf16.mxu0 0
      %1140 = vmatpush1.bf16.msra.mxu0 0
      %1141 = vmatprep.subr.bf16.mxu0 0
      %1142 = vmatpush1.bf16.msra.mxu0 0
      %1143 = vmatprep.subr.bf16.mxu0 0
      %1144 = vmatpush1.bf16.msra.mxu0 0
      %1145 = vmatprep.subr.bf16.mxu0 0
      %1146 = vmatpush1.bf16.msra.mxu0 0
      %1147 = vmatprep.subr.bf16.mxu0 0
      %1148 = vmatpush1.bf16.msra.mxu0 0
      %1149 = vmatprep.subr.bf16.mxu0 0
      %1150 = vmatpush1.bf16.msra.mxu0 0
      %1151 = vmatprep.subr.bf16.mxu0 0
      %1152 = vmatpush1.bf16.msra.mxu0 0
      %1153 = vmatprep.mubr.bf16.mxu0 0
      %1154 = vmatmul.mubr.bf16.gmra.mrb[0].mxu0 %v1066
      %v1155 = vpop.f32.mrb[0].mxu0
      %v1156 = vadd.f32 0.0, %v1155
      %v1157 = vpop.f32.mrb[0].mxu0
      %v1158 = vadd.f32 0.0, %v1157
      %v1159 = vpop.f32.mrb[0].mxu0
      %v1160 = vpop.f32.mrb[0].mxu0
      %1161 = vdwg.mxu0
      %v1162 = vadd.f32 %v1047, %v1115
      %v1163 = vadd.f32 %v1048, %v1117
      %v1164 = vadd.f32 %v1049, %v1156
      %v1165 = vadd.f32 %v1050, %v1158
      %s1166 = scalar_lea.vmem %s1, 32
      %v1167 = vld [vmem:[%s1166] sm:$0xf]
      %1168 = vrot.lane.b32.xlu0 %v264, 106
      %v1169 = vpop.permute.xlu0 %1168
      %1170 = vrot.lane.b32.xlu0 %v265, 106
      %v1171 = vpop.permute.xlu0 %1170
      %1172 = vrot.lane.b32.xlu0 %v266, 106
      %v1173 = vpop.permute.xlu0 %1172
      %1174 = vrot.lane.b32.xlu0 %v267, 106
      %v1175 = vpop.permute.xlu0 %1174
      %vm1176 = vcmask 867328
      %v1177 = vsel %vm1176, %v1169, %v1171
      %v1178 = vsel %vm1176, %v1171, %v1173
      %v1179 = vsel %vm1176, %v1173, %v1175
      %v1181 = vsel %vm280, %v1167, 0
      %v1184 = vsel %vm284, %v1177, 0
      %v1187 = vsel %vm284, %v1178, 0
      %v1190 = vsel %vm284, %v1179, 0
      %v1193 = vsel %vm284, %v1175, 0
      %1195 = vmatprep.subr.bf16.mxu0 %v1187
      %1196 = vmatpush1.bf16.msra.mxu0 %v1184
      %1197 = vmatprep.subr.bf16.mxu0 0
      %1198 = vmatpush1.bf16.msra.mxu0 0
      %1199 = vmatprep.subr.bf16.mxu0 0
      %1200 = vmatpush1.bf16.msra.mxu0 0
      %1201 = vmatprep.subr.bf16.mxu0 0
      %1202 = vmatpush1.bf16.msra.mxu0 0
      %1203 = vmatprep.subr.bf16.mxu0 0
      %1204 = vmatpush1.bf16.msra.mxu0 0
      %1205 = vmatprep.subr.bf16.mxu0 0
      %1206 = vmatpush1.bf16.msra.mxu0 0
      %1207 = vmatprep.subr.bf16.mxu0 0
      %1208 = vmatpush1.bf16.msra.mxu0 0
      %1209 = vmatprep.subr.bf16.mxu0 0
      %1210 = vmatpush1.bf16.msra.mxu0 0
      %1211 = vmatprep.subr.bf16.mxu0 0
      %1212 = vmatpush1.bf16.msra.mxu0 0
      %1213 = vmatprep.subr.bf16.mxu0 0
      %1214 = vmatpush1.bf16.msra.mxu0 0
      %1215 = vmatprep.subr.bf16.mxu0 0
      %1216 = vmatpush1.bf16.msra.mxu0 0
      %1217 = vmatprep.subr.bf16.mxu0 0
      %1218 = vmatpush1.bf16.msra.mxu0 0
      %1219 = vmatprep.subr.bf16.mxu0 0
      %1220 = vmatpush1.bf16.msra.mxu0 0
      %1221 = vmatprep.subr.bf16.mxu0 0
      %1222 = vmatpush1.bf16.msra.mxu0 0
      %1223 = vmatprep.subr.bf16.mxu0 0
      %1224 = vmatpush1.bf16.msra.mxu0 0
      %1225 = vmatprep.subr.bf16.mxu0 0
      %1226 = vmatpush1.bf16.msra.mxu0 0
      %1227 = vmatprep.mubr.bf16.mxu0 0
      %1228 = vmatmul.mubr.bf16.gmra.mrb[0].mxu0 %v1181
      %v1229 = vpop.f32.mrb[0].mxu0
      %v1230 = vadd.f32 0.0, %v1229
      %v1231 = vpop.f32.mrb[0].mxu0
      %v1232 = vadd.f32 0.0, %v1231
      %v1233 = vpop.f32.mrb[0].mxu0
      %v1234 = vpop.f32.mrb[0].mxu0
      %1235 = vdwg.mxu0
      %1236 = vmatprep.subr.bf16.mxu0 %v1193
      %1237 = vmatpush1.bf16.msra.mxu0 %v1190
      %1238 = vmatprep.subr.bf16.mxu0 0
      %1239 = vmatpush1.bf16.msra.mxu0 0
      %1240 = vmatprep.subr.bf16.mxu0 0
      %1241 = vmatpush1.bf16.msra.mxu0 0
      %1242 = vmatprep.subr.bf16.mxu0 0
      %1243 = vmatpush1.bf16.msra.mxu0 0
      %1244 = vmatprep.subr.bf16.mxu0 0
      %1245 = vmatpush1.bf16.msra.mxu0 0
      %1246 = vmatprep.subr.bf16.mxu0 0
      %1247 = vmatpush1.bf16.msra.mxu0 0
      %1248 = vmatprep.subr.bf16.mxu0 0
      %1249 = vmatpush1.bf16.msra.mxu0 0
      %1250 = vmatprep.subr.bf16.mxu0 0
      %1251 = vmatpush1.bf16.msra.mxu0 0
      %1252 = vmatprep.subr.bf16.mxu0 0
      %1253 = vmatpush1.bf16.msra.mxu0 0
      %1254 = vmatprep.subr.bf16.mxu0 0
      %1255 = vmatpush1.bf16.msra.mxu0 0
      %1256 = vmatprep.subr.bf16.mxu0 0
      %1257 = vmatpush1.bf16.msra.mxu0 0
      %1258 = vmatprep.subr.bf16.mxu0 0
      %1259 = vmatpush1.bf16.msra.mxu0 0
      %1260 = vmatprep.subr.bf16.mxu0 0
      %1261 = vmatpush1.bf16.msra.mxu0 0
      %1262 = vmatprep.subr.bf16.mxu0 0
      %1263 = vmatpush1.bf16.msra.mxu0 0
      %1264 = vmatprep.subr.bf16.mxu0 0
      %1265 = vmatpush1.bf16.msra.mxu0 0
      %1266 = vmatprep.subr.bf16.mxu0 0
      %1267 = vmatpush1.bf16.msra.mxu0 0
      %1268 = vmatprep.mubr.bf16.mxu0 0
      %1269 = vmatmul.mubr.bf16.gmra.mrb[0].mxu0 %v1181
      %v1270 = vpop.f32.mrb[0].mxu0
      %v1271 = vadd.f32 0.0, %v1270
      %v1272 = vpop.f32.mrb[0].mxu0
      %v1273 = vadd.f32 0.0, %v1272
      %v1274 = vpop.f32.mrb[0].mxu0
      %v1275 = vpop.f32.mrb[0].mxu0
      %1276 = vdwg.mxu0
      %v1277 = vadd.f32 %v1162, %v1230
      %v1278 = vadd.f32 %v1163, %v1232
      %v1279 = vadd.f32 %v1164, %v1271
      %v1280 = vadd.f32 %v1165, %v1273
      %s1281 = scalar_lea.vmem %s1, 36
      %v1282 = vld [vmem:[%s1281] sm:$0xf]
      %1283 = vrot.lane.b32.xlu0 %v264, 28
      %v1284 = vpop.permute.xlu0 %1283
      %1285 = vrot.lane.b32.xlu0 %v265, 28
      %v1286 = vpop.permute.xlu0 %1285
      %1287 = vrot.lane.b32.xlu0 %v266, 28
      %v1288 = vpop.permute.xlu0 %1287
      %1289 = vrot.lane.b32.xlu0 %v267, 28
      %v1290 = vpop.permute.xlu0 %1289
      %vm1291 = vcmask 228352
      %v1292 = vsel %vm1291, %v1284, %v1286
      %v1293 = vsel %vm1291, %v1286, %v1288
      %v1294 = vsel %vm1291, %v1288, %v1290
      %v1296 = vsel %vm280, %v1282, 0
      %v1299 = vsel %vm284, %v1292, 0
      %v1302 = vsel %vm284, %v1293, 0
      %v1305 = vsel %vm284, %v1294, 0
      %v1308 = vsel %vm284, %v1290, 0
      %1310 = vmatprep.subr.bf16.mxu0 %v1302
      %1311 = vmatpush1.bf16.msra.mxu0 %v1299
      %1312 = vmatprep.subr.bf16.mxu0 0
      %1313 = vmatpush1.bf16.msra.mxu0 0
      %1314 = vmatprep.subr.bf16.mxu0 0
      %1315 = vmatpush1.bf16.msra.mxu0 0
      %1316 = vmatprep.subr.bf16.mxu0 0
      %1317 = vmatpush1.bf16.msra.mxu0 0
      %1318 = vmatprep.subr.bf16.mxu0 0
      %1319 = vmatpush1.bf16.msra.mxu0 0
      %1320 = vmatprep.subr.bf16.mxu0 0
      %1321 = vmatpush1.bf16.msra.mxu0 0
      %1322 = vmatprep.subr.bf16.mxu0 0
      %1323 = vmatpush1.bf16.msra.mxu0 0
      %1324 = vmatprep.subr.bf16.mxu0 0
      %1325 = vmatpush1.bf16.msra.mxu0 0
      %1326 = vmatprep.subr.bf16.mxu0 0
      %1327 = vmatpush1.bf16.msra.mxu0 0
      %1328 = vmatprep.subr.bf16.mxu0 0
      %1329 = vmatpush1.bf16.msra.mxu0 0
      %1330 = vmatprep.subr.bf16.mxu0 0
      %1331 = vmatpush1.bf16.msra.mxu0 0
      %1332 = vmatprep.subr.bf16.mxu0 0
      %1333 = vmatpush1.bf16.msra.mxu0 0
      %1334 = vmatprep.subr.bf16.mxu0 0
      %1335 = vmatpush1.bf16.msra.mxu0 0
      %1336 = vmatprep.subr.bf16.mxu0 0
      %1337 = vmatpush1.bf16.msra.mxu0 0
      %1338 = vmatprep.subr.bf16.mxu0 0
      %1339 = vmatpush1.bf16.msra.mxu0 0
      %1340 = vmatprep.subr.bf16.mxu0 0
      %1341 = vmatpush1.bf16.msra.mxu0 0
      %1342 = vmatprep.mubr.bf16.mxu0 0
      %1343 = vmatmul.mubr.bf16.gmra.mrb[0].mxu0 %v1296
      %v1344 = vpop.f32.mrb[0].mxu0
      %v1345 = vadd.f32 0.0, %v1344
      %v1346 = vpop.f32.mrb[0].mxu0
      %v1347 = vadd.f32 0.0, %v1346
      %v1348 = vpop.f32.mrb[0].mxu0
      %v1349 = vpop.f32.mrb[0].mxu0
      %1350 = vdwg.mxu0
      %1351 = vmatprep.subr.bf16.mxu0 %v1308
      %1352 = vmatpush1.bf16.msra.mxu0 %v1305
      %1353 = vmatprep.subr.bf16.mxu0 0
      %1354 = vmatpush1.bf16.msra.mxu0 0
      %1355 = vmatprep.subr.bf16.mxu0 0
      %1356 = vmatpush1.bf16.msra.mxu0 0
      %1357 = vmatprep.subr.bf16.mxu0 0
      %1358 = vmatpush1.bf16.msra.mxu0 0
      %1359 = vmatprep.subr.bf16.mxu0 0
      %1360 = vmatpush1.bf16.msra.mxu0 0
      %1361 = vmatprep.subr.bf16.mxu0 0
      %1362 = vmatpush1.bf16.msra.mxu0 0
      %1363 = vmatprep.subr.bf16.mxu0 0
      %1364 = vmatpush1.bf16.msra.mxu0 0
      %1365 = vmatprep.subr.bf16.mxu0 0
      %1366 = vmatpush1.bf16.msra.mxu0 0
      %1367 = vmatprep.subr.bf16.mxu0 0
      %1368 = vmatpush1.bf16.msra.mxu0 0
      %1369 = vmatprep.subr.bf16.mxu0 0
      %1370 = vmatpush1.bf16.msra.mxu0 0
      %1371 = vmatprep.subr.bf16.mxu0 0
      %1372 = vmatpush1.bf16.msra.mxu0 0
      %1373 = vmatprep.subr.bf16.mxu0 0
      %1374 = vmatpush1.bf16.msra.mxu0 0
      %1375 = vmatprep.subr.bf16.mxu0 0
      %1376 = vmatpush1.bf16.msra.mxu0 0
      %1377 = vmatprep.subr.bf16.mxu0 0
      %1378 = vmatpush1.bf16.msra.mxu0 0
      %1379 = vmatprep.subr.bf16.mxu0 0
      %1380 = vmatpush1.bf16.msra.mxu0 0
      %1381 = vmatprep.subr.bf16.mxu0 0
      %1382 = vmatpush1.bf16.msra.mxu0 0
      %1383 = vmatprep.mubr.bf16.mxu0 0
      %1384 = vmatmul.mubr.bf16.gmra.mrb[0].mxu0 %v1296
      %v1385 = vpop.f32.mrb[0].mxu0
      %v1386 = vadd.f32 0.0, %v1385
      %v1387 = vpop.f32.mrb[0].mxu0
      %v1388 = vadd.f32 0.0, %v1387
      %v1389 = vpop.f32.mrb[0].mxu0
      %v1390 = vpop.f32.mrb[0].mxu0
      %1391 = vdwg.mxu0
      %v1392 = vadd.f32 %v1277, %v1345
      %v1393 = vadd.f32 %v1278, %v1347
      %v1394 = vadd.f32 %v1279, %v1386
      %v1395 = vadd.f32 %v1280, %v1388
      %s1396 = scalar_lea.vmem %s1, 40
      %v1397 = vld [vmem:[%s1396] sm:$0xf]
      %1398 = vrot.lane.b32.xlu0 %v264, 27
      %v1399 = vpop.permute.xlu0 %1398
      %1400 = vrot.lane.b32.xlu0 %v265, 27
      %v1401 = vpop.permute.xlu0 %1400
      %1402 = vrot.lane.b32.xlu0 %v266, 27
      %v1403 = vpop.permute.xlu0 %1402
      %1404 = vrot.lane.b32.xlu0 %v267, 27
      %v1405 = vpop.permute.xlu0 %1404
      %vm1406 = vcmask 220160
      %v1407 = vsel %vm1406, %v1399, %v1401
      %v1408 = vsel %vm1406, %v1401, %v1403
      %v1409 = vsel %vm1406, %v1403, %v1405
      %v1411 = vsel %vm280, %v1397, 0
      %v1414 = vsel %vm284, %v1407, 0
      %v1417 = vsel %vm284, %v1408, 0
      %v1420 = vsel %vm284, %v1409, 0
      %v1423 = vsel %vm284, %v1405, 0
      %1425 = vmatprep.subr.bf16.mxu0 %v1417
      %1426 = vmatpush1.bf16.msra.mxu0 %v1414
      %1427 = vmatprep.subr.bf16.mxu0 0
      %1428 = vmatpush1.bf16.msra.mxu0 0
      %1429 = vmatprep.subr.bf16.mxu0 0
      %1430 = vmatpush1.bf16.msra.mxu0 0
      %1431 = vmatprep.subr.bf16.mxu0 0
      %1432 = vmatpush1.bf16.msra.mxu0 0
      %1433 = vmatprep.subr.bf16.mxu0 0
      %1434 = vmatpush1.bf16.msra.mxu0 0
      %1435 = vmatprep.subr.bf16.mxu0 0
      %1436 = vmatpush1.bf16.msra.mxu0 0
      %1437 = vmatprep.subr.bf16.mxu0 0
      %1438 = vmatpush1.bf16.msra.mxu0 0
      %1439 = vmatprep.subr.bf16.mxu0 0
      %1440 = vmatpush1.bf16.msra.mxu0 0
      %1441 = vmatprep.subr.bf16.mxu0 0
      %1442 = vmatpush1.bf16.msra.mxu0 0
      %1443 = vmatprep.subr.bf16.mxu0 0
      %1444 = vmatpush1.bf16.msra.mxu0 0
      %1445 = vmatprep.subr.bf16.mxu0 0
      %1446 = vmatpush1.bf16.msra.mxu0 0
      %1447 = vmatprep.subr.bf16.mxu0 0
      %1448 = vmatpush1.bf16.msra.mxu0 0
      %1449 = vmatprep.subr.bf16.mxu0 0
      %1450 = vmatpush1.bf16.msra.mxu0 0
      %1451 = vmatprep.subr.bf16.mxu0 0
      %1452 = vmatpush1.bf16.msra.mxu0 0
      %1453 = vmatprep.subr.bf16.mxu0 0
      %1454 = vmatpush1.bf16.msra.mxu0 0
      %1455 = vmatprep.subr.bf16.mxu0 0
      %1456 = vmatpush1.bf16.msra.mxu0 0
      %1457 = vmatprep.mubr.bf16.mxu0 0
      %1458 = vmatmul.mubr.bf16.gmra.mrb[0].mxu0 %v1411
      %v1459 = vpop.f32.mrb[0].mxu0
      %v1460 = vadd.f32 0.0, %v1459
      %v1461 = vpop.f32.mrb[0].mxu0
      %v1462 = vadd.f32 0.0, %v1461
      %v1463 = vpop.f32.mrb[0].mxu0
      %v1464 = vpop.f32.mrb[0].mxu0
      %1465 = vdwg.mxu0
      %1466 = vmatprep.subr.bf16.mxu0 %v1423
      %1467 = vmatpush1.bf16.msra.mxu0 %v1420
      %1468 = vmatprep.subr.bf16.mxu0 0
      %1469 = vmatpush1.bf16.msra.mxu0 0
      %1470 = vmatprep.subr.bf16.mxu0 0
      %1471 = vmatpush1.bf16.msra.mxu0 0
      %1472 = vmatprep.subr.bf16.mxu0 0
      %1473 = vmatpush1.bf16.msra.mxu0 0
      %1474 = vmatprep.subr.bf16.mxu0 0
      %1475 = vmatpush1.bf16.msra.mxu0 0
      %1476 = vmatprep.subr.bf16.mxu0 0
      %1477 = vmatpush1.bf16.msra.mxu0 0
      %1478 = vmatprep.subr.bf16.mxu0 0
      %1479 = vmatpush1.bf16.msra.mxu0 0
      %1480 = vmatprep.subr.bf16.mxu0 0
      %1481 = vmatpush1.bf16.msra.mxu0 0
      %1482 = vmatprep.subr.bf16.mxu0 0
      %1483 = vmatpush1.bf16.msra.mxu0 0
      %1484 = vmatprep.subr.bf16.mxu0 0
      %1485 = vmatpush1.bf16.msra.mxu0 0
      %1486 = vmatprep.subr.bf16.mxu0 0
      %1487 = vmatpush1.bf16.msra.mxu0 0
      %1488 = vmatprep.subr.bf16.mxu0 0
      %1489 = vmatpush1.bf16.msra.mxu0 0
      %1490 = vmatprep.subr.bf16.mxu0 0
      %1491 = vmatpush1.bf16.msra.mxu0 0
      %1492 = vmatprep.subr.bf16.mxu0 0
      %1493 = vmatpush1.bf16.msra.mxu0 0
      %1494 = vmatprep.subr.bf16.mxu0 0
      %1495 = vmatpush1.bf16.msra.mxu0 0
      %1496 = vmatprep.subr.bf16.mxu0 0
      %1497 = vmatpush1.bf16.msra.mxu0 0
      %1498 = vmatprep.mubr.bf16.mxu0 0
      %1499 = vmatmul.mubr.bf16.gmra.mrb[0].mxu0 %v1411
      %v1500 = vpop.f32.mrb[0].mxu0
      %v1501 = vadd.f32 0.0, %v1500
      %v1502 = vpop.f32.mrb[0].mxu0
      %v1503 = vadd.f32 0.0, %v1502
      %v1504 = vpop.f32.mrb[0].mxu0
      %v1505 = vpop.f32.mrb[0].mxu0
      %1506 = vdwg.mxu0
      %v1507 = vadd.f32 %v1392, %v1460
      %v1508 = vadd.f32 %v1393, %v1462
      %v1509 = vadd.f32 %v1394, %v1501
      %v1510 = vadd.f32 %v1395, %v1503
      %s1511 = scalar_lea.vmem %s1, 44
      %v1512 = vld [vmem:[%s1511] sm:$0xf]
      %1513 = vrot.lane.b32.xlu0 %v264, 26
      %v1514 = vpop.permute.xlu0 %1513
      %1515 = vrot.lane.b32.xlu0 %v265, 26
      %v1516 = vpop.permute.xlu0 %1515
      %1517 = vrot.lane.b32.xlu0 %v266, 26
      %v1518 = vpop.permute.xlu0 %1517
      %1519 = vrot.lane.b32.xlu0 %v267, 26
      %v1520 = vpop.permute.xlu0 %1519
      %vm1521 = vcmask 211968
      %v1522 = vsel %vm1521, %v1514, %v1516
      %v1523 = vsel %vm1521, %v1516, %v1518
      %v1524 = vsel %vm1521, %v1518, %v1520
      %v1526 = vsel %vm280, %v1512, 0
      %v1529 = vsel %vm284, %v1522, 0
      %v1532 = vsel %vm284, %v1523, 0
      %v1535 = vsel %vm284, %v1524, 0
      %v1538 = vsel %vm284, %v1520, 0
      %1540 = vmatprep.subr.bf16.mxu0 %v1532
      %1541 = vmatpush1.bf16.msra.mxu0 %v1529
      %1542 = vmatprep.subr.bf16.mxu0 0
      %1543 = vmatpush1.bf16.msra.mxu0 0
      %1544 = vmatprep.subr.bf16.mxu0 0
      %1545 = vmatpush1.bf16.msra.mxu0 0
      %1546 = vmatprep.subr.bf16.mxu0 0
      %1547 = vmatpush1.bf16.msra.mxu0 0
      %1548 = vmatprep.subr.bf16.mxu0 0
      %1549 = vmatpush1.bf16.msra.mxu0 0
      %1550 = vmatprep.subr.bf16.mxu0 0
      %1551 = vmatpush1.bf16.msra.mxu0 0
      %1552 = vmatprep.subr.bf16.mxu0 0
      %1553 = vmatpush1.bf16.msra.mxu0 0
      %1554 = vmatprep.subr.bf16.mxu0 0
      %1555 = vmatpush1.bf16.msra.mxu0 0
      %1556 = vmatprep.subr.bf16.mxu0 0
      %1557 = vmatpush1.bf16.msra.mxu0 0
      %1558 = vmatprep.subr.bf16.mxu0 0
      %1559 = vmatpush1.bf16.msra.mxu0 0
      %1560 = vmatprep.subr.bf16.mxu0 0
      %1561 = vmatpush1.bf16.msra.mxu0 0
      %1562 = vmatprep.subr.bf16.mxu0 0
      %1563 = vmatpush1.bf16.msra.mxu0 0
      %1564 = vmatprep.subr.bf16.mxu0 0
      %1565 = vmatpush1.bf16.msra.mxu0 0
      %1566 = vmatprep.subr.bf16.mxu0 0
      %1567 = vmatpush1.bf16.msra.mxu0 0
      %1568 = vmatprep.subr.bf16.mxu0 0
      %1569 = vmatpush1.bf16.msra.mxu0 0
      %1570 = vmatprep.subr.bf16.mxu0 0
      %1571 = vmatpush1.bf16.msra.mxu0 0
      %1572 = vmatprep.mubr.bf16.mxu0 0
      %1573 = vmatmul.mubr.bf16.gmra.mrb[0].mxu0 %v1526
      %v1574 = vpop.f32.mrb[0].mxu0
      %v1575 = vadd.f32 0.0, %v1574
      %v1576 = vpop.f32.mrb[0].mxu0
      %v1577 = vadd.f32 0.0, %v1576
      %v1578 = vpop.f32.mrb[0].mxu0
      %v1579 = vpop.f32.mrb[0].mxu0
      %1580 = vdwg.mxu0
      %1581 = vmatprep.subr.bf16.mxu0 %v1538
      %1582 = vmatpush1.bf16.msra.mxu0 %v1535
      %1583 = vmatprep.subr.bf16.mxu0 0
      %1584 = vmatpush1.bf16.msra.mxu0 0
      %1585 = vmatprep.subr.bf16.mxu0 0
      %1586 = vmatpush1.bf16.msra.mxu0 0
      %1587 = vmatprep.subr.bf16.mxu0 0
      %1588 = vmatpush1.bf16.msra.mxu0 0
      %1589 = vmatprep.subr.bf16.mxu0 0
      %1590 = vmatpush1.bf16.msra.mxu0 0
      %1591 = vmatprep.subr.bf16.mxu0 0
      %1592 = vmatpush1.bf16.msra.mxu0 0
      %1593 = vmatprep.subr.bf16.mxu0 0
      %1594 = vmatpush1.bf16.msra.mxu0 0
      %1595 = vmatprep.subr.bf16.mxu0 0
      %1596 = vmatpush1.bf16.msra.mxu0 0
      %1597 = vmatprep.subr.bf16.mxu0 0
      %1598 = vmatpush1.bf16.msra.mxu0 0
      %1599 = vmatprep.subr.bf16.mxu0 0
      %1600 = vmatpush1.bf16.msra.mxu0 0
      %1601 = vmatprep.subr.bf16.mxu0 0
      %1602 = vmatpush1.bf16.msra.mxu0 0
      %1603 = vmatprep.subr.bf16.mxu0 0
      %1604 = vmatpush1.bf16.msra.mxu0 0
      %1605 = vmatprep.subr.bf16.mxu0 0
      %1606 = vmatpush1.bf16.msra.mxu0 0
      %1607 = vmatprep.subr.bf16.mxu0 0
      %1608 = vmatpush1.bf16.msra.mxu0 0
      %1609 = vmatprep.subr.bf16.mxu0 0
      %1610 = vmatpush1.bf16.msra.mxu0 0
      %1611 = vmatprep.subr.bf16.mxu0 0
      %1612 = vmatpush1.bf16.msra.mxu0 0
      %1613 = vmatprep.mubr.bf16.mxu0 0
      %1614 = vmatmul.mubr.bf16.gmra.mrb[0].mxu0 %v1526
      %v1615 = vpop.f32.mrb[0].mxu0
      %v1616 = vadd.f32 0.0, %v1615
      %v1617 = vpop.f32.mrb[0].mxu0
      %v1618 = vadd.f32 0.0, %v1617
      %v1619 = vpop.f32.mrb[0].mxu0
      %v1620 = vpop.f32.mrb[0].mxu0
      %1621 = vdwg.mxu0
      %v1622 = vadd.f32 %v1507, %v1575
      %v1623 = vadd.f32 %v1508, %v1577
      %v1624 = vadd.f32 %v1509, %v1616
      %v1625 = vadd.f32 %v1510, %v1618
      %s1626 = scalar_lea.vmem %s1, 48
      %v1627 = vld [vmem:[%s1626] sm:$0xf]
      %1628 = vrot.lane.b32.xlu0 %v264, 18
      %v1629 = vpop.permute.xlu0 %1628
      %1630 = vrot.lane.b32.xlu0 %v265, 18
      %v1631 = vpop.permute.xlu0 %1630
      %1632 = vrot.lane.b32.xlu0 %v266, 18
      %v1633 = vpop.permute.xlu0 %1632
      %1634 = vrot.lane.b32.xlu0 %v267, 18
      %v1635 = vpop.permute.xlu0 %1634
      %vm1636 = vcmask 146432
      %v1637 = vsel %vm1636, %v1629, %v1631
      %v1638 = vsel %vm1636, %v1631, %v1633
      %v1639 = vsel %vm1636, %v1633, %v1635
      %v1641 = vsel %vm280, %v1627, 0
      %v1644 = vsel %vm284, %v1637, 0
      %v1647 = vsel %vm284, %v1638, 0
      %v1650 = vsel %vm284, %v1639, 0
      %v1653 = vsel %vm284, %v1635, 0
      %1655 = vmatprep.subr.bf16.mxu0 %v1647
      %1656 = vmatpush1.bf16.msra.mxu0 %v1644
      %1657 = vmatprep.subr.bf16.mxu0 0
      %1658 = vmatpush1.bf16.msra.mxu0 0
      %1659 = vmatprep.subr.bf16.mxu0 0
      %1660 = vmatpush1.bf16.msra.mxu0 0
      %1661 = vmatprep.subr.bf16.mxu0 0
      %1662 = vmatpush1.bf16.msra.mxu0 0
      %1663 = vmatprep.subr.bf16.mxu0 0
      %1664 = vmatpush1.bf16.msra.mxu0 0
      %1665 = vmatprep.subr.bf16.mxu0 0
      %1666 = vmatpush1.bf16.msra.mxu0 0
      %1667 = vmatprep.subr.bf16.mxu0 0
      %1668 = vmatpush1.bf16.msra.mxu0 0
      %1669 = vmatprep.subr.bf16.mxu0 0
      %1670 = vmatpush1.bf16.msra.mxu0 0
      %1671 = vmatprep.subr.bf16.mxu0 0
      %1672 = vmatpush1.bf16.msra.mxu0 0
      %1673 = vmatprep.subr.bf16.mxu0 0
      %1674 = vmatpush1.bf16.msra.mxu0 0
      %1675 = vmatprep.subr.bf16.mxu0 0
      %1676 = vmatpush1.bf16.msra.mxu0 0
      %1677 = vmatprep.subr.bf16.mxu0 0
      %1678 = vmatpush1.bf16.msra.mxu0 0
      %1679 = vmatprep.subr.bf16.mxu0 0
      %1680 = vmatpush1.bf16.msra.mxu0 0
      %1681 = vmatprep.subr.bf16.mxu0 0
      %1682 = vmatpush1.bf16.msra.mxu0 0
      %1683 = vmatprep.subr.bf16.mxu0 0
      %1684 = vmatpush1.bf16.msra.mxu0 0
      %1685 = vmatprep.subr.bf16.mxu0 0
      %1686 = vmatpush1.bf16.msra.mxu0 0
      %1687 = vmatprep.mubr.bf16.mxu0 0
      %1688 = vmatmul.mubr.bf16.gmra.mrb[0].mxu0 %v1641
      %v1689 = vpop.f32.mrb[0].mxu0
      %v1690 = vadd.f32 0.0, %v1689
      %v1691 = vpop.f32.mrb[0].mxu0
      %v1692 = vadd.f32 0.0, %v1691
      %v1693 = vpop.f32.mrb[0].mxu0
      %v1694 = vpop.f32.mrb[0].mxu0
      %1695 = vdwg.mxu0
      %1696 = vmatprep.subr.bf16.mxu0 %v1653
      %1697 = vmatpush1.bf16.msra.mxu0 %v1650
      %1698 = vmatprep.subr.bf16.mxu0 0
      %1699 = vmatpush1.bf16.msra.mxu0 0
      %1700 = vmatprep.subr.bf16.mxu0 0
      %1701 = vmatpush1.bf16.msra.mxu0 0
      %1702 = vmatprep.subr.bf16.mxu0 0
      %1703 = vmatpush1.bf16.msra.mxu0 0
      %1704 = vmatprep.subr.bf16.mxu0 0
      %1705 = vmatpush1.bf16.msra.mxu0 0
      %1706 = vmatprep.subr.bf16.mxu0 0
      %1707 = vmatpush1.bf16.msra.mxu0 0
      %1708 = vmatprep.subr.bf16.mxu0 0
      %1709 = vmatpush1.bf16.msra.mxu0 0
      %1710 = vmatprep.subr.bf16.mxu0 0
      %1711 = vmatpush1.bf16.msra.mxu0 0
      %1712 = vmatprep.subr.bf16.mxu0 0
      %1713 = vmatpush1.bf16.msra.mxu0 0
      %1714 = vmatprep.subr.bf16.mxu0 0
      %1715 = vmatpush1.bf16.msra.mxu0 0
      %1716 = vmatprep.subr.bf16.mxu0 0
      %1717 = vmatpush1.bf16.msra.mxu0 0
      %1718 = vmatprep.subr.bf16.mxu0 0
      %1719 = vmatpush1.bf16.msra.mxu0 0
      %1720 = vmatprep.subr.bf16.mxu0 0
      %1721 = vmatpush1.bf16.msra.mxu0 0
      %1722 = vmatprep.subr.bf16.mxu0 0
      %1723 = vmatpush1.bf16.msra.mxu0 0
      %1724 = vmatprep.subr.bf16.mxu0 0
      %1725 = vmatpush1.bf16.msra.mxu0 0
      %1726 = vmatprep.subr.bf16.mxu0 0
      %1727 = vmatpush1.bf16.msra.mxu0 0
      %1728 = vmatprep.mubr.bf16.mxu0 0
      %1729 = vmatmul.mubr.bf16.gmra.mrb[0].mxu0 %v1641
      %v1730 = vpop.f32.mrb[0].mxu0
      %v1731 = vadd.f32 0.0, %v1730
      %v1732 = vpop.f32.mrb[0].mxu0
      %v1733 = vadd.f32 0.0, %v1732
      %v1734 = vpop.f32.mrb[0].mxu0
      %v1735 = vpop.f32.mrb[0].mxu0
      %1736 = vdwg.mxu0
      %v1737 = vadd.f32 %v1622, %v1690
      %v1738 = vadd.f32 %v1623, %v1692
      %v1739 = vadd.f32 %v1624, %v1731
      %v1740 = vadd.f32 %v1625, %v1733
      %s1741 = scalar_lea.vmem %s1, 52
      %v1742 = vld [vmem:[%s1741] sm:$0xf]
      %1743 = vrot.lane.b32.xlu0 %v264, 17
      %v1744 = vpop.permute.xlu0 %1743
      %1745 = vrot.lane.b32.xlu0 %v265, 17
      %v1746 = vpop.permute.xlu0 %1745
      %1747 = vrot.lane.b32.xlu0 %v266, 17
      %v1748 = vpop.permute.xlu0 %1747
      %1749 = vrot.lane.b32.xlu0 %v267, 17
      %v1750 = vpop.permute.xlu0 %1749
      %vm1751 = vcmask 138240
      %v1752 = vsel %vm1751, %v1744, %v1746
      %v1753 = vsel %vm1751, %v1746, %v1748
      %v1754 = vsel %vm1751, %v1748, %v1750
      %v1756 = vsel %vm280, %v1742, 0
      %v1759 = vsel %vm284, %v1752, 0
      %v1762 = vsel %vm284, %v1753, 0
      %v1765 = vsel %vm284, %v1754, 0
      %v1768 = vsel %vm284, %v1750, 0
      %1770 = vmatprep.subr.bf16.mxu0 %v1762
      %1771 = vmatpush1.bf16.msra.mxu0 %v1759
      %1772 = vmatprep.subr.bf16.mxu0 0
      %1773 = vmatpush1.bf16.msra.mxu0 0
      %1774 = vmatprep.subr.bf16.mxu0 0
      %1775 = vmatpush1.bf16.msra.mxu0 0
      %1776 = vmatprep.subr.bf16.mxu0 0
      %1777 = vmatpush1.bf16.msra.mxu0 0
      %1778 = vmatprep.subr.bf16.mxu0 0
      %1779 = vmatpush1.bf16.msra.mxu0 0
      %1780 = vmatprep.subr.bf16.mxu0 0
      %1781 = vmatpush1.bf16.msra.mxu0 0
      %1782 = vmatprep.subr.bf16.mxu0 0
      %1783 = vmatpush1.bf16.msra.mxu0 0
      %1784 = vmatprep.subr.bf16.mxu0 0
      %1785 = vmatpush1.bf16.msra.mxu0 0
      %1786 = vmatprep.subr.bf16.mxu0 0
      %1787 = vmatpush1.bf16.msra.mxu0 0
      %1788 = vmatprep.subr.bf16.mxu0 0
      %1789 = vmatpush1.bf16.msra.mxu0 0
      %1790 = vmatprep.subr.bf16.mxu0 0
      %1791 = vmatpush1.bf16.msra.mxu0 0
      %1792 = vmatprep.subr.bf16.mxu0 0
      %1793 = vmatpush1.bf16.msra.mxu0 0
      %1794 = vmatprep.subr.bf16.mxu0 0
      %1795 = vmatpush1.bf16.msra.mxu0 0
      %1796 = vmatprep.subr.bf16.mxu0 0
      %1797 = vmatpush1.bf16.msra.mxu0 0
      %1798 = vmatprep.subr.bf16.mxu0 0
      %1799 = vmatpush1.bf16.msra.mxu0 0
      %1800 = vmatprep.subr.bf16.mxu0 0
      %1801 = vmatpush1.bf16.msra.mxu0 0
      %1802 = vmatprep.mubr.bf16.mxu0 0
      %1803 = vmatmul.mubr.bf16.gmra.mrb[0].mxu0 %v1756
      %v1804 = vpop.f32.mrb[0].mxu0
      %v1805 = vadd.f32 0.0, %v1804
      %v1806 = vpop.f32.mrb[0].mxu0
      %v1807 = vadd.f32 0.0, %v1806
      %v1808 = vpop.f32.mrb[0].mxu0
      %v1809 = vpop.f32.mrb[0].mxu0
      %1810 = vdwg.mxu0
      %1811 = vmatprep.subr.bf16.mxu0 %v1768
      %1812 = vmatpush1.bf16.msra.mxu0 %v1765
      %1813 = vmatprep.subr.bf16.mxu0 0
      %1814 = vmatpush1.bf16.msra.mxu0 0
      %1815 = vmatprep.subr.bf16.mxu0 0
      %1816 = vmatpush1.bf16.msra.mxu0 0
      %1817 = vmatprep.subr.bf16.mxu0 0
      %1818 = vmatpush1.bf16.msra.mxu0 0
      %1819 = vmatprep.subr.bf16.mxu0 0
      %1820 = vmatpush1.bf16.msra.mxu0 0
      %1821 = vmatprep.subr.bf16.mxu0 0
      %1822 = vmatpush1.bf16.msra.mxu0 0
      %1823 = vmatprep.subr.bf16.mxu0 0
      %1824 = vmatpush1.bf16.msra.mxu0 0
      %1825 = vmatprep.subr.bf16.mxu0 0
      %1826 = vmatpush1.bf16.msra.mxu0 0
      %1827 = vmatprep.subr.bf16.mxu0 0
      %1828 = vmatpush1.bf16.msra.mxu0 0
      %1829 = vmatprep.subr.bf16.mxu0 0
      %1830 = vmatpush1.bf16.msra.mxu0 0
      %1831 = vmatprep.subr.bf16.mxu0 0
      %1832 = vmatpush1.bf16.msra.mxu0 0
      %1833 = vmatprep.subr.bf16.mxu0 0
      %1834 = vmatpush1.bf16.msra.mxu0 0
      %1835 = vmatprep.subr.bf16.mxu0 0
      %1836 = vmatpush1.bf16.msra.mxu0 0
      %1837 = vmatprep.subr.bf16.mxu0 0
      %1838 = vmatpush1.bf16.msra.mxu0 0
      %1839 = vmatprep.subr.bf16.mxu0 0
      %1840 = vmatpush1.bf16.msra.mxu0 0
      %1841 = vmatprep.subr.bf16.mxu0 0
      %1842 = vmatpush1.bf16.msra.mxu0 0
      %1843 = vmatprep.mubr.bf16.mxu0 0
      %1844 = vmatmul.mubr.bf16.gmra.mrb[0].mxu0 %v1756
      %v1845 = vpop.f32.mrb[0].mxu0
      %v1846 = vadd.f32 0.0, %v1845
      %v1847 = vpop.f32.mrb[0].mxu0
      %v1848 = vadd.f32 0.0, %v1847
      %v1849 = vpop.f32.mrb[0].mxu0
      %v1850 = vpop.f32.mrb[0].mxu0
      %1851 = vdwg.mxu0
      %v1852 = vadd.f32 %v1737, %v1805
      %v1853 = vadd.f32 %v1738, %v1807
      %v1854 = vadd.f32 %v1739, %v1846
      %v1855 = vadd.f32 %v1740, %v1848
      %s1856 = scalar_lea.vmem %s1, 56
      %v1857 = vld [vmem:[%s1856] sm:$0xf]
      %1858 = vrot.lane.b32.xlu0 %v264, 16
      %v1859 = vpop.permute.xlu0 %1858
      %1860 = vrot.lane.b32.xlu0 %v265, 16
      %v1861 = vpop.permute.xlu0 %1860
      %1862 = vrot.lane.b32.xlu0 %v266, 16
      %v1863 = vpop.permute.xlu0 %1862
      %1864 = vrot.lane.b32.xlu0 %v267, 16
      %v1865 = vpop.permute.xlu0 %1864
      %vm1866 = vcmask 130048
      %v1867 = vsel %vm1866, %v1859, %v1861
      %v1868 = vsel %vm1866, %v1861, %v1863
      %v1869 = vsel %vm1866, %v1863, %v1865
      %v1871 = vsel %vm280, %v1857, 0
      %v1874 = vsel %vm284, %v1867, 0
      %v1877 = vsel %vm284, %v1868, 0
      %v1880 = vsel %vm284, %v1869, 0
      %v1883 = vsel %vm284, %v1865, 0
      %1885 = vmatprep.subr.bf16.mxu0 %v1877
      %1886 = vmatpush1.bf16.msra.mxu0 %v1874
      %1887 = vmatprep.subr.bf16.mxu0 0
      %1888 = vmatpush1.bf16.msra.mxu0 0
      %1889 = vmatprep.subr.bf16.mxu0 0
      %1890 = vmatpush1.bf16.msra.mxu0 0
      %1891 = vmatprep.subr.bf16.mxu0 0
      %1892 = vmatpush1.bf16.msra.mxu0 0
      %1893 = vmatprep.subr.bf16.mxu0 0
      %1894 = vmatpush1.bf16.msra.mxu0 0
      %1895 = vmatprep.subr.bf16.mxu0 0
      %1896 = vmatpush1.bf16.msra.mxu0 0
      %1897 = vmatprep.subr.bf16.mxu0 0
      %1898 = vmatpush1.bf16.msra.mxu0 0
      %1899 = vmatprep.subr.bf16.mxu0 0
      %1900 = vmatpush1.bf16.msra.mxu0 0
      %1901 = vmatprep.subr.bf16.mxu0 0
      %1902 = vmatpush1.bf16.msra.mxu0 0
      %1903 = vmatprep.subr.bf16.mxu0 0
      %1904 = vmatpush1.bf16.msra.mxu0 0
      %1905 = vmatprep.subr.bf16.mxu0 0
      %1906 = vmatpush1.bf16.msra.mxu0 0
      %1907 = vmatprep.subr.bf16.mxu0 0
      %1908 = vmatpush1.bf16.msra.mxu0 0
      %1909 = vmatprep.subr.bf16.mxu0 0
      %1910 = vmatpush1.bf16.msra.mxu0 0
      %1911 = vmatprep.subr.bf16.mxu0 0
      %1912 = vmatpush1.bf16.msra.mxu0 0
      %1913 = vmatprep.subr.bf16.mxu0 0
      %1914 = vmatpush1.bf16.msra.mxu0 0
      %1915 = vmatprep.subr.bf16.mxu0 0
      %1916 = vmatpush1.bf16.msra.mxu0 0
      %1917 = vmatprep.mubr.bf16.mxu0 0
      %1918 = vmatmul.mubr.bf16.gmra.mrb[0].mxu0 %v1871
      %v1919 = vpop.f32.mrb[0].mxu0
      %v1920 = vadd.f32 0.0, %v1919
      %v1921 = vpop.f32.mrb[0].mxu0
      %v1922 = vadd.f32 0.0, %v1921
      %v1923 = vpop.f32.mrb[0].mxu0
      %v1924 = vpop.f32.mrb[0].mxu0
      %1925 = vdwg.mxu0
      %1926 = vmatprep.subr.bf16.mxu0 %v1883
      %1927 = vmatpush1.bf16.msra.mxu0 %v1880
      %1928 = vmatprep.subr.bf16.mxu0 0
      %1929 = vmatpush1.bf16.msra.mxu0 0
      %1930 = vmatprep.subr.bf16.mxu0 0
      %1931 = vmatpush1.bf16.msra.mxu0 0
      %1932 = vmatprep.subr.bf16.mxu0 0
      %1933 = vmatpush1.bf16.msra.mxu0 0
      %1934 = vmatprep.subr.bf16.mxu0 0
      %1935 = vmatpush1.bf16.msra.mxu0 0
      %1936 = vmatprep.subr.bf16.mxu0 0
      %1937 = vmatpush1.bf16.msra.mxu0 0
      %1938 = vmatprep.subr.bf16.mxu0 0
      %1939 = vmatpush1.bf16.msra.mxu0 0
      %1940 = vmatprep.subr.bf16.mxu0 0
      %1941 = vmatpush1.bf16.msra.mxu0 0
      %1942 = vmatprep.subr.bf16.mxu0 0
      %1943 = vmatpush1.bf16.msra.mxu0 0
      %1944 = vmatprep.subr.bf16.mxu0 0
      %1945 = vmatpush1.bf16.msra.mxu0 0
      %1946 = vmatprep.subr.bf16.mxu0 0
      %1947 = vmatpush1.bf16.msra.mxu0 0
      %1948 = vmatprep.subr.bf16.mxu0 0
      %1949 = vmatpush1.bf16.msra.mxu0 0
      %1950 = vmatprep.subr.bf16.mxu0 0
      %1951 = vmatpush1.bf16.msra.mxu0 0
      %1952 = vmatprep.subr.bf16.mxu0 0
      %1953 = vmatpush1.bf16.msra.mxu0 0
      %1954 = vmatprep.subr.bf16.mxu0 0
      %1955 = vmatpush1.bf16.msra.mxu0 0
      %1956 = vmatprep.subr.bf16.mxu0 0
      %1957 = vmatpush1.bf16.msra.mxu0 0
      %1958 = vmatprep.mubr.bf16.mxu0 0
      %1959 = vmatmul.mubr.bf16.gmra.mrb[0].mxu0 %v1871
      %v1960 = vpop.f32.mrb[0].mxu0
      %v1961 = vadd.f32 0.0, %v1960
      %v1962 = vpop.f32.mrb[0].mxu0
      %v1963 = vadd.f32 0.0, %v1962
      %v1964 = vpop.f32.mrb[0].mxu0
      %v1965 = vpop.f32.mrb[0].mxu0
      %1966 = vdwg.mxu0
      %v1967 = vadd.f32 %v1852, %v1920
      %v1968 = vadd.f32 %v1853, %v1922
      %v1969 = vadd.f32 %v1854, %v1961
      %v1970 = vadd.f32 %v1855, %v1963
      %s1971 = scalar_lea.vmem %s1, 60
      %v1972 = vld [vmem:[%s1971] sm:$0xf]
      %v1973 = vld [vmem:[%s246] sm:$0xff]
      %v1974 = vld [vmem:[%s246 + $0x8] sm:$0xff]
      %v1975 = vld [vmem:[%s246 + $0x10] sm:$0xf]
      %v1979 = vunpack.c.l.b16 %v1973
      %v1980 = vunpack.c.h.b16 %v1973
      %v1981 = vunpack.c.l.b16 %v1974
      %v1982 = vunpack.c.h.b16 %v1974
      %v1983 = vunpack.c.l.b16 %v1975
      %v1984 = vpack.c.b16 %v1979, %v1979
      %v1985 = vpack.c.b16 %v1980, %v1980
      %v1986 = vpack.c.b16 %v1981, %v1981
      %v1987 = vpack.c.b16 %v1982, %v1982
      %v1988 = vpack.c.b16 %v1983, %v1983
      %1989 = vrot.lane.b32.xlu0 %v1984, 8
      %v1990 = vpop.permute.xlu0 %1989
      %1991 = vrot.lane.b32.xlu0 %v1985, 8
      %v1992 = vpop.permute.xlu0 %1991
      %1993 = vrot.lane.b32.xlu0 %v1986, 8
      %v1994 = vpop.permute.xlu0 %1993
      %1995 = vrot.lane.b32.xlu0 %v1987, 8
      %v1996 = vpop.permute.xlu0 %1995
      %1997 = vrot.lane.b32.xlu0 %v1988, 8
      %v1998 = vpop.permute.xlu0 %1997
      %vm1999 = vcmask 64512
      %v2000 = vsel %vm1999, %v1990, %v1992
      %v2001 = vsel %vm1999, %v1992, %v1994
      %v2002 = vsel %vm1999, %v1994, %v1996
      %v2003 = vsel %vm1999, %v1996, %v1998
      %v2005 = vsel %vm280, %v1972, 0
      %v2008 = vsel %vm284, %v2000, 0
      %v2011 = vsel %vm284, %v2001, 0
      %v2014 = vsel %vm284, %v2002, 0
      %v2017 = vsel %vm284, %v2003, 0
      %2019 = vmatprep.subr.bf16.mxu0 %v2011
      %2020 = vmatpush1.bf16.msra.mxu0 %v2008
      %2021 = vmatprep.subr.bf16.mxu0 0
      %2022 = vmatpush1.bf16.msra.mxu0 0
      %2023 = vmatprep.subr.bf16.mxu0 0
      %2024 = vmatpush1.bf16.msra.mxu0 0
      %2025 = vmatprep.subr.bf16.mxu0 0
      %2026 = vmatpush1.bf16.msra.mxu0 0
      %2027 = vmatprep.subr.bf16.mxu0 0
      %2028 = vmatpush1.bf16.msra.mxu0 0
      %2029 = vmatprep.subr.bf16.mxu0 0
      %2030 = vmatpush1.bf16.msra.mxu0 0
      %2031 = vmatprep.subr.bf16.mxu0 0
      %2032 = vmatpush1.bf16.msra.mxu0 0
      %2033 = vmatprep.subr.bf16.mxu0 0
      %2034 = vmatpush1.bf16.msra.mxu0 0
      %2035 = vmatprep.subr.bf16.mxu0 0
      %2036 = vmatpush1.bf16.msra.mxu0 0
      %2037 = vmatprep.subr.bf16.mxu0 0
      %2038 = vmatpush1.bf16.msra.mxu0 0
      %2039 = vmatprep.subr.bf16.mxu0 0
      %2040 = vmatpush1.bf16.msra.mxu0 0
      %2041 = vmatprep.subr.bf16.mxu0 0
      %2042 = vmatpush1.bf16.msra.mxu0 0
      %2043 = vmatprep.subr.bf16.mxu0 0
      %2044 = vmatpush1.bf16.msra.mxu0 0
      %2045 = vmatprep.subr.bf16.mxu0 0
      %2046 = vmatpush1.bf16.msra.mxu0 0
      %2047 = vmatprep.subr.bf16.mxu0 0
      %2048 = vmatpush1.bf16.msra.mxu0 0
      %2049 = vmatprep.subr.bf16.mxu0 0
      %2050 = vmatpush1.bf16.msra.mxu0 0
      %2051 = vmatprep.mubr.bf16.mxu0 0
      %2052 = vmatmul.mubr.bf16.gmra.mrb[0].mxu0 %v2005
      %v2053 = vpop.f32.mrb[0].mxu0
      %v2054 = vadd.f32 0.0, %v2053
      %v2055 = vpop.f32.mrb[0].mxu0
      %v2056 = vadd.f32 0.0, %v2055
      %v2057 = vpop.f32.mrb[0].mxu0
      %v2058 = vpop.f32.mrb[0].mxu0
      %2059 = vdwg.mxu0
      %2060 = vmatprep.subr.bf16.mxu0 %v2017
      %2061 = vmatpush1.bf16.msra.mxu0 %v2014
      %2062 = vmatprep.subr.bf16.mxu0 0
      %2063 = vmatpush1.bf16.msra.mxu0 0
      %2064 = vmatprep.subr.bf16.mxu0 0
      %2065 = vmatpush1.bf16.msra.mxu0 0
      %2066 = vmatprep.subr.bf16.mxu0 0
      %2067 = vmatpush1.bf16.msra.mxu0 0
      %2068 = vmatprep.subr.bf16.mxu0 0
      %2069 = vmatpush1.bf16.msra.mxu0 0
      %2070 = vmatprep.subr.bf16.mxu0 0
      %2071 = vmatpush1.bf16.msra.mxu0 0
      %2072 = vmatprep.subr.bf16.mxu0 0
      %2073 = vmatpush1.bf16.msra.mxu0 0
      %2074 = vmatprep.subr.bf16.mxu0 0
      %2075 = vmatpush1.bf16.msra.mxu0 0
      %2076 = vmatprep.subr.bf16.mxu0 0
      %2077 = vmatpush1.bf16.msra.mxu0 0
      %2078 = vmatprep.subr.bf16.mxu0 0
      %2079 = vmatpush1.bf16.msra.mxu0 0
      %2080 = vmatprep.subr.bf16.mxu0 0
      %2081 = vmatpush1.bf16.msra.mxu0 0
      %2082 = vmatprep.subr.bf16.mxu0 0
      %2083 = vmatpush1.bf16.msra.mxu0 0
      %2084 = vmatprep.subr.bf16.mxu0 0
      %2085 = vmatpush1.bf16.msra.mxu0 0
      %2086 = vmatprep.subr.bf16.mxu0 0
      %2087 = vmatpush1.bf16.msra.mxu0 0
      %2088 = vmatprep.subr.bf16.mxu0 0
      %2089 = vmatpush1.bf16.msra.mxu0 0
      %2090 = vmatprep.subr.bf16.mxu0 0
      %2091 = vmatpush1.bf16.msra.mxu0 0
      %2092 = vmatprep.mubr.bf16.mxu0 0
      %2093 = vmatmul.mubr.bf16.gmra.mrb[0].mxu0 %v2005
      %v2094 = vpop.f32.mrb[0].mxu0
      %v2095 = vadd.f32 0.0, %v2094
      %v2096 = vpop.f32.mrb[0].mxu0
      %v2097 = vadd.f32 0.0, %v2096
      %v2098 = vpop.f32.mrb[0].mxu0
      %v2099 = vpop.f32.mrb[0].mxu0
      %2100 = vdwg.mxu0
      %v2101 = vadd.f32 %v1967, %v2054
      %v2102 = vadd.f32 %v1968, %v2056
      %v2103 = vadd.f32 %v1969, %v2095
      %v2104 = vadd.f32 %v1970, %v2097
      %s2105 = scalar_lea.vmem %s1, 64
      %v2106 = vld [vmem:[%s2105] sm:$0xf]
      %2107 = vrot.lane.b32.xlu0 %v1984, 7
      %v2108 = vpop.permute.xlu0 %2107
      %2109 = vrot.lane.b32.xlu0 %v1985, 7
      %v2110 = vpop.permute.xlu0 %2109
      %2111 = vrot.lane.b32.xlu0 %v1986, 7
      %v2112 = vpop.permute.xlu0 %2111
      %2113 = vrot.lane.b32.xlu0 %v1987, 7
      %v2114 = vpop.permute.xlu0 %2113
      %2115 = vrot.lane.b32.xlu0 %v1988, 7
      %v2116 = vpop.permute.xlu0 %2115
      %vm2117 = vcmask 56320
      %v2118 = vsel %vm2117, %v2108, %v2110
      %v2119 = vsel %vm2117, %v2110, %v2112
      %v2120 = vsel %vm2117, %v2112, %v2114
      %v2121 = vsel %vm2117, %v2114, %v2116
      %v2123 = vsel %vm280, %v2106, 0
      %v2126 = vsel %vm284, %v2118, 0
      %v2129 = vsel %vm284, %v2119, 0
      %v2132 = vsel %vm284, %v2120, 0
      %v2135 = vsel %vm284, %v2121, 0
      %2137 = vmatprep.subr.bf16.mxu0 %v2129
      %2138 = vmatpush1.bf16.msra.mxu0 %v2126
      %2139 = vmatprep.subr.bf16.mxu0 0
      %2140 = vmatpush1.bf16.msra.mxu0 0
      %2141 = vmatprep.subr.bf16.mxu0 0
      %2142 = vmatpush1.bf16.msra.mxu0 0
      %2143 = vmatprep.subr.bf16.mxu0 0
      %2144 = vmatpush1.bf16.msra.mxu0 0
      %2145 = vmatprep.subr.bf16.mxu0 0
      %2146 = vmatpush1.bf16.msra.mxu0 0
      %2147 = vmatprep.subr.bf16.mxu0 0
      %2148 = vmatpush1.bf16.msra.mxu0 0
      %2149 = vmatprep.subr.bf16.mxu0 0
      %2150 = vmatpush1.bf16.msra.mxu0 0
      %2151 = vmatprep.subr.bf16.mxu0 0
      %2152 = vmatpush1.bf16.msra.mxu0 0
      %2153 = vmatprep.subr.bf16.mxu0 0
      %2154 = vmatpush1.bf16.msra.mxu0 0
      %2155 = vmatprep.subr.bf16.mxu0 0
      %2156 = vmatpush1.bf16.msra.mxu0 0
      %2157 = vmatprep.subr.bf16.mxu0 0
      %2158 = vmatpush1.bf16.msra.mxu0 0
      %2159 = vmatprep.subr.bf16.mxu0 0
      %2160 = vmatpush1.bf16.msra.mxu0 0
      %2161 = vmatprep.subr.bf16.mxu0 0
      %2162 = vmatpush1.bf16.msra.mxu0 0
      %2163 = vmatprep.subr.bf16.mxu0 0
      %2164 = vmatpush1.bf16.msra.mxu0 0
      %2165 = vmatprep.subr.bf16.mxu0 0
      %2166 = vmatpush1.bf16.msra.mxu0 0
      %2167 = vmatprep.subr.bf16.mxu0 0
      %2168 = vmatpush1.bf16.msra.mxu0 0
      %2169 = vmatprep.mubr.bf16.mxu0 0
      %2170 = vmatmul.mubr.bf16.gmra.mrb[0].mxu0 %v2123
      %v2171 = vpop.f32.mrb[0].mxu0
      %v2172 = vadd.f32 0.0, %v2171
      %v2173 = vpop.f32.mrb[0].mxu0
      %v2174 = vadd.f32 0.0, %v2173
      %v2175 = vpop.f32.mrb[0].mxu0
      %v2176 = vpop.f32.mrb[0].mxu0
      %2177 = vdwg.mxu0
      %2178 = vmatprep.subr.bf16.mxu0 %v2135
      %2179 = vmatpush1.bf16.msra.mxu0 %v2132
      %2180 = vmatprep.subr.bf16.mxu0 0
      %2181 = vmatpush1.bf16.msra.mxu0 0
      %2182 = vmatprep.subr.bf16.mxu0 0
      %2183 = vmatpush1.bf16.msra.mxu0 0
      %2184 = vmatprep.subr.bf16.mxu0 0
      %2185 = vmatpush1.bf16.msra.mxu0 0
      %2186 = vmatprep.subr.bf16.mxu0 0
      %2187 = vmatpush1.bf16.msra.mxu0 0
      %2188 = vmatprep.subr.bf16.mxu0 0
      %2189 = vmatpush1.bf16.msra.mxu0 0
      %2190 = vmatprep.subr.bf16.mxu0 0
      %2191 = vmatpush1.bf16.msra.mxu0 0
      %2192 = vmatprep.subr.bf16.mxu0 0
      %2193 = vmatpush1.bf16.msra.mxu0 0
      %2194 = vmatprep.subr.bf16.mxu0 0
      %2195 = vmatpush1.bf16.msra.mxu0 0
      %2196 = vmatprep.subr.bf16.mxu0 0
      %2197 = vmatpush1.bf16.msra.mxu0 0
      %2198 = vmatprep.subr.bf16.mxu0 0
      %2199 = vmatpush1.bf16.msra.mxu0 0
      %2200 = vmatprep.subr.bf16.mxu0 0
      %2201 = vmatpush1.bf16.msra.mxu0 0
      %2202 = vmatprep.subr.bf16.mxu0 0
      %2203 = vmatpush1.bf16.msra.mxu0 0
      %2204 = vmatprep.subr.bf16.mxu0 0
      %2205 = vmatpush1.bf16.msra.mxu0 0
      %2206 = vmatprep.subr.bf16.mxu0 0
      %2207 = vmatpush1.bf16.msra.mxu0 0
      %2208 = vmatprep.subr.bf16.mxu0 0
      %2209 = vmatpush1.bf16.msra.mxu0 0
      %2210 = vmatprep.mubr.bf16.mxu0 0
      %2211 = vmatmul.mubr.bf16.gmra.mrb[0].mxu0 %v2123
      %v2212 = vpop.f32.mrb[0].mxu0
      %v2213 = vadd.f32 0.0, %v2212
      %v2214 = vpop.f32.mrb[0].mxu0
      %v2215 = vadd.f32 0.0, %v2214
      %v2216 = vpop.f32.mrb[0].mxu0
      %v2217 = vpop.f32.mrb[0].mxu0
      %2218 = vdwg.mxu0
      %v2219 = vadd.f32 %v2101, %v2172
      %v2220 = vadd.f32 %v2102, %v2174
      %v2221 = vadd.f32 %v2103, %v2213
      %v2222 = vadd.f32 %v2104, %v2215
      %s2223 = scalar_lea.vmem %s1, 68
      %v2224 = vld [vmem:[%s2223] sm:$0xf]
      %2225 = vrot.lane.b32.xlu0 %v1984, 6
      %v2226 = vpop.permute.xlu0 %2225
      %2227 = vrot.lane.b32.xlu0 %v1985, 6
      %v2228 = vpop.permute.xlu0 %2227
      %2229 = vrot.lane.b32.xlu0 %v1986, 6
      %v2230 = vpop.permute.xlu0 %2229
      %2231 = vrot.lane.b32.xlu0 %v1987, 6
      %v2232 = vpop.permute.xlu0 %2231
      %2233 = vrot.lane.b32.xlu0 %v1988, 6
      %v2234 = vpop.permute.xlu0 %2233
      %vm2235 = vcmask 48128
      %v2236 = vsel %vm2235, %v2226, %v2228
      %v2237 = vsel %vm2235, %v2228, %v2230
      %v2238 = vsel %vm2235, %v2230, %v2232
      %v2239 = vsel %vm2235, %v2232, %v2234
      %v2241 = vsel %vm280, %v2224, 0
      %v2244 = vsel %vm284, %v2236, 0
      %v2247 = vsel %vm284, %v2237, 0
      %v2250 = vsel %vm284, %v2238, 0
      %v2253 = vsel %vm284, %v2239, 0
      %2255 = vmatprep.subr.bf16.mxu0 %v2247
      %2256 = vmatpush1.bf16.msra.mxu0 %v2244
      %2257 = vmatprep.subr.bf16.mxu0 0
      %2258 = vmatpush1.bf16.msra.mxu0 0
      %2259 = vmatprep.subr.bf16.mxu0 0
      %2260 = vmatpush1.bf16.msra.mxu0 0
      %2261 = vmatprep.subr.bf16.mxu0 0
      %2262 = vmatpush1.bf16.msra.mxu0 0
      %2263 = vmatprep.subr.bf16.mxu0 0
      %2264 = vmatpush1.bf16.msra.mxu0 0
      %2265 = vmatprep.subr.bf16.mxu0 0
      %2266 = vmatpush1.bf16.msra.mxu0 0
      %2267 = vmatprep.subr.bf16.mxu0 0
      %2268 = vmatpush1.bf16.msra.mxu0 0
      %2269 = vmatprep.subr.bf16.mxu0 0
      %2270 = vmatpush1.bf16.msra.mxu0 0
      %2271 = vmatprep.subr.bf16.mxu0 0
      %2272 = vmatpush1.bf16.msra.mxu0 0
      %2273 = vmatprep.subr.bf16.mxu0 0
      %2274 = vmatpush1.bf16.msra.mxu0 0
      %2275 = vmatprep.subr.bf16.mxu0 0
      %2276 = vmatpush1.bf16.msra.mxu0 0
      %2277 = vmatprep.subr.bf16.mxu0 0
      %2278 = vmatpush1.bf16.msra.mxu0 0
      %2279 = vmatprep.subr.bf16.mxu0 0
      %2280 = vmatpush1.bf16.msra.mxu0 0
      %2281 = vmatprep.subr.bf16.mxu0 0
      %2282 = vmatpush1.bf16.msra.mxu0 0
      %2283 = vmatprep.subr.bf16.mxu0 0
      %2284 = vmatpush1.bf16.msra.mxu0 0
      %2285 = vmatprep.subr.bf16.mxu0 0
      %2286 = vmatpush1.bf16.msra.mxu0 0
      %2287 = vmatprep.mubr.bf16.mxu0 0
      %2288 = vmatmul.mubr.bf16.gmra.mrb[0].mxu0 %v2241
      %v2289 = vpop.f32.mrb[0].mxu0
      %v2290 = vadd.f32 0.0, %v2289
      %v2291 = vpop.f32.mrb[0].mxu0
      %v2292 = vadd.f32 0.0, %v2291
      %v2293 = vpop.f32.mrb[0].mxu0
      %v2294 = vpop.f32.mrb[0].mxu0
      %2295 = vdwg.mxu0
      %2296 = vmatprep.subr.bf16.mxu0 %v2253
      %2297 = vmatpush1.bf16.msra.mxu0 %v2250
      %2298 = vmatprep.subr.bf16.mxu0 0
      %2299 = vmatpush1.bf16.msra.mxu0 0
      %2300 = vmatprep.subr.bf16.mxu0 0
      %2301 = vmatpush1.bf16.msra.mxu0 0
      %2302 = vmatprep.subr.bf16.mxu0 0
      %2303 = vmatpush1.bf16.msra.mxu0 0
      %2304 = vmatprep.subr.bf16.mxu0 0
      %2305 = vmatpush1.bf16.msra.mxu0 0
      %2306 = vmatprep.subr.bf16.mxu0 0
      %2307 = vmatpush1.bf16.msra.mxu0 0
      %2308 = vmatprep.subr.bf16.mxu0 0
      %2309 = vmatpush1.bf16.msra.mxu0 0
      %2310 = vmatprep.subr.bf16.mxu0 0
      %2311 = vmatpush1.bf16.msra.mxu0 0
      %2312 = vmatprep.subr.bf16.mxu0 0
      %2313 = vmatpush1.bf16.msra.mxu0 0
      %2314 = vmatprep.subr.bf16.mxu0 0
      %2315 = vmatpush1.bf16.msra.mxu0 0
      %2316 = vmatprep.subr.bf16.mxu0 0
      %2317 = vmatpush1.bf16.msra.mxu0 0
      %2318 = vmatprep.subr.bf16.mxu0 0
      %2319 = vmatpush1.bf16.msra.mxu0 0
      %2320 = vmatprep.subr.bf16.mxu0 0
      %2321 = vmatpush1.bf16.msra.mxu0 0
      %2322 = vmatprep.subr.bf16.mxu0 0
      %2323 = vmatpush1.bf16.msra.mxu0 0
      %2324 = vmatprep.subr.bf16.mxu0 0
      %2325 = vmatpush1.bf16.msra.mxu0 0
      %2326 = vmatprep.subr.bf16.mxu0 0
      %2327 = vmatpush1.bf16.msra.mxu0 0
      %2328 = vmatprep.mubr.bf16.mxu0 0
      %2329 = vmatmul.mubr.bf16.gmra.mrb[0].mxu0 %v2241
      %v2330 = vpop.f32.mrb[0].mxu0
      %v2331 = vadd.f32 0.0, %v2330
      %v2332 = vpop.f32.mrb[0].mxu0
      %v2333 = vadd.f32 0.0, %v2332
      %v2334 = vpop.f32.mrb[0].mxu0
      %v2335 = vpop.f32.mrb[0].mxu0
      %2336 = vdwg.mxu0
      %v2337 = vadd.f32 %v2219, %v2290
      %v2338 = vadd.f32 %v2220, %v2292
      %v2339 = vadd.f32 %v2221, %v2331
      %v2340 = vadd.f32 %v2222, %v2333
      %s2341 = scalar_lea.vmem %s1, 72
      %v2342 = vld [vmem:[%s2341] sm:$0xf]
      %v2343 = vld [vmem:[%s246 + $0x4] sm:$0xff]
      %v2344 = vld [vmem:[%s246 + $0xc] sm:$0xff]
      %v2347 = vunpack.c.l.b16 %v2343
      %v2348 = vunpack.c.h.b16 %v2343
      %v2349 = vunpack.c.l.b16 %v2344
      %v2350 = vunpack.c.h.b16 %v2344
      %v2351 = vpack.c.b16 %v2347, %v2347
      %v2352 = vpack.c.b16 %v2348, %v2348
      %v2353 = vpack.c.b16 %v2349, %v2349
      %v2354 = vpack.c.b16 %v2350, %v2350
      %2355 = vrot.lane.b32.xlu0 %v2351, 56
      %v2356 = vpop.permute.xlu0 %2355
      %2357 = vrot.lane.b32.xlu0 %v2352, 56
      %v2358 = vpop.permute.xlu0 %2357
      %2359 = vrot.lane.b32.xlu0 %v2353, 56
      %v2360 = vpop.permute.xlu0 %2359
      %2361 = vrot.lane.b32.xlu0 %v2354, 56
      %v2362 = vpop.permute.xlu0 %2361
      %vm2363 = vcmask 457728
      %v2364 = vsel %vm2363, %v2356, %v2358
      %v2365 = vsel %vm2363, %v2358, %v2360
      %v2366 = vsel %vm2363, %v2360, %v2362
      %v2368 = vsel %vm280, %v2342, 0
      %v2371 = vsel %vm284, %v2364, 0
      %v2374 = vsel %vm284, %v2365, 0
      %v2377 = vsel %vm284, %v2366, 0
      %v2380 = vsel %vm284, %v2362, 0
      %2382 = vmatprep.subr.bf16.mxu0 %v2374
      %2383 = vmatpush1.bf16.msra.mxu0 %v2371
      %2384 = vmatprep.subr.bf16.mxu0 0
      %2385 = vmatpush1.bf16.msra.mxu0 0
      %2386 = vmatprep.subr.bf16.mxu0 0
      %2387 = vmatpush1.bf16.msra.mxu0 0
      %2388 = vmatprep.subr.bf16.mxu0 0
      %2389 = vmatpush1.bf16.msra.mxu0 0
      %2390 = vmatprep.subr.bf16.mxu0 0
      %2391 = vmatpush1.bf16.msra.mxu0 0
      %2392 = vmatprep.subr.bf16.mxu0 0
      %2393 = vmatpush1.bf16.msra.mxu0 0
      %2394 = vmatprep.subr.bf16.mxu0 0
      %2395 = vmatpush1.bf16.msra.mxu0 0
      %2396 = vmatprep.subr.bf16.mxu0 0
      %2397 = vmatpush1.bf16.msra.mxu0 0
      %2398 = vmatprep.subr.bf16.mxu0 0
      %2399 = vmatpush1.bf16.msra.mxu0 0
      %2400 = vmatprep.subr.bf16.mxu0 0
      %2401 = vmatpush1.bf16.msra.mxu0 0
      %2402 = vmatprep.subr.bf16.mxu0 0
      %2403 = vmatpush1.bf16.msra.mxu0 0
      %2404 = vmatprep.subr.bf16.mxu0 0
      %2405 = vmatpush1.bf16.msra.mxu0 0
      %2406 = vmatprep.subr.bf16.mxu0 0
      %2407 = vmatpush1.bf16.msra.mxu0 0
      %2408 = vmatprep.subr.bf16.mxu0 0
      %2409 = vmatpush1.bf16.msra.mxu0 0
      %2410 = vmatprep.subr.bf16.mxu0 0
      %2411 = vmatpush1.bf16.msra.mxu0 0
      %2412 = vmatprep.subr.bf16.mxu0 0
      %2413 = vmatpush1.bf16.msra.mxu0 0
      %2414 = vmatprep.mubr.bf16.mxu0 0
      %2415 = vmatmul.mubr.bf16.gmra.mrb[0].mxu0 %v2368
      %v2416 = vpop.f32.mrb[0].mxu0
      %v2417 = vadd.f32 0.0, %v2416
      %v2418 = vpop.f32.mrb[0].mxu0
      %v2419 = vadd.f32 0.0, %v2418
      %v2420 = vpop.f32.mrb[0].mxu0
      %v2421 = vpop.f32.mrb[0].mxu0
      %2422 = vdwg.mxu0
      %2423 = vmatprep.subr.bf16.mxu0 %v2380
      %2424 = vmatpush1.bf16.msra.mxu0 %v2377
      %2425 = vmatprep.subr.bf16.mxu0 0
      %2426 = vmatpush1.bf16.msra.mxu0 0
      %2427 = vmatprep.subr.bf16.mxu0 0
      %2428 = vmatpush1.bf16.msra.mxu0 0
      %2429 = vmatprep.subr.bf16.mxu0 0
      %2430 = vmatpush1.bf16.msra.mxu0 0
      %2431 = vmatprep.subr.bf16.mxu0 0
      %2432 = vmatpush1.bf16.msra.mxu0 0
      %2433 = vmatprep.subr.bf16.mxu0 0
      %2434 = vmatpush1.bf16.msra.mxu0 0
      %2435 = vmatprep.subr.bf16.mxu0 0
      %2436 = vmatpush1.bf16.msra.mxu0 0
      %2437 = vmatprep.subr.bf16.mxu0 0
      %2438 = vmatpush1.bf16.msra.mxu0 0
      %2439 = vmatprep.subr.bf16.mxu0 0
      %2440 = vmatpush1.bf16.msra.mxu0 0
      %2441 = vmatprep.subr.bf16.mxu0 0
      %2442 = vmatpush1.bf16.msra.mxu0 0
      %2443 = vmatprep.subr.bf16.mxu0 0
      %2444 = vmatpush1.bf16.msra.mxu0 0
      %2445 = vmatprep.subr.bf16.mxu0 0
      %2446 = vmatpush1.bf16.msra.mxu0 0
      %2447 = vmatprep.subr.bf16.mxu0 0
      %2448 = vmatpush1.bf16.msra.mxu0 0
      %2449 = vmatprep.subr.bf16.mxu0 0
      %2450 = vmatpush1.bf16.msra.mxu0 0
      %2451 = vmatprep.subr.bf16.mxu0 0
      %2452 = vmatpush1.bf16.msra.mxu0 0
      %2453 = vmatprep.subr.bf16.mxu0 0
      %2454 = vmatpush1.bf16.msra.mxu0 0
      %2455 = vmatprep.mubr.bf16.mxu0 0
      %2456 = vmatmul.mubr.bf16.gmra.mrb[0].mxu0 %v2368
      %v2457 = vpop.f32.mrb[0].mxu0
      %v2458 = vadd.f32 0.0, %v2457
      %v2459 = vpop.f32.mrb[0].mxu0
      %v2460 = vadd.f32 0.0, %v2459
      %v2461 = vpop.f32.mrb[0].mxu0
      %v2462 = vpop.f32.mrb[0].mxu0
      %2463 = vdwg.mxu0
      %v2464 = vadd.f32 %v2337, %v2417
      %v2465 = vadd.f32 %v2338, %v2419
      %v2466 = vadd.f32 %v2339, %v2458
      %v2467 = vadd.f32 %v2340, %v2460
      %s2468 = scalar_lea.vmem %s1, 76
      %v2469 = vld [vmem:[%s2468] sm:$0xf]
      %2470 = vrot.lane.b32.xlu0 %v2351, 55
      %v2471 = vpop.permute.xlu0 %2470
      %2472 = vrot.lane.b32.xlu0 %v2352, 55
      %v2473 = vpop.permute.xlu0 %2472
      %2474 = vrot.lane.b32.xlu0 %v2353, 55
      %v2475 = vpop.permute.xlu0 %2474
      %2476 = vrot.lane.b32.xlu0 %v2354, 55
      %v2477 = vpop.permute.xlu0 %2476
      %vm2478 = vcmask 449536
      %v2479 = vsel %vm2478, %v2471, %v2473
      %v2480 = vsel %vm2478, %v2473, %v2475
      %v2481 = vsel %vm2478, %v2475, %v2477
      %v2483 = vsel %vm280, %v2469, 0
      %v2486 = vsel %vm284, %v2479, 0
      %v2489 = vsel %vm284, %v2480, 0
      %v2492 = vsel %vm284, %v2481, 0
      %v2495 = vsel %vm284, %v2477, 0
      %2497 = vmatprep.subr.bf16.mxu0 %v2489
      %2498 = vmatpush1.bf16.msra.mxu0 %v2486
      %2499 = vmatprep.subr.bf16.mxu0 0
      %2500 = vmatpush1.bf16.msra.mxu0 0
      %2501 = vmatprep.subr.bf16.mxu0 0
      %2502 = vmatpush1.bf16.msra.mxu0 0
      %2503 = vmatprep.subr.bf16.mxu0 0
      %2504 = vmatpush1.bf16.msra.mxu0 0
      %2505 = vmatprep.subr.bf16.mxu0 0
      %2506 = vmatpush1.bf16.msra.mxu0 0
      %2507 = vmatprep.subr.bf16.mxu0 0
      %2508 = vmatpush1.bf16.msra.mxu0 0
      %2509 = vmatprep.subr.bf16.mxu0 0
      %2510 = vmatpush1.bf16.msra.mxu0 0
      %2511 = vmatprep.subr.bf16.mxu0 0
      %2512 = vmatpush1.bf16.msra.mxu0 0
      %2513 = vmatprep.subr.bf16.mxu0 0
      %2514 = vmatpush1.bf16.msra.mxu0 0
      %2515 = vmatprep.subr.bf16.mxu0 0
      %2516 = vmatpush1.bf16.msra.mxu0 0
      %2517 = vmatprep.subr.bf16.mxu0 0
      %2518 = vmatpush1.bf16.msra.mxu0 0
      %2519 = vmatprep.subr.bf16.mxu0 0
      %2520 = vmatpush1.bf16.msra.mxu0 0
      %2521 = vmatprep.subr.bf16.mxu0 0
      %2522 = vmatpush1.bf16.msra.mxu0 0
      %2523 = vmatprep.subr.bf16.mxu0 0
      %2524 = vmatpush1.bf16.msra.mxu0 0
      %2525 = vmatprep.subr.bf16.mxu0 0
      %2526 = vmatpush1.bf16.msra.mxu0 0
      %2527 = vmatprep.subr.bf16.mxu0 0
      %2528 = vmatpush1.bf16.msra.mxu0 0
      %2529 = vmatprep.mubr.bf16.mxu0 0
      %2530 = vmatmul.mubr.bf16.gmra.mrb[0].mxu0 %v2483
      %v2531 = vpop.f32.mrb[0].mxu0
      %v2532 = vadd.f32 0.0, %v2531
      %v2533 = vpop.f32.mrb[0].mxu0
      %v2534 = vadd.f32 0.0, %v2533
      %v2535 = vpop.f32.mrb[0].mxu0
      %v2536 = vpop.f32.mrb[0].mxu0
      %2537 = vdwg.mxu0
      %2538 = vmatprep.subr.bf16.mxu0 %v2495
      %2539 = vmatpush1.bf16.msra.mxu0 %v2492
      %2540 = vmatprep.subr.bf16.mxu0 0
      %2541 = vmatpush1.bf16.msra.mxu0 0
      %2542 = vmatprep.subr.bf16.mxu0 0
      %2543 = vmatpush1.bf16.msra.mxu0 0
      %2544 = vmatprep.subr.bf16.mxu0 0
      %2545 = vmatpush1.bf16.msra.mxu0 0
      %2546 = vmatprep.subr.bf16.mxu0 0
      %2547 = vmatpush1.bf16.msra.mxu0 0
      %2548 = vmatprep.subr.bf16.mxu0 0
      %2549 = vmatpush1.bf16.msra.mxu0 0
      %2550 = vmatprep.subr.bf16.mxu0 0
      %2551 = vmatpush1.bf16.msra.mxu0 0
      %2552 = vmatprep.subr.bf16.mxu0 0
      %2553 = vmatpush1.bf16.msra.mxu0 0
      %2554 = vmatprep.subr.bf16.mxu0 0
      %2555 = vmatpush1.bf16.msra.mxu0 0
      %2556 = vmatprep.subr.bf16.mxu0 0
      %2557 = vmatpush1.bf16.msra.mxu0 0
      %2558 = vmatprep.subr.bf16.mxu0 0
      %2559 = vmatpush1.bf16.msra.mxu0 0
      %2560 = vmatprep.subr.bf16.mxu0 0
      %2561 = vmatpush1.bf16.msra.mxu0 0
      %2562 = vmatprep.subr.bf16.mxu0 0
      %2563 = vmatpush1.bf16.msra.mxu0 0
      %2564 = vmatprep.subr.bf16.mxu0 0
      %2565 = vmatpush1.bf16.msra.mxu0 0
      %2566 = vmatprep.subr.bf16.mxu0 0
      %2567 = vmatpush1.bf16.msra.mxu0 0
      %2568 = vmatprep.subr.bf16.mxu0 0
      %2569 = vmatpush1.bf16.msra.mxu0 0
      %2570 = vmatprep.mubr.bf16.mxu0 0
      %2571 = vmatmul.mubr.bf16.gmra.mrb[0].mxu0 %v2483
      %v2572 = vpop.f32.mrb[0].mxu0
      %v2573 = vadd.f32 0.0, %v2572
      %v2574 = vpop.f32.mrb[0].mxu0
      %v2575 = vadd.f32 0.0, %v2574
      %v2576 = vpop.f32.mrb[0].mxu0
      %v2577 = vpop.f32.mrb[0].mxu0
      %2578 = vdwg.mxu0
      %v2579 = vadd.f32 %v2464, %v2532
      %v2580 = vadd.f32 %v2465, %v2534
      %v2581 = vadd.f32 %v2466, %v2573
      %v2582 = vadd.f32 %v2467, %v2575
      %s2583 = scalar_lea.vmem %s1, 80
      %v2584 = vld [vmem:[%s2583] sm:$0xf]
      %2585 = vrot.lane.b32.xlu0 %v2351, 54
      %v2586 = vpop.permute.xlu0 %2585
      %2587 = vrot.lane.b32.xlu0 %v2352, 54
      %v2588 = vpop.permute.xlu0 %2587
      %2589 = vrot.lane.b32.xlu0 %v2353, 54
      %v2590 = vpop.permute.xlu0 %2589
      %2591 = vrot.lane.b32.xlu0 %v2354, 54
      %v2592 = vpop.permute.xlu0 %2591
      %vm2593 = vcmask 441344
      %v2594 = vsel %vm2593, %v2586, %v2588
      %v2595 = vsel %vm2593, %v2588, %v2590
      %v2596 = vsel %vm2593, %v2590, %v2592
      %v2598 = vsel %vm280, %v2584, 0
      %v2601 = vsel %vm284, %v2594, 0
      %v2604 = vsel %vm284, %v2595, 0
      %v2607 = vsel %vm284, %v2596, 0
      %v2610 = vsel %vm284, %v2592, 0
      %2612 = vmatprep.subr.bf16.mxu0 %v2604
      %2613 = vmatpush1.bf16.msra.mxu0 %v2601
      %2614 = vmatprep.subr.bf16.mxu0 0
      %2615 = vmatpush1.bf16.msra.mxu0 0
      %2616 = vmatprep.subr.bf16.mxu0 0
      %2617 = vmatpush1.bf16.msra.mxu0 0
      %2618 = vmatprep.subr.bf16.mxu0 0
      %2619 = vmatpush1.bf16.msra.mxu0 0
      %2620 = vmatprep.subr.bf16.mxu0 0
      %2621 = vmatpush1.bf16.msra.mxu0 0
      %2622 = vmatprep.subr.bf16.mxu0 0
      %2623 = vmatpush1.bf16.msra.mxu0 0
      %2624 = vmatprep.subr.bf16.mxu0 0
      %2625 = vmatpush1.bf16.msra.mxu0 0
      %2626 = vmatprep.subr.bf16.mxu0 0
      %2627 = vmatpush1.bf16.msra.mxu0 0
      %2628 = vmatprep.subr.bf16.mxu0 0
      %2629 = vmatpush1.bf16.msra.mxu0 0
      %2630 = vmatprep.subr.bf16.mxu0 0
      %2631 = vmatpush1.bf16.msra.mxu0 0
      %2632 = vmatprep.subr.bf16.mxu0 0
      %2633 = vmatpush1.bf16.msra.mxu0 0
      %2634 = vmatprep.subr.bf16.mxu0 0
      %2635 = vmatpush1.bf16.msra.mxu0 0
      %2636 = vmatprep.subr.bf16.mxu0 0
      %2637 = vmatpush1.bf16.msra.mxu0 0
      %2638 = vmatprep.subr.bf16.mxu0 0
      %2639 = vmatpush1.bf16.msra.mxu0 0
      %2640 = vmatprep.subr.bf16.mxu0 0
      %2641 = vmatpush1.bf16.msra.mxu0 0
      %2642 = vmatprep.subr.bf16.mxu0 0
      %2643 = vmatpush1.bf16.msra.mxu0 0
      %2644 = vmatprep.mubr.bf16.mxu0 0
      %2645 = vmatmul.mubr.bf16.gmra.mrb[0].mxu0 %v2598
      %v2646 = vpop.f32.mrb[0].mxu0
      %v2647 = vadd.f32 0.0, %v2646
      %v2648 = vpop.f32.mrb[0].mxu0
      %v2649 = vadd.f32 0.0, %v2648
      %v2650 = vpop.f32.mrb[0].mxu0
      %v2651 = vpop.f32.mrb[0].mxu0
      %2652 = vdwg.mxu0
      %2653 = vmatprep.subr.bf16.mxu0 %v2610
      %2654 = vmatpush1.bf16.msra.mxu0 %v2607
      %2655 = vmatprep.subr.bf16.mxu0 0
      %2656 = vmatpush1.bf16.msra.mxu0 0
      %2657 = vmatprep.subr.bf16.mxu0 0
      %2658 = vmatpush1.bf16.msra.mxu0 0
      %2659 = vmatprep.subr.bf16.mxu0 0
      %2660 = vmatpush1.bf16.msra.mxu0 0
      %2661 = vmatprep.subr.bf16.mxu0 0
      %2662 = vmatpush1.bf16.msra.mxu0 0
      %2663 = vmatprep.subr.bf16.mxu0 0
      %2664 = vmatpush1.bf16.msra.mxu0 0
      %2665 = vmatprep.subr.bf16.mxu0 0
      %2666 = vmatpush1.bf16.msra.mxu0 0
      %2667 = vmatprep.subr.bf16.mxu0 0
      %2668 = vmatpush1.bf16.msra.mxu0 0
      %2669 = vmatprep.subr.bf16.mxu0 0
      %2670 = vmatpush1.bf16.msra.mxu0 0
      %2671 = vmatprep.subr.bf16.mxu0 0
      %2672 = vmatpush1.bf16.msra.mxu0 0
      %2673 = vmatprep.subr.bf16.mxu0 0
      %2674 = vmatpush1.bf16.msra.mxu0 0
      %2675 = vmatprep.subr.bf16.mxu0 0
      %2676 = vmatpush1.bf16.msra.mxu0 0
      %2677 = vmatprep.subr.bf16.mxu0 0
      %2678 = vmatpush1.bf16.msra.mxu0 0
      %2679 = vmatprep.subr.bf16.mxu0 0
      %2680 = vmatpush1.bf16.msra.mxu0 0
      %2681 = vmatprep.subr.bf16.mxu0 0
      %2682 = vmatpush1.bf16.msra.mxu0 0
      %2683 = vmatprep.subr.bf16.mxu0 0
      %2684 = vmatpush1.bf16.msra.mxu0 0
      %2685 = vmatprep.mubr.bf16.mxu0 0
      %2686 = vmatmul.mubr.bf16.gmra.mrb[0].mxu0 %v2598
      %v2687 = vpop.f32.mrb[0].mxu0
      %v2688 = vadd.f32 0.0, %v2687
      %v2689 = vpop.f32.mrb[0].mxu0
      %v2690 = vadd.f32 0.0, %v2689
      %v2691 = vpop.f32.mrb[0].mxu0
      %v2692 = vpop.f32.mrb[0].mxu0
      %2693 = vdwg.mxu0
      %v2694 = vadd.f32 %v2579, %v2647
      %v2695 = vadd.f32 %v2580, %v2649
      %v2696 = vadd.f32 %v2581, %v2688
      %v2697 = vadd.f32 %v2582, %v2690
      %s2698 = scalar_lea.vmem %s1, 84
      %v2699 = vld [vmem:[%s2698] sm:$0xf]
      %2700 = vrot.lane.b32.xlu0 %v2351, 46
      %v2701 = vpop.permute.xlu0 %2700
      %2702 = vrot.lane.b32.xlu0 %v2352, 46
      %v2703 = vpop.permute.xlu0 %2702
      %2704 = vrot.lane.b32.xlu0 %v2353, 46
      %v2705 = vpop.permute.xlu0 %2704
      %2706 = vrot.lane.b32.xlu0 %v2354, 46
      %v2707 = vpop.permute.xlu0 %2706
      %vm2708 = vcmask 375808
      %v2709 = vsel %vm2708, %v2701, %v2703
      %v2710 = vsel %vm2708, %v2703, %v2705
      %v2711 = vsel %vm2708, %v2705, %v2707
      %v2713 = vsel %vm280, %v2699, 0
      %v2716 = vsel %vm284, %v2709, 0
      %v2719 = vsel %vm284, %v2710, 0
      %v2722 = vsel %vm284, %v2711, 0
      %v2725 = vsel %vm284, %v2707, 0
      %2727 = vmatprep.subr.bf16.mxu0 %v2719
      %2728 = vmatpush1.bf16.msra.mxu0 %v2716
      %2729 = vmatprep.subr.bf16.mxu0 0
      %2730 = vmatpush1.bf16.msra.mxu0 0
      %2731 = vmatprep.subr.bf16.mxu0 0
      %2732 = vmatpush1.bf16.msra.mxu0 0
      %2733 = vmatprep.subr.bf16.mxu0 0
      %2734 = vmatpush1.bf16.msra.mxu0 0
      %2735 = vmatprep.subr.bf16.mxu0 0
      %2736 = vmatpush1.bf16.msra.mxu0 0
      %2737 = vmatprep.subr.bf16.mxu0 0
      %2738 = vmatpush1.bf16.msra.mxu0 0
      %2739 = vmatprep.subr.bf16.mxu0 0
      %2740 = vmatpush1.bf16.msra.mxu0 0
      %2741 = vmatprep.subr.bf16.mxu0 0
      %2742 = vmatpush1.bf16.msra.mxu0 0
      %2743 = vmatprep.subr.bf16.mxu0 0
      %2744 = vmatpush1.bf16.msra.mxu0 0
      %2745 = vmatprep.subr.bf16.mxu0 0
      %2746 = vmatpush1.bf16.msra.mxu0 0
      %2747 = vmatprep.subr.bf16.mxu0 0
      %2748 = vmatpush1.bf16.msra.mxu0 0
      %2749 = vmatprep.subr.bf16.mxu0 0
      %2750 = vmatpush1.bf16.msra.mxu0 0
      %2751 = vmatprep.subr.bf16.mxu0 0
      %2752 = vmatpush1.bf16.msra.mxu0 0
      %2753 = vmatprep.subr.bf16.mxu0 0
      %2754 = vmatpush1.bf16.msra.mxu0 0
      %2755 = vmatprep.subr.bf16.mxu0 0
      %2756 = vmatpush1.bf16.msra.mxu0 0
      %2757 = vmatprep.subr.bf16.mxu0 0
      %2758 = vmatpush1.bf16.msra.mxu0 0
      %2759 = vmatprep.mubr.bf16.mxu0 0
      %2760 = vmatmul.mubr.bf16.gmra.mrb[0].mxu0 %v2713
      %v2761 = vpop.f32.mrb[0].mxu0
      %v2762 = vadd.f32 0.0, %v2761
      %v2763 = vpop.f32.mrb[0].mxu0
      %v2764 = vadd.f32 0.0, %v2763
      %v2765 = vpop.f32.mrb[0].mxu0
      %v2766 = vpop.f32.mrb[0].mxu0
      %2767 = vdwg.mxu0
      %2768 = vmatprep.subr.bf16.mxu0 %v2725
      %2769 = vmatpush1.bf16.msra.mxu0 %v2722
      %2770 = vmatprep.subr.bf16.mxu0 0
      %2771 = vmatpush1.bf16.msra.mxu0 0
      %2772 = vmatprep.subr.bf16.mxu0 0
      %2773 = vmatpush1.bf16.msra.mxu0 0
      %2774 = vmatprep.subr.bf16.mxu0 0
      %2775 = vmatpush1.bf16.msra.mxu0 0
      %2776 = vmatprep.subr.bf16.mxu0 0
      %2777 = vmatpush1.bf16.msra.mxu0 0
      %2778 = vmatprep.subr.bf16.mxu0 0
      %2779 = vmatpush1.bf16.msra.mxu0 0
      %2780 = vmatprep.subr.bf16.mxu0 0
      %2781 = vmatpush1.bf16.msra.mxu0 0
      %2782 = vmatprep.subr.bf16.mxu0 0
      %2783 = vmatpush1.bf16.msra.mxu0 0
      %2784 = vmatprep.subr.bf16.mxu0 0
      %2785 = vmatpush1.bf16.msra.mxu0 0
      %2786 = vmatprep.subr.bf16.mxu0 0
      %2787 = vmatpush1.bf16.msra.mxu0 0
      %2788 = vmatprep.subr.bf16.mxu0 0
      %2789 = vmatpush1.bf16.msra.mxu0 0
      %2790 = vmatprep.subr.bf16.mxu0 0
      %2791 = vmatpush1.bf16.msra.mxu0 0
      %2792 = vmatprep.subr.bf16.mxu0 0
      %2793 = vmatpush1.bf16.msra.mxu0 0
      %2794 = vmatprep.subr.bf16.mxu0 0
      %2795 = vmatpush1.bf16.msra.mxu0 0
      %2796 = vmatprep.subr.bf16.mxu0 0
      %2797 = vmatpush1.bf16.msra.mxu0 0
      %2798 = vmatprep.subr.bf16.mxu0 0
      %2799 = vmatpush1.bf16.msra.mxu0 0
      %2800 = vmatprep.mubr.bf16.mxu0 0
      %2801 = vmatmul.mubr.bf16.gmra.mrb[0].mxu0 %v2713
      %v2802 = vpop.f32.mrb[0].mxu0
      %v2803 = vadd.f32 0.0, %v2802
      %v2804 = vpop.f32.mrb[0].mxu0
      %v2805 = vadd.f32 0.0, %v2804
      %v2806 = vpop.f32.mrb[0].mxu0
      %v2807 = vpop.f32.mrb[0].mxu0
      %2808 = vdwg.mxu0
      %v2809 = vadd.f32 %v2694, %v2762
      %v2810 = vadd.f32 %v2695, %v2764
      %v2811 = vadd.f32 %v2696, %v2803
      %v2812 = vadd.f32 %v2697, %v2805
      %s2813 = scalar_lea.vmem %s1, 88
      %v2814 = vld [vmem:[%s2813] sm:$0xf]
      %2815 = vrot.lane.b32.xlu0 %v2351, 45
      %v2816 = vpop.permute.xlu0 %2815
      %2817 = vrot.lane.b32.xlu0 %v2352, 45
      %v2818 = vpop.permute.xlu0 %2817
      %2819 = vrot.lane.b32.xlu0 %v2353, 45
      %v2820 = vpop.permute.xlu0 %2819
      %2821 = vrot.lane.b32.xlu0 %v2354, 45
      %v2822 = vpop.permute.xlu0 %2821
      %vm2823 = vcmask 367616
      %v2824 = vsel %vm2823, %v2816, %v2818
      %v2825 = vsel %vm2823, %v2818, %v2820
      %v2826 = vsel %vm2823, %v2820, %v2822
      %v2828 = vsel %vm280, %v2814, 0
      %v2831 = vsel %vm284, %v2824, 0
      %v2834 = vsel %vm284, %v2825, 0
      %v2837 = vsel %vm284, %v2826, 0
      %v2840 = vsel %vm284, %v2822, 0
      %2842 = vmatprep.subr.bf16.mxu0 %v2834
      %2843 = vmatpush1.bf16.msra.mxu0 %v2831
      %2844 = vmatprep.subr.bf16.mxu0 0
      %2845 = vmatpush1.bf16.msra.mxu0 0
      %2846 = vmatprep.subr.bf16.mxu0 0
      %2847 = vmatpush1.bf16.msra.mxu0 0
      %2848 = vmatprep.subr.bf16.mxu0 0
      %2849 = vmatpush1.bf16.msra.mxu0 0
      %2850 = vmatprep.subr.bf16.mxu0 0
      %2851 = vmatpush1.bf16.msra.mxu0 0
      %2852 = vmatprep.subr.bf16.mxu0 0
      %2853 = vmatpush1.bf16.msra.mxu0 0
      %2854 = vmatprep.subr.bf16.mxu0 0
      %2855 = vmatpush1.bf16.msra.mxu0 0
      %2856 = vmatprep.subr.bf16.mxu0 0
      %2857 = vmatpush1.bf16.msra.mxu0 0
      %2858 = vmatprep.subr.bf16.mxu0 0
      %2859 = vmatpush1.bf16.msra.mxu0 0
      %2860 = vmatprep.subr.bf16.mxu0 0
      %2861 = vmatpush1.bf16.msra.mxu0 0
      %2862 = vmatprep.subr.bf16.mxu0 0
      %2863 = vmatpush1.bf16.msra.mxu0 0
      %2864 = vmatprep.subr.bf16.mxu0 0
      %2865 = vmatpush1.bf16.msra.mxu0 0
      %2866 = vmatprep.subr.bf16.mxu0 0
      %2867 = vmatpush1.bf16.msra.mxu0 0
      %2868 = vmatprep.subr.bf16.mxu0 0
      %2869 = vmatpush1.bf16.msra.mxu0 0
      %2870 = vmatprep.subr.bf16.mxu0 0
      %2871 = vmatpush1.bf16.msra.mxu0 0
      %2872 = vmatprep.subr.bf16.mxu0 0
      %2873 = vmatpush1.bf16.msra.mxu0 0
      %2874 = vmatprep.mubr.bf16.mxu0 0
      %2875 = vmatmul.mubr.bf16.gmra.mrb[0].mxu0 %v2828
      %v2876 = vpop.f32.mrb[0].mxu0
      %v2877 = vadd.f32 0.0, %v2876
      %v2878 = vpop.f32.mrb[0].mxu0
      %v2879 = vadd.f32 0.0, %v2878
      %v2880 = vpop.f32.mrb[0].mxu0
      %v2881 = vpop.f32.mrb[0].mxu0
      %2882 = vdwg.mxu0
      %2883 = vmatprep.subr.bf16.mxu0 %v2840
      %2884 = vmatpush1.bf16.msra.mxu0 %v2837
      %2885 = vmatprep.subr.bf16.mxu0 0
      %2886 = vmatpush1.bf16.msra.mxu0 0
      %2887 = vmatprep.subr.bf16.mxu0 0
      %2888 = vmatpush1.bf16.msra.mxu0 0
      %2889 = vmatprep.subr.bf16.mxu0 0
      %2890 = vmatpush1.bf16.msra.mxu0 0
      %2891 = vmatprep.subr.bf16.mxu0 0
      %2892 = vmatpush1.bf16.msra.mxu0 0
      %2893 = vmatprep.subr.bf16.mxu0 0
      %2894 = vmatpush1.bf16.msra.mxu0 0
      %2895 = vmatprep.subr.bf16.mxu0 0
      %2896 = vmatpush1.bf16.msra.mxu0 0
      %2897 = vmatprep.subr.bf16.mxu0 0
      %2898 = vmatpush1.bf16.msra.mxu0 0
      %2899 = vmatprep.subr.bf16.mxu0 0
      %2900 = vmatpush1.bf16.msra.mxu0 0
      %2901 = vmatprep.subr.bf16.mxu0 0
      %2902 = vmatpush1.bf16.msra.mxu0 0
      %2903 = vmatprep.subr.bf16.mxu0 0
      %2904 = vmatpush1.bf16.msra.mxu0 0
      %2905 = vmatprep.subr.bf16.mxu0 0
      %2906 = vmatpush1.bf16.msra.mxu0 0
      %2907 = vmatprep.subr.bf16.mxu0 0
      %2908 = vmatpush1.bf16.msra.mxu0 0
      %2909 = vmatprep.subr.bf16.mxu0 0
      %2910 = vmatpush1.bf16.msra.mxu0 0
      %2911 = vmatprep.subr.bf16.mxu0 0
      %2912 = vmatpush1.bf16.msra.mxu0 0
      %2913 = vmatprep.subr.bf16.mxu0 0
      %2914 = vmatpush1.bf16.msra.mxu0 0
      %2915 = vmatprep.mubr.bf16.mxu0 0
      %2916 = vmatmul.mubr.bf16.gmra.mrb[0].mxu0 %v2828
      %v2917 = vpop.f32.mrb[0].mxu0
      %v2918 = vadd.f32 0.0, %v2917
      %v2919 = vpop.f32.mrb[0].mxu0
      %v2920 = vadd.f32 0.0, %v2919
      %v2921 = vpop.f32.mrb[0].mxu0
      %v2922 = vpop.f32.mrb[0].mxu0
      %2923 = vdwg.mxu0
      %v2924 = vadd.f32 %v2809, %v2877
      %v2925 = vadd.f32 %v2810, %v2879
      %v2926 = vadd.f32 %v2811, %v2918
      %v2927 = vadd.f32 %v2812, %v2920
      %s2928 = scalar_lea.vmem %s1, 92
      %v2929 = vld [vmem:[%s2928] sm:$0xf]
      %2930 = vrot.lane.b32.xlu0 %v2351, 44
      %v2931 = vpop.permute.xlu0 %2930
      %2932 = vrot.lane.b32.xlu0 %v2352, 44
      %v2933 = vpop.permute.xlu0 %2932
      %2934 = vrot.lane.b32.xlu0 %v2353, 44
      %v2935 = vpop.permute.xlu0 %2934
      %2936 = vrot.lane.b32.xlu0 %v2354, 44
      %v2937 = vpop.permute.xlu0 %2936
      %vm2938 = vcmask 359424
      %v2939 = vsel %vm2938, %v2931, %v2933
      %v2940 = vsel %vm2938, %v2933, %v2935
      %v2941 = vsel %vm2938, %v2935, %v2937
      %v2943 = vsel %vm280, %v2929, 0
      %v2946 = vsel %vm284, %v2939, 0
      %v2949 = vsel %vm284, %v2940, 0
      %v2952 = vsel %vm284, %v2941, 0
      %v2955 = vsel %vm284, %v2937, 0
      %2957 = vmatprep.subr.bf16.mxu0 %v2949
      %2958 = vmatpush1.bf16.msra.mxu0 %v2946
      %2959 = vmatprep.subr.bf16.mxu0 0
      %2960 = vmatpush1.bf16.msra.mxu0 0
      %2961 = vmatprep.subr.bf16.mxu0 0
      %2962 = vmatpush1.bf16.msra.mxu0 0
      %2963 = vmatprep.subr.bf16.mxu0 0
      %2964 = vmatpush1.bf16.msra.mxu0 0
      %2965 = vmatprep.subr.bf16.mxu0 0
      %2966 = vmatpush1.bf16.msra.mxu0 0
      %2967 = vmatprep.subr.bf16.mxu0 0
      %2968 = vmatpush1.bf16.msra.mxu0 0
      %2969 = vmatprep.subr.bf16.mxu0 0
      %2970 = vmatpush1.bf16.msra.mxu0 0
      %2971 = vmatprep.subr.bf16.mxu0 0
      %2972 = vmatpush1.bf16.msra.mxu0 0
      %2973 = vmatprep.subr.bf16.mxu0 0
      %2974 = vmatpush1.bf16.msra.mxu0 0
      %2975 = vmatprep.subr.bf16.mxu0 0
      %2976 = vmatpush1.bf16.msra.mxu0 0
      %2977 = vmatprep.subr.bf16.mxu0 0
      %2978 = vmatpush1.bf16.msra.mxu0 0
      %2979 = vmatprep.subr.bf16.mxu0 0
      %2980 = vmatpush1.bf16.msra.mxu0 0
      %2981 = vmatprep.subr.bf16.mxu0 0
      %2982 = vmatpush1.bf16.msra.mxu0 0
      %2983 = vmatprep.subr.bf16.mxu0 0
      %2984 = vmatpush1.bf16.msra.mxu0 0
      %2985 = vmatprep.subr.bf16.mxu0 0
      %2986 = vmatpush1.bf16.msra.mxu0 0
      %2987 = vmatprep.subr.bf16.mxu0 0
      %2988 = vmatpush1.bf16.msra.mxu0 0
      %2989 = vmatprep.mubr.bf16.mxu0 0
      %2990 = vmatmul.mubr.bf16.gmra.mrb[0].mxu0 %v2943
      %v2991 = vpop.f32.mrb[0].mxu0
      %v2992 = vadd.f32 0.0, %v2991
      %v2993 = vpop.f32.mrb[0].mxu0
      %v2994 = vadd.f32 0.0, %v2993
      %v2995 = vpop.f32.mrb[0].mxu0
      %v2996 = vpop.f32.mrb[0].mxu0
      %2997 = vdwg.mxu0
      %2998 = vmatprep.subr.bf16.mxu0 %v2955
      %2999 = vmatpush1.bf16.msra.mxu0 %v2952
      %3000 = vmatprep.subr.bf16.mxu0 0
      %3001 = vmatpush1.bf16.msra.mxu0 0
      %3002 = vmatprep.subr.bf16.mxu0 0
      %3003 = vmatpush1.bf16.msra.mxu0 0
      %3004 = vmatprep.subr.bf16.mxu0 0
      %3005 = vmatpush1.bf16.msra.mxu0 0
      %3006 = vmatprep.subr.bf16.mxu0 0
      %3007 = vmatpush1.bf16.msra.mxu0 0
      %3008 = vmatprep.subr.bf16.mxu0 0
      %3009 = vmatpush1.bf16.msra.mxu0 0
      %3010 = vmatprep.subr.bf16.mxu0 0
      %3011 = vmatpush1.bf16.msra.mxu0 0
      %3012 = vmatprep.subr.bf16.mxu0 0
      %3013 = vmatpush1.bf16.msra.mxu0 0
      %3014 = vmatprep.subr.bf16.mxu0 0
      %3015 = vmatpush1.bf16.msra.mxu0 0
      %3016 = vmatprep.subr.bf16.mxu0 0
      %3017 = vmatpush1.bf16.msra.mxu0 0
      %3018 = vmatprep.subr.bf16.mxu0 0
      %3019 = vmatpush1.bf16.msra.mxu0 0
      %3020 = vmatprep.subr.bf16.mxu0 0
      %3021 = vmatpush1.bf16.msra.mxu0 0
      %3022 = vmatprep.subr.bf16.mxu0 0
      %3023 = vmatpush1.bf16.msra.mxu0 0
      %3024 = vmatprep.subr.bf16.mxu0 0
      %3025 = vmatpush1.bf16.msra.mxu0 0
      %3026 = vmatprep.subr.bf16.mxu0 0
      %3027 = vmatpush1.bf16.msra.mxu0 0
      %3028 = vmatprep.subr.bf16.mxu0 0
      %3029 = vmatpush1.bf16.msra.mxu0 0
      %3030 = vmatprep.mubr.bf16.mxu0 0
      %3031 = vmatmul.mubr.bf16.gmra.mrb[0].mxu0 %v2943
      %v3032 = vpop.f32.mrb[0].mxu0
      %v3033 = vadd.f32 0.0, %v3032
      %v3034 = vpop.f32.mrb[0].mxu0
      %v3035 = vadd.f32 0.0, %v3034
      %v3036 = vpop.f32.mrb[0].mxu0
      %v3037 = vpop.f32.mrb[0].mxu0
      %3038 = vdwg.mxu0
      %v3039 = vadd.f32 %v2924, %v2992
      %v3040 = vadd.f32 %v2925, %v2994
      %v3041 = vadd.f32 %v2926, %v3033
      %v3042 = vadd.f32 %v2927, %v3035
      %s3043 = scalar_lea.vmem %s1, 96
      %v3044 = vld [vmem:[%s3043] sm:$0xf]
      %3045 = vrot.lane.b32.xlu0 %v2351, 36
      %v3046 = vpop.permute.xlu0 %3045
      %3047 = vrot.lane.b32.xlu0 %v2352, 36
      %v3048 = vpop.permute.xlu0 %3047
      %3049 = vrot.lane.b32.xlu0 %v2353, 36
      %v3050 = vpop.permute.xlu0 %3049
      %3051 = vrot.lane.b32.xlu0 %v2354, 36
      %v3052 = vpop.permute.xlu0 %3051
      %vm3053 = vcmask 293888
      %v3054 = vsel %vm3053, %v3046, %v3048
      %v3055 = vsel %vm3053, %v3048, %v3050
      %v3056 = vsel %vm3053, %v3050, %v3052
      %v3058 = vsel %vm280, %v3044, 0
      %v3061 = vsel %vm284, %v3054, 0
      %v3064 = vsel %vm284, %v3055, 0
      %v3067 = vsel %vm284, %v3056, 0
      %v3070 = vsel %vm284, %v3052, 0
      %3072 = vmatprep.subr.bf16.mxu0 %v3064
      %3073 = vmatpush1.bf16.msra.mxu0 %v3061
      %3074 = vmatprep.subr.bf16.mxu0 0
      %3075 = vmatpush1.bf16.msra.mxu0 0
      %3076 = vmatprep.subr.bf16.mxu0 0
      %3077 = vmatpush1.bf16.msra.mxu0 0
      %3078 = vmatprep.subr.bf16.mxu0 0
      %3079 = vmatpush1.bf16.msra.mxu0 0
      %3080 = vmatprep.subr.bf16.mxu0 0
      %3081 = vmatpush1.bf16.msra.mxu0 0
      %3082 = vmatprep.subr.bf16.mxu0 0
      %3083 = vmatpush1.bf16.msra.mxu0 0
      %3084 = vmatprep.subr.bf16.mxu0 0
      %3085 = vmatpush1.bf16.msra.mxu0 0
      %3086 = vmatprep.subr.bf16.mxu0 0
      %3087 = vmatpush1.bf16.msra.mxu0 0
      %3088 = vmatprep.subr.bf16.mxu0 0
      %3089 = vmatpush1.bf16.msra.mxu0 0
      %3090 = vmatprep.subr.bf16.mxu0 0
      %3091 = vmatpush1.bf16.msra.mxu0 0
      %3092 = vmatprep.subr.bf16.mxu0 0
      %3093 = vmatpush1.bf16.msra.mxu0 0
      %3094 = vmatprep.subr.bf16.mxu0 0
      %3095 = vmatpush1.bf16.msra.mxu0 0
      %3096 = vmatprep.subr.bf16.mxu0 0
      %3097 = vmatpush1.bf16.msra.mxu0 0
      %3098 = vmatprep.subr.bf16.mxu0 0
      %3099 = vmatpush1.bf16.msra.mxu0 0
      %3100 = vmatprep.subr.bf16.mxu0 0
      %3101 = vmatpush1.bf16.msra.mxu0 0
      %3102 = vmatprep.subr.bf16.mxu0 0
      %3103 = vmatpush1.bf16.msra.mxu0 0
      %3104 = vmatprep.mubr.bf16.mxu0 0
      %3105 = vmatmul.mubr.bf16.gmra.mrb[0].mxu0 %v3058
      %v3106 = vpop.f32.mrb[0].mxu0
      %v3107 = vadd.f32 0.0, %v3106
      %v3108 = vpop.f32.mrb[0].mxu0
      %v3109 = vadd.f32 0.0, %v3108
      %v3110 = vpop.f32.mrb[0].mxu0
      %v3111 = vpop.f32.mrb[0].mxu0
      %3112 = vdwg.mxu0
      %3113 = vmatprep.subr.bf16.mxu0 %v3070
      %3114 = vmatpush1.bf16.msra.mxu0 %v3067
      %3115 = vmatprep.subr.bf16.mxu0 0
      %3116 = vmatpush1.bf16.msra.mxu0 0
      %3117 = vmatprep.subr.bf16.mxu0 0
      %3118 = vmatpush1.bf16.msra.mxu0 0
      %3119 = vmatprep.subr.bf16.mxu0 0
      %3120 = vmatpush1.bf16.msra.mxu0 0
      %3121 = vmatprep.subr.bf16.mxu0 0
      %3122 = vmatpush1.bf16.msra.mxu0 0
      %3123 = vmatprep.subr.bf16.mxu0 0
      %3124 = vmatpush1.bf16.msra.mxu0 0
      %3125 = vmatprep.subr.bf16.mxu0 0
      %3126 = vmatpush1.bf16.msra.mxu0 0
      %3127 = vmatprep.subr.bf16.mxu0 0
      %3128 = vmatpush1.bf16.msra.mxu0 0
      %3129 = vmatprep.subr.bf16.mxu0 0
      %3130 = vmatpush1.bf16.msra.mxu0 0
      %3131 = vmatprep.subr.bf16.mxu0 0
      %3132 = vmatpush1.bf16.msra.mxu0 0
      %3133 = vmatprep.subr.bf16.mxu0 0
      %3134 = vmatpush1.bf16.msra.mxu0 0
      %3135 = vmatprep.subr.bf16.mxu0 0
      %3136 = vmatpush1.bf16.msra.mxu0 0
      %3137 = vmatprep.subr.bf16.mxu0 0
      %3138 = vmatpush1.bf16.msra.mxu0 0
      %3139 = vmatprep.subr.bf16.mxu0 0
      %3140 = vmatpush1.bf16.msra.mxu0 0
      %3141 = vmatprep.subr.bf16.mxu0 0
      %3142 = vmatpush1.bf16.msra.mxu0 0
      %3143 = vmatprep.subr.bf16.mxu0 0
      %3144 = vmatpush1.bf16.msra.mxu0 0
      %3145 = vmatprep.mubr.bf16.mxu0 0
      %3146 = vmatmul.mubr.bf16.gmra.mrb[0].mxu0 %v3058
      %v3147 = vpop.f32.mrb[0].mxu0
      %v3148 = vadd.f32 0.0, %v3147
      %v3149 = vpop.f32.mrb[0].mxu0
      %v3150 = vadd.f32 0.0, %v3149
      %v3151 = vpop.f32.mrb[0].mxu0
      %v3152 = vpop.f32.mrb[0].mxu0
      %3153 = vdwg.mxu0
      %v3154 = vadd.f32 %v3039, %v3107
      %v3155 = vadd.f32 %v3040, %v3109
      %v3156 = vadd.f32 %v3041, %v3148
      %v3157 = vadd.f32 %v3042, %v3150
      %s3158 = scalar_lea.vmem %s1, 100
      %v3159 = vld [vmem:[%s3158] sm:$0xf]
      %3160 = vrot.lane.b32.xlu0 %v2351, 35
      %v3161 = vpop.permute.xlu0 %3160
      %3162 = vrot.lane.b32.xlu0 %v2352, 35
      %v3163 = vpop.permute.xlu0 %3162
      %3164 = vrot.lane.b32.xlu0 %v2353, 35
      %v3165 = vpop.permute.xlu0 %3164
      %3166 = vrot.lane.b32.xlu0 %v2354, 35
      %v3167 = vpop.permute.xlu0 %3166
      %vm3168 = vcmask 285696
      %v3169 = vsel %vm3168, %v3161, %v3163
      %v3170 = vsel %vm3168, %v3163, %v3165
      %v3171 = vsel %vm3168, %v3165, %v3167
      %v3173 = vsel %vm280, %v3159, 0
      %v3176 = vsel %vm284, %v3169, 0
      %v3179 = vsel %vm284, %v3170, 0
      %v3182 = vsel %vm284, %v3171, 0
      %v3185 = vsel %vm284, %v3167, 0
      %3187 = vmatprep.subr.bf16.mxu0 %v3179
      %3188 = vmatpush1.bf16.msra.mxu0 %v3176
      %3189 = vmatprep.subr.bf16.mxu0 0
      %3190 = vmatpush1.bf16.msra.mxu0 0
      %3191 = vmatprep.subr.bf16.mxu0 0
      %3192 = vmatpush1.bf16.msra.mxu0 0
      %3193 = vmatprep.subr.bf16.mxu0 0
      %3194 = vmatpush1.bf16.msra.mxu0 0
      %3195 = vmatprep.subr.bf16.mxu0 0
      %3196 = vmatpush1.bf16.msra.mxu0 0
      %3197 = vmatprep.subr.bf16.mxu0 0
      %3198 = vmatpush1.bf16.msra.mxu0 0
      %3199 = vmatprep.subr.bf16.mxu0 0
      %3200 = vmatpush1.bf16.msra.mxu0 0
      %3201 = vmatprep.subr.bf16.mxu0 0
      %3202 = vmatpush1.bf16.msra.mxu0 0
      %3203 = vmatprep.subr.bf16.mxu0 0
      %3204 = vmatpush1.bf16.msra.mxu0 0
      %3205 = vmatprep.subr.bf16.mxu0 0
      %3206 = vmatpush1.bf16.msra.mxu0 0
      %3207 = vmatprep.subr.bf16.mxu0 0
      %3208 = vmatpush1.bf16.msra.mxu0 0
      %3209 = vmatprep.subr.bf16.mxu0 0
      %3210 = vmatpush1.bf16.msra.mxu0 0
      %3211 = vmatprep.subr.bf16.mxu0 0
      %3212 = vmatpush1.bf16.msra.mxu0 0
      %3213 = vmatprep.subr.bf16.mxu0 0
      %3214 = vmatpush1.bf16.msra.mxu0 0
      %3215 = vmatprep.subr.bf16.mxu0 0
      %3216 = vmatpush1.bf16.msra.mxu0 0
      %3217 = vmatprep.subr.bf16.mxu0 0
      %3218 = vmatpush1.bf16.msra.mxu0 0
      %3219 = vmatprep.mubr.bf16.mxu0 0
      %3220 = vmatmul.mubr.bf16.gmra.mrb[0].mxu0 %v3173
      %v3221 = vpop.f32.mrb[0].mxu0
      %v3222 = vadd.f32 0.0, %v3221
      %v3223 = vpop.f32.mrb[0].mxu0
      %v3224 = vadd.f32 0.0, %v3223
      %v3225 = vpop.f32.mrb[0].mxu0
      %v3226 = vpop.f32.mrb[0].mxu0
      %3227 = vdwg.mxu0
      %3228 = vmatprep.subr.bf16.mxu0 %v3185
      %3229 = vmatpush1.bf16.msra.mxu0 %v3182
      %3230 = vmatprep.subr.bf16.mxu0 0
      %3231 = vmatpush1.bf16.msra.mxu0 0
      %3232 = vmatprep.subr.bf16.mxu0 0
      %3233 = vmatpush1.bf16.msra.mxu0 0
      %3234 = vmatprep.subr.bf16.mxu0 0
      %3235 = vmatpush1.bf16.msra.mxu0 0
      %3236 = vmatprep.subr.bf16.mxu0 0
      %3237 = vmatpush1.bf16.msra.mxu0 0
      %3238 = vmatprep.subr.bf16.mxu0 0
      %3239 = vmatpush1.bf16.msra.mxu0 0
      %3240 = vmatprep.subr.bf16.mxu0 0
      %3241 = vmatpush1.bf16.msra.mxu0 0
      %3242 = vmatprep.subr.bf16.mxu0 0
      %3243 = vmatpush1.bf16.msra.mxu0 0
      %3244 = vmatprep.subr.bf16.mxu0 0
      %3245 = vmatpush1.bf16.msra.mxu0 0
      %3246 = vmatprep.subr.bf16.mxu0 0
      %3247 = vmatpush1.bf16.msra.mxu0 0
      %3248 = vmatprep.subr.bf16.mxu0 0
      %3249 = vmatpush1.bf16.msra.mxu0 0
      %3250 = vmatprep.subr.bf16.mxu0 0
      %3251 = vmatpush1.bf16.msra.mxu0 0
      %3252 = vmatprep.subr.bf16.mxu0 0
      %3253 = vmatpush1.bf16.msra.mxu0 0
      %3254 = vmatprep.subr.bf16.mxu0 0
      %3255 = vmatpush1.bf16.msra.mxu0 0
      %3256 = vmatprep.subr.bf16.mxu0 0
      %3257 = vmatpush1.bf16.msra.mxu0 0
      %3258 = vmatprep.subr.bf16.mxu0 0
      %3259 = vmatpush1.bf16.msra.mxu0 0
      %3260 = vmatprep.mubr.bf16.mxu0 0
      %3261 = vmatmul.mubr.bf16.gmra.mrb[0].mxu0 %v3173
      %v3262 = vpop.f32.mrb[0].mxu0
      %v3263 = vadd.f32 0.0, %v3262
      %v3264 = vpop.f32.mrb[0].mxu0
      %v3265 = vadd.f32 0.0, %v3264
      %v3266 = vpop.f32.mrb[0].mxu0
      %v3267 = vpop.f32.mrb[0].mxu0
      %3268 = vdwg.mxu0
      %v3269 = vadd.f32 %v3154, %v3222
      %v3270 = vadd.f32 %v3155, %v3224
      %v3271 = vadd.f32 %v3156, %v3263
      %v3272 = vadd.f32 %v3157, %v3265
      %s3273 = scalar_lea.vmem %s1, 104
      %v3274 = vld [vmem:[%s3273] sm:$0xf]
      %3275 = vrot.lane.b32.xlu0 %v2351, 34
      %v3276 = vpop.permute.xlu0 %3275
      %3277 = vrot.lane.b32.xlu0 %v2352, 34
      %v3278 = vpop.permute.xlu0 %3277
      %3279 = vrot.lane.b32.xlu0 %v2353, 34
      %v3280 = vpop.permute.xlu0 %3279
      %3281 = vrot.lane.b32.xlu0 %v2354, 34
      %v3282 = vpop.permute.xlu0 %3281
      %vm3283 = vcmask 277504
      %v3284 = vsel %vm3283, %v3276, %v3278
      %v3285 = vsel %vm3283, %v3278, %v3280
      %v3286 = vsel %vm3283, %v3280, %v3282
      %v3288 = vsel %vm280, %v3274, 0
      %v3291 = vsel %vm284, %v3284, 0
      %v3294 = vsel %vm284, %v3285, 0
      %v3297 = vsel %vm284, %v3286, 0
      %v3300 = vsel %vm284, %v3282, 0
      %3302 = vmatprep.subr.bf16.mxu0 %v3294
      %3303 = vmatpush1.bf16.msra.mxu0 %v3291
      %3304 = vmatprep.subr.bf16.mxu0 0
      %3305 = vmatpush1.bf16.msra.mxu0 0
      %3306 = vmatprep.subr.bf16.mxu0 0
      %3307 = vmatpush1.bf16.msra.mxu0 0
      %3308 = vmatprep.subr.bf16.mxu0 0
      %3309 = vmatpush1.bf16.msra.mxu0 0
      %3310 = vmatprep.subr.bf16.mxu0 0
      %3311 = vmatpush1.bf16.msra.mxu0 0
      %3312 = vmatprep.subr.bf16.mxu0 0
      %3313 = vmatpush1.bf16.msra.mxu0 0
      %3314 = vmatprep.subr.bf16.mxu0 0
      %3315 = vmatpush1.bf16.msra.mxu0 0
      %3316 = vmatprep.subr.bf16.mxu0 0
      %3317 = vmatpush1.bf16.msra.mxu0 0
      %3318 = vmatprep.subr.bf16.mxu0 0
      %3319 = vmatpush1.bf16.msra.mxu0 0
      %3320 = vmatprep.subr.bf16.mxu0 0
      %3321 = vmatpush1.bf16.msra.mxu0 0
      %3322 = vmatprep.subr.bf16.mxu0 0
      %3323 = vmatpush1.bf16.msra.mxu0 0
      %3324 = vmatprep.subr.bf16.mxu0 0
      %3325 = vmatpush1.bf16.msra.mxu0 0
      %3326 = vmatprep.subr.bf16.mxu0 0
      %3327 = vmatpush1.bf16.msra.mxu0 0
      %3328 = vmatprep.subr.bf16.mxu0 0
      %3329 = vmatpush1.bf16.msra.mxu0 0
      %3330 = vmatprep.subr.bf16.mxu0 0
      %3331 = vmatpush1.bf16.msra.mxu0 0
      %3332 = vmatprep.subr.bf16.mxu0 0
      %3333 = vmatpush1.bf16.msra.mxu0 0
      %3334 = vmatprep.mubr.bf16.mxu0 0
      %3335 = vmatmul.mubr.bf16.gmra.mrb[0].mxu0 %v3288
      %v3336 = vpop.f32.mrb[0].mxu0
      %v3337 = vadd.f32 0.0, %v3336
      %v3338 = vpop.f32.mrb[0].mxu0
      %v3339 = vadd.f32 0.0, %v3338
      %v3340 = vpop.f32.mrb[0].mxu0
      %v3341 = vpop.f32.mrb[0].mxu0
      %3342 = vdwg.mxu0
      %3343 = vmatprep.subr.bf16.mxu0 %v3300
      %3344 = vmatpush1.bf16.msra.mxu0 %v3297
      %3345 = vmatprep.subr.bf16.mxu0 0
      %3346 = vmatpush1.bf16.msra.mxu0 0
      %3347 = vmatprep.subr.bf16.mxu0 0
      %3348 = vmatpush1.bf16.msra.mxu0 0
      %3349 = vmatprep.subr.bf16.mxu0 0
      %3350 = vmatpush1.bf16.msra.mxu0 0
      %3351 = vmatprep.subr.bf16.mxu0 0
      %3352 = vmatpush1.bf16.msra.mxu0 0
      %3353 = vmatprep.subr.bf16.mxu0 0
      %3354 = vmatpush1.bf16.msra.mxu0 0
      %3355 = vmatprep.subr.bf16.mxu0 0
      %3356 = vmatpush1.bf16.msra.mxu0 0
      %3357 = vmatprep.subr.bf16.mxu0 0
      %3358 = vmatpush1.bf16.msra.mxu0 0
      %3359 = vmatprep.subr.bf16.mxu0 0
      %3360 = vmatpush1.bf16.msra.mxu0 0
      %3361 = vmatprep.subr.bf16.mxu0 0
      %3362 = vmatpush1.bf16.msra.mxu0 0
      %3363 = vmatprep.subr.bf16.mxu0 0
      %3364 = vmatpush1.bf16.msra.mxu0 0
      %3365 = vmatprep.subr.bf16.mxu0 0
      %3366 = vmatpush1.bf16.msra.mxu0 0
      %3367 = vmatprep.subr.bf16.mxu0 0
      %3368 = vmatpush1.bf16.msra.mxu0 0
      %3369 = vmatprep.subr.bf16.mxu0 0
      %3370 = vmatpush1.bf16.msra.mxu0 0
      %3371 = vmatprep.subr.bf16.mxu0 0
      %3372 = vmatpush1.bf16.msra.mxu0 0
      %3373 = vmatprep.subr.bf16.mxu0 0
      %3374 = vmatpush1.bf16.msra.mxu0 0
      %3375 = vmatprep.mubr.bf16.mxu0 0
      %3376 = vmatmul.mubr.bf16.gmra.mrb[0].mxu0 %v3288
      %v3377 = vpop.f32.mrb[0].mxu0
      %v3378 = vadd.f32 0.0, %v3377
      %v3379 = vpop.f32.mrb[0].mxu0
      %v3380 = vadd.f32 0.0, %v3379
      %v3381 = vpop.f32.mrb[0].mxu0
      %v3382 = vpop.f32.mrb[0].mxu0
      %3383 = vdwg.mxu0
      %v3384 = vadd.f32 %v3269, %v3337
      %v3385 = vadd.f32 %v3270, %v3339
      %v3386 = vadd.f32 %v3271, %v3378
      %v3387 = vadd.f32 %v3272, %v3380
      %v3388 = vld [vmem:[%s3] sm:$0xff]
      %3390 = vset.pattern.permute.xlu0 0
      %3391 = vperm.xlu0 %3390, %v3388
      %v3392 = vpop.permute.xlu0 %3391
      %v3394 = vadd.f32 %v3384, %v3392
      %v3395 = vadd.f32 %v3385, %v3392
      %v3396 = vadd.f32 %v3386, %v3392
      %v3397 = vadd.f32 %v3387, %v3392
      %v3398 = vmax.f32 %v3394, 0.0
      %v3399 = vmax.f32 %v3395, 0.0
      %v3400 = vmax.f32 %v3396, 0.0
      %v3401 = vmax.f32 %v3397, 0.0
      %v3402 = vld [vmem:[%s5] sm:$0xf]
      %v3404 = vlaneseq
      %v3405 = vshrl.u32 %v3404, 7
      %v3406 = vsub.s32 0, %v3405
      %v3407 = vrot.slane %v3402, %v3406
      %v3408 = vlaneseq
      %v3409 = vshrl.u32 %v3408, 7
      %v3410 = vsub.s32 1, %v3409
      %v3411 = vrot.slane %v3402, %v3410
      %v3412 = vlaneseq
      %v3413 = vshrl.u32 %v3412, 7
      %v3414 = vsub.s32 2, %v3413
      %v3415 = vrot.slane %v3402, %v3414
      %v3416 = vlaneseq
      %v3417 = vshrl.u32 %v3416, 7
      %v3418 = vsub.s32 3, %v3417
      %v3419 = vrot.slane %v3402, %v3418
      %v3424 = vmul.f32 %v3398, %v3407
      %v3425 = vmul.f32 %v3399, %v3411
      %v3426 = vmul.f32 %v3400, %v3415
      %v3427 = vmul.f32 %v3401, %v3419
      %3428 = vst [vmem:[#allocation2] sm:$0xff] 0
      %3429 = vst [vmem:[#allocation2 + $0x8] sm:$0xff] 0
      %3430 = vst [vmem:[#allocation2 + $0x10] sm:$0xf] 0
      %v3431 = vpack.c.bf16 %v3424, %v3424
      %v3432 = vpack.c.bf16 %v3425, %v3425
      %v3433 = vpack.c.bf16 %v3426, %v3426
      %v3434 = vpack.c.bf16 %v3427, %v3427
      %v3439 = vunpack.c.l.b16 %v3431
      %v3440 = vunpack.c.l.b16 %v3432
      %v3441 = vunpack.c.l.b16 %v3433
      %v3442 = vunpack.c.l.b16 %v3434
      %v3443 = vpack.c.b16 %v3440, %v3439
      %v3444 = vpack.c.b16 %v3442, %v3441
      %3447 = vst [vmem:[#allocation2 + $0x4] sm:$0xff] %v3443
      %vm3448 = vcmask 130052
      %vm3449 = vmor %vm3448, %vm284
      %3450 = vst.msk [vmem:[#allocation2 + $0xc] sm:$0xff] %vm3449, %v3444
      %v3451 = vld [vmem:[%s2] sm:$0xf]
      %v3452 = vld [vmem:[#allocation2] sm:$0xff]
      %v3453 = vld [vmem:[#allocation2 + $0x8] sm:$0xff]
      %s3454 = scalar_lea.vmem %s2, 4
      %v3455 = vld [vmem:[%s3454] sm:$0xf]
      %v3458 = vunpack.c.l.b16 %v3452
      %v3459 = vunpack.c.h.b16 %v3452
      %v3460 = vunpack.c.l.b16 %v3453
      %v3461 = vunpack.c.h.b16 %v3453
      %v3462 = vpack.c.b16 %v3458, %v3458
      %v3463 = vpack.c.b16 %v3459, %v3459
      %v3464 = vpack.c.b16 %v3460, %v3460
      %v3465 = vpack.c.b16 %v3461, %v3461
      %3466 = vrot.lane.b32.xlu0 %v3462, 110
      %v3467 = vpop.permute.xlu0 %3466
      %3468 = vrot.lane.b32.xlu0 %v3463, 110
      %v3469 = vpop.permute.xlu0 %3468
      %3470 = vrot.lane.b32.xlu0 %v3464, 110
      %v3471 = vpop.permute.xlu0 %3470
      %3472 = vrot.lane.b32.xlu0 %v3465, 110
      %v3473 = vpop.permute.xlu0 %3472
      %vm3474 = vcmask 900096
      %v3475 = vsel %vm3474, %v3467, %v3469
      %v3476 = vsel %vm3474, %v3469, %v3471
      %v3477 = vsel %vm3474, %v3471, %v3473
      %v3479 = vsel %vm280, %v3455, 0
      %v3482 = vsel %vm284, %v3475, 0
      %v3485 = vsel %vm284, %v3476, 0
      %v3488 = vsel %vm284, %v3477, 0
      %v3491 = vsel %vm284, %v3473, 0
      %3493 = vmatprep.subr.bf16.mxu0 %v3485
      %3494 = vmatpush1.bf16.msra.mxu0 %v3482
      %3495 = vmatprep.subr.bf16.mxu0 0
      %3496 = vmatpush1.bf16.msra.mxu0 0
      %3497 = vmatprep.subr.bf16.mxu0 0
      %3498 = vmatpush1.bf16.msra.mxu0 0
      %3499 = vmatprep.subr.bf16.mxu0 0
      %3500 = vmatpush1.bf16.msra.mxu0 0
      %3501 = vmatprep.subr.bf16.mxu0 0
      %3502 = vmatpush1.bf16.msra.mxu0 0
      %3503 = vmatprep.subr.bf16.mxu0 0
      %3504 = vmatpush1.bf16.msra.mxu0 0
      %3505 = vmatprep.subr.bf16.mxu0 0
      %3506 = vmatpush1.bf16.msra.mxu0 0
      %3507 = vmatprep.subr.bf16.mxu0 0
      %3508 = vmatpush1.bf16.msra.mxu0 0
      %3509 = vmatprep.subr.bf16.mxu0 0
      %3510 = vmatpush1.bf16.msra.mxu0 0
      %3511 = vmatprep.subr.bf16.mxu0 0
      %3512 = vmatpush1.bf16.msra.mxu0 0
      %3513 = vmatprep.subr.bf16.mxu0 0
      %3514 = vmatpush1.bf16.msra.mxu0 0
      %3515 = vmatprep.subr.bf16.mxu0 0
      %3516 = vmatpush1.bf16.msra.mxu0 0
      %3517 = vmatprep.subr.bf16.mxu0 0
      %3518 = vmatpush1.bf16.msra.mxu0 0
      %3519 = vmatprep.subr.bf16.mxu0 0
      %3520 = vmatpush1.bf16.msra.mxu0 0
      %3521 = vmatprep.subr.bf16.mxu0 0
      %3522 = vmatpush1.bf16.msra.mxu0 0
      %3523 = vmatprep.subr.bf16.mxu0 0
      %3524 = vmatpush1.bf16.msra.mxu0 0
      %3525 = vmatprep.mubr.bf16.mxu0 0
      %3526 = vmatmul.mubr.bf16.gmra.mrb[0].mxu0 %v3479
      %v3527 = vpop.f32.mrb[0].mxu0
      %v3528 = vadd.f32 0.0, %v3527
      %v3529 = vpop.f32.mrb[0].mxu0
      %v3530 = vadd.f32 0.0, %v3529
      %v3531 = vpop.f32.mrb[0].mxu0
      %v3532 = vpop.f32.mrb[0].mxu0
      %3533 = vdwg.mxu0
      %3534 = vmatprep.subr.bf16.mxu0 %v3491
      %3535 = vmatpush1.bf16.msra.mxu0 %v3488
      %3536 = vmatprep.subr.bf16.mxu0 0
      %3537 = vmatpush1.bf16.msra.mxu0 0
      %3538 = vmatprep.subr.bf16.mxu0 0
      %3539 = vmatpush1.bf16.msra.mxu0 0
      %3540 = vmatprep.subr.bf16.mxu0 0
      %3541 = vmatpush1.bf16.msra.mxu0 0
      %3542 = vmatprep.subr.bf16.mxu0 0
      %3543 = vmatpush1.bf16.msra.mxu0 0
      %3544 = vmatprep.subr.bf16.mxu0 0
      %3545 = vmatpush1.bf16.msra.mxu0 0
      %3546 = vmatprep.subr.bf16.mxu0 0
      %3547 = vmatpush1.bf16.msra.mxu0 0
      %3548 = vmatprep.subr.bf16.mxu0 0
      %3549 = vmatpush1.bf16.msra.mxu0 0
      %3550 = vmatprep.subr.bf16.mxu0 0
      %3551 = vmatpush1.bf16.msra.mxu0 0
      %3552 = vmatprep.subr.bf16.mxu0 0
      %3553 = vmatpush1.bf16.msra.mxu0 0
      %3554 = vmatprep.subr.bf16.mxu0 0
      %3555 = vmatpush1.bf16.msra.mxu0 0
      %3556 = vmatprep.subr.bf16.mxu0 0
      %3557 = vmatpush1.bf16.msra.mxu0 0
      %3558 = vmatprep.subr.bf16.mxu0 0
      %3559 = vmatpush1.bf16.msra.mxu0 0
      %3560 = vmatprep.subr.bf16.mxu0 0
      %3561 = vmatpush1.bf16.msra.mxu0 0
      %3562 = vmatprep.subr.bf16.mxu0 0
      %3563 = vmatpush1.bf16.msra.mxu0 0
      %3564 = vmatprep.subr.bf16.mxu0 0
      %3565 = vmatpush1.bf16.msra.mxu0 0
      %3566 = vmatprep.mubr.bf16.mxu0 0
      %3567 = vmatmul.mubr.bf16.gmra.mrb[0].mxu0 %v3479
      %v3568 = vpop.f32.mrb[0].mxu0
      %v3569 = vadd.f32 0.0, %v3568
      %v3570 = vpop.f32.mrb[0].mxu0
      %v3571 = vadd.f32 0.0, %v3570
      %v3572 = vpop.f32.mrb[0].mxu0
      %v3573 = vpop.f32.mrb[0].mxu0
      %3574 = vdwg.mxu0
      %3575 = vrot.lane.b32.xlu0 %v3462, 111
      %v3576 = vpop.permute.xlu0 %3575
      %3577 = vrot.lane.b32.xlu0 %v3463, 111
      %v3578 = vpop.permute.xlu0 %3577
      %3579 = vrot.lane.b32.xlu0 %v3464, 111
      %v3580 = vpop.permute.xlu0 %3579
      %3581 = vrot.lane.b32.xlu0 %v3465, 111
      %v3582 = vpop.permute.xlu0 %3581
      %vm3583 = vcmask 908288
      %v3584 = vsel %vm3583, %v3576, %v3578
      %v3585 = vsel %vm3583, %v3578, %v3580
      %v3586 = vsel %vm3583, %v3580, %v3582
      %v3588 = vsel %vm280, %v3451, 0
      %v3591 = vsel %vm284, %v3584, 0
      %v3594 = vsel %vm284, %v3585, 0
      %v3597 = vsel %vm284, %v3586, 0
      %v3600 = vsel %vm284, %v3582, 0
      %3602 = vmatprep.subr.bf16.mxu0 %v3594
      %3603 = vmatpush1.bf16.msra.mxu0 %v3591
      %3604 = vmatprep.subr.bf16.mxu0 0
      %3605 = vmatpush1.bf16.msra.mxu0 0
      %3606 = vmatprep.subr.bf16.mxu0 0
      %3607 = vmatpush1.bf16.msra.mxu0 0
      %3608 = vmatprep.subr.bf16.mxu0 0
      %3609 = vmatpush1.bf16.msra.mxu0 0
      %3610 = vmatprep.subr.bf16.mxu0 0
      %3611 = vmatpush1.bf16.msra.mxu0 0
      %3612 = vmatprep.subr.bf16.mxu0 0
      %3613 = vmatpush1.bf16.msra.mxu0 0
      %3614 = vmatprep.subr.bf16.mxu0 0
      %3615 = vmatpush1.bf16.msra.mxu0 0
      %3616 = vmatprep.subr.bf16.mxu0 0
      %3617 = vmatpush1.bf16.msra.mxu0 0
      %3618 = vmatprep.subr.bf16.mxu0 0
      %3619 = vmatpush1.bf16.msra.mxu0 0
      %3620 = vmatprep.subr.bf16.mxu0 0
      %3621 = vmatpush1.bf16.msra.mxu0 0
      %3622 = vmatprep.subr.bf16.mxu0 0
      %3623 = vmatpush1.bf16.msra.mxu0 0
      %3624 = vmatprep.subr.bf16.mxu0 0
      %3625 = vmatpush1.bf16.msra.mxu0 0
      %3626 = vmatprep.subr.bf16.mxu0 0
      %3627 = vmatpush1.bf16.msra.mxu0 0
      %3628 = vmatprep.subr.bf16.mxu0 0
      %3629 = vmatpush1.bf16.msra.mxu0 0
      %3630 = vmatprep.subr.bf16.mxu0 0
      %3631 = vmatpush1.bf16.msra.mxu0 0
      %3632 = vmatprep.subr.bf16.mxu0 0
      %3633 = vmatpush1.bf16.msra.mxu0 0
      %3634 = vmatprep.mubr.bf16.mxu0 0
      %3635 = vmatmul.mubr.bf16.gmra.mrb[0].mxu0 %v3588
      %v3636 = vpop.f32.mrb[0].mxu0
      %v3637 = vadd.f32 %v3528, %v3636
      %v3638 = vpop.f32.mrb[0].mxu0
      %v3639 = vadd.f32 %v3530, %v3638
      %v3640 = vpop.f32.mrb[0].mxu0
      %v3641 = vpop.f32.mrb[0].mxu0
      %3642 = vdwg.mxu0
      %3643 = vmatprep.subr.bf16.mxu0 %v3600
      %3644 = vmatpush1.bf16.msra.mxu0 %v3597
      %3645 = vmatprep.subr.bf16.mxu0 0
      %3646 = vmatpush1.bf16.msra.mxu0 0
      %3647 = vmatprep.subr.bf16.mxu0 0
      %3648 = vmatpush1.bf16.msra.mxu0 0
      %3649 = vmatprep.subr.bf16.mxu0 0
      %3650 = vmatpush1.bf16.msra.mxu0 0
      %3651 = vmatprep.subr.bf16.mxu0 0
      %3652 = vmatpush1.bf16.msra.mxu0 0
      %3653 = vmatprep.subr.bf16.mxu0 0
      %3654 = vmatpush1.bf16.msra.mxu0 0
      %3655 = vmatprep.subr.bf16.mxu0 0
      %3656 = vmatpush1.bf16.msra.mxu0 0
      %3657 = vmatprep.subr.bf16.mxu0 0
      %3658 = vmatpush1.bf16.msra.mxu0 0
      %3659 = vmatprep.subr.bf16.mxu0 0
      %3660 = vmatpush1.bf16.msra.mxu0 0
      %3661 = vmatprep.subr.bf16.mxu0 0
      %3662 = vmatpush1.bf16.msra.mxu0 0
      %3663 = vmatprep.subr.bf16.mxu0 0
      %3664 = vmatpush1.bf16.msra.mxu0 0
      %3665 = vmatprep.subr.bf16.mxu0 0
      %3666 = vmatpush1.bf16.msra.mxu0 0
      %3667 = vmatprep.subr.bf16.mxu0 0
      %3668 = vmatpush1.bf16.msra.mxu0 0
      %3669 = vmatprep.subr.bf16.mxu0 0
      %3670 = vmatpush1.bf16.msra.mxu0 0
      %3671 = vmatprep.subr.bf16.mxu0 0
      %3672 = vmatpush1.bf16.msra.mxu0 0
      %3673 = vmatprep.subr.bf16.mxu0 0
      %3674 = vmatpush1.bf16.msra.mxu0 0
      %3675 = vmatprep.mubr.bf16.mxu0 0
      %3676 = vmatmul.mubr.bf16.gmra.mrb[0].mxu0 %v3588
      %v3677 = vpop.f32.mrb[0].mxu0
      %v3678 = vadd.f32 %v3569, %v3677
      %v3679 = vpop.f32.mrb[0].mxu0
      %v3680 = vadd.f32 %v3571, %v3679
      %v3681 = vpop.f32.mrb[0].mxu0
      %v3682 = vpop.f32.mrb[0].mxu0
      %3683 = vdwg.mxu0
      %s3684 = scalar_lea.vmem %s2, 8
      %v3685 = vld [vmem:[%s3684] sm:$0xf]
      %3686 = vrot.lane.b32.xlu0 %v3462, 109
      %v3687 = vpop.permute.xlu0 %3686
      %3688 = vrot.lane.b32.xlu0 %v3463, 109
      %v3689 = vpop.permute.xlu0 %3688
      %3690 = vrot.lane.b32.xlu0 %v3464, 109
      %v3691 = vpop.permute.xlu0 %3690
      %3692 = vrot.lane.b32.xlu0 %v3465, 109
      %v3693 = vpop.permute.xlu0 %3692
      %vm3694 = vcmask 891904
      %v3695 = vsel %vm3694, %v3687, %v3689
      %v3696 = vsel %vm3694, %v3689, %v3691
      %v3697 = vsel %vm3694, %v3691, %v3693
      %v3699 = vsel %vm280, %v3685, 0
      %v3702 = vsel %vm284, %v3695, 0
      %v3705 = vsel %vm284, %v3696, 0
      %v3708 = vsel %vm284, %v3697, 0
      %v3711 = vsel %vm284, %v3693, 0
      %3713 = vmatprep.subr.bf16.mxu0 %v3705
      %3714 = vmatpush1.bf16.msra.mxu0 %v3702
      %3715 = vmatprep.subr.bf16.mxu0 0
      %3716 = vmatpush1.bf16.msra.mxu0 0
      %3717 = vmatprep.subr.bf16.mxu0 0
      %3718 = vmatpush1.bf16.msra.mxu0 0
      %3719 = vmatprep.subr.bf16.mxu0 0
      %3720 = vmatpush1.bf16.msra.mxu0 0
      %3721 = vmatprep.subr.bf16.mxu0 0
      %3722 = vmatpush1.bf16.msra.mxu0 0
      %3723 = vmatprep.subr.bf16.mxu0 0
      %3724 = vmatpush1.bf16.msra.mxu0 0
      %3725 = vmatprep.subr.bf16.mxu0 0
      %3726 = vmatpush1.bf16.msra.mxu0 0
      %3727 = vmatprep.subr.bf16.mxu0 0
      %3728 = vmatpush1.bf16.msra.mxu0 0
      %3729 = vmatprep.subr.bf16.mxu0 0
      %3730 = vmatpush1.bf16.msra.mxu0 0
      %3731 = vmatprep.subr.bf16.mxu0 0
      %3732 = vmatpush1.bf16.msra.mxu0 0
      %3733 = vmatprep.subr.bf16.mxu0 0
      %3734 = vmatpush1.bf16.msra.mxu0 0
      %3735 = vmatprep.subr.bf16.mxu0 0
      %3736 = vmatpush1.bf16.msra.mxu0 0
      %3737 = vmatprep.subr.bf16.mxu0 0
      %3738 = vmatpush1.bf16.msra.mxu0 0
      %3739 = vmatprep.subr.bf16.mxu0 0
      %3740 = vmatpush1.bf16.msra.mxu0 0
      %3741 = vmatprep.subr.bf16.mxu0 0
      %3742 = vmatpush1.bf16.msra.mxu0 0
      %3743 = vmatprep.subr.bf16.mxu0 0
      %3744 = vmatpush1.bf16.msra.mxu0 0
      %3745 = vmatprep.mubr.bf16.mxu0 0
      %3746 = vmatmul.mubr.bf16.gmra.mrb[0].mxu0 %v3699
      %v3747 = vpop.f32.mrb[0].mxu0
      %v3748 = vadd.f32 0.0, %v3747
      %v3749 = vpop.f32.mrb[0].mxu0
      %v3750 = vadd.f32 0.0, %v3749
      %v3751 = vpop.f32.mrb[0].mxu0
      %v3752 = vpop.f32.mrb[0].mxu0
      %3753 = vdwg.mxu0
      %3754 = vmatprep.subr.bf16.mxu0 %v3711
      %3755 = vmatpush1.bf16.msra.mxu0 %v3708
      %3756 = vmatprep.subr.bf16.mxu0 0
      %3757 = vmatpush1.bf16.msra.mxu0 0
      %3758 = vmatprep.subr.bf16.mxu0 0
      %3759 = vmatpush1.bf16.msra.mxu0 0
      %3760 = vmatprep.subr.bf16.mxu0 0
      %3761 = vmatpush1.bf16.msra.mxu0 0
      %3762 = vmatprep.subr.bf16.mxu0 0
      %3763 = vmatpush1.bf16.msra.mxu0 0
      %3764 = vmatprep.subr.bf16.mxu0 0
      %3765 = vmatpush1.bf16.msra.mxu0 0
      %3766 = vmatprep.subr.bf16.mxu0 0
      %3767 = vmatpush1.bf16.msra.mxu0 0
      %3768 = vmatprep.subr.bf16.mxu0 0
      %3769 = vmatpush1.bf16.msra.mxu0 0
      %3770 = vmatprep.subr.bf16.mxu0 0
      %3771 = vmatpush1.bf16.msra.mxu0 0
      %3772 = vmatprep.subr.bf16.mxu0 0
      %3773 = vmatpush1.bf16.msra.mxu0 0
      %3774 = vmatprep.subr.bf16.mxu0 0
      %3775 = vmatpush1.bf16.msra.mxu0 0
      %3776 = vmatprep.subr.bf16.mxu0 0
      %3777 = vmatpush1.bf16.msra.mxu0 0
      %3778 = vmatprep.subr.bf16.mxu0 0
      %3779 = vmatpush1.bf16.msra.mxu0 0
      %3780 = vmatprep.subr.bf16.mxu0 0
      %3781 = vmatpush1.bf16.msra.mxu0 0
      %3782 = vmatprep.subr.bf16.mxu0 0
      %3783 = vmatpush1.bf16.msra.mxu0 0
      %3784 = vmatprep.subr.bf16.mxu0 0
      %3785 = vmatpush1.bf16.msra.mxu0 0
      %3786 = vmatprep.mubr.bf16.mxu0 0
      %3787 = vmatmul.mubr.bf16.gmra.mrb[0].mxu0 %v3699
      %v3788 = vpop.f32.mrb[0].mxu0
      %v3789 = vadd.f32 0.0, %v3788
      %v3790 = vpop.f32.mrb[0].mxu0
      %v3791 = vadd.f32 0.0, %v3790
      %v3792 = vpop.f32.mrb[0].mxu0
      %v3793 = vpop.f32.mrb[0].mxu0
      %3794 = vdwg.mxu0
      %v3795 = vadd.f32 %v3637, %v3748
      %v3796 = vadd.f32 %v3639, %v3750
      %v3797 = vadd.f32 %v3678, %v3789
      %v3798 = vadd.f32 %v3680, %v3791
      %s3799 = scalar_lea.vmem %s2, 12
      %v3800 = vld [vmem:[%s3799] sm:$0xf]
      %3801 = vrot.lane.b32.xlu0 %v3462, 101
      %v3802 = vpop.permute.xlu0 %3801
      %3803 = vrot.lane.b32.xlu0 %v3463, 101
      %v3804 = vpop.permute.xlu0 %3803
      %3805 = vrot.lane.b32.xlu0 %v3464, 101
      %v3806 = vpop.permute.xlu0 %3805
      %3807 = vrot.lane.b32.xlu0 %v3465, 101
      %v3808 = vpop.permute.xlu0 %3807
      %vm3809 = vcmask 826368
      %v3810 = vsel %vm3809, %v3802, %v3804
      %v3811 = vsel %vm3809, %v3804, %v3806
      %v3812 = vsel %vm3809, %v3806, %v3808
      %v3814 = vsel %vm280, %v3800, 0
      %v3817 = vsel %vm284, %v3810, 0
      %v3820 = vsel %vm284, %v3811, 0
      %v3823 = vsel %vm284, %v3812, 0
      %v3826 = vsel %vm284, %v3808, 0
      %3828 = vmatprep.subr.bf16.mxu0 %v3820
      %3829 = vmatpush1.bf16.msra.mxu0 %v3817
      %3830 = vmatprep.subr.bf16.mxu0 0
      %3831 = vmatpush1.bf16.msra.mxu0 0
      %3832 = vmatprep.subr.bf16.mxu0 0
      %3833 = vmatpush1.bf16.msra.mxu0 0
      %3834 = vmatprep.subr.bf16.mxu0 0
      %3835 = vmatpush1.bf16.msra.mxu0 0
      %3836 = vmatprep.subr.bf16.mxu0 0
      %3837 = vmatpush1.bf16.msra.mxu0 0
      %3838 = vmatprep.subr.bf16.mxu0 0
      %3839 = vmatpush1.bf16.msra.mxu0 0
      %3840 = vmatprep.subr.bf16.mxu0 0
      %3841 = vmatpush1.bf16.msra.mxu0 0
      %3842 = vmatprep.subr.bf16.mxu0 0
      %3843 = vmatpush1.bf16.msra.mxu0 0
      %3844 = vmatprep.subr.bf16.mxu0 0
      %3845 = vmatpush1.bf16.msra.mxu0 0
      %3846 = vmatprep.subr.bf16.mxu0 0
      %3847 = vmatpush1.bf16.msra.mxu0 0
      %3848 = vmatprep.subr.bf16.mxu0 0
      %3849 = vmatpush1.bf16.msra.mxu0 0
      %3850 = vmatprep.subr.bf16.mxu0 0
      %3851 = vmatpush1.bf16.msra.mxu0 0
      %3852 = vmatprep.subr.bf16.mxu0 0
      %3853 = vmatpush1.bf16.msra.mxu0 0
      %3854 = vmatprep.subr.bf16.mxu0 0
      %3855 = vmatpush1.bf16.msra.mxu0 0
      %3856 = vmatprep.subr.bf16.mxu0 0
      %3857 = vmatpush1.bf16.msra.mxu0 0
      %3858 = vmatprep.subr.bf16.mxu0 0
      %3859 = vmatpush1.bf16.msra.mxu0 0
      %3860 = vmatprep.mubr.bf16.mxu0 0
      %3861 = vmatmul.mubr.bf16.gmra.mrb[0].mxu0 %v3814
      %v3862 = vpop.f32.mrb[0].mxu0
      %v3863 = vadd.f32 0.0, %v3862
      %v3864 = vpop.f32.mrb[0].mxu0
      %v3865 = vadd.f32 0.0, %v3864
      %v3866 = vpop.f32.mrb[0].mxu0
      %v3867 = vpop.f32.mrb[0].mxu0
      %3868 = vdwg.mxu0
      %3869 = vmatprep.subr.bf16.mxu0 %v3826
      %3870 = vmatpush1.bf16.msra.mxu0 %v3823
      %3871 = vmatprep.subr.bf16.mxu0 0
      %3872 = vmatpush1.bf16.msra.mxu0 0
      %3873 = vmatprep.subr.bf16.mxu0 0
      %3874 = vmatpush1.bf16.msra.mxu0 0
      %3875 = vmatprep.subr.bf16.mxu0 0
      %3876 = vmatpush1.bf16.msra.mxu0 0
      %3877 = vmatprep.subr.bf16.mxu0 0
      %3878 = vmatpush1.bf16.msra.mxu0 0
      %3879 = vmatprep.subr.bf16.mxu0 0
      %3880 = vmatpush1.bf16.msra.mxu0 0
      %3881 = vmatprep.subr.bf16.mxu0 0
      %3882 = vmatpush1.bf16.msra.mxu0 0
      %3883 = vmatprep.subr.bf16.mxu0 0
      %3884 = vmatpush1.bf16.msra.mxu0 0
      %3885 = vmatprep.subr.bf16.mxu0 0
      %3886 = vmatpush1.bf16.msra.mxu0 0
      %3887 = vmatprep.subr.bf16.mxu0 0
      %3888 = vmatpush1.bf16.msra.mxu0 0
      %3889 = vmatprep.subr.bf16.mxu0 0
      %3890 = vmatpush1.bf16.msra.mxu0 0
      %3891 = vmatprep.subr.bf16.mxu0 0
      %3892 = vmatpush1.bf16.msra.mxu0 0
      %3893 = vmatprep.subr.bf16.mxu0 0
      %3894 = vmatpush1.bf16.msra.mxu0 0
      %3895 = vmatprep.subr.bf16.mxu0 0
      %3896 = vmatpush1.bf16.msra.mxu0 0
      %3897 = vmatprep.subr.bf16.mxu0 0
      %3898 = vmatpush1.bf16.msra.mxu0 0
      %3899 = vmatprep.subr.bf16.mxu0 0
      %3900 = vmatpush1.bf16.msra.mxu0 0
      %3901 = vmatprep.mubr.bf16.mxu0 0
      %3902 = vmatmul.mubr.bf16.gmra.mrb[0].mxu0 %v3814
      %v3903 = vpop.f32.mrb[0].mxu0
      %v3904 = vadd.f32 0.0, %v3903
      %v3905 = vpop.f32.mrb[0].mxu0
      %v3906 = vadd.f32 0.0, %v3905
      %v3907 = vpop.f32.mrb[0].mxu0
      %v3908 = vpop.f32.mrb[0].mxu0
      %3909 = vdwg.mxu0
      %v3910 = vadd.f32 %v3795, %v3863
      %v3911 = vadd.f32 %v3796, %v3865
      %v3912 = vadd.f32 %v3797, %v3904
      %v3913 = vadd.f32 %v3798, %v3906
      %s3914 = scalar_lea.vmem %s2, 16
      %v3915 = vld [vmem:[%s3914] sm:$0xf]
      %3916 = vrot.lane.b32.xlu0 %v3462, 100
      %v3917 = vpop.permute.xlu0 %3916
      %3918 = vrot.lane.b32.xlu0 %v3463, 100
      %v3919 = vpop.permute.xlu0 %3918
      %3920 = vrot.lane.b32.xlu0 %v3464, 100
      %v3921 = vpop.permute.xlu0 %3920
      %3922 = vrot.lane.b32.xlu0 %v3465, 100
      %v3923 = vpop.permute.xlu0 %3922
      %vm3924 = vcmask 818176
      %v3925 = vsel %vm3924, %v3917, %v3919
      %v3926 = vsel %vm3924, %v3919, %v3921
      %v3927 = vsel %vm3924, %v3921, %v3923
      %v3929 = vsel %vm280, %v3915, 0
      %v3932 = vsel %vm284, %v3925, 0
      %v3935 = vsel %vm284, %v3926, 0
      %v3938 = vsel %vm284, %v3927, 0
      %v3941 = vsel %vm284, %v3923, 0
      %3943 = vmatprep.subr.bf16.mxu0 %v3935
      %3944 = vmatpush1.bf16.msra.mxu0 %v3932
      %3945 = vmatprep.subr.bf16.mxu0 0
      %3946 = vmatpush1.bf16.msra.mxu0 0
      %3947 = vmatprep.subr.bf16.mxu0 0
      %3948 = vmatpush1.bf16.msra.mxu0 0
      %3949 = vmatprep.subr.bf16.mxu0 0
      %3950 = vmatpush1.bf16.msra.mxu0 0
      %3951 = vmatprep.subr.bf16.mxu0 0
      %3952 = vmatpush1.bf16.msra.mxu0 0
      %3953 = vmatprep.subr.bf16.mxu0 0
      %3954 = vmatpush1.bf16.msra.mxu0 0
      %3955 = vmatprep.subr.bf16.mxu0 0
      %3956 = vmatpush1.bf16.msra.mxu0 0
      %3957 = vmatprep.subr.bf16.mxu0 0
      %3958 = vmatpush1.bf16.msra.mxu0 0
      %3959 = vmatprep.subr.bf16.mxu0 0
      %3960 = vmatpush1.bf16.msra.mxu0 0
      %3961 = vmatprep.subr.bf16.mxu0 0
      %3962 = vmatpush1.bf16.msra.mxu0 0
      %3963 = vmatprep.subr.bf16.mxu0 0
      %3964 = vmatpush1.bf16.msra.mxu0 0
      %3965 = vmatprep.subr.bf16.mxu0 0
      %3966 = vmatpush1.bf16.msra.mxu0 0
      %3967 = vmatprep.subr.bf16.mxu0 0
      %3968 = vmatpush1.bf16.msra.mxu0 0
      %3969 = vmatprep.subr.bf16.mxu0 0
      %3970 = vmatpush1.bf16.msra.mxu0 0
      %3971 = vmatprep.subr.bf16.mxu0 0
      %3972 = vmatpush1.bf16.msra.mxu0 0
      %3973 = vmatprep.subr.bf16.mxu0 0
      %3974 = vmatpush1.bf16.msra.mxu0 0
      %3975 = vmatprep.mubr.bf16.mxu0 0
      %3976 = vmatmul.mubr.bf16.gmra.mrb[0].mxu0 %v3929
      %v3977 = vpop.f32.mrb[0].mxu0
      %v3978 = vadd.f32 0.0, %v3977
      %v3979 = vpop.f32.mrb[0].mxu0
      %v3980 = vadd.f32 0.0, %v3979
      %v3981 = vpop.f32.mrb[0].mxu0
      %v3982 = vpop.f32.mrb[0].mxu0
      %3983 = vdwg.mxu0
      %3984 = vmatprep.subr.bf16.mxu0 %v3941
      %3985 = vmatpush1.bf16.msra.mxu0 %v3938
      %3986 = vmatprep.subr.bf16.mxu0 0
      %3987 = vmatpush1.bf16.msra.mxu0 0
      %3988 = vmatprep.subr.bf16.mxu0 0
      %3989 = vmatpush1.bf16.msra.mxu0 0
      %3990 = vmatprep.subr.bf16.mxu0 0
      %3991 = vmatpush1.bf16.msra.mxu0 0
      %3992 = vmatprep.subr.bf16.mxu0 0
      %3993 = vmatpush1.bf16.msra.mxu0 0
      %3994 = vmatprep.subr.bf16.mxu0 0
      %3995 = vmatpush1.bf16.msra.mxu0 0
      %3996 = vmatprep.subr.bf16.mxu0 0
      %3997 = vmatpush1.bf16.msra.mxu0 0
      %3998 = vmatprep.subr.bf16.mxu0 0
      %3999 = vmatpush1.bf16.msra.mxu0 0
      %4000 = vmatprep.subr.bf16.mxu0 0
      %4001 = vmatpush1.bf16.msra.mxu0 0
      %4002 = vmatprep.subr.bf16.mxu0 0
      %4003 = vmatpush1.bf16.msra.mxu0 0
      %4004 = vmatprep.subr.bf16.mxu0 0
      %4005 = vmatpush1.bf16.msra.mxu0 0
      %4006 = vmatprep.subr.bf16.mxu0 0
      %4007 = vmatpush1.bf16.msra.mxu0 0
      %4008 = vmatprep.subr.bf16.mxu0 0
      %4009 = vmatpush1.bf16.msra.mxu0 0
      %4010 = vmatprep.subr.bf16.mxu0 0
      %4011 = vmatpush1.bf16.msra.mxu0 0
      %4012 = vmatprep.subr.bf16.mxu0 0
      %4013 = vmatpush1.bf16.msra.mxu0 0
      %4014 = vmatprep.subr.bf16.mxu0 0
      %4015 = vmatpush1.bf16.msra.mxu0 0
      %4016 = vmatprep.mubr.bf16.mxu0 0
      %4017 = vmatmul.mubr.bf16.gmra.mrb[0].mxu0 %v3929
      %v4018 = vpop.f32.mrb[0].mxu0
      %v4019 = vadd.f32 0.0, %v4018
      %v4020 = vpop.f32.mrb[0].mxu0
      %v4021 = vadd.f32 0.0, %v4020
      %v4022 = vpop.f32.mrb[0].mxu0
      %v4023 = vpop.f32.mrb[0].mxu0
      %4024 = vdwg.mxu0
      %v4025 = vadd.f32 %v3910, %v3978
      %v4026 = vadd.f32 %v3911, %v3980
      %v4027 = vadd.f32 %v3912, %v4019
      %v4028 = vadd.f32 %v3913, %v4021
      %s4029 = scalar_lea.vmem %s2, 20
      %v4030 = vld [vmem:[%s4029] sm:$0xf]
      %4031 = vrot.lane.b32.xlu0 %v3462, 99
      %v4032 = vpop.permute.xlu0 %4031
      %4033 = vrot.lane.b32.xlu0 %v3463, 99
      %v4034 = vpop.permute.xlu0 %4033
      %4035 = vrot.lane.b32.xlu0 %v3464, 99
      %v4036 = vpop.permute.xlu0 %4035
      %4037 = vrot.lane.b32.xlu0 %v3465, 99
      %v4038 = vpop.permute.xlu0 %4037
      %vm4039 = vcmask 809984
      %v4040 = vsel %vm4039, %v4032, %v4034
      %v4041 = vsel %vm4039, %v4034, %v4036
      %v4042 = vsel %vm4039, %v4036, %v4038
      %v4044 = vsel %vm280, %v4030, 0
      %v4047 = vsel %vm284, %v4040, 0
      %v4050 = vsel %vm284, %v4041, 0
      %v4053 = vsel %vm284, %v4042, 0
      %v4056 = vsel %vm284, %v4038, 0
      %4058 = vmatprep.subr.bf16.mxu0 %v4050
      %4059 = vmatpush1.bf16.msra.mxu0 %v4047
      %4060 = vmatprep.subr.bf16.mxu0 0
      %4061 = vmatpush1.bf16.msra.mxu0 0
      %4062 = vmatprep.subr.bf16.mxu0 0
      %4063 = vmatpush1.bf16.msra.mxu0 0
      %4064 = vmatprep.subr.bf16.mxu0 0
      %4065 = vmatpush1.bf16.msra.mxu0 0
      %4066 = vmatprep.subr.bf16.mxu0 0
      %4067 = vmatpush1.bf16.msra.mxu0 0
      %4068 = vmatprep.subr.bf16.mxu0 0
      %4069 = vmatpush1.bf16.msra.mxu0 0
      %4070 = vmatprep.subr.bf16.mxu0 0
      %4071 = vmatpush1.bf16.msra.mxu0 0
      %4072 = vmatprep.subr.bf16.mxu0 0
      %4073 = vmatpush1.bf16.msra.mxu0 0
      %4074 = vmatprep.subr.bf16.mxu0 0
      %4075 = vmatpush1.bf16.msra.mxu0 0
      %4076 = vmatprep.subr.bf16.mxu0 0
      %4077 = vmatpush1.bf16.msra.mxu0 0
      %4078 = vmatprep.subr.bf16.mxu0 0
      %4079 = vmatpush1.bf16.msra.mxu0 0
      %4080 = vmatprep.subr.bf16.mxu0 0
      %4081 = vmatpush1.bf16.msra.mxu0 0
      %4082 = vmatprep.subr.bf16.mxu0 0
      %4083 = vmatpush1.bf16.msra.mxu0 0
      %4084 = vmatprep.subr.bf16.mxu0 0
      %4085 = vmatpush1.bf16.msra.mxu0 0
      %4086 = vmatprep.subr.bf16.mxu0 0
      %4087 = vmatpush1.bf16.msra.mxu0 0
      %4088 = vmatprep.subr.bf16.mxu0 0
      %4089 = vmatpush1.bf16.msra.mxu0 0
      %4090 = vmatprep.mubr.bf16.mxu0 0
      %4091 = vmatmul.mubr.bf16.gmra.mrb[0].mxu0 %v4044
      %v4092 = vpop.f32.mrb[0].mxu0
      %v4093 = vadd.f32 0.0, %v4092
      %v4094 = vpop.f32.mrb[0].mxu0
      %v4095 = vadd.f32 0.0, %v4094
      %v4096 = vpop.f32.mrb[0].mxu0
      %v4097 = vpop.f32.mrb[0].mxu0
      %4098 = vdwg.mxu0
      %4099 = vmatprep.subr.bf16.mxu0 %v4056
      %4100 = vmatpush1.bf16.msra.mxu0 %v4053
      %4101 = vmatprep.subr.bf16.mxu0 0
      %4102 = vmatpush1.bf16.msra.mxu0 0
      %4103 = vmatprep.subr.bf16.mxu0 0
      %4104 = vmatpush1.bf16.msra.mxu0 0
      %4105 = vmatprep.subr.bf16.mxu0 0
      %4106 = vmatpush1.bf16.msra.mxu0 0
      %4107 = vmatprep.subr.bf16.mxu0 0
      %4108 = vmatpush1.bf16.msra.mxu0 0
      %4109 = vmatprep.subr.bf16.mxu0 0
      %4110 = vmatpush1.bf16.msra.mxu0 0
      %4111 = vmatprep.subr.bf16.mxu0 0
      %4112 = vmatpush1.bf16.msra.mxu0 0
      %4113 = vmatprep.subr.bf16.mxu0 0
      %4114 = vmatpush1.bf16.msra.mxu0 0
      %4115 = vmatprep.subr.bf16.mxu0 0
      %4116 = vmatpush1.bf16.msra.mxu0 0
      %4117 = vmatprep.subr.bf16.mxu0 0
      %4118 = vmatpush1.bf16.msra.mxu0 0
      %4119 = vmatprep.subr.bf16.mxu0 0
      %4120 = vmatpush1.bf16.msra.mxu0 0
      %4121 = vmatprep.subr.bf16.mxu0 0
      %4122 = vmatpush1.bf16.msra.mxu0 0
      %4123 = vmatprep.subr.bf16.mxu0 0
      %4124 = vmatpush1.bf16.msra.mxu0 0
      %4125 = vmatprep.subr.bf16.mxu0 0
      %4126 = vmatpush1.bf16.msra.mxu0 0
      %4127 = vmatprep.subr.bf16.mxu0 0
      %4128 = vmatpush1.bf16.msra.mxu0 0
      %4129 = vmatprep.subr.bf16.mxu0 0
      %4130 = vmatpush1.bf16.msra.mxu0 0
      %4131 = vmatprep.mubr.bf16.mxu0 0
      %4132 = vmatmul.mubr.bf16.gmra.mrb[0].mxu0 %v4044
      %v4133 = vpop.f32.mrb[0].mxu0
      %v4134 = vadd.f32 0.0, %v4133
      %v4135 = vpop.f32.mrb[0].mxu0
      %v4136 = vadd.f32 0.0, %v4135
      %v4137 = vpop.f32.mrb[0].mxu0
      %v4138 = vpop.f32.mrb[0].mxu0
      %4139 = vdwg.mxu0
      %v4140 = vadd.f32 %v4025, %v4093
      %v4141 = vadd.f32 %v4026, %v4095
      %v4142 = vadd.f32 %v4027, %v4134
      %v4143 = vadd.f32 %v4028, %v4136
      %s4144 = scalar_lea.vmem %s2, 24
      %v4145 = vld [vmem:[%s4144] sm:$0xf]
      %4146 = vrot.lane.b32.xlu0 %v3462, 91
      %v4147 = vpop.permute.xlu0 %4146
      %4148 = vrot.lane.b32.xlu0 %v3463, 91
      %v4149 = vpop.permute.xlu0 %4148
      %4150 = vrot.lane.b32.xlu0 %v3464, 91
      %v4151 = vpop.permute.xlu0 %4150
      %4152 = vrot.lane.b32.xlu0 %v3465, 91
      %v4153 = vpop.permute.xlu0 %4152
      %vm4154 = vcmask 744448
      %v4155 = vsel %vm4154, %v4147, %v4149
      %v4156 = vsel %vm4154, %v4149, %v4151
      %v4157 = vsel %vm4154, %v4151, %v4153
      %v4159 = vsel %vm280, %v4145, 0
      %v4162 = vsel %vm284, %v4155, 0
      %v4165 = vsel %vm284, %v4156, 0
      %v4168 = vsel %vm284, %v4157, 0
      %v4171 = vsel %vm284, %v4153, 0
      %4173 = vmatprep.subr.bf16.mxu0 %v4165
      %4174 = vmatpush1.bf16.msra.mxu0 %v4162
      %4175 = vmatprep.subr.bf16.mxu0 0
      %4176 = vmatpush1.bf16.msra.mxu0 0
      %4177 = vmatprep.subr.bf16.mxu0 0
      %4178 = vmatpush1.bf16.msra.mxu0 0
      %4179 = vmatprep.subr.bf16.mxu0 0
      %4180 = vmatpush1.bf16.msra.mxu0 0
      %4181 = vmatprep.subr.bf16.mxu0 0
      %4182 = vmatpush1.bf16.msra.mxu0 0
      %4183 = vmatprep.subr.bf16.mxu0 0
      %4184 = vmatpush1.bf16.msra.mxu0 0
      %4185 = vmatprep.subr.bf16.mxu0 0
      %4186 = vmatpush1.bf16.msra.mxu0 0
      %4187 = vmatprep.subr.bf16.mxu0 0
      %4188 = vmatpush1.bf16.msra.mxu0 0
      %4189 = vmatprep.subr.bf16.mxu0 0
      %4190 = vmatpush1.bf16.msra.mxu0 0
      %4191 = vmatprep.subr.bf16.mxu0 0
      %4192 = vmatpush1.bf16.msra.mxu0 0
      %4193 = vmatprep.subr.bf16.mxu0 0
      %4194 = vmatpush1.bf16.msra.mxu0 0
      %4195 = vmatprep.subr.bf16.mxu0 0
      %4196 = vmatpush1.bf16.msra.mxu0 0
      %4197 = vmatprep.subr.bf16.mxu0 0
      %4198 = vmatpush1.bf16.msra.mxu0 0
      %4199 = vmatprep.subr.bf16.mxu0 0
      %4200 = vmatpush1.bf16.msra.mxu0 0
      %4201 = vmatprep.subr.bf16.mxu0 0
      %4202 = vmatpush1.bf16.msra.mxu0 0
      %4203 = vmatprep.subr.bf16.mxu0 0
      %4204 = vmatpush1.bf16.msra.mxu0 0
      %4205 = vmatprep.mubr.bf16.mxu0 0
      %4206 = vmatmul.mubr.bf16.gmra.mrb[0].mxu0 %v4159
      %v4207 = vpop.f32.mrb[0].mxu0
      %v4208 = vadd.f32 0.0, %v4207
      %v4209 = vpop.f32.mrb[0].mxu0
      %v4210 = vadd.f32 0.0, %v4209
      %v4211 = vpop.f32.mrb[0].mxu0
      %v4212 = vpop.f32.mrb[0].mxu0
      %4213 = vdwg.mxu0
      %4214 = vmatprep.subr.bf16.mxu0 %v4171
      %4215 = vmatpush1.bf16.msra.mxu0 %v4168
      %4216 = vmatprep.subr.bf16.mxu0 0
      %4217 = vmatpush1.bf16.msra.mxu0 0
      %4218 = vmatprep.subr.bf16.mxu0 0
      %4219 = vmatpush1.bf16.msra.mxu0 0
      %4220 = vmatprep.subr.bf16.mxu0 0
      %4221 = vmatpush1.bf16.msra.mxu0 0
      %4222 = vmatprep.subr.bf16.mxu0 0
      %4223 = vmatpush1.bf16.msra.mxu0 0
      %4224 = vmatprep.subr.bf16.mxu0 0
      %4225 = vmatpush1.bf16.msra.mxu0 0
      %4226 = vmatprep.subr.bf16.mxu0 0
      %4227 = vmatpush1.bf16.msra.mxu0 0
      %4228 = vmatprep.subr.bf16.mxu0 0
      %4229 = vmatpush1.bf16.msra.mxu0 0
      %4230 = vmatprep.subr.bf16.mxu0 0
      %4231 = vmatpush1.bf16.msra.mxu0 0
      %4232 = vmatprep.subr.bf16.mxu0 0
      %4233 = vmatpush1.bf16.msra.mxu0 0
      %4234 = vmatprep.subr.bf16.mxu0 0
      %4235 = vmatpush1.bf16.msra.mxu0 0
      %4236 = vmatprep.subr.bf16.mxu0 0
      %4237 = vmatpush1.bf16.msra.mxu0 0
      %4238 = vmatprep.subr.bf16.mxu0 0
      %4239 = vmatpush1.bf16.msra.mxu0 0
      %4240 = vmatprep.subr.bf16.mxu0 0
      %4241 = vmatpush1.bf16.msra.mxu0 0
      %4242 = vmatprep.subr.bf16.mxu0 0
      %4243 = vmatpush1.bf16.msra.mxu0 0
      %4244 = vmatprep.subr.bf16.mxu0 0
      %4245 = vmatpush1.bf16.msra.mxu0 0
      %4246 = vmatprep.mubr.bf16.mxu0 0
      %4247 = vmatmul.mubr.bf16.gmra.mrb[0].mxu0 %v4159
      %v4248 = vpop.f32.mrb[0].mxu0
      %v4249 = vadd.f32 0.0, %v4248
      %v4250 = vpop.f32.mrb[0].mxu0
      %v4251 = vadd.f32 0.0, %v4250
      %v4252 = vpop.f32.mrb[0].mxu0
      %v4253 = vpop.f32.mrb[0].mxu0
      %4254 = vdwg.mxu0
      %v4255 = vadd.f32 %v4140, %v4208
      %v4256 = vadd.f32 %v4141, %v4210
      %v4257 = vadd.f32 %v4142, %v4249
      %v4258 = vadd.f32 %v4143, %v4251
      %s4259 = scalar_lea.vmem %s2, 28
      %v4260 = vld [vmem:[%s4259] sm:$0xf]
      %4261 = vrot.lane.b32.xlu0 %v3462, 90
      %v4262 = vpop.permute.xlu0 %4261
      %4263 = vrot.lane.b32.xlu0 %v3463, 90
      %v4264 = vpop.permute.xlu0 %4263
      %4265 = vrot.lane.b32.xlu0 %v3464, 90
      %v4266 = vpop.permute.xlu0 %4265
      %4267 = vrot.lane.b32.xlu0 %v3465, 90
      %v4268 = vpop.permute.xlu0 %4267
      %vm4269 = vcmask 736256
      %v4270 = vsel %vm4269, %v4262, %v4264
      %v4271 = vsel %vm4269, %v4264, %v4266
      %v4272 = vsel %vm4269, %v4266, %v4268
      %v4274 = vsel %vm280, %v4260, 0
      %v4277 = vsel %vm284, %v4270, 0
      %v4280 = vsel %vm284, %v4271, 0
      %v4283 = vsel %vm284, %v4272, 0
      %v4286 = vsel %vm284, %v4268, 0
      %4288 = vmatprep.subr.bf16.mxu0 %v4280
      %4289 = vmatpush1.bf16.msra.mxu0 %v4277
      %4290 = vmatprep.subr.bf16.mxu0 0
      %4291 = vmatpush1.bf16.msra.mxu0 0
      %4292 = vmatprep.subr.bf16.mxu0 0
      %4293 = vmatpush1.bf16.msra.mxu0 0
      %4294 = vmatprep.subr.bf16.mxu0 0
      %4295 = vmatpush1.bf16.msra.mxu0 0
      %4296 = vmatprep.subr.bf16.mxu0 0
      %4297 = vmatpush1.bf16.msra.mxu0 0
      %4298 = vmatprep.subr.bf16.mxu0 0
      %4299 = vmatpush1.bf16.msra.mxu0 0
      %4300 = vmatprep.subr.bf16.mxu0 0
      %4301 = vmatpush1.bf16.msra.mxu0 0
      %4302 = vmatprep.subr.bf16.mxu0 0
      %4303 = vmatpush1.bf16.msra.mxu0 0
      %4304 = vmatprep.subr.bf16.mxu0 0
      %4305 = vmatpush1.bf16.msra.mxu0 0
      %4306 = vmatprep.subr.bf16.mxu0 0
      %4307 = vmatpush1.bf16.msra.mxu0 0
      %4308 = vmatprep.subr.bf16.mxu0 0
      %4309 = vmatpush1.bf16.msra.mxu0 0
      %4310 = vmatprep.subr.bf16.mxu0 0
      %4311 = vmatpush1.bf16.msra.mxu0 0
      %4312 = vmatprep.subr.bf16.mxu0 0
      %4313 = vmatpush1.bf16.msra.mxu0 0
      %4314 = vmatprep.subr.bf16.mxu0 0
      %4315 = vmatpush1.bf16.msra.mxu0 0
      %4316 = vmatprep.subr.bf16.mxu0 0
      %4317 = vmatpush1.bf16.msra.mxu0 0
      %4318 = vmatprep.subr.bf16.mxu0 0
      %4319 = vmatpush1.bf16.msra.mxu0 0
      %4320 = vmatprep.mubr.bf16.mxu0 0
      %4321 = vmatmul.mubr.bf16.gmra.mrb[0].mxu0 %v4274
      %v4322 = vpop.f32.mrb[0].mxu0
      %v4323 = vadd.f32 0.0, %v4322
      %v4324 = vpop.f32.mrb[0].mxu0
      %v4325 = vadd.f32 0.0, %v4324
      %v4326 = vpop.f32.mrb[0].mxu0
      %v4327 = vpop.f32.mrb[0].mxu0
      %4328 = vdwg.mxu0
      %4329 = vmatprep.subr.bf16.mxu0 %v4286
      %4330 = vmatpush1.bf16.msra.mxu0 %v4283
      %4331 = vmatprep.subr.bf16.mxu0 0
      %4332 = vmatpush1.bf16.msra.mxu0 0
      %4333 = vmatprep.subr.bf16.mxu0 0
      %4334 = vmatpush1.bf16.msra.mxu0 0
      %4335 = vmatprep.subr.bf16.mxu0 0
      %4336 = vmatpush1.bf16.msra.mxu0 0
      %4337 = vmatprep.subr.bf16.mxu0 0
      %4338 = vmatpush1.bf16.msra.mxu0 0
      %4339 = vmatprep.subr.bf16.mxu0 0
      %4340 = vmatpush1.bf16.msra.mxu0 0
      %4341 = vmatprep.subr.bf16.mxu0 0
      %4342 = vmatpush1.bf16.msra.mxu0 0
      %4343 = vmatprep.subr.bf16.mxu0 0
      %4344 = vmatpush1.bf16.msra.mxu0 0
      %4345 = vmatprep.subr.bf16.mxu0 0
      %4346 = vmatpush1.bf16.msra.mxu0 0
      %4347 = vmatprep.subr.bf16.mxu0 0
      %4348 = vmatpush1.bf16.msra.mxu0 0
      %4349 = vmatprep.subr.bf16.mxu0 0
      %4350 = vmatpush1.bf16.msra.mxu0 0
      %4351 = vmatprep.subr.bf16.mxu0 0
      %4352 = vmatpush1.bf16.msra.mxu0 0
      %4353 = vmatprep.subr.bf16.mxu0 0
      %4354 = vmatpush1.bf16.msra.mxu0 0
      %4355 = vmatprep.subr.bf16.mxu0 0
      %4356 = vmatpush1.bf16.msra.mxu0 0
      %4357 = vmatprep.subr.bf16.mxu0 0
      %4358 = vmatpush1.bf16.msra.mxu0 0
      %4359 = vmatprep.subr.bf16.mxu0 0
      %4360 = vmatpush1.bf16.msra.mxu0 0
      %4361 = vmatprep.mubr.bf16.mxu0 0
      %4362 = vmatmul.mubr.bf16.gmra.mrb[0].mxu0 %v4274
      %v4363 = vpop.f32.mrb[0].mxu0
      %v4364 = vadd.f32 0.0, %v4363
      %v4365 = vpop.f32.mrb[0].mxu0
      %v4366 = vadd.f32 0.0, %v4365
      %v4367 = vpop.f32.mrb[0].mxu0
      %v4368 = vpop.f32.mrb[0].mxu0
      %4369 = vdwg.mxu0
      %v4370 = vadd.f32 %v4255, %v4323
      %v4371 = vadd.f32 %v4256, %v4325
      %v4372 = vadd.f32 %v4257, %v4364
      %v4373 = vadd.f32 %v4258, %v4366
      %s4374 = scalar_lea.vmem %s2, 32
      %v4375 = vld [vmem:[%s4374] sm:$0xf]
      %4376 = vrot.lane.b32.xlu0 %v3462, 89
      %v4377 = vpop.permute.xlu0 %4376
      %4378 = vrot.lane.b32.xlu0 %v3463, 89
      %v4379 = vpop.permute.xlu0 %4378
      %4380 = vrot.lane.b32.xlu0 %v3464, 89
      %v4381 = vpop.permute.xlu0 %4380
      %4382 = vrot.lane.b32.xlu0 %v3465, 89
      %v4383 = vpop.permute.xlu0 %4382
      %vm4384 = vcmask 728064
      %v4385 = vsel %vm4384, %v4377, %v4379
      %v4386 = vsel %vm4384, %v4379, %v4381
      %v4387 = vsel %vm4384, %v4381, %v4383
      %v4389 = vsel %vm280, %v4375, 0
      %v4392 = vsel %vm284, %v4385, 0
      %v4395 = vsel %vm284, %v4386, 0
      %v4398 = vsel %vm284, %v4387, 0
      %v4401 = vsel %vm284, %v4383, 0
      %4403 = vmatprep.subr.bf16.mxu0 %v4395
      %4404 = vmatpush1.bf16.msra.mxu0 %v4392
      %4405 = vmatprep.subr.bf16.mxu0 0
      %4406 = vmatpush1.bf16.msra.mxu0 0
      %4407 = vmatprep.subr.bf16.mxu0 0
      %4408 = vmatpush1.bf16.msra.mxu0 0
      %4409 = vmatprep.subr.bf16.mxu0 0
      %4410 = vmatpush1.bf16.msra.mxu0 0
      %4411 = vmatprep.subr.bf16.mxu0 0
      %4412 = vmatpush1.bf16.msra.mxu0 0
      %4413 = vmatprep.subr.bf16.mxu0 0
      %4414 = vmatpush1.bf16.msra.mxu0 0
      %4415 = vmatprep.subr.bf16.mxu0 0
      %4416 = vmatpush1.bf16.msra.mxu0 0
      %4417 = vmatprep.subr.bf16.mxu0 0
      %4418 = vmatpush1.bf16.msra.mxu0 0
      %4419 = vmatprep.subr.bf16.mxu0 0
      %4420 = vmatpush1.bf16.msra.mxu0 0
      %4421 = vmatprep.subr.bf16.mxu0 0
      %4422 = vmatpush1.bf16.msra.mxu0 0
      %4423 = vmatprep.subr.bf16.mxu0 0
      %4424 = vmatpush1.bf16.msra.mxu0 0
      %4425 = vmatprep.subr.bf16.mxu0 0
      %4426 = vmatpush1.bf16.msra.mxu0 0
      %4427 = vmatprep.subr.bf16.mxu0 0
      %4428 = vmatpush1.bf16.msra.mxu0 0
      %4429 = vmatprep.subr.bf16.mxu0 0
      %4430 = vmatpush1.bf16.msra.mxu0 0
      %4431 = vmatprep.subr.bf16.mxu0 0
      %4432 = vmatpush1.bf16.msra.mxu0 0
      %4433 = vmatprep.subr.bf16.mxu0 0
      %4434 = vmatpush1.bf16.msra.mxu0 0
      %4435 = vmatprep.mubr.bf16.mxu0 0
      %4436 = vmatmul.mubr.bf16.gmra.mrb[0].mxu0 %v4389
      %v4437 = vpop.f32.mrb[0].mxu0
      %v4438 = vadd.f32 0.0, %v4437
      %v4439 = vpop.f32.mrb[0].mxu0
      %v4440 = vadd.f32 0.0, %v4439
      %v4441 = vpop.f32.mrb[0].mxu0
      %v4442 = vpop.f32.mrb[0].mxu0
      %4443 = vdwg.mxu0
      %4444 = vmatprep.subr.bf16.mxu0 %v4401
      %4445 = vmatpush1.bf16.msra.mxu0 %v4398
      %4446 = vmatprep.subr.bf16.mxu0 0
      %4447 = vmatpush1.bf16.msra.mxu0 0
      %4448 = vmatprep.subr.bf16.mxu0 0
      %4449 = vmatpush1.bf16.msra.mxu0 0
      %4450 = vmatprep.subr.bf16.mxu0 0
      %4451 = vmatpush1.bf16.msra.mxu0 0
      %4452 = vmatprep.subr.bf16.mxu0 0
      %4453 = vmatpush1.bf16.msra.mxu0 0
      %4454 = vmatprep.subr.bf16.mxu0 0
      %4455 = vmatpush1.bf16.msra.mxu0 0
      %4456 = vmatprep.subr.bf16.mxu0 0
      %4457 = vmatpush1.bf16.msra.mxu0 0
      %4458 = vmatprep.subr.bf16.mxu0 0
      %4459 = vmatpush1.bf16.msra.mxu0 0
      %4460 = vmatprep.subr.bf16.mxu0 0
      %4461 = vmatpush1.bf16.msra.mxu0 0
      %4462 = vmatprep.subr.bf16.mxu0 0
      %4463 = vmatpush1.bf16.msra.mxu0 0
      %4464 = vmatprep.subr.bf16.mxu0 0
      %4465 = vmatpush1.bf16.msra.mxu0 0
      %4466 = vmatprep.subr.bf16.mxu0 0
      %4467 = vmatpush1.bf16.msra.mxu0 0
      %4468 = vmatprep.subr.bf16.mxu0 0
      %4469 = vmatpush1.bf16.msra.mxu0 0
      %4470 = vmatprep.subr.bf16.mxu0 0
      %4471 = vmatpush1.bf16.msra.mxu0 0
      %4472 = vmatprep.subr.bf16.mxu0 0
      %4473 = vmatpush1.bf16.msra.mxu0 0
      %4474 = vmatprep.subr.bf16.mxu0 0
      %4475 = vmatpush1.bf16.msra.mxu0 0
      %4476 = vmatprep.mubr.bf16.mxu0 0
      %4477 = vmatmul.mubr.bf16.gmra.mrb[0].mxu0 %v4389
      %v4478 = vpop.f32.mrb[0].mxu0
      %v4479 = vadd.f32 0.0, %v4478
      %v4480 = vpop.f32.mrb[0].mxu0
      %v4481 = vadd.f32 0.0, %v4480
      %v4482 = vpop.f32.mrb[0].mxu0
      %v4483 = vpop.f32.mrb[0].mxu0
      %4484 = vdwg.mxu0
      %v4485 = vadd.f32 %v4370, %v4438
      %v4486 = vadd.f32 %v4371, %v4440
      %v4487 = vadd.f32 %v4372, %v4479
      %v4488 = vadd.f32 %v4373, %v4481
      %s4489 = scalar_lea.vmem %s2, 36
      %v4490 = vld [vmem:[%s4489] sm:$0xf]
      %v4491 = vld [vmem:[#allocation2] sm:$0xff]
      %v4492 = vld [vmem:[#allocation2 + $0x8] sm:$0xff]
      %v4493 = vld [vmem:[#allocation2 + $0x10] sm:$0xf]
      %v4497 = vunpack.c.l.b16 %v4491
      %v4498 = vunpack.c.h.b16 %v4491
      %v4499 = vunpack.c.l.b16 %v4492
      %v4500 = vunpack.c.h.b16 %v4492
      %v4501 = vunpack.c.l.b16 %v4493
      %v4502 = vpack.c.b16 %v4497, %v4497
      %v4503 = vpack.c.b16 %v4498, %v4498
      %v4504 = vpack.c.b16 %v4499, %v4499
      %v4505 = vpack.c.b16 %v4500, %v4500
      %v4506 = vpack.c.b16 %v4501, %v4501
      %4507 = vrot.lane.b32.xlu0 %v4502, 11
      %v4508 = vpop.permute.xlu0 %4507
      %4509 = vrot.lane.b32.xlu0 %v4503, 11
      %v4510 = vpop.permute.xlu0 %4509
      %4511 = vrot.lane.b32.xlu0 %v4504, 11
      %v4512 = vpop.permute.xlu0 %4511
      %4513 = vrot.lane.b32.xlu0 %v4505, 11
      %v4514 = vpop.permute.xlu0 %4513
      %4515 = vrot.lane.b32.xlu0 %v4506, 11
      %v4516 = vpop.permute.xlu0 %4515
      %vm4517 = vcmask 89088
      %v4518 = vsel %vm4517, %v4508, %v4510
      %v4519 = vsel %vm4517, %v4510, %v4512
      %v4520 = vsel %vm4517, %v4512, %v4514
      %v4521 = vsel %vm4517, %v4514, %v4516
      %v4523 = vsel %vm280, %v4490, 0
      %v4526 = vsel %vm284, %v4518, 0
      %v4529 = vsel %vm284, %v4519, 0
      %v4532 = vsel %vm284, %v4520, 0
      %v4535 = vsel %vm284, %v4521, 0
      %4537 = vmatprep.subr.bf16.mxu0 %v4529
      %4538 = vmatpush1.bf16.msra.mxu0 %v4526
      %4539 = vmatprep.subr.bf16.mxu0 0
      %4540 = vmatpush1.bf16.msra.mxu0 0
      %4541 = vmatprep.subr.bf16.mxu0 0
      %4542 = vmatpush1.bf16.msra.mxu0 0
      %4543 = vmatprep.subr.bf16.mxu0 0
      %4544 = vmatpush1.bf16.msra.mxu0 0
      %4545 = vmatprep.subr.bf16.mxu0 0
      %4546 = vmatpush1.bf16.msra.mxu0 0
      %4547 = vmatprep.subr.bf16.mxu0 0
      %4548 = vmatpush1.bf16.msra.mxu0 0
      %4549 = vmatprep.subr.bf16.mxu0 0
      %4550 = vmatpush1.bf16.msra.mxu0 0
      %4551 = vmatprep.subr.bf16.mxu0 0
      %4552 = vmatpush1.bf16.msra.mxu0 0
      %4553 = vmatprep.subr.bf16.mxu0 0
      %4554 = vmatpush1.bf16.msra.mxu0 0
      %4555 = vmatprep.subr.bf16.mxu0 0
      %4556 = vmatpush1.bf16.msra.mxu0 0
      %4557 = vmatprep.subr.bf16.mxu0 0
      %4558 = vmatpush1.bf16.msra.mxu0 0
      %4559 = vmatprep.subr.bf16.mxu0 0
      %4560 = vmatpush1.bf16.msra.mxu0 0
      %4561 = vmatprep.subr.bf16.mxu0 0
      %4562 = vmatpush1.bf16.msra.mxu0 0
      %4563 = vmatprep.subr.bf16.mxu0 0
      %4564 = vmatpush1.bf16.msra.mxu0 0
      %4565 = vmatprep.subr.bf16.mxu0 0
      %4566 = vmatpush1.bf16.msra.mxu0 0
      %4567 = vmatprep.subr.bf16.mxu0 0
      %4568 = vmatpush1.bf16.msra.mxu0 0
      %4569 = vmatprep.mubr.bf16.mxu0 0
      %4570 = vmatmul.mubr.bf16.gmra.mrb[0].mxu0 %v4523
      %v4571 = vpop.f32.mrb[0].mxu0
      %v4572 = vadd.f32 0.0, %v4571
      %v4573 = vpop.f32.mrb[0].mxu0
      %v4574 = vadd.f32 0.0, %v4573
      %v4575 = vpop.f32.mrb[0].mxu0
      %v4576 = vpop.f32.mrb[0].mxu0
      %4577 = vdwg.mxu0
      %4578 = vmatprep.subr.bf16.mxu0 %v4535
      %4579 = vmatpush1.bf16.msra.mxu0 %v4532
      %4580 = vmatprep.subr.bf16.mxu0 0
      %4581 = vmatpush1.bf16.msra.mxu0 0
      %4582 = vmatprep.subr.bf16.mxu0 0
      %4583 = vmatpush1.bf16.msra.mxu0 0
      %4584 = vmatprep.subr.bf16.mxu0 0
      %4585 = vmatpush1.bf16.msra.mxu0 0
      %4586 = vmatprep.subr.bf16.mxu0 0
      %4587 = vmatpush1.bf16.msra.mxu0 0
      %4588 = vmatprep.subr.bf16.mxu0 0
      %4589 = vmatpush1.bf16.msra.mxu0 0
      %4590 = vmatprep.subr.bf16.mxu0 0
      %4591 = vmatpush1.bf16.msra.mxu0 0
      %4592 = vmatprep.subr.bf16.mxu0 0
      %4593 = vmatpush1.bf16.msra.mxu0 0
      %4594 = vmatprep.subr.bf16.mxu0 0
      %4595 = vmatpush1.bf16.msra.mxu0 0
      %4596 = vmatprep.subr.bf16.mxu0 0
      %4597 = vmatpush1.bf16.msra.mxu0 0
      %4598 = vmatprep.subr.bf16.mxu0 0
      %4599 = vmatpush1.bf16.msra.mxu0 0
      %4600 = vmatprep.subr.bf16.mxu0 0
      %4601 = vmatpush1.bf16.msra.mxu0 0
      %4602 = vmatprep.subr.bf16.mxu0 0
      %4603 = vmatpush1.bf16.msra.mxu0 0
      %4604 = vmatprep.subr.bf16.mxu0 0
      %4605 = vmatpush1.bf16.msra.mxu0 0
      %4606 = vmatprep.subr.bf16.mxu0 0
      %4607 = vmatpush1.bf16.msra.mxu0 0
      %4608 = vmatprep.subr.bf16.mxu0 0
      %4609 = vmatpush1.bf16.msra.mxu0 0
      %4610 = vmatprep.mubr.bf16.mxu0 0
      %4611 = vmatmul.mubr.bf16.gmra.mrb[0].mxu0 %v4523
      %v4612 = vpop.f32.mrb[0].mxu0
      %v4613 = vadd.f32 0.0, %v4612
      %v4614 = vpop.f32.mrb[0].mxu0
      %v4615 = vadd.f32 0.0, %v4614
      %v4616 = vpop.f32.mrb[0].mxu0
      %v4617 = vpop.f32.mrb[0].mxu0
      %4618 = vdwg.mxu0
      %v4619 = vadd.f32 %v4485, %v4572
      %v4620 = vadd.f32 %v4486, %v4574
      %v4621 = vadd.f32 %v4487, %v4613
      %v4622 = vadd.f32 %v4488, %v4615
      %s4623 = scalar_lea.vmem %s2, 40
      %v4624 = vld [vmem:[%s4623] sm:$0xf]
      %4625 = vrot.lane.b32.xlu0 %v4502, 10
      %v4626 = vpop.permute.xlu0 %4625
      %4627 = vrot.lane.b32.xlu0 %v4503, 10
      %v4628 = vpop.permute.xlu0 %4627
      %4629 = vrot.lane.b32.xlu0 %v4504, 10
      %v4630 = vpop.permute.xlu0 %4629
      %4631 = vrot.lane.b32.xlu0 %v4505, 10
      %v4632 = vpop.permute.xlu0 %4631
      %4633 = vrot.lane.b32.xlu0 %v4506, 10
      %v4634 = vpop.permute.xlu0 %4633
      %vm4635 = vcmask 80896
      %v4636 = vsel %vm4635, %v4626, %v4628
      %v4637 = vsel %vm4635, %v4628, %v4630
      %v4638 = vsel %vm4635, %v4630, %v4632
      %v4639 = vsel %vm4635, %v4632, %v4634
      %v4641 = vsel %vm280, %v4624, 0
      %v4644 = vsel %vm284, %v4636, 0
      %v4647 = vsel %vm284, %v4637, 0
      %v4650 = vsel %vm284, %v4638, 0
      %v4653 = vsel %vm284, %v4639, 0
      %4655 = vmatprep.subr.bf16.mxu0 %v4647
      %4656 = vmatpush1.bf16.msra.mxu0 %v4644
      %4657 = vmatprep.subr.bf16.mxu0 0
      %4658 = vmatpush1.bf16.msra.mxu0 0
      %4659 = vmatprep.subr.bf16.mxu0 0
      %4660 = vmatpush1.bf16.msra.mxu0 0
      %4661 = vmatprep.subr.bf16.mxu0 0
      %4662 = vmatpush1.bf16.msra.mxu0 0
      %4663 = vmatprep.subr.bf16.mxu0 0
      %4664 = vmatpush1.bf16.msra.mxu0 0
      %4665 = vmatprep.subr.bf16.mxu0 0
      %4666 = vmatpush1.bf16.msra.mxu0 0
      %4667 = vmatprep.subr.bf16.mxu0 0
      %4668 = vmatpush1.bf16.msra.mxu0 0
      %4669 = vmatprep.subr.bf16.mxu0 0
      %4670 = vmatpush1.bf16.msra.mxu0 0
      %4671 = vmatprep.subr.bf16.mxu0 0
      %4672 = vmatpush1.bf16.msra.mxu0 0
      %4673 = vmatprep.subr.bf16.mxu0 0
      %4674 = vmatpush1.bf16.msra.mxu0 0
      %4675 = vmatprep.subr.bf16.mxu0 0
      %4676 = vmatpush1.bf16.msra.mxu0 0
      %4677 = vmatprep.subr.bf16.mxu0 0
      %4678 = vmatpush1.bf16.msra.mxu0 0
      %4679 = vmatprep.subr.bf16.mxu0 0
      %4680 = vmatpush1.bf16.msra.mxu0 0
      %4681 = vmatprep.subr.bf16.mxu0 0
      %4682 = vmatpush1.bf16.msra.mxu0 0
      %4683 = vmatprep.subr.bf16.mxu0 0
      %4684 = vmatpush1.bf16.msra.mxu0 0
      %4685 = vmatprep.subr.bf16.mxu0 0
      %4686 = vmatpush1.bf16.msra.mxu0 0
      %4687 = vmatprep.mubr.bf16.mxu0 0
      %4688 = vmatmul.mubr.bf16.gmra.mrb[0].mxu0 %v4641
      %v4689 = vpop.f32.mrb[0].mxu0
      %v4690 = vadd.f32 0.0, %v4689
      %v4691 = vpop.f32.mrb[0].mxu0
      %v4692 = vadd.f32 0.0, %v4691
      %v4693 = vpop.f32.mrb[0].mxu0
      %v4694 = vpop.f32.mrb[0].mxu0
      %4695 = vdwg.mxu0
      %4696 = vmatprep.subr.bf16.mxu0 %v4653
      %4697 = vmatpush1.bf16.msra.mxu0 %v4650
      %4698 = vmatprep.subr.bf16.mxu0 0
      %4699 = vmatpush1.bf16.msra.mxu0 0
      %4700 = vmatprep.subr.bf16.mxu0 0
      %4701 = vmatpush1.bf16.msra.mxu0 0
      %4702 = vmatprep.subr.bf16.mxu0 0
      %4703 = vmatpush1.bf16.msra.mxu0 0
      %4704 = vmatprep.subr.bf16.mxu0 0
      %4705 = vmatpush1.bf16.msra.mxu0 0
      %4706 = vmatprep.subr.bf16.mxu0 0
      %4707 = vmatpush1.bf16.msra.mxu0 0
      %4708 = vmatprep.subr.bf16.mxu0 0
      %4709 = vmatpush1.bf16.msra.mxu0 0
      %4710 = vmatprep.subr.bf16.mxu0 0
      %4711 = vmatpush1.bf16.msra.mxu0 0
      %4712 = vmatprep.subr.bf16.mxu0 0
      %4713 = vmatpush1.bf16.msra.mxu0 0
      %4714 = vmatprep.subr.bf16.mxu0 0
      %4715 = vmatpush1.bf16.msra.mxu0 0
      %4716 = vmatprep.subr.bf16.mxu0 0
      %4717 = vmatpush1.bf16.msra.mxu0 0
      %4718 = vmatprep.subr.bf16.mxu0 0
      %4719 = vmatpush1.bf16.msra.mxu0 0
      %4720 = vmatprep.subr.bf16.mxu0 0
      %4721 = vmatpush1.bf16.msra.mxu0 0
      %4722 = vmatprep.subr.bf16.mxu0 0
      %4723 = vmatpush1.bf16.msra.mxu0 0
      %4724 = vmatprep.subr.bf16.mxu0 0
      %4725 = vmatpush1.bf16.msra.mxu0 0
      %4726 = vmatprep.subr.bf16.mxu0 0
      %4727 = vmatpush1.bf16.msra.mxu0 0
      %4728 = vmatprep.mubr.bf16.mxu0 0
      %4729 = vmatmul.mubr.bf16.gmra.mrb[0].mxu0 %v4641
      %v4730 = vpop.f32.mrb[0].mxu0
      %v4731 = vadd.f32 0.0, %v4730
      %v4732 = vpop.f32.mrb[0].mxu0
      %v4733 = vadd.f32 0.0, %v4732
      %v4734 = vpop.f32.mrb[0].mxu0
      %v4735 = vpop.f32.mrb[0].mxu0
      %4736 = vdwg.mxu0
      %v4737 = vadd.f32 %v4619, %v4690
      %v4738 = vadd.f32 %v4620, %v4692
      %v4739 = vadd.f32 %v4621, %v4731
      %v4740 = vadd.f32 %v4622, %v4733
      %s4741 = scalar_lea.vmem %s2, 44
      %v4742 = vld [vmem:[%s4741] sm:$0xf]
      %4743 = vrot.lane.b32.xlu0 %v4502, 9
      %v4744 = vpop.permute.xlu0 %4743
      %4745 = vrot.lane.b32.xlu0 %v4503, 9
      %v4746 = vpop.permute.xlu0 %4745
      %4747 = vrot.lane.b32.xlu0 %v4504, 9
      %v4748 = vpop.permute.xlu0 %4747
      %4749 = vrot.lane.b32.xlu0 %v4505, 9
      %v4750 = vpop.permute.xlu0 %4749
      %4751 = vrot.lane.b32.xlu0 %v4506, 9
      %v4752 = vpop.permute.xlu0 %4751
      %vm4753 = vcmask 72704
      %v4754 = vsel %vm4753, %v4744, %v4746
      %v4755 = vsel %vm4753, %v4746, %v4748
      %v4756 = vsel %vm4753, %v4748, %v4750
      %v4757 = vsel %vm4753, %v4750, %v4752
      %v4759 = vsel %vm280, %v4742, 0
      %v4762 = vsel %vm284, %v4754, 0
      %v4765 = vsel %vm284, %v4755, 0
      %v4768 = vsel %vm284, %v4756, 0
      %v4771 = vsel %vm284, %v4757, 0
      %4773 = vmatprep.subr.bf16.mxu0 %v4765
      %4774 = vmatpush1.bf16.msra.mxu0 %v4762
      %4775 = vmatprep.subr.bf16.mxu0 0
      %4776 = vmatpush1.bf16.msra.mxu0 0
      %4777 = vmatprep.subr.bf16.mxu0 0
      %4778 = vmatpush1.bf16.msra.mxu0 0
      %4779 = vmatprep.subr.bf16.mxu0 0
      %4780 = vmatpush1.bf16.msra.mxu0 0
      %4781 = vmatprep.subr.bf16.mxu0 0
      %4782 = vmatpush1.bf16.msra.mxu0 0
      %4783 = vmatprep.subr.bf16.mxu0 0
      %4784 = vmatpush1.bf16.msra.mxu0 0
      %4785 = vmatprep.subr.bf16.mxu0 0
      %4786 = vmatpush1.bf16.msra.mxu0 0
      %4787 = vmatprep.subr.bf16.mxu0 0
      %4788 = vmatpush1.bf16.msra.mxu0 0
      %4789 = vmatprep.subr.bf16.mxu0 0
      %4790 = vmatpush1.bf16.msra.mxu0 0
      %4791 = vmatprep.subr.bf16.mxu0 0
      %4792 = vmatpush1.bf16.msra.mxu0 0
      %4793 = vmatprep.subr.bf16.mxu0 0
      %4794 = vmatpush1.bf16.msra.mxu0 0
      %4795 = vmatprep.subr.bf16.mxu0 0
      %4796 = vmatpush1.bf16.msra.mxu0 0
      %4797 = vmatprep.subr.bf16.mxu0 0
      %4798 = vmatpush1.bf16.msra.mxu0 0
      %4799 = vmatprep.subr.bf16.mxu0 0
      %4800 = vmatpush1.bf16.msra.mxu0 0
      %4801 = vmatprep.subr.bf16.mxu0 0
      %4802 = vmatpush1.bf16.msra.mxu0 0
      %4803 = vmatprep.subr.bf16.mxu0 0
      %4804 = vmatpush1.bf16.msra.mxu0 0
      %4805 = vmatprep.mubr.bf16.mxu0 0
      %4806 = vmatmul.mubr.bf16.gmra.mrb[0].mxu0 %v4759
      %v4807 = vpop.f32.mrb[0].mxu0
      %v4808 = vadd.f32 0.0, %v4807
      %v4809 = vpop.f32.mrb[0].mxu0
      %v4810 = vadd.f32 0.0, %v4809
      %v4811 = vpop.f32.mrb[0].mxu0
      %v4812 = vpop.f32.mrb[0].mxu0
      %4813 = vdwg.mxu0
      %4814 = vmatprep.subr.bf16.mxu0 %v4771
      %4815 = vmatpush1.bf16.msra.mxu0 %v4768
      %4816 = vmatprep.subr.bf16.mxu0 0
      %4817 = vmatpush1.bf16.msra.mxu0 0
      %4818 = vmatprep.subr.bf16.mxu0 0
      %4819 = vmatpush1.bf16.msra.mxu0 0
      %4820 = vmatprep.subr.bf16.mxu0 0
      %4821 = vmatpush1.bf16.msra.mxu0 0
      %4822 = vmatprep.subr.bf16.mxu0 0
      %4823 = vmatpush1.bf16.msra.mxu0 0
      %4824 = vmatprep.subr.bf16.mxu0 0
      %4825 = vmatpush1.bf16.msra.mxu0 0
      %4826 = vmatprep.subr.bf16.mxu0 0
      %4827 = vmatpush1.bf16.msra.mxu0 0
      %4828 = vmatprep.subr.bf16.mxu0 0
      %4829 = vmatpush1.bf16.msra.mxu0 0
      %4830 = vmatprep.subr.bf16.mxu0 0
      %4831 = vmatpush1.bf16.msra.mxu0 0
      %4832 = vmatprep.subr.bf16.mxu0 0
      %4833 = vmatpush1.bf16.msra.mxu0 0
      %4834 = vmatprep.subr.bf16.mxu0 0
      %4835 = vmatpush1.bf16.msra.mxu0 0
      %4836 = vmatprep.subr.bf16.mxu0 0
      %4837 = vmatpush1.bf16.msra.mxu0 0
      %4838 = vmatprep.subr.bf16.mxu0 0
      %4839 = vmatpush1.bf16.msra.mxu0 0
      %4840 = vmatprep.subr.bf16.mxu0 0
      %4841 = vmatpush1.bf16.msra.mxu0 0
      %4842 = vmatprep.subr.bf16.mxu0 0
      %4843 = vmatpush1.bf16.msra.mxu0 0
      %4844 = vmatprep.subr.bf16.mxu0 0
      %4845 = vmatpush1.bf16.msra.mxu0 0
      %4846 = vmatprep.mubr.bf16.mxu0 0
      %4847 = vmatmul.mubr.bf16.gmra.mrb[0].mxu0 %v4759
      %v4848 = vpop.f32.mrb[0].mxu0
      %v4849 = vadd.f32 0.0, %v4848
      %v4850 = vpop.f32.mrb[0].mxu0
      %v4851 = vadd.f32 0.0, %v4850
      %v4852 = vpop.f32.mrb[0].mxu0
      %v4853 = vpop.f32.mrb[0].mxu0
      %4854 = vdwg.mxu0
      %v4855 = vadd.f32 %v4737, %v4808
      %v4856 = vadd.f32 %v4738, %v4810
      %v4857 = vadd.f32 %v4739, %v4849
      %v4858 = vadd.f32 %v4740, %v4851
      %s4859 = scalar_lea.vmem %s2, 48
      %v4860 = vld [vmem:[%s4859] sm:$0xf]
      %4861 = vrot.lane.b32.xlu0 %v4502, 1
      %v4862 = vpop.permute.xlu0 %4861
      %4863 = vrot.lane.b32.xlu0 %v4503, 1
      %v4864 = vpop.permute.xlu0 %4863
      %4865 = vrot.lane.b32.xlu0 %v4504, 1
      %v4866 = vpop.permute.xlu0 %4865
      %4867 = vrot.lane.b32.xlu0 %v4505, 1
      %v4868 = vpop.permute.xlu0 %4867
      %4869 = vrot.lane.b32.xlu0 %v4506, 1
      %v4870 = vpop.permute.xlu0 %4869
      %vm4871 = vcmask 7168
      %v4872 = vsel %vm4871, %v4862, %v4864
      %v4873 = vsel %vm4871, %v4864, %v4866
      %v4874 = vsel %vm4871, %v4866, %v4868
      %v4875 = vsel %vm4871, %v4868, %v4870
      %v4877 = vsel %vm280, %v4860, 0
      %v4880 = vsel %vm284, %v4872, 0
      %v4883 = vsel %vm284, %v4873, 0
      %v4886 = vsel %vm284, %v4874, 0
      %v4889 = vsel %vm284, %v4875, 0
      %4891 = vmatprep.subr.bf16.mxu0 %v4883
      %4892 = vmatpush1.bf16.msra.mxu0 %v4880
      %4893 = vmatprep.subr.bf16.mxu0 0
      %4894 = vmatpush1.bf16.msra.mxu0 0
      %4895 = vmatprep.subr.bf16.mxu0 0
      %4896 = vmatpush1.bf16.msra.mxu0 0
      %4897 = vmatprep.subr.bf16.mxu0 0
      %4898 = vmatpush1.bf16.msra.mxu0 0
      %4899 = vmatprep.subr.bf16.mxu0 0
      %4900 = vmatpush1.bf16.msra.mxu0 0
      %4901 = vmatprep.subr.bf16.mxu0 0
      %4902 = vmatpush1.bf16.msra.mxu0 0
      %4903 = vmatprep.subr.bf16.mxu0 0
      %4904 = vmatpush1.bf16.msra.mxu0 0
      %4905 = vmatprep.subr.bf16.mxu0 0
      %4906 = vmatpush1.bf16.msra.mxu0 0
      %4907 = vmatprep.subr.bf16.mxu0 0
      %4908 = vmatpush1.bf16.msra.mxu0 0
      %4909 = vmatprep.subr.bf16.mxu0 0
      %4910 = vmatpush1.bf16.msra.mxu0 0
      %4911 = vmatprep.subr.bf16.mxu0 0
      %4912 = vmatpush1.bf16.msra.mxu0 0
      %4913 = vmatprep.subr.bf16.mxu0 0
      %4914 = vmatpush1.bf16.msra.mxu0 0
      %4915 = vmatprep.subr.bf16.mxu0 0
      %4916 = vmatpush1.bf16.msra.mxu0 0
      %4917 = vmatprep.subr.bf16.mxu0 0
      %4918 = vmatpush1.bf16.msra.mxu0 0
      %4919 = vmatprep.subr.bf16.mxu0 0
      %4920 = vmatpush1.bf16.msra.mxu0 0
      %4921 = vmatprep.subr.bf16.mxu0 0
      %4922 = vmatpush1.bf16.msra.mxu0 0
      %4923 = vmatprep.mubr.bf16.mxu0 0
      %4924 = vmatmul.mubr.bf16.gmra.mrb[0].mxu0 %v4877
      %v4925 = vpop.f32.mrb[0].mxu0
      %v4926 = vadd.f32 0.0, %v4925
      %v4927 = vpop.f32.mrb[0].mxu0
      %v4928 = vadd.f32 0.0, %v4927
      %v4929 = vpop.f32.mrb[0].mxu0
      %v4930 = vpop.f32.mrb[0].mxu0
      %4931 = vdwg.mxu0
      %4932 = vmatprep.subr.bf16.mxu0 %v4889
      %4933 = vmatpush1.bf16.msra.mxu0 %v4886
      %4934 = vmatprep.subr.bf16.mxu0 0
      %4935 = vmatpush1.bf16.msra.mxu0 0
      %4936 = vmatprep.subr.bf16.mxu0 0
      %4937 = vmatpush1.bf16.msra.mxu0 0
      %4938 = vmatprep.subr.bf16.mxu0 0
      %4939 = vmatpush1.bf16.msra.mxu0 0
      %4940 = vmatprep.subr.bf16.mxu0 0
      %4941 = vmatpush1.bf16.msra.mxu0 0
      %4942 = vmatprep.subr.bf16.mxu0 0
      %4943 = vmatpush1.bf16.msra.mxu0 0
      %4944 = vmatprep.subr.bf16.mxu0 0
      %4945 = vmatpush1.bf16.msra.mxu0 0
      %4946 = vmatprep.subr.bf16.mxu0 0
      %4947 = vmatpush1.bf16.msra.mxu0 0
      %4948 = vmatprep.subr.bf16.mxu0 0
      %4949 = vmatpush1.bf16.msra.mxu0 0
      %4950 = vmatprep.subr.bf16.mxu0 0
      %4951 = vmatpush1.bf16.msra.mxu0 0
      %4952 = vmatprep.subr.bf16.mxu0 0
      %4953 = vmatpush1.bf16.msra.mxu0 0
      %4954 = vmatprep.subr.bf16.mxu0 0
      %4955 = vmatpush1.bf16.msra.mxu0 0
      %4956 = vmatprep.subr.bf16.mxu0 0
      %4957 = vmatpush1.bf16.msra.mxu0 0
      %4958 = vmatprep.subr.bf16.mxu0 0
      %4959 = vmatpush1.bf16.msra.mxu0 0
      %4960 = vmatprep.subr.bf16.mxu0 0
      %4961 = vmatpush1.bf16.msra.mxu0 0
      %4962 = vmatprep.subr.bf16.mxu0 0
      %4963 = vmatpush1.bf16.msra.mxu0 0
      %4964 = vmatprep.mubr.bf16.mxu0 0
      %4965 = vmatmul.mubr.bf16.gmra.mrb[0].mxu0 %v4877
      %v4966 = vpop.f32.mrb[0].mxu0
      %v4967 = vadd.f32 0.0, %v4966
      %v4968 = vpop.f32.mrb[0].mxu0
      %v4969 = vadd.f32 0.0, %v4968
      %v4970 = vpop.f32.mrb[0].mxu0
      %v4971 = vpop.f32.mrb[0].mxu0
      %4972 = vdwg.mxu0
      %v4973 = vadd.f32 %v4855, %v4926
      %v4974 = vadd.f32 %v4856, %v4928
      %v4975 = vadd.f32 %v4857, %v4967
      %v4976 = vadd.f32 %v4858, %v4969
      %s4977 = scalar_lea.vmem %s2, 52
      %v4978 = vld [vmem:[%s4977] sm:$0xf]
      %v4979 = vld [vmem:[#allocation2 + $0x4] sm:$0xff]
      %v4980 = vld [vmem:[#allocation2 + $0xc] sm:$0xff]
      %v4983 = vunpack.c.l.b16 %v4979
      %v4984 = vunpack.c.h.b16 %v4979
      %v4985 = vunpack.c.l.b16 %v4980
      %v4986 = vunpack.c.h.b16 %v4980
      %v4987 = vpack.c.b16 %v4983, %v4983
      %v4988 = vpack.c.b16 %v4984, %v4984
      %v4989 = vpack.c.b16 %v4985, %v4985
      %v4990 = vpack.c.b16 %v4986, %v4986
      %v4992 = vsel %vm280, %v4978, 0
      %v4995 = vsel %vm284, %v4987, 0
      %v4998 = vsel %vm284, %v4988, 0
      %v5001 = vsel %vm284, %v4989, 0
      %v5004 = vsel %vm284, %v4990, 0
      %5006 = vmatprep.subr.bf16.mxu0 %v4998
      %5007 = vmatpush1.bf16.msra.mxu0 %v4995
      %5008 = vmatprep.subr.bf16.mxu0 0
      %5009 = vmatpush1.bf16.msra.mxu0 0
      %5010 = vmatprep.subr.bf16.mxu0 0
      %5011 = vmatpush1.bf16.msra.mxu0 0
      %5012 = vmatprep.subr.bf16.mxu0 0
      %5013 = vmatpush1.bf16.msra.mxu0 0
      %5014 = vmatprep.subr.bf16.mxu0 0
      %5015 = vmatpush1.bf16.msra.mxu0 0
      %5016 = vmatprep.subr.bf16.mxu0 0
      %5017 = vmatpush1.bf16.msra.mxu0 0
      %5018 = vmatprep.subr.bf16.mxu0 0
      %5019 = vmatpush1.bf16.msra.mxu0 0
      %5020 = vmatprep.subr.bf16.mxu0 0
      %5021 = vmatpush1.bf16.msra.mxu0 0
      %5022 = vmatprep.subr.bf16.mxu0 0
      %5023 = vmatpush1.bf16.msra.mxu0 0
      %5024 = vmatprep.subr.bf16.mxu0 0
      %5025 = vmatpush1.bf16.msra.mxu0 0
      %5026 = vmatprep.subr.bf16.mxu0 0
      %5027 = vmatpush1.bf16.msra.mxu0 0
      %5028 = vmatprep.subr.bf16.mxu0 0
      %5029 = vmatpush1.bf16.msra.mxu0 0
      %5030 = vmatprep.subr.bf16.mxu0 0
      %5031 = vmatpush1.bf16.msra.mxu0 0
      %5032 = vmatprep.subr.bf16.mxu0 0
      %5033 = vmatpush1.bf16.msra.mxu0 0
      %5034 = vmatprep.subr.bf16.mxu0 0
      %5035 = vmatpush1.bf16.msra.mxu0 0
      %5036 = vmatprep.subr.bf16.mxu0 0
      %5037 = vmatpush1.bf16.msra.mxu0 0
      %5038 = vmatprep.mubr.bf16.mxu0 0
      %5039 = vmatmul.mubr.bf16.gmra.mrb[0].mxu0 %v4992
      %v5040 = vpop.f32.mrb[0].mxu0
      %v5041 = vadd.f32 0.0, %v5040
      %v5042 = vpop.f32.mrb[0].mxu0
      %v5043 = vadd.f32 0.0, %v5042
      %v5044 = vpop.f32.mrb[0].mxu0
      %v5045 = vpop.f32.mrb[0].mxu0
      %5046 = vdwg.mxu0
      %5047 = vmatprep.subr.bf16.mxu0 %v5004
      %5048 = vmatpush1.bf16.msra.mxu0 %v5001
      %5049 = vmatprep.subr.bf16.mxu0 0
      %5050 = vmatpush1.bf16.msra.mxu0 0
      %5051 = vmatprep.subr.bf16.mxu0 0
      %5052 = vmatpush1.bf16.msra.mxu0 0
      %5053 = vmatprep.subr.bf16.mxu0 0
      %5054 = vmatpush1.bf16.msra.mxu0 0
      %5055 = vmatprep.subr.bf16.mxu0 0
      %5056 = vmatpush1.bf16.msra.mxu0 0
      %5057 = vmatprep.subr.bf16.mxu0 0
      %5058 = vmatpush1.bf16.msra.mxu0 0
      %5059 = vmatprep.subr.bf16.mxu0 0
      %5060 = vmatpush1.bf16.msra.mxu0 0
      %5061 = vmatprep.subr.bf16.mxu0 0
      %5062 = vmatpush1.bf16.msra.mxu0 0
      %5063 = vmatprep.subr.bf16.mxu0 0
      %5064 = vmatpush1.bf16.msra.mxu0 0
      %5065 = vmatprep.subr.bf16.mxu0 0
      %5066 = vmatpush1.bf16.msra.mxu0 0
      %5067 = vmatprep.subr.bf16.mxu0 0
      %5068 = vmatpush1.bf16.msra.mxu0 0
      %5069 = vmatprep.subr.bf16.mxu0 0
      %5070 = vmatpush1.bf16.msra.mxu0 0
      %5071 = vmatprep.subr.bf16.mxu0 0
      %5072 = vmatpush1.bf16.msra.mxu0 0
      %5073 = vmatprep.subr.bf16.mxu0 0
      %5074 = vmatpush1.bf16.msra.mxu0 0
      %5075 = vmatprep.subr.bf16.mxu0 0
      %5076 = vmatpush1.bf16.msra.mxu0 0
      %5077 = vmatprep.subr.bf16.mxu0 0
      %5078 = vmatpush1.bf16.msra.mxu0 0
      %5079 = vmatprep.mubr.bf16.mxu0 0
      %5080 = vmatmul.mubr.bf16.gmra.mrb[0].mxu0 %v4992
      %v5081 = vpop.f32.mrb[0].mxu0
      %v5082 = vadd.f32 0.0, %v5081
      %v5083 = vpop.f32.mrb[0].mxu0
      %v5084 = vadd.f32 0.0, %v5083
      %v5085 = vpop.f32.mrb[0].mxu0
      %v5086 = vpop.f32.mrb[0].mxu0
      %5087 = vdwg.mxu0
      %v5088 = vadd.f32 %v4973, %v5041
      %v5089 = vadd.f32 %v4974, %v5043
      %v5090 = vadd.f32 %v4975, %v5082
      %v5091 = vadd.f32 %v4976, %v5084
      %s5092 = scalar_lea.vmem %s2, 56
      %v5093 = vld [vmem:[%s5092] sm:$0xf]
      %5094 = vrot.lane.b32.xlu0 %v4987, 127
      %v5095 = vpop.permute.xlu0 %5094
      %5096 = vrot.lane.b32.xlu0 %v4988, 127
      %v5097 = vpop.permute.xlu0 %5096
      %5098 = vrot.lane.b32.xlu0 %v4989, 127
      %v5099 = vpop.permute.xlu0 %5098
      %5100 = vrot.lane.b32.xlu0 %v4990, 127
      %v5101 = vpop.permute.xlu0 %5100
      %v5102 = vsel %vm276, %v5095, %v5097
      %v5103 = vsel %vm276, %v5097, %v5099
      %v5104 = vsel %vm276, %v5099, %v5101
      %v5106 = vsel %vm280, %v5093, 0
      %v5109 = vsel %vm284, %v5102, 0
      %v5112 = vsel %vm284, %v5103, 0
      %v5115 = vsel %vm284, %v5104, 0
      %v5118 = vsel %vm284, %v5101, 0
      %5120 = vmatprep.subr.bf16.mxu0 %v5112
      %5121 = vmatpush1.bf16.msra.mxu0 %v5109
      %5122 = vmatprep.subr.bf16.mxu0 0
      %5123 = vmatpush1.bf16.msra.mxu0 0
      %5124 = vmatprep.subr.bf16.mxu0 0
      %5125 = vmatpush1.bf16.msra.mxu0 0
      %5126 = vmatprep.subr.bf16.mxu0 0
      %5127 = vmatpush1.bf16.msra.mxu0 0
      %5128 = vmatprep.subr.bf16.mxu0 0
      %5129 = vmatpush1.bf16.msra.mxu0 0
      %5130 = vmatprep.subr.bf16.mxu0 0
      %5131 = vmatpush1.bf16.msra.mxu0 0
      %5132 = vmatprep.subr.bf16.mxu0 0
      %5133 = vmatpush1.bf16.msra.mxu0 0
      %5134 = vmatprep.subr.bf16.mxu0 0
      %5135 = vmatpush1.bf16.msra.mxu0 0
      %5136 = vmatprep.subr.bf16.mxu0 0
      %5137 = vmatpush1.bf16.msra.mxu0 0
      %5138 = vmatprep.subr.bf16.mxu0 0
      %5139 = vmatpush1.bf16.msra.mxu0 0
      %5140 = vmatprep.subr.bf16.mxu0 0
      %5141 = vmatpush1.bf16.msra.mxu0 0
      %5142 = vmatprep.subr.bf16.mxu0 0
      %5143 = vmatpush1.bf16.msra.mxu0 0
      %5144 = vmatprep.subr.bf16.mxu0 0
      %5145 = vmatpush1.bf16.msra.mxu0 0
      %5146 = vmatprep.subr.bf16.mxu0 0
      %5147 = vmatpush1.bf16.msra.mxu0 0
      %5148 = vmatprep.subr.bf16.mxu0 0
      %5149 = vmatpush1.bf16.msra.mxu0 0
      %5150 = vmatprep.subr.bf16.mxu0 0
      %5151 = vmatpush1.bf16.msra.mxu0 0
      %5152 = vmatprep.mubr.bf16.mxu0 0
      %5153 = vmatmul.mubr.bf16.gmra.mrb[0].mxu0 %v5106
      %v5154 = vpop.f32.mrb[0].mxu0
      %v5155 = vadd.f32 0.0, %v5154
      %v5156 = vpop.f32.mrb[0].mxu0
      %v5157 = vadd.f32 0.0, %v5156
      %v5158 = vpop.f32.mrb[0].mxu0
      %v5159 = vpop.f32.mrb[0].mxu0
      %5160 = vdwg.mxu0
      %5161 = vmatprep.subr.bf16.mxu0 %v5118
      %5162 = vmatpush1.bf16.msra.mxu0 %v5115
      %5163 = vmatprep.subr.bf16.mxu0 0
      %5164 = vmatpush1.bf16.msra.mxu0 0
      %5165 = vmatprep.subr.bf16.mxu0 0
      %5166 = vmatpush1.bf16.msra.mxu0 0
      %5167 = vmatprep.subr.bf16.mxu0 0
      %5168 = vmatpush1.bf16.msra.mxu0 0
      %5169 = vmatprep.subr.bf16.mxu0 0
      %5170 = vmatpush1.bf16.msra.mxu0 0
      %5171 = vmatprep.subr.bf16.mxu0 0
      %5172 = vmatpush1.bf16.msra.mxu0 0
      %5173 = vmatprep.subr.bf16.mxu0 0
      %5174 = vmatpush1.bf16.msra.mxu0 0
      %5175 = vmatprep.subr.bf16.mxu0 0
      %5176 = vmatpush1.bf16.msra.mxu0 0
      %5177 = vmatprep.subr.bf16.mxu0 0
      %5178 = vmatpush1.bf16.msra.mxu0 0
      %5179 = vmatprep.subr.bf16.mxu0 0
      %5180 = vmatpush1.bf16.msra.mxu0 0
      %5181 = vmatprep.subr.bf16.mxu0 0
      %5182 = vmatpush1.bf16.msra.mxu0 0
      %5183 = vmatprep.subr.bf16.mxu0 0
      %5184 = vmatpush1.bf16.msra.mxu0 0
      %5185 = vmatprep.subr.bf16.mxu0 0
      %5186 = vmatpush1.bf16.msra.mxu0 0
      %5187 = vmatprep.subr.bf16.mxu0 0
      %5188 = vmatpush1.bf16.msra.mxu0 0
      %5189 = vmatprep.subr.bf16.mxu0 0
      %5190 = vmatpush1.bf16.msra.mxu0 0
      %5191 = vmatprep.subr.bf16.mxu0 0
      %5192 = vmatpush1.bf16.msra.mxu0 0
      %5193 = vmatprep.mubr.bf16.mxu0 0
      %5194 = vmatmul.mubr.bf16.gmra.mrb[0].mxu0 %v5106
      %v5195 = vpop.f32.mrb[0].mxu0
      %v5196 = vadd.f32 0.0, %v5195
      %v5197 = vpop.f32.mrb[0].mxu0
      %v5198 = vadd.f32 0.0, %v5197
      %v5199 = vpop.f32.mrb[0].mxu0
      %v5200 = vpop.f32.mrb[0].mxu0
      %5201 = vdwg.mxu0
      %v5202 = vadd.f32 %v5088, %v5155
      %v5203 = vadd.f32 %v5089, %v5157
      %v5204 = vadd.f32 %v5090, %v5196
      %v5205 = vadd.f32 %v5091, %v5198
      %s5206 = scalar_lea.vmem %s2, 60
      %v5207 = vld [vmem:[%s5206] sm:$0xf]
      %5208 = vrot.lane.b32.xlu0 %v4987, 119
      %v5209 = vpop.permute.xlu0 %5208
      %5210 = vrot.lane.b32.xlu0 %v4988, 119
      %v5211 = vpop.permute.xlu0 %5210
      %5212 = vrot.lane.b32.xlu0 %v4989, 119
      %v5213 = vpop.permute.xlu0 %5212
      %5214 = vrot.lane.b32.xlu0 %v4990, 119
      %v5215 = vpop.permute.xlu0 %5214
      %vm5216 = vcmask 973824
      %v5217 = vsel %vm5216, %v5209, %v5211
      %v5218 = vsel %vm5216, %v5211, %v5213
      %v5219 = vsel %vm5216, %v5213, %v5215
      %v5221 = vsel %vm280, %v5207, 0
      %v5224 = vsel %vm284, %v5217, 0
      %v5227 = vsel %vm284, %v5218, 0
      %v5230 = vsel %vm284, %v5219, 0
      %v5233 = vsel %vm284, %v5215, 0
      %5235 = vmatprep.subr.bf16.mxu0 %v5227
      %5236 = vmatpush1.bf16.msra.mxu0 %v5224
      %5237 = vmatprep.subr.bf16.mxu0 0
      %5238 = vmatpush1.bf16.msra.mxu0 0
      %5239 = vmatprep.subr.bf16.mxu0 0
      %5240 = vmatpush1.bf16.msra.mxu0 0
      %5241 = vmatprep.subr.bf16.mxu0 0
      %5242 = vmatpush1.bf16.msra.mxu0 0
      %5243 = vmatprep.subr.bf16.mxu0 0
      %5244 = vmatpush1.bf16.msra.mxu0 0
      %5245 = vmatprep.subr.bf16.mxu0 0
      %5246 = vmatpush1.bf16.msra.mxu0 0
      %5247 = vmatprep.subr.bf16.mxu0 0
      %5248 = vmatpush1.bf16.msra.mxu0 0
      %5249 = vmatprep.subr.bf16.mxu0 0
      %5250 = vmatpush1.bf16.msra.mxu0 0
      %5251 = vmatprep.subr.bf16.mxu0 0
      %5252 = vmatpush1.bf16.msra.mxu0 0
      %5253 = vmatprep.subr.bf16.mxu0 0
      %5254 = vmatpush1.bf16.msra.mxu0 0
      %5255 = vmatprep.subr.bf16.mxu0 0
      %5256 = vmatpush1.bf16.msra.mxu0 0
      %5257 = vmatprep.subr.bf16.mxu0 0
      %5258 = vmatpush1.bf16.msra.mxu0 0
      %5259 = vmatprep.subr.bf16.mxu0 0
      %5260 = vmatpush1.bf16.msra.mxu0 0
      %5261 = vmatprep.subr.bf16.mxu0 0
      %5262 = vmatpush1.bf16.msra.mxu0 0
      %5263 = vmatprep.subr.bf16.mxu0 0
      %5264 = vmatpush1.bf16.msra.mxu0 0
      %5265 = vmatprep.subr.bf16.mxu0 0
      %5266 = vmatpush1.bf16.msra.mxu0 0
      %5267 = vmatprep.mubr.bf16.mxu0 0
      %5268 = vmatmul.mubr.bf16.gmra.mrb[0].mxu0 %v5221
      %v5269 = vpop.f32.mrb[0].mxu0
      %v5270 = vadd.f32 0.0, %v5269
      %v5271 = vpop.f32.mrb[0].mxu0
      %v5272 = vadd.f32 0.0, %v5271
      %v5273 = vpop.f32.mrb[0].mxu0
      %v5274 = vpop.f32.mrb[0].mxu0
      %5275 = vdwg.mxu0
      %5276 = vmatprep.subr.bf16.mxu0 %v5233
      %5277 = vmatpush1.bf16.msra.mxu0 %v5230
      %5278 = vmatprep.subr.bf16.mxu0 0
      %5279 = vmatpush1.bf16.msra.mxu0 0
      %5280 = vmatprep.subr.bf16.mxu0 0
      %5281 = vmatpush1.bf16.msra.mxu0 0
      %5282 = vmatprep.subr.bf16.mxu0 0
      %5283 = vmatpush1.bf16.msra.mxu0 0
      %5284 = vmatprep.subr.bf16.mxu0 0
      %5285 = vmatpush1.bf16.msra.mxu0 0
      %5286 = vmatprep.subr.bf16.mxu0 0
      %5287 = vmatpush1.bf16.msra.mxu0 0
      %5288 = vmatprep.subr.bf16.mxu0 0
      %5289 = vmatpush1.bf16.msra.mxu0 0
      %5290 = vmatprep.subr.bf16.mxu0 0
      %5291 = vmatpush1.bf16.msra.mxu0 0
      %5292 = vmatprep.subr.bf16.mxu0 0
      %5293 = vmatpush1.bf16.msra.mxu0 0
      %5294 = vmatprep.subr.bf16.mxu0 0
      %5295 = vmatpush1.bf16.msra.mxu0 0
      %5296 = vmatprep.subr.bf16.mxu0 0
      %5297 = vmatpush1.bf16.msra.mxu0 0
      %5298 = vmatprep.subr.bf16.mxu0 0
      %5299 = vmatpush1.bf16.msra.mxu0 0
      %5300 = vmatprep.subr.bf16.mxu0 0
      %5301 = vmatpush1.bf16.msra.mxu0 0
      %5302 = vmatprep.subr.bf16.mxu0 0
      %5303 = vmatpush1.bf16.msra.mxu0 0
      %5304 = vmatprep.subr.bf16.mxu0 0
      %5305 = vmatpush1.bf16.msra.mxu0 0
      %5306 = vmatprep.subr.bf16.mxu0 0
      %5307 = vmatpush1.bf16.msra.mxu0 0
      %5308 = vmatprep.mubr.bf16.mxu0 0
      %5309 = vmatmul.mubr.bf16.gmra.mrb[0].mxu0 %v5221
      %v5310 = vpop.f32.mrb[0].mxu0
      %v5311 = vadd.f32 0.0, %v5310
      %v5312 = vpop.f32.mrb[0].mxu0
      %v5313 = vadd.f32 0.0, %v5312
      %v5314 = vpop.f32.mrb[0].mxu0
      %v5315 = vpop.f32.mrb[0].mxu0
      %5316 = vdwg.mxu0
      %v5317 = vadd.f32 %v5202, %v5270
      %v5318 = vadd.f32 %v5203, %v5272
      %v5319 = vadd.f32 %v5204, %v5311
      %v5320 = vadd.f32 %v5205, %v5313
      %s5321 = scalar_lea.vmem %s2, 64
      %v5322 = vld [vmem:[%s5321] sm:$0xf]
      %5323 = vrot.lane.b32.xlu0 %v4987, 118
      %v5324 = vpop.permute.xlu0 %5323
      %5325 = vrot.lane.b32.xlu0 %v4988, 118
      %v5326 = vpop.permute.xlu0 %5325
      %5327 = vrot.lane.b32.xlu0 %v4989, 118
      %v5328 = vpop.permute.xlu0 %5327
      %5329 = vrot.lane.b32.xlu0 %v4990, 118
      %v5330 = vpop.permute.xlu0 %5329
      %v5331 = vsel %vm601, %v5324, %v5326
      %v5332 = vsel %vm601, %v5326, %v5328
      %v5333 = vsel %vm601, %v5328, %v5330
      %v5335 = vsel %vm280, %v5322, 0
      %v5338 = vsel %vm284, %v5331, 0
      %v5341 = vsel %vm284, %v5332, 0
      %v5344 = vsel %vm284, %v5333, 0
      %v5347 = vsel %vm284, %v5330, 0
      %5349 = vmatprep.subr.bf16.mxu0 %v5341
      %5350 = vmatpush1.bf16.msra.mxu0 %v5338
      %5351 = vmatprep.subr.bf16.mxu0 0
      %5352 = vmatpush1.bf16.msra.mxu0 0
      %5353 = vmatprep.subr.bf16.mxu0 0
      %5354 = vmatpush1.bf16.msra.mxu0 0
      %5355 = vmatprep.subr.bf16.mxu0 0
      %5356 = vmatpush1.bf16.msra.mxu0 0
      %5357 = vmatprep.subr.bf16.mxu0 0
      %5358 = vmatpush1.bf16.msra.mxu0 0
      %5359 = vmatprep.subr.bf16.mxu0 0
      %5360 = vmatpush1.bf16.msra.mxu0 0
      %5361 = vmatprep.subr.bf16.mxu0 0
      %5362 = vmatpush1.bf16.msra.mxu0 0
      %5363 = vmatprep.subr.bf16.mxu0 0
      %5364 = vmatpush1.bf16.msra.mxu0 0
      %5365 = vmatprep.subr.bf16.mxu0 0
      %5366 = vmatpush1.bf16.msra.mxu0 0
      %5367 = vmatprep.subr.bf16.mxu0 0
      %5368 = vmatpush1.bf16.msra.mxu0 0
      %5369 = vmatprep.subr.bf16.mxu0 0
      %5370 = vmatpush1.bf16.msra.mxu0 0
      %5371 = vmatprep.subr.bf16.mxu0 0
      %5372 = vmatpush1.bf16.msra.mxu0 0
      %5373 = vmatprep.subr.bf16.mxu0 0
      %5374 = vmatpush1.bf16.msra.mxu0 0
      %5375 = vmatprep.subr.bf16.mxu0 0
      %5376 = vmatpush1.bf16.msra.mxu0 0
      %5377 = vmatprep.subr.bf16.mxu0 0
      %5378 = vmatpush1.bf16.msra.mxu0 0
      %5379 = vmatprep.subr.bf16.mxu0 0
      %5380 = vmatpush1.bf16.msra.mxu0 0
      %5381 = vmatprep.mubr.bf16.mxu0 0
      %5382 = vmatmul.mubr.bf16.gmra.mrb[0].mxu0 %v5335
      %v5383 = vpop.f32.mrb[0].mxu0
      %v5384 = vadd.f32 0.0, %v5383
      %v5385 = vpop.f32.mrb[0].mxu0
      %v5386 = vadd.f32 0.0, %v5385
      %v5387 = vpop.f32.mrb[0].mxu0
      %v5388 = vpop.f32.mrb[0].mxu0
      %5389 = vdwg.mxu0
      %5390 = vmatprep.subr.bf16.mxu0 %v5347
      %5391 = vmatpush1.bf16.msra.mxu0 %v5344
      %5392 = vmatprep.subr.bf16.mxu0 0
      %5393 = vmatpush1.bf16.msra.mxu0 0
      %5394 = vmatprep.subr.bf16.mxu0 0
      %5395 = vmatpush1.bf16.msra.mxu0 0
      %5396 = vmatprep.subr.bf16.mxu0 0
      %5397 = vmatpush1.bf16.msra.mxu0 0
      %5398 = vmatprep.subr.bf16.mxu0 0
      %5399 = vmatpush1.bf16.msra.mxu0 0
      %5400 = vmatprep.subr.bf16.mxu0 0
      %5401 = vmatpush1.bf16.msra.mxu0 0
      %5402 = vmatprep.subr.bf16.mxu0 0
      %5403 = vmatpush1.bf16.msra.mxu0 0
      %5404 = vmatprep.subr.bf16.mxu0 0
      %5405 = vmatpush1.bf16.msra.mxu0 0
      %5406 = vmatprep.subr.bf16.mxu0 0
      %5407 = vmatpush1.bf16.msra.mxu0 0
      %5408 = vmatprep.subr.bf16.mxu0 0
      %5409 = vmatpush1.bf16.msra.mxu0 0
      %5410 = vmatprep.subr.bf16.mxu0 0
      %5411 = vmatpush1.bf16.msra.mxu0 0
      %5412 = vmatprep.subr.bf16.mxu0 0
      %5413 = vmatpush1.bf16.msra.mxu0 0
      %5414 = vmatprep.subr.bf16.mxu0 0
      %5415 = vmatpush1.bf16.msra.mxu0 0
      %5416 = vmatprep.subr.bf16.mxu0 0
      %5417 = vmatpush1.bf16.msra.mxu0 0
      %5418 = vmatprep.subr.bf16.mxu0 0
      %5419 = vmatpush1.bf16.msra.mxu0 0
      %5420 = vmatprep.subr.bf16.mxu0 0
      %5421 = vmatpush1.bf16.msra.mxu0 0
      %5422 = vmatprep.mubr.bf16.mxu0 0
      %5423 = vmatmul.mubr.bf16.gmra.mrb[0].mxu0 %v5335
      %v5424 = vpop.f32.mrb[0].mxu0
      %v5425 = vadd.f32 0.0, %v5424
      %v5426 = vpop.f32.mrb[0].mxu0
      %v5427 = vadd.f32 0.0, %v5426
      %v5428 = vpop.f32.mrb[0].mxu0
      %v5429 = vpop.f32.mrb[0].mxu0
      %5430 = vdwg.mxu0
      %v5431 = vadd.f32 %v5317, %v5384
      %v5432 = vadd.f32 %v5318, %v5386
      %v5433 = vadd.f32 %v5319, %v5425
      %v5434 = vadd.f32 %v5320, %v5427
      %s5435 = scalar_lea.vmem %s2, 68
      %v5436 = vld [vmem:[%s5435] sm:$0xf]
      %5437 = vrot.lane.b32.xlu0 %v4987, 117
      %v5438 = vpop.permute.xlu0 %5437
      %5439 = vrot.lane.b32.xlu0 %v4988, 117
      %v5440 = vpop.permute.xlu0 %5439
      %5441 = vrot.lane.b32.xlu0 %v4989, 117
      %v5442 = vpop.permute.xlu0 %5441
      %5443 = vrot.lane.b32.xlu0 %v4990, 117
      %v5444 = vpop.permute.xlu0 %5443
      %v5445 = vsel %vm716, %v5438, %v5440
      %v5446 = vsel %vm716, %v5440, %v5442
      %v5447 = vsel %vm716, %v5442, %v5444
      %v5449 = vsel %vm280, %v5436, 0
      %v5452 = vsel %vm284, %v5445, 0
      %v5455 = vsel %vm284, %v5446, 0
      %v5458 = vsel %vm284, %v5447, 0
      %v5461 = vsel %vm284, %v5444, 0
      %5463 = vmatprep.subr.bf16.mxu0 %v5455
      %5464 = vmatpush1.bf16.msra.mxu0 %v5452
      %5465 = vmatprep.subr.bf16.mxu0 0
      %5466 = vmatpush1.bf16.msra.mxu0 0
      %5467 = vmatprep.subr.bf16.mxu0 0
      %5468 = vmatpush1.bf16.msra.mxu0 0
      %5469 = vmatprep.subr.bf16.mxu0 0
      %5470 = vmatpush1.bf16.msra.mxu0 0
      %5471 = vmatprep.subr.bf16.mxu0 0
      %5472 = vmatpush1.bf16.msra.mxu0 0
      %5473 = vmatprep.subr.bf16.mxu0 0
      %5474 = vmatpush1.bf16.msra.mxu0 0
      %5475 = vmatprep.subr.bf16.mxu0 0
      %5476 = vmatpush1.bf16.msra.mxu0 0
      %5477 = vmatprep.subr.bf16.mxu0 0
      %5478 = vmatpush1.bf16.msra.mxu0 0
      %5479 = vmatprep.subr.bf16.mxu0 0
      %5480 = vmatpush1.bf16.msra.mxu0 0
      %5481 = vmatprep.subr.bf16.mxu0 0
      %5482 = vmatpush1.bf16.msra.mxu0 0
      %5483 = vmatprep.subr.bf16.mxu0 0
      %5484 = vmatpush1.bf16.msra.mxu0 0
      %5485 = vmatprep.subr.bf16.mxu0 0
      %5486 = vmatpush1.bf16.msra.mxu0 0
      %5487 = vmatprep.subr.bf16.mxu0 0
      %5488 = vmatpush1.bf16.msra.mxu0 0
      %5489 = vmatprep.subr.bf16.mxu0 0
      %5490 = vmatpush1.bf16.msra.mxu0 0
      %5491 = vmatprep.subr.bf16.mxu0 0
      %5492 = vmatpush1.bf16.msra.mxu0 0
      %5493 = vmatprep.subr.bf16.mxu0 0
      %5494 = vmatpush1.bf16.msra.mxu0 0
      %5495 = vmatprep.mubr.bf16.mxu0 0
      %5496 = vmatmul.mubr.bf16.gmra.mrb[0].mxu0 %v5449
      %v5497 = vpop.f32.mrb[0].mxu0
      %v5498 = vadd.f32 0.0, %v5497
      %v5499 = vpop.f32.mrb[0].mxu0
      %v5500 = vadd.f32 0.0, %v5499
      %v5501 = vpop.f32.mrb[0].mxu0
      %v5502 = vpop.f32.mrb[0].mxu0
      %5503 = vdwg.mxu0
      %5504 = vmatprep.subr.bf16.mxu0 %v5461
      %5505 = vmatpush1.bf16.msra.mxu0 %v5458
      %5506 = vmatprep.subr.bf16.mxu0 0
      %5507 = vmatpush1.bf16.msra.mxu0 0
      %5508 = vmatprep.subr.bf16.mxu0 0
      %5509 = vmatpush1.bf16.msra.mxu0 0
      %5510 = vmatprep.subr.bf16.mxu0 0
      %5511 = vmatpush1.bf16.msra.mxu0 0
      %5512 = vmatprep.subr.bf16.mxu0 0
      %5513 = vmatpush1.bf16.msra.mxu0 0
      %5514 = vmatprep.subr.bf16.mxu0 0
      %5515 = vmatpush1.bf16.msra.mxu0 0
      %5516 = vmatprep.subr.bf16.mxu0 0
      %5517 = vmatpush1.bf16.msra.mxu0 0
      %5518 = vmatprep.subr.bf16.mxu0 0
      %5519 = vmatpush1.bf16.msra.mxu0 0
      %5520 = vmatprep.subr.bf16.mxu0 0
      %5521 = vmatpush1.bf16.msra.mxu0 0
      %5522 = vmatprep.subr.bf16.mxu0 0
      %5523 = vmatpush1.bf16.msra.mxu0 0
      %5524 = vmatprep.subr.bf16.mxu0 0
      %5525 = vmatpush1.bf16.msra.mxu0 0
      %5526 = vmatprep.subr.bf16.mxu0 0
      %5527 = vmatpush1.bf16.msra.mxu0 0
      %5528 = vmatprep.subr.bf16.mxu0 0
      %5529 = vmatpush1.bf16.msra.mxu0 0
      %5530 = vmatprep.subr.bf16.mxu0 0
      %5531 = vmatpush1.bf16.msra.mxu0 0
      %5532 = vmatprep.subr.bf16.mxu0 0
      %5533 = vmatpush1.bf16.msra.mxu0 0
      %5534 = vmatprep.subr.bf16.mxu0 0
      %5535 = vmatpush1.bf16.msra.mxu0 0
      %5536 = vmatprep.mubr.bf16.mxu0 0
      %5537 = vmatmul.mubr.bf16.gmra.mrb[0].mxu0 %v5449
      %v5538 = vpop.f32.mrb[0].mxu0
      %v5539 = vadd.f32 0.0, %v5538
      %v5540 = vpop.f32.mrb[0].mxu0
      %v5541 = vadd.f32 0.0, %v5540
      %v5542 = vpop.f32.mrb[0].mxu0
      %v5543 = vpop.f32.mrb[0].mxu0
      %5544 = vdwg.mxu0
      %v5545 = vadd.f32 %v5431, %v5498
      %v5546 = vadd.f32 %v5432, %v5500
      %v5547 = vadd.f32 %v5433, %v5539
      %v5548 = vadd.f32 %v5434, %v5541
      %s5549 = scalar_lea.vmem %s2, 72
      %v5550 = vld [vmem:[%s5549] sm:$0xf]
      %5551 = vrot.lane.b32.xlu0 %v4987, 39
      %v5552 = vpop.permute.xlu0 %5551
      %5553 = vrot.lane.b32.xlu0 %v4988, 39
      %v5554 = vpop.permute.xlu0 %5553
      %5555 = vrot.lane.b32.xlu0 %v4989, 39
      %v5556 = vpop.permute.xlu0 %5555
      %5557 = vrot.lane.b32.xlu0 %v4990, 39
      %v5558 = vpop.permute.xlu0 %5557
      %vm5559 = vcmask 318464
      %v5560 = vsel %vm5559, %v5552, %v5554
      %v5561 = vsel %vm5559, %v5554, %v5556
      %v5562 = vsel %vm5559, %v5556, %v5558
      %v5564 = vsel %vm280, %v5550, 0
      %v5567 = vsel %vm284, %v5560, 0
      %v5570 = vsel %vm284, %v5561, 0
      %v5573 = vsel %vm284, %v5562, 0
      %v5576 = vsel %vm284, %v5558, 0
      %5578 = vmatprep.subr.bf16.mxu0 %v5570
      %5579 = vmatpush1.bf16.msra.mxu0 %v5567
      %5580 = vmatprep.subr.bf16.mxu0 0
      %5581 = vmatpush1.bf16.msra.mxu0 0
      %5582 = vmatprep.subr.bf16.mxu0 0
      %5583 = vmatpush1.bf16.msra.mxu0 0
      %5584 = vmatprep.subr.bf16.mxu0 0
      %5585 = vmatpush1.bf16.msra.mxu0 0
      %5586 = vmatprep.subr.bf16.mxu0 0
      %5587 = vmatpush1.bf16.msra.mxu0 0
      %5588 = vmatprep.subr.bf16.mxu0 0
      %5589 = vmatpush1.bf16.msra.mxu0 0
      %5590 = vmatprep.subr.bf16.mxu0 0
      %5591 = vmatpush1.bf16.msra.mxu0 0
      %5592 = vmatprep.subr.bf16.mxu0 0
      %5593 = vmatpush1.bf16.msra.mxu0 0
      %5594 = vmatprep.subr.bf16.mxu0 0
      %5595 = vmatpush1.bf16.msra.mxu0 0
      %5596 = vmatprep.subr.bf16.mxu0 0
      %5597 = vmatpush1.bf16.msra.mxu0 0
      %5598 = vmatprep.subr.bf16.mxu0 0
      %5599 = vmatpush1.bf16.msra.mxu0 0
      %5600 = vmatprep.subr.bf16.mxu0 0
      %5601 = vmatpush1.bf16.msra.mxu0 0
      %5602 = vmatprep.subr.bf16.mxu0 0
      %5603 = vmatpush1.bf16.msra.mxu0 0
      %5604 = vmatprep.subr.bf16.mxu0 0
      %5605 = vmatpush1.bf16.msra.mxu0 0
      %5606 = vmatprep.subr.bf16.mxu0 0
      %5607 = vmatpush1.bf16.msra.mxu0 0
      %5608 = vmatprep.subr.bf16.mxu0 0
      %5609 = vmatpush1.bf16.msra.mxu0 0
      %5610 = vmatprep.mubr.bf16.mxu0 0
      %5611 = vmatmul.mubr.bf16.gmra.mrb[0].mxu0 %v5564
      %v5612 = vpop.f32.mrb[0].mxu0
      %v5613 = vadd.f32 0.0, %v5612
      %v5614 = vpop.f32.mrb[0].mxu0
      %v5615 = vadd.f32 0.0, %v5614
      %v5616 = vpop.f32.mrb[0].mxu0
      %v5617 = vpop.f32.mrb[0].mxu0
      %5618 = vdwg.mxu0
      %5619 = vmatprep.subr.bf16.mxu0 %v5576
      %5620 = vmatpush1.bf16.msra.mxu0 %v5573
      %5621 = vmatprep.subr.bf16.mxu0 0
      %5622 = vmatpush1.bf16.msra.mxu0 0
      %5623 = vmatprep.subr.bf16.mxu0 0
      %5624 = vmatpush1.bf16.msra.mxu0 0
      %5625 = vmatprep.subr.bf16.mxu0 0
      %5626 = vmatpush1.bf16.msra.mxu0 0
      %5627 = vmatprep.subr.bf16.mxu0 0
      %5628 = vmatpush1.bf16.msra.mxu0 0
      %5629 = vmatprep.subr.bf16.mxu0 0
      %5630 = vmatpush1.bf16.msra.mxu0 0
      %5631 = vmatprep.subr.bf16.mxu0 0
      %5632 = vmatpush1.bf16.msra.mxu0 0
      %5633 = vmatprep.subr.bf16.mxu0 0
      %5634 = vmatpush1.bf16.msra.mxu0 0
      %5635 = vmatprep.subr.bf16.mxu0 0
      %5636 = vmatpush1.bf16.msra.mxu0 0
      %5637 = vmatprep.subr.bf16.mxu0 0
      %5638 = vmatpush1.bf16.msra.mxu0 0
      %5639 = vmatprep.subr.bf16.mxu0 0
      %5640 = vmatpush1.bf16.msra.mxu0 0
      %5641 = vmatprep.subr.bf16.mxu0 0
      %5642 = vmatpush1.bf16.msra.mxu0 0
      %5643 = vmatprep.subr.bf16.mxu0 0
      %5644 = vmatpush1.bf16.msra.mxu0 0
      %5645 = vmatprep.subr.bf16.mxu0 0
      %5646 = vmatpush1.bf16.msra.mxu0 0
      %5647 = vmatprep.subr.bf16.mxu0 0
      %5648 = vmatpush1.bf16.msra.mxu0 0
      %5649 = vmatprep.subr.bf16.mxu0 0
      %5650 = vmatpush1.bf16.msra.mxu0 0
      %5651 = vmatprep.mubr.bf16.mxu0 0
      %5652 = vmatmul.mubr.bf16.gmra.mrb[0].mxu0 %v5564
      %v5653 = vpop.f32.mrb[0].mxu0
      %v5654 = vadd.f32 0.0, %v5653
      %v5655 = vpop.f32.mrb[0].mxu0
      %v5656 = vadd.f32 0.0, %v5655
      %v5657 = vpop.f32.mrb[0].mxu0
      %v5658 = vpop.f32.mrb[0].mxu0
      %5659 = vdwg.mxu0
      %v5660 = vadd.f32 %v5545, %v5613
      %v5661 = vadd.f32 %v5546, %v5615
      %v5662 = vadd.f32 %v5547, %v5654
      %v5663 = vadd.f32 %v5548, %v5656
      %s5664 = scalar_lea.vmem %s2, 76
      %v5665 = vld [vmem:[%s5664] sm:$0xf]
      %5666 = vrot.lane.b32.xlu0 %v4987, 38
      %v5667 = vpop.permute.xlu0 %5666
      %5668 = vrot.lane.b32.xlu0 %v4988, 38
      %v5669 = vpop.permute.xlu0 %5668
      %5670 = vrot.lane.b32.xlu0 %v4989, 38
      %v5671 = vpop.permute.xlu0 %5670
      %5672 = vrot.lane.b32.xlu0 %v4990, 38
      %v5673 = vpop.permute.xlu0 %5672
      %vm5674 = vcmask 310272
      %v5675 = vsel %vm5674, %v5667, %v5669
      %v5676 = vsel %vm5674, %v5669, %v5671
      %v5677 = vsel %vm5674, %v5671, %v5673
      %v5679 = vsel %vm280, %v5665, 0
      %v5682 = vsel %vm284, %v5675, 0
      %v5685 = vsel %vm284, %v5676, 0
      %v5688 = vsel %vm284, %v5677, 0
      %v5691 = vsel %vm284, %v5673, 0
      %5693 = vmatprep.subr.bf16.mxu0 %v5685
      %5694 = vmatpush1.bf16.msra.mxu0 %v5682
      %5695 = vmatprep.subr.bf16.mxu0 0
      %5696 = vmatpush1.bf16.msra.mxu0 0
      %5697 = vmatprep.subr.bf16.mxu0 0
      %5698 = vmatpush1.bf16.msra.mxu0 0
      %5699 = vmatprep.subr.bf16.mxu0 0
      %5700 = vmatpush1.bf16.msra.mxu0 0
      %5701 = vmatprep.subr.bf16.mxu0 0
      %5702 = vmatpush1.bf16.msra.mxu0 0
      %5703 = vmatprep.subr.bf16.mxu0 0
      %5704 = vmatpush1.bf16.msra.mxu0 0
      %5705 = vmatprep.subr.bf16.mxu0 0
      %5706 = vmatpush1.bf16.msra.mxu0 0
      %5707 = vmatprep.subr.bf16.mxu0 0
      %5708 = vmatpush1.bf16.msra.mxu0 0
      %5709 = vmatprep.subr.bf16.mxu0 0
      %5710 = vmatpush1.bf16.msra.mxu0 0
      %5711 = vmatprep.subr.bf16.mxu0 0
      %5712 = vmatpush1.bf16.msra.mxu0 0
      %5713 = vmatprep.subr.bf16.mxu0 0
      %5714 = vmatpush1.bf16.msra.mxu0 0
      %5715 = vmatprep.subr.bf16.mxu0 0
      %5716 = vmatpush1.bf16.msra.mxu0 0
      %5717 = vmatprep.subr.bf16.mxu0 0
      %5718 = vmatpush1.bf16.msra.mxu0 0
      %5719 = vmatprep.subr.bf16.mxu0 0
      %5720 = vmatpush1.bf16.msra.mxu0 0
      %5721 = vmatprep.subr.bf16.mxu0 0
      %5722 = vmatpush1.bf16.msra.mxu0 0
      %5723 = vmatprep.subr.bf16.mxu0 0
      %5724 = vmatpush1.bf16.msra.mxu0 0
      %5725 = vmatprep.mubr.bf16.mxu0 0
      %5726 = vmatmul.mubr.bf16.gmra.mrb[0].mxu0 %v5679
      %v5727 = vpop.f32.mrb[0].mxu0
      %v5728 = vadd.f32 0.0, %v5727
      %v5729 = vpop.f32.mrb[0].mxu0
      %v5730 = vadd.f32 0.0, %v5729
      %v5731 = vpop.f32.mrb[0].mxu0
      %v5732 = vpop.f32.mrb[0].mxu0
      %5733 = vdwg.mxu0
      %5734 = vmatprep.subr.bf16.mxu0 %v5691
      %5735 = vmatpush1.bf16.msra.mxu0 %v5688
      %5736 = vmatprep.subr.bf16.mxu0 0
      %5737 = vmatpush1.bf16.msra.mxu0 0
      %5738 = vmatprep.subr.bf16.mxu0 0
      %5739 = vmatpush1.bf16.msra.mxu0 0
      %5740 = vmatprep.subr.bf16.mxu0 0
      %5741 = vmatpush1.bf16.msra.mxu0 0
      %5742 = vmatprep.subr.bf16.mxu0 0
      %5743 = vmatpush1.bf16.msra.mxu0 0
      %5744 = vmatprep.subr.bf16.mxu0 0
      %5745 = vmatpush1.bf16.msra.mxu0 0
      %5746 = vmatprep.subr.bf16.mxu0 0
      %5747 = vmatpush1.bf16.msra.mxu0 0
      %5748 = vmatprep.subr.bf16.mxu0 0
      %5749 = vmatpush1.bf16.msra.mxu0 0
      %5750 = vmatprep.subr.bf16.mxu0 0
      %5751 = vmatpush1.bf16.msra.mxu0 0
      %5752 = vmatprep.subr.bf16.mxu0 0
      %5753 = vmatpush1.bf16.msra.mxu0 0
      %5754 = vmatprep.subr.bf16.mxu0 0
      %5755 = vmatpush1.bf16.msra.mxu0 0
      %5756 = vmatprep.subr.bf16.mxu0 0
      %5757 = vmatpush1.bf16.msra.mxu0 0
      %5758 = vmatprep.subr.bf16.mxu0 0
      %5759 = vmatpush1.bf16.msra.mxu0 0
      %5760 = vmatprep.subr.bf16.mxu0 0
      %5761 = vmatpush1.bf16.msra.mxu0 0
      %5762 = vmatprep.subr.bf16.mxu0 0
      %5763 = vmatpush1.bf16.msra.mxu0 0
      %5764 = vmatprep.subr.bf16.mxu0 0
      %5765 = vmatpush1.bf16.msra.mxu0 0
      %5766 = vmatprep.mubr.bf16.mxu0 0
      %5767 = vmatmul.mubr.bf16.gmra.mrb[0].mxu0 %v5679
      %v5768 = vpop.f32.mrb[0].mxu0
      %v5769 = vadd.f32 0.0, %v5768
      %v5770 = vpop.f32.mrb[0].mxu0
      %v5771 = vadd.f32 0.0, %v5770
      %v5772 = vpop.f32.mrb[0].mxu0
      %v5773 = vpop.f32.mrb[0].mxu0
      %5774 = vdwg.mxu0
      %v5775 = vadd.f32 %v5660, %v5728
      %v5776 = vadd.f32 %v5661, %v5730
      %v5777 = vadd.f32 %v5662, %v5769
      %v5778 = vadd.f32 %v5663, %v5771
      %s5779 = scalar_lea.vmem %s2, 80
      %v5780 = vld [vmem:[%s5779] sm:$0xf]
      %5781 = vrot.lane.b32.xlu0 %v4987, 37
      %v5782 = vpop.permute.xlu0 %5781
      %5783 = vrot.lane.b32.xlu0 %v4988, 37
      %v5784 = vpop.permute.xlu0 %5783
      %5785 = vrot.lane.b32.xlu0 %v4989, 37
      %v5786 = vpop.permute.xlu0 %5785
      %5787 = vrot.lane.b32.xlu0 %v4990, 37
      %v5788 = vpop.permute.xlu0 %5787
      %vm5789 = vcmask 302080
      %v5790 = vsel %vm5789, %v5782, %v5784
      %v5791 = vsel %vm5789, %v5784, %v5786
      %v5792 = vsel %vm5789, %v5786, %v5788
      %v5794 = vsel %vm280, %v5780, 0
      %v5797 = vsel %vm284, %v5790, 0
      %v5800 = vsel %vm284, %v5791, 0
      %v5803 = vsel %vm284, %v5792, 0
      %v5806 = vsel %vm284, %v5788, 0
      %5808 = vmatprep.subr.bf16.mxu0 %v5800
      %5809 = vmatpush1.bf16.msra.mxu0 %v5797
      %5810 = vmatprep.subr.bf16.mxu0 0
      %5811 = vmatpush1.bf16.msra.mxu0 0
      %5812 = vmatprep.subr.bf16.mxu0 0
      %5813 = vmatpush1.bf16.msra.mxu0 0
      %5814 = vmatprep.subr.bf16.mxu0 0
      %5815 = vmatpush1.bf16.msra.mxu0 0
      %5816 = vmatprep.subr.bf16.mxu0 0
      %5817 = vmatpush1.bf16.msra.mxu0 0
      %5818 = vmatprep.subr.bf16.mxu0 0
      %5819 = vmatpush1.bf16.msra.mxu0 0
      %5820 = vmatprep.subr.bf16.mxu0 0
      %5821 = vmatpush1.bf16.msra.mxu0 0
      %5822 = vmatprep.subr.bf16.mxu0 0
      %5823 = vmatpush1.bf16.msra.mxu0 0
      %5824 = vmatprep.subr.bf16.mxu0 0
      %5825 = vmatpush1.bf16.msra.mxu0 0
      %5826 = vmatprep.subr.bf16.mxu0 0
      %5827 = vmatpush1.bf16.msra.mxu0 0
      %5828 = vmatprep.subr.bf16.mxu0 0
      %5829 = vmatpush1.bf16.msra.mxu0 0
      %5830 = vmatprep.subr.bf16.mxu0 0
      %5831 = vmatpush1.bf16.msra.mxu0 0
      %5832 = vmatprep.subr.bf16.mxu0 0
      %5833 = vmatpush1.bf16.msra.mxu0 0
      %5834 = vmatprep.subr.bf16.mxu0 0
      %5835 = vmatpush1.bf16.msra.mxu0 0
      %5836 = vmatprep.subr.bf16.mxu0 0
      %5837 = vmatpush1.bf16.msra.mxu0 0
      %5838 = vmatprep.subr.bf16.mxu0 0
      %5839 = vmatpush1.bf16.msra.mxu0 0
      %5840 = vmatprep.mubr.bf16.mxu0 0
      %5841 = vmatmul.mubr.bf16.gmra.mrb[0].mxu0 %v5794
      %v5842 = vpop.f32.mrb[0].mxu0
      %v5843 = vadd.f32 0.0, %v5842
      %v5844 = vpop.f32.mrb[0].mxu0
      %v5845 = vadd.f32 0.0, %v5844
      %v5846 = vpop.f32.mrb[0].mxu0
      %v5847 = vpop.f32.mrb[0].mxu0
      %5848 = vdwg.mxu0
      %5849 = vmatprep.subr.bf16.mxu0 %v5806
      %5850 = vmatpush1.bf16.msra.mxu0 %v5803
      %5851 = vmatprep.subr.bf16.mxu0 0
      %5852 = vmatpush1.bf16.msra.mxu0 0
      %5853 = vmatprep.subr.bf16.mxu0 0
      %5854 = vmatpush1.bf16.msra.mxu0 0
      %5855 = vmatprep.subr.bf16.mxu0 0
      %5856 = vmatpush1.bf16.msra.mxu0 0
      %5857 = vmatprep.subr.bf16.mxu0 0
      %5858 = vmatpush1.bf16.msra.mxu0 0
      %5859 = vmatprep.subr.bf16.mxu0 0
      %5860 = vmatpush1.bf16.msra.mxu0 0
      %5861 = vmatprep.subr.bf16.mxu0 0
      %5862 = vmatpush1.bf16.msra.mxu0 0
      %5863 = vmatprep.subr.bf16.mxu0 0
      %5864 = vmatpush1.bf16.msra.mxu0 0
      %5865 = vmatprep.subr.bf16.mxu0 0
      %5866 = vmatpush1.bf16.msra.mxu0 0
      %5867 = vmatprep.subr.bf16.mxu0 0
      %5868 = vmatpush1.bf16.msra.mxu0 0
      %5869 = vmatprep.subr.bf16.mxu0 0
      %5870 = vmatpush1.bf16.msra.mxu0 0
      %5871 = vmatprep.subr.bf16.mxu0 0
      %5872 = vmatpush1.bf16.msra.mxu0 0
      %5873 = vmatprep.subr.bf16.mxu0 0
      %5874 = vmatpush1.bf16.msra.mxu0 0
      %5875 = vmatprep.subr.bf16.mxu0 0
      %5876 = vmatpush1.bf16.msra.mxu0 0
      %5877 = vmatprep.subr.bf16.mxu0 0
      %5878 = vmatpush1.bf16.msra.mxu0 0
      %5879 = vmatprep.subr.bf16.mxu0 0
      %5880 = vmatpush1.bf16.msra.mxu0 0
      %5881 = vmatprep.mubr.bf16.mxu0 0
      %5882 = vmatmul.mubr.bf16.gmra.mrb[0].mxu0 %v5794
      %v5883 = vpop.f32.mrb[0].mxu0
      %v5884 = vadd.f32 0.0, %v5883
      %v5885 = vpop.f32.mrb[0].mxu0
      %v5886 = vadd.f32 0.0, %v5885
      %v5887 = vpop.f32.mrb[0].mxu0
      %v5888 = vpop.f32.mrb[0].mxu0
      %5889 = vdwg.mxu0
      %v5890 = vadd.f32 %v5775, %v5843
      %v5891 = vadd.f32 %v5776, %v5845
      %v5892 = vadd.f32 %v5777, %v5884
      %v5893 = vadd.f32 %v5778, %v5886
      %s5894 = scalar_lea.vmem %s2, 84
      %v5895 = vld [vmem:[%s5894] sm:$0xf]
      %5896 = vrot.lane.b32.xlu0 %v4987, 29
      %v5897 = vpop.permute.xlu0 %5896
      %5898 = vrot.lane.b32.xlu0 %v4988, 29
      %v5899 = vpop.permute.xlu0 %5898
      %5900 = vrot.lane.b32.xlu0 %v4989, 29
      %v5901 = vpop.permute.xlu0 %5900
      %5902 = vrot.lane.b32.xlu0 %v4990, 29
      %v5903 = vpop.permute.xlu0 %5902
      %vm5904 = vcmask 236544
      %v5905 = vsel %vm5904, %v5897, %v5899
      %v5906 = vsel %vm5904, %v5899, %v5901
      %v5907 = vsel %vm5904, %v5901, %v5903
      %v5909 = vsel %vm280, %v5895, 0
      %v5912 = vsel %vm284, %v5905, 0
      %v5915 = vsel %vm284, %v5906, 0
      %v5918 = vsel %vm284, %v5907, 0
      %v5921 = vsel %vm284, %v5903, 0
      %5923 = vmatprep.subr.bf16.mxu0 %v5915
      %5924 = vmatpush1.bf16.msra.mxu0 %v5912
      %5925 = vmatprep.subr.bf16.mxu0 0
      %5926 = vmatpush1.bf16.msra.mxu0 0
      %5927 = vmatprep.subr.bf16.mxu0 0
      %5928 = vmatpush1.bf16.msra.mxu0 0
      %5929 = vmatprep.subr.bf16.mxu0 0
      %5930 = vmatpush1.bf16.msra.mxu0 0
      %5931 = vmatprep.subr.bf16.mxu0 0
      %5932 = vmatpush1.bf16.msra.mxu0 0
      %5933 = vmatprep.subr.bf16.mxu0 0
      %5934 = vmatpush1.bf16.msra.mxu0 0
      %5935 = vmatprep.subr.bf16.mxu0 0
      %5936 = vmatpush1.bf16.msra.mxu0 0
      %5937 = vmatprep.subr.bf16.mxu0 0
      %5938 = vmatpush1.bf16.msra.mxu0 0
      %5939 = vmatprep.subr.bf16.mxu0 0
      %5940 = vmatpush1.bf16.msra.mxu0 0
      %5941 = vmatprep.subr.bf16.mxu0 0
      %5942 = vmatpush1.bf16.msra.mxu0 0
      %5943 = vmatprep.subr.bf16.mxu0 0
      %5944 = vmatpush1.bf16.msra.mxu0 0
      %5945 = vmatprep.subr.bf16.mxu0 0
      %5946 = vmatpush1.bf16.msra.mxu0 0
      %5947 = vmatprep.subr.bf16.mxu0 0
      %5948 = vmatpush1.bf16.msra.mxu0 0
      %5949 = vmatprep.subr.bf16.mxu0 0
      %5950 = vmatpush1.bf16.msra.mxu0 0
      %5951 = vmatprep.subr.bf16.mxu0 0
      %5952 = vmatpush1.bf16.msra.mxu0 0
      %5953 = vmatprep.subr.bf16.mxu0 0
      %5954 = vmatpush1.bf16.msra.mxu0 0
      %5955 = vmatprep.mubr.bf16.mxu0 0
      %5956 = vmatmul.mubr.bf16.gmra.mrb[0].mxu0 %v5909
      %v5957 = vpop.f32.mrb[0].mxu0
      %v5958 = vadd.f32 0.0, %v5957
      %v5959 = vpop.f32.mrb[0].mxu0
      %v5960 = vadd.f32 0.0, %v5959
      %v5961 = vpop.f32.mrb[0].mxu0
      %v5962 = vpop.f32.mrb[0].mxu0
      %5963 = vdwg.mxu0
      %5964 = vmatprep.subr.bf16.mxu0 %v5921
      %5965 = vmatpush1.bf16.msra.mxu0 %v5918
      %5966 = vmatprep.subr.bf16.mxu0 0
      %5967 = vmatpush1.bf16.msra.mxu0 0
      %5968 = vmatprep.subr.bf16.mxu0 0
      %5969 = vmatpush1.bf16.msra.mxu0 0
      %5970 = vmatprep.subr.bf16.mxu0 0
      %5971 = vmatpush1.bf16.msra.mxu0 0
      %5972 = vmatprep.subr.bf16.mxu0 0
      %5973 = vmatpush1.bf16.msra.mxu0 0
      %5974 = vmatprep.subr.bf16.mxu0 0
      %5975 = vmatpush1.bf16.msra.mxu0 0
      %5976 = vmatprep.subr.bf16.mxu0 0
      %5977 = vmatpush1.bf16.msra.mxu0 0
      %5978 = vmatprep.subr.bf16.mxu0 0
      %5979 = vmatpush1.bf16.msra.mxu0 0
      %5980 = vmatprep.subr.bf16.mxu0 0
      %5981 = vmatpush1.bf16.msra.mxu0 0
      %5982 = vmatprep.subr.bf16.mxu0 0
      %5983 = vmatpush1.bf16.msra.mxu0 0
      %5984 = vmatprep.subr.bf16.mxu0 0
      %5985 = vmatpush1.bf16.msra.mxu0 0
      %5986 = vmatprep.subr.bf16.mxu0 0
      %5987 = vmatpush1.bf16.msra.mxu0 0
      %5988 = vmatprep.subr.bf16.mxu0 0
      %5989 = vmatpush1.bf16.msra.mxu0 0
      %5990 = vmatprep.subr.bf16.mxu0 0
      %5991 = vmatpush1.bf16.msra.mxu0 0
      %5992 = vmatprep.subr.bf16.mxu0 0
      %5993 = vmatpush1.bf16.msra.mxu0 0
      %5994 = vmatprep.subr.bf16.mxu0 0
      %5995 = vmatpush1.bf16.msra.mxu0 0
      %5996 = vmatprep.mubr.bf16.mxu0 0
      %5997 = vmatmul.mubr.bf16.gmra.mrb[0].mxu0 %v5909
      %v5998 = vpop.f32.mrb[0].mxu0
      %v5999 = vadd.f32 0.0, %v5998
      %v6000 = vpop.f32.mrb[0].mxu0
      %v6001 = vadd.f32 0.0, %v6000
      %v6002 = vpop.f32.mrb[0].mxu0
      %v6003 = vpop.f32.mrb[0].mxu0
      %6004 = vdwg.mxu0
      %v6005 = vadd.f32 %v5890, %v5958
      %v6006 = vadd.f32 %v5891, %v5960
      %v6007 = vadd.f32 %v5892, %v5999
      %v6008 = vadd.f32 %v5893, %v6001
      %s6009 = scalar_lea.vmem %s2, 88
      %v6010 = vld [vmem:[%s6009] sm:$0xf]
      %6011 = vrot.lane.b32.xlu0 %v4987, 28
      %v6012 = vpop.permute.xlu0 %6011
      %6013 = vrot.lane.b32.xlu0 %v4988, 28
      %v6014 = vpop.permute.xlu0 %6013
      %6015 = vrot.lane.b32.xlu0 %v4989, 28
      %v6016 = vpop.permute.xlu0 %6015
      %6017 = vrot.lane.b32.xlu0 %v4990, 28
      %v6018 = vpop.permute.xlu0 %6017
      %v6019 = vsel %vm1291, %v6012, %v6014
      %v6020 = vsel %vm1291, %v6014, %v6016
      %v6021 = vsel %vm1291, %v6016, %v6018
      %v6023 = vsel %vm280, %v6010, 0
      %v6026 = vsel %vm284, %v6019, 0
      %v6029 = vsel %vm284, %v6020, 0
      %v6032 = vsel %vm284, %v6021, 0
      %v6035 = vsel %vm284, %v6018, 0
      %6037 = vmatprep.subr.bf16.mxu0 %v6029
      %6038 = vmatpush1.bf16.msra.mxu0 %v6026
      %6039 = vmatprep.subr.bf16.mxu0 0
      %6040 = vmatpush1.bf16.msra.mxu0 0
      %6041 = vmatprep.subr.bf16.mxu0 0
      %6042 = vmatpush1.bf16.msra.mxu0 0
      %6043 = vmatprep.subr.bf16.mxu0 0
      %6044 = vmatpush1.bf16.msra.mxu0 0
      %6045 = vmatprep.subr.bf16.mxu0 0
      %6046 = vmatpush1.bf16.msra.mxu0 0
      %6047 = vmatprep.subr.bf16.mxu0 0
      %6048 = vmatpush1.bf16.msra.mxu0 0
      %6049 = vmatprep.subr.bf16.mxu0 0
      %6050 = vmatpush1.bf16.msra.mxu0 0
      %6051 = vmatprep.subr.bf16.mxu0 0
      %6052 = vmatpush1.bf16.msra.mxu0 0
      %6053 = vmatprep.subr.bf16.mxu0 0
      %6054 = vmatpush1.bf16.msra.mxu0 0
      %6055 = vmatprep.subr.bf16.mxu0 0
      %6056 = vmatpush1.bf16.msra.mxu0 0
      %6057 = vmatprep.subr.bf16.mxu0 0
      %6058 = vmatpush1.bf16.msra.mxu0 0
      %6059 = vmatprep.subr.bf16.mxu0 0
      %6060 = vmatpush1.bf16.msra.mxu0 0
      %6061 = vmatprep.subr.bf16.mxu0 0
      %6062 = vmatpush1.bf16.msra.mxu0 0
      %6063 = vmatprep.subr.bf16.mxu0 0
      %6064 = vmatpush1.bf16.msra.mxu0 0
      %6065 = vmatprep.subr.bf16.mxu0 0
      %6066 = vmatpush1.bf16.msra.mxu0 0
      %6067 = vmatprep.subr.bf16.mxu0 0
      %6068 = vmatpush1.bf16.msra.mxu0 0
      %6069 = vmatprep.mubr.bf16.mxu0 0
      %6070 = vmatmul.mubr.bf16.gmra.mrb[0].mxu0 %v6023
      %v6071 = vpop.f32.mrb[0].mxu0
      %v6072 = vadd.f32 0.0, %v6071
      %v6073 = vpop.f32.mrb[0].mxu0
      %v6074 = vadd.f32 0.0, %v6073
      %v6075 = vpop.f32.mrb[0].mxu0
      %v6076 = vpop.f32.mrb[0].mxu0
      %6077 = vdwg.mxu0
      %6078 = vmatprep.subr.bf16.mxu0 %v6035
      %6079 = vmatpush1.bf16.msra.mxu0 %v6032
      %6080 = vmatprep.subr.bf16.mxu0 0
      %6081 = vmatpush1.bf16.msra.mxu0 0
      %6082 = vmatprep.subr.bf16.mxu0 0
      %6083 = vmatpush1.bf16.msra.mxu0 0
      %6084 = vmatprep.subr.bf16.mxu0 0
      %6085 = vmatpush1.bf16.msra.mxu0 0
      %6086 = vmatprep.subr.bf16.mxu0 0
      %6087 = vmatpush1.bf16.msra.mxu0 0
      %6088 = vmatprep.subr.bf16.mxu0 0
      %6089 = vmatpush1.bf16.msra.mxu0 0
      %6090 = vmatprep.subr.bf16.mxu0 0
      %6091 = vmatpush1.bf16.msra.mxu0 0
      %6092 = vmatprep.subr.bf16.mxu0 0
      %6093 = vmatpush1.bf16.msra.mxu0 0
      %6094 = vmatprep.subr.bf16.mxu0 0
      %6095 = vmatpush1.bf16.msra.mxu0 0
      %6096 = vmatprep.subr.bf16.mxu0 0
      %6097 = vmatpush1.bf16.msra.mxu0 0
      %6098 = vmatprep.subr.bf16.mxu0 0
      %6099 = vmatpush1.bf16.msra.mxu0 0
      %6100 = vmatprep.subr.bf16.mxu0 0
      %6101 = vmatpush1.bf16.msra.mxu0 0
      %6102 = vmatprep.subr.bf16.mxu0 0
      %6103 = vmatpush1.bf16.msra.mxu0 0
      %6104 = vmatprep.subr.bf16.mxu0 0
      %6105 = vmatpush1.bf16.msra.mxu0 0
      %6106 = vmatprep.subr.bf16.mxu0 0
      %6107 = vmatpush1.bf16.msra.mxu0 0
      %6108 = vmatprep.subr.bf16.mxu0 0
      %6109 = vmatpush1.bf16.msra.mxu0 0
      %6110 = vmatprep.mubr.bf16.mxu0 0
      %6111 = vmatmul.mubr.bf16.gmra.mrb[0].mxu0 %v6023
      %v6112 = vpop.f32.mrb[0].mxu0
      %v6113 = vadd.f32 0.0, %v6112
      %v6114 = vpop.f32.mrb[0].mxu0
      %v6115 = vadd.f32 0.0, %v6114
      %v6116 = vpop.f32.mrb[0].mxu0
      %v6117 = vpop.f32.mrb[0].mxu0
      %6118 = vdwg.mxu0
      %v6119 = vadd.f32 %v6005, %v6072
      %v6120 = vadd.f32 %v6006, %v6074
      %v6121 = vadd.f32 %v6007, %v6113
      %v6122 = vadd.f32 %v6008, %v6115
      %s6123 = scalar_lea.vmem %s2, 92
      %v6124 = vld [vmem:[%s6123] sm:$0xf]
      %6125 = vrot.lane.b32.xlu0 %v4987, 27
      %v6126 = vpop.permute.xlu0 %6125
      %6127 = vrot.lane.b32.xlu0 %v4988, 27
      %v6128 = vpop.permute.xlu0 %6127
      %6129 = vrot.lane.b32.xlu0 %v4989, 27
      %v6130 = vpop.permute.xlu0 %6129
      %6131 = vrot.lane.b32.xlu0 %v4990, 27
      %v6132 = vpop.permute.xlu0 %6131
      %v6133 = vsel %vm1406, %v6126, %v6128
      %v6134 = vsel %vm1406, %v6128, %v6130
      %v6135 = vsel %vm1406, %v6130, %v6132
      %v6137 = vsel %vm280, %v6124, 0
      %v6140 = vsel %vm284, %v6133, 0
      %v6143 = vsel %vm284, %v6134, 0
      %v6146 = vsel %vm284, %v6135, 0
      %v6149 = vsel %vm284, %v6132, 0
      %6151 = vmatprep.subr.bf16.mxu0 %v6143
      %6152 = vmatpush1.bf16.msra.mxu0 %v6140
      %6153 = vmatprep.subr.bf16.mxu0 0
      %6154 = vmatpush1.bf16.msra.mxu0 0
      %6155 = vmatprep.subr.bf16.mxu0 0
      %6156 = vmatpush1.bf16.msra.mxu0 0
      %6157 = vmatprep.subr.bf16.mxu0 0
      %6158 = vmatpush1.bf16.msra.mxu0 0
      %6159 = vmatprep.subr.bf16.mxu0 0
      %6160 = vmatpush1.bf16.msra.mxu0 0
      %6161 = vmatprep.subr.bf16.mxu0 0
      %6162 = vmatpush1.bf16.msra.mxu0 0
      %6163 = vmatprep.subr.bf16.mxu0 0
      %6164 = vmatpush1.bf16.msra.mxu0 0
      %6165 = vmatprep.subr.bf16.mxu0 0
      %6166 = vmatpush1.bf16.msra.mxu0 0
      %6167 = vmatprep.subr.bf16.mxu0 0
      %6168 = vmatpush1.bf16.msra.mxu0 0
      %6169 = vmatprep.subr.bf16.mxu0 0
      %6170 = vmatpush1.bf16.msra.mxu0 0
      %6171 = vmatprep.subr.bf16.mxu0 0
      %6172 = vmatpush1.bf16.msra.mxu0 0
      %6173 = vmatprep.subr.bf16.mxu0 0
      %6174 = vmatpush1.bf16.msra.mxu0 0
      %6175 = vmatprep.subr.bf16.mxu0 0
      %6176 = vmatpush1.bf16.msra.mxu0 0
      %6177 = vmatprep.subr.bf16.mxu0 0
      %6178 = vmatpush1.bf16.msra.mxu0 0
      %6179 = vmatprep.subr.bf16.mxu0 0
      %6180 = vmatpush1.bf16.msra.mxu0 0
      %6181 = vmatprep.subr.bf16.mxu0 0
      %6182 = vmatpush1.bf16.msra.mxu0 0
      %6183 = vmatprep.mubr.bf16.mxu0 0
      %6184 = vmatmul.mubr.bf16.gmra.mrb[0].mxu0 %v6137
      %v6185 = vpop.f32.mrb[0].mxu0
      %v6186 = vadd.f32 0.0, %v6185
      %v6187 = vpop.f32.mrb[0].mxu0
      %v6188 = vadd.f32 0.0, %v6187
      %v6189 = vpop.f32.mrb[0].mxu0
      %v6190 = vpop.f32.mrb[0].mxu0
      %6191 = vdwg.mxu0
      %6192 = vmatprep.subr.bf16.mxu0 %v6149
      %6193 = vmatpush1.bf16.msra.mxu0 %v6146
      %6194 = vmatprep.subr.bf16.mxu0 0
      %6195 = vmatpush1.bf16.msra.mxu0 0
      %6196 = vmatprep.subr.bf16.mxu0 0
      %6197 = vmatpush1.bf16.msra.mxu0 0
      %6198 = vmatprep.subr.bf16.mxu0 0
      %6199 = vmatpush1.bf16.msra.mxu0 0
      %6200 = vmatprep.subr.bf16.mxu0 0
      %6201 = vmatpush1.bf16.msra.mxu0 0
      %6202 = vmatprep.subr.bf16.mxu0 0
      %6203 = vmatpush1.bf16.msra.mxu0 0
      %6204 = vmatprep.subr.bf16.mxu0 0
      %6205 = vmatpush1.bf16.msra.mxu0 0
      %6206 = vmatprep.subr.bf16.mxu0 0
      %6207 = vmatpush1.bf16.msra.mxu0 0
      %6208 = vmatprep.subr.bf16.mxu0 0
      %6209 = vmatpush1.bf16.msra.mxu0 0
      %6210 = vmatprep.subr.bf16.mxu0 0
      %6211 = vmatpush1.bf16.msra.mxu0 0
      %6212 = vmatprep.subr.bf16.mxu0 0
      %6213 = vmatpush1.bf16.msra.mxu0 0
      %6214 = vmatprep.subr.bf16.mxu0 0
      %6215 = vmatpush1.bf16.msra.mxu0 0
      %6216 = vmatprep.subr.bf16.mxu0 0
      %6217 = vmatpush1.bf16.msra.mxu0 0
      %6218 = vmatprep.subr.bf16.mxu0 0
      %6219 = vmatpush1.bf16.msra.mxu0 0
      %6220 = vmatprep.subr.bf16.mxu0 0
      %6221 = vmatpush1.bf16.msra.mxu0 0
      %6222 = vmatprep.subr.bf16.mxu0 0
      %6223 = vmatpush1.bf16.msra.mxu0 0
      %6224 = vmatprep.mubr.bf16.mxu0 0
      %6225 = vmatmul.mubr.bf16.gmra.mrb[0].mxu0 %v6137
      %v6226 = vpop.f32.mrb[0].mxu0
      %v6227 = vadd.f32 0.0, %v6226
      %v6228 = vpop.f32.mrb[0].mxu0
      %v6229 = vadd.f32 0.0, %v6228
      %v6230 = vpop.f32.mrb[0].mxu0
      %v6231 = vpop.f32.mrb[0].mxu0
      %6232 = vdwg.mxu0
      %v6233 = vadd.f32 %v6119, %v6186
      %v6234 = vadd.f32 %v6120, %v6188
      %v6235 = vadd.f32 %v6121, %v6227
      %v6236 = vadd.f32 %v6122, %v6229
      %s6237 = scalar_lea.vmem %s2, 96
      %v6238 = vld [vmem:[%s6237] sm:$0xf]
      %6239 = vrot.lane.b32.xlu0 %v4987, 19
      %v6240 = vpop.permute.xlu0 %6239
      %6241 = vrot.lane.b32.xlu0 %v4988, 19
      %v6242 = vpop.permute.xlu0 %6241
      %6243 = vrot.lane.b32.xlu0 %v4989, 19
      %v6244 = vpop.permute.xlu0 %6243
      %6245 = vrot.lane.b32.xlu0 %v4990, 19
      %v6246 = vpop.permute.xlu0 %6245
      %vm6247 = vcmask 154624
      %v6248 = vsel %vm6247, %v6240, %v6242
      %v6249 = vsel %vm6247, %v6242, %v6244
      %v6250 = vsel %vm6247, %v6244, %v6246
      %v6252 = vsel %vm280, %v6238, 0
      %v6255 = vsel %vm284, %v6248, 0
      %v6258 = vsel %vm284, %v6249, 0
      %v6261 = vsel %vm284, %v6250, 0
      %v6264 = vsel %vm284, %v6246, 0
      %6266 = vmatprep.subr.bf16.mxu0 %v6258
      %6267 = vmatpush1.bf16.msra.mxu0 %v6255
      %6268 = vmatprep.subr.bf16.mxu0 0
      %6269 = vmatpush1.bf16.msra.mxu0 0
      %6270 = vmatprep.subr.bf16.mxu0 0
      %6271 = vmatpush1.bf16.msra.mxu0 0
      %6272 = vmatprep.subr.bf16.mxu0 0
      %6273 = vmatpush1.bf16.msra.mxu0 0
      %6274 = vmatprep.subr.bf16.mxu0 0
      %6275 = vmatpush1.bf16.msra.mxu0 0
      %6276 = vmatprep.subr.bf16.mxu0 0
      %6277 = vmatpush1.bf16.msra.mxu0 0
      %6278 = vmatprep.subr.bf16.mxu0 0
      %6279 = vmatpush1.bf16.msra.mxu0 0
      %6280 = vmatprep.subr.bf16.mxu0 0
      %6281 = vmatpush1.bf16.msra.mxu0 0
      %6282 = vmatprep.subr.bf16.mxu0 0
      %6283 = vmatpush1.bf16.msra.mxu0 0
      %6284 = vmatprep.subr.bf16.mxu0 0
      %6285 = vmatpush1.bf16.msra.mxu0 0
      %6286 = vmatprep.subr.bf16.mxu0 0
      %6287 = vmatpush1.bf16.msra.mxu0 0
      %6288 = vmatprep.subr.bf16.mxu0 0
      %6289 = vmatpush1.bf16.msra.mxu0 0
      %6290 = vmatprep.subr.bf16.mxu0 0
      %6291 = vmatpush1.bf16.msra.mxu0 0
      %6292 = vmatprep.subr.bf16.mxu0 0
      %6293 = vmatpush1.bf16.msra.mxu0 0
      %6294 = vmatprep.subr.bf16.mxu0 0
      %6295 = vmatpush1.bf16.msra.mxu0 0
      %6296 = vmatprep.subr.bf16.mxu0 0
      %6297 = vmatpush1.bf16.msra.mxu0 0
      %6298 = vmatprep.mubr.bf16.mxu0 0
      %6299 = vmatmul.mubr.bf16.gmra.mrb[0].mxu0 %v6252
      %v6300 = vpop.f32.mrb[0].mxu0
      %v6301 = vadd.f32 0.0, %v6300
      %v6302 = vpop.f32.mrb[0].mxu0
      %v6303 = vadd.f32 0.0, %v6302
      %v6304 = vpop.f32.mrb[0].mxu0
      %v6305 = vpop.f32.mrb[0].mxu0
      %6306 = vdwg.mxu0
      %6307 = vmatprep.subr.bf16.mxu0 %v6264
      %6308 = vmatpush1.bf16.msra.mxu0 %v6261
      %6309 = vmatprep.subr.bf16.mxu0 0
      %6310 = vmatpush1.bf16.msra.mxu0 0
      %6311 = vmatprep.subr.bf16.mxu0 0
      %6312 = vmatpush1.bf16.msra.mxu0 0
      %6313 = vmatprep.subr.bf16.mxu0 0
      %6314 = vmatpush1.bf16.msra.mxu0 0
      %6315 = vmatprep.subr.bf16.mxu0 0
      %6316 = vmatpush1.bf16.msra.mxu0 0
      %6317 = vmatprep.subr.bf16.mxu0 0
      %6318 = vmatpush1.bf16.msra.mxu0 0
      %6319 = vmatprep.subr.bf16.mxu0 0
      %6320 = vmatpush1.bf16.msra.mxu0 0
      %6321 = vmatprep.subr.bf16.mxu0 0
      %6322 = vmatpush1.bf16.msra.mxu0 0
      %6323 = vmatprep.subr.bf16.mxu0 0
      %6324 = vmatpush1.bf16.msra.mxu0 0
      %6325 = vmatprep.subr.bf16.mxu0 0
      %6326 = vmatpush1.bf16.msra.mxu0 0
      %6327 = vmatprep.subr.bf16.mxu0 0
      %6328 = vmatpush1.bf16.msra.mxu0 0
      %6329 = vmatprep.subr.bf16.mxu0 0
      %6330 = vmatpush1.bf16.msra.mxu0 0
      %6331 = vmatprep.subr.bf16.mxu0 0
      %6332 = vmatpush1.bf16.msra.mxu0 0
      %6333 = vmatprep.subr.bf16.mxu0 0
      %6334 = vmatpush1.bf16.msra.mxu0 0
      %6335 = vmatprep.subr.bf16.mxu0 0
      %6336 = vmatpush1.bf16.msra.mxu0 0
      %6337 = vmatprep.subr.bf16.mxu0 0
      %6338 = vmatpush1.bf16.msra.mxu0 0
      %6339 = vmatprep.mubr.bf16.mxu0 0
      %6340 = vmatmul.mubr.bf16.gmra.mrb[0].mxu0 %v6252
      %v6341 = vpop.f32.mrb[0].mxu0
      %v6342 = vadd.f32 0.0, %v6341
      %v6343 = vpop.f32.mrb[0].mxu0
      %v6344 = vadd.f32 0.0, %v6343
      %v6345 = vpop.f32.mrb[0].mxu0
      %v6346 = vpop.f32.mrb[0].mxu0
      %6347 = vdwg.mxu0
      %v6348 = vadd.f32 %v6233, %v6301
      %v6349 = vadd.f32 %v6234, %v6303
      %v6350 = vadd.f32 %v6235, %v6342
      %v6351 = vadd.f32 %v6236, %v6344
      %s6352 = scalar_lea.vmem %s2, 100
      %v6353 = vld [vmem:[%s6352] sm:$0xf]
      %6354 = vrot.lane.b32.xlu0 %v4987, 18
      %v6355 = vpop.permute.xlu0 %6354
      %6356 = vrot.lane.b32.xlu0 %v4988, 18
      %v6357 = vpop.permute.xlu0 %6356
      %6358 = vrot.lane.b32.xlu0 %v4989, 18
      %v6359 = vpop.permute.xlu0 %6358
      %6360 = vrot.lane.b32.xlu0 %v4990, 18
      %v6361 = vpop.permute.xlu0 %6360
      %v6362 = vsel %vm1636, %v6355, %v6357
      %v6363 = vsel %vm1636, %v6357, %v6359
      %v6364 = vsel %vm1636, %v6359, %v6361
      %v6366 = vsel %vm280, %v6353, 0
      %v6369 = vsel %vm284, %v6362, 0
      %v6372 = vsel %vm284, %v6363, 0
      %v6375 = vsel %vm284, %v6364, 0
      %v6378 = vsel %vm284, %v6361, 0
      %6380 = vmatprep.subr.bf16.mxu0 %v6372
      %6381 = vmatpush1.bf16.msra.mxu0 %v6369
      %6382 = vmatprep.subr.bf16.mxu0 0
      %6383 = vmatpush1.bf16.msra.mxu0 0
      %6384 = vmatprep.subr.bf16.mxu0 0
      %6385 = vmatpush1.bf16.msra.mxu0 0
      %6386 = vmatprep.subr.bf16.mxu0 0
      %6387 = vmatpush1.bf16.msra.mxu0 0
      %6388 = vmatprep.subr.bf16.mxu0 0
      %6389 = vmatpush1.bf16.msra.mxu0 0
      %6390 = vmatprep.subr.bf16.mxu0 0
      %6391 = vmatpush1.bf16.msra.mxu0 0
      %6392 = vmatprep.subr.bf16.mxu0 0
      %6393 = vmatpush1.bf16.msra.mxu0 0
      %6394 = vmatprep.subr.bf16.mxu0 0
      %6395 = vmatpush1.bf16.msra.mxu0 0
      %6396 = vmatprep.subr.bf16.mxu0 0
      %6397 = vmatpush1.bf16.msra.mxu0 0
      %6398 = vmatprep.subr.bf16.mxu0 0
      %6399 = vmatpush1.bf16.msra.mxu0 0
      %6400 = vmatprep.subr.bf16.mxu0 0
      %6401 = vmatpush1.bf16.msra.mxu0 0
      %6402 = vmatprep.subr.bf16.mxu0 0
      %6403 = vmatpush1.bf16.msra.mxu0 0
      %6404 = vmatprep.subr.bf16.mxu0 0
      %6405 = vmatpush1.bf16.msra.mxu0 0
      %6406 = vmatprep.subr.bf16.mxu0 0
      %6407 = vmatpush1.bf16.msra.mxu0 0
      %6408 = vmatprep.subr.bf16.mxu0 0
      %6409 = vmatpush1.bf16.msra.mxu0 0
      %6410 = vmatprep.subr.bf16.mxu0 0
      %6411 = vmatpush1.bf16.msra.mxu0 0
      %6412 = vmatprep.mubr.bf16.mxu0 0
      %6413 = vmatmul.mubr.bf16.gmra.mrb[0].mxu0 %v6366
      %v6414 = vpop.f32.mrb[0].mxu0
      %v6415 = vadd.f32 0.0, %v6414
      %v6416 = vpop.f32.mrb[0].mxu0
      %v6417 = vadd.f32 0.0, %v6416
      %v6418 = vpop.f32.mrb[0].mxu0
      %v6419 = vpop.f32.mrb[0].mxu0
      %6420 = vdwg.mxu0
      %6421 = vmatprep.subr.bf16.mxu0 %v6378
      %6422 = vmatpush1.bf16.msra.mxu0 %v6375
      %6423 = vmatprep.subr.bf16.mxu0 0
      %6424 = vmatpush1.bf16.msra.mxu0 0
      %6425 = vmatprep.subr.bf16.mxu0 0
      %6426 = vmatpush1.bf16.msra.mxu0 0
      %6427 = vmatprep.subr.bf16.mxu0 0
      %6428 = vmatpush1.bf16.msra.mxu0 0
      %6429 = vmatprep.subr.bf16.mxu0 0
      %6430 = vmatpush1.bf16.msra.mxu0 0
      %6431 = vmatprep.subr.bf16.mxu0 0
      %6432 = vmatpush1.bf16.msra.mxu0 0
      %6433 = vmatprep.subr.bf16.mxu0 0
      %6434 = vmatpush1.bf16.msra.mxu0 0
      %6435 = vmatprep.subr.bf16.mxu0 0
      %6436 = vmatpush1.bf16.msra.mxu0 0
      %6437 = vmatprep.subr.bf16.mxu0 0
      %6438 = vmatpush1.bf16.msra.mxu0 0
      %6439 = vmatprep.subr.bf16.mxu0 0
      %6440 = vmatpush1.bf16.msra.mxu0 0
      %6441 = vmatprep.subr.bf16.mxu0 0
      %6442 = vmatpush1.bf16.msra.mxu0 0
      %6443 = vmatprep.subr.bf16.mxu0 0
      %6444 = vmatpush1.bf16.msra.mxu0 0
      %6445 = vmatprep.subr.bf16.mxu0 0
      %6446 = vmatpush1.bf16.msra.mxu0 0
      %6447 = vmatprep.subr.bf16.mxu0 0
      %6448 = vmatpush1.bf16.msra.mxu0 0
      %6449 = vmatprep.subr.bf16.mxu0 0
      %6450 = vmatpush1.bf16.msra.mxu0 0
      %6451 = vmatprep.subr.bf16.mxu0 0
      %6452 = vmatpush1.bf16.msra.mxu0 0
      %6453 = vmatprep.mubr.bf16.mxu0 0
      %6454 = vmatmul.mubr.bf16.gmra.mrb[0].mxu0 %v6366
      %v6455 = vpop.f32.mrb[0].mxu0
      %v6456 = vadd.f32 0.0, %v6455
      %v6457 = vpop.f32.mrb[0].mxu0
      %v6458 = vadd.f32 0.0, %v6457
      %v6459 = vpop.f32.mrb[0].mxu0
      %v6460 = vpop.f32.mrb[0].mxu0
      %6461 = vdwg.mxu0
      %v6462 = vadd.f32 %v6348, %v6415
      %v6463 = vadd.f32 %v6349, %v6417
      %v6464 = vadd.f32 %v6350, %v6456
      %v6465 = vadd.f32 %v6351, %v6458
      %s6466 = scalar_lea.vmem %s2, 104
      %v6467 = vld [vmem:[%s6466] sm:$0xf]
      %6468 = vrot.lane.b32.xlu0 %v4987, 17
      %v6469 = vpop.permute.xlu0 %6468
      %6470 = vrot.lane.b32.xlu0 %v4988, 17
      %v6471 = vpop.permute.xlu0 %6470
      %6472 = vrot.lane.b32.xlu0 %v4989, 17
      %v6473 = vpop.permute.xlu0 %6472
      %6474 = vrot.lane.b32.xlu0 %v4990, 17
      %v6475 = vpop.permute.xlu0 %6474
      %v6476 = vsel %vm1751, %v6469, %v6471
      %v6477 = vsel %vm1751, %v6471, %v6473
      %v6478 = vsel %vm1751, %v6473, %v6475
      %v6480 = vsel %vm280, %v6467, 0
      %v6483 = vsel %vm284, %v6476, 0
      %v6486 = vsel %vm284, %v6477, 0
      %v6489 = vsel %vm284, %v6478, 0
      %v6492 = vsel %vm284, %v6475, 0
      %6494 = vmatprep.subr.bf16.mxu0 %v6486
      %6495 = vmatpush1.bf16.msra.mxu0 %v6483
      %6496 = vmatprep.subr.bf16.mxu0 0
      %6497 = vmatpush1.bf16.msra.mxu0 0
      %6498 = vmatprep.subr.bf16.mxu0 0
      %6499 = vmatpush1.bf16.msra.mxu0 0
      %6500 = vmatprep.subr.bf16.mxu0 0
      %6501 = vmatpush1.bf16.msra.mxu0 0
      %6502 = vmatprep.subr.bf16.mxu0 0
      %6503 = vmatpush1.bf16.msra.mxu0 0
      %6504 = vmatprep.subr.bf16.mxu0 0
      %6505 = vmatpush1.bf16.msra.mxu0 0
      %6506 = vmatprep.subr.bf16.mxu0 0
      %6507 = vmatpush1.bf16.msra.mxu0 0
      %6508 = vmatprep.subr.bf16.mxu0 0
      %6509 = vmatpush1.bf16.msra.mxu0 0
      %6510 = vmatprep.subr.bf16.mxu0 0
      %6511 = vmatpush1.bf16.msra.mxu0 0
      %6512 = vmatprep.subr.bf16.mxu0 0
      %6513 = vmatpush1.bf16.msra.mxu0 0
      %6514 = vmatprep.subr.bf16.mxu0 0
      %6515 = vmatpush1.bf16.msra.mxu0 0
      %6516 = vmatprep.subr.bf16.mxu0 0
      %6517 = vmatpush1.bf16.msra.mxu0 0
      %6518 = vmatprep.subr.bf16.mxu0 0
      %6519 = vmatpush1.bf16.msra.mxu0 0
      %6520 = vmatprep.subr.bf16.mxu0 0
      %6521 = vmatpush1.bf16.msra.mxu0 0
      %6522 = vmatprep.subr.bf16.mxu0 0
      %6523 = vmatpush1.bf16.msra.mxu0 0
      %6524 = vmatprep.subr.bf16.mxu0 0
      %6525 = vmatpush1.bf16.msra.mxu0 0
      %6526 = vmatprep.mubr.bf16.mxu0 0
      %6527 = vmatmul.mubr.bf16.gmra.mrb[0].mxu0 %v6480
      %v6528 = vpop.f32.mrb[0].mxu0
      %v6529 = vadd.f32 0.0, %v6528
      %v6530 = vpop.f32.mrb[0].mxu0
      %v6531 = vadd.f32 0.0, %v6530
      %v6532 = vpop.f32.mrb[0].mxu0
      %v6533 = vpop.f32.mrb[0].mxu0
      %6534 = vdwg.mxu0
      %6535 = vmatprep.subr.bf16.mxu0 %v6492
      %6536 = vmatpush1.bf16.msra.mxu0 %v6489
      %6537 = vmatprep.subr.bf16.mxu0 0
      %6538 = vmatpush1.bf16.msra.mxu0 0
      %6539 = vmatprep.subr.bf16.mxu0 0
      %6540 = vmatpush1.bf16.msra.mxu0 0
      %6541 = vmatprep.subr.bf16.mxu0 0
      %6542 = vmatpush1.bf16.msra.mxu0 0
      %6543 = vmatprep.subr.bf16.mxu0 0
      %6544 = vmatpush1.bf16.msra.mxu0 0
      %6545 = vmatprep.subr.bf16.mxu0 0
      %6546 = vmatpush1.bf16.msra.mxu0 0
      %6547 = vmatprep.subr.bf16.mxu0 0
      %6548 = vmatpush1.bf16.msra.mxu0 0
      %6549 = vmatprep.subr.bf16.mxu0 0
      %6550 = vmatpush1.bf16.msra.mxu0 0
      %6551 = vmatprep.subr.bf16.mxu0 0
      %6552 = vmatpush1.bf16.msra.mxu0 0
      %6553 = vmatprep.subr.bf16.mxu0 0
      %6554 = vmatpush1.bf16.msra.mxu0 0
      %6555 = vmatprep.subr.bf16.mxu0 0
      %6556 = vmatpush1.bf16.msra.mxu0 0
      %6557 = vmatprep.subr.bf16.mxu0 0
      %6558 = vmatpush1.bf16.msra.mxu0 0
      %6559 = vmatprep.subr.bf16.mxu0 0
      %6560 = vmatpush1.bf16.msra.mxu0 0
      %6561 = vmatprep.subr.bf16.mxu0 0
      %6562 = vmatpush1.bf16.msra.mxu0 0
      %6563 = vmatprep.subr.bf16.mxu0 0
      %6564 = vmatpush1.bf16.msra.mxu0 0
      %6565 = vmatprep.subr.bf16.mxu0 0
      %6566 = vmatpush1.bf16.msra.mxu0 0
      %6567 = vmatprep.mubr.bf16.mxu0 0
      %6568 = vmatmul.mubr.bf16.gmra.mrb[0].mxu0 %v6480
      %v6569 = vpop.f32.mrb[0].mxu0
      %v6570 = vadd.f32 0.0, %v6569
      %v6571 = vpop.f32.mrb[0].mxu0
      %v6572 = vadd.f32 0.0, %v6571
      %v6573 = vpop.f32.mrb[0].mxu0
      %v6574 = vpop.f32.mrb[0].mxu0
      %6575 = vdwg.mxu0
      %v6576 = vadd.f32 %v6462, %v6529
      %v6577 = vadd.f32 %v6463, %v6531
      %v6578 = vadd.f32 %v6464, %v6570
      %v6579 = vadd.f32 %v6465, %v6572
      %v6580 = vld [vmem:[%s246] sm:$0xff]
      %v6581 = vld [vmem:[%s246 + $0x8] sm:$0xff]
      %v6582 = vunpack.c.l.bf16 %v6580
      %v6583 = vunpack.c.h.bf16 %v6580
      %v6584 = vunpack.c.l.bf16 %v6581
      %v6585 = vunpack.c.h.bf16 %v6581
      %v6586 = vld [vmem:[%s4] sm:$0xff]
      %6588 = vset.pattern.permute.xlu0 0
      %6589 = vperm.xlu0 %6588, %v6586
      %v6590 = vpop.permute.xlu0 %6589
      %v6592 = vadd.f32 %v6576, %v6590
      %v6593 = vadd.f32 %v6577, %v6590
      %v6594 = vadd.f32 %v6578, %v6590
      %v6595 = vadd.f32 %v6579, %v6590
      %6600 = vrot.lane.b32.xlu0 %v6582, 17
      %v6601 = vpop.permute.xlu0 %6600
      %6602 = vrot.lane.b32.xlu0 %v6583, 17
      %v6603 = vpop.permute.xlu0 %6602
      %6604 = vrot.lane.b32.xlu0 %v6584, 17
      %v6605 = vpop.permute.xlu0 %6604
      %6606 = vrot.lane.b32.xlu0 %v6585, 17
      %v6607 = vpop.permute.xlu0 %6606
      %vm6608 = vcmask 138240
      %v6609 = vsel %vm6608, %v6601, %v6603
      %v6610 = vsel %vm6608, %v6603, %v6605
      %v6611 = vsel %vm6608, %v6605, %v6607
      %v6616 = vadd.f32 %v6592, %v6609
      %v6617 = vadd.f32 %v6593, %v6610
      %v6618 = vadd.f32 %v6594, %v6611
      %v6619 = vadd.f32 %v6595, %v6607
      %v6620 = vmax.f32 %v6616, 0.0
      %v6621 = vmax.f32 %v6617, 0.0
      %v6622 = vmax.f32 %v6618, 0.0
      %v6623 = vmax.f32 %v6619, 0.0
      %6624 = vst [vmem:[%s251] sm:$0xff] %v6620
      %6625 = vst [vmem:[%s251 + $0x8] sm:$0xff] %v6621
      %6626 = vst [vmem:[%s251 + $0x10] sm:$0xff] %v6622
      %vm6627 = vcmask 130048
      %6628 = vst.msk [vmem:[%s251 + $0x18] sm:$0xff] %vm6627, %v6623
      %p6629 = scmp.lt.s32.totalorder %s17, 1
      %s6630 = scalar_select %p6629, %s17, 1
      %s6631 = smul.addr %s6630, 4
      %s6632 = smul.addr %s6631, 8
      %s6633 = scalar_lea.vmem %s6, %s6632
      // Predicated region
      $region45: #{basic_block_forward.1} parent=43 // pred_check
        %p6634 = pneg %p166
      $region46: #{basic_block_forward.1} parent=43 // pred_check_branch
        %6636 = sbr.rel (%p6634) target = $region48
      $region47: #{basic_block_forward.1} parent=43 // pred_region
        _
      $region48: #{basic_block_forward.1} parent=43 // pred_fallthru
        _
    $region44: #{basic_block_forward.1} parent=5 // pred_fallthru
      _
    %p6637 = scmp.le.s32.totalorder 2, %s12
    // Predicated region
    $region49: #{basic_block_forward.1} parent=5 // pred_check
      %p6638 = pneg %p6637
    $region50: #{basic_block_forward.1} parent=5 // pred_check_branch
      %6640 = sbr.rel (%p6638) target = $region52
    $region51: #{basic_block_forward.1} parent=5 // pred_region
      %s6641 = ssub.s32 %s12, 2
      // Predicated region
      $region53: #{basic_block_forward.1} parent=51 // pred_check
        %p6642 = pneg %p172
      $region54: #{basic_block_forward.1} parent=51 // pred_check_branch
        %6644 = sbr.rel (%p6642) target = $region56
      $region55: #{basic_block_forward.1} parent=51 // pred_region
        %p6645 = scmp.lt.s32.totalorder %s18, 1
        %s6646 = scalar_select %p6645, %s18, 1
        %s6647 = smul.addr %s6646, 4
        %s6648 = smul.addr %s6647, 8
        %s6649 = scalar_lea.vmem %s6, %s6648
      $region56: #{basic_block_forward.1} parent=51 // pred_fallthru
        _
    $region52: #{basic_block_forward.1} parent=5 // pred_fallthru
      _
  $region6: #{basic_block_forward.1} parent=0 // loop_footer
    %s16 = sadd.s32 1, %s12
  $region7: #{basic_block_forward.1} parent=0 // loop_footer_branch
    %11 = sbr.rel target = $region3
  $region8: #{basic_block_forward.1} parent=0 // loop_exit
    _

</llo_original>
